<compile_context>
chip_gen: v5e
topology: v5e:2x2
jax: 0.10.0
libtpu: 0.0.40
codegen_flags: <defaults>
</compile_context>

<pallas_src>
import functools

import jax
import jax.numpy as jnp
from jax.experimental import pallas as pl
from jax.experimental.pallas import tpu as pltpu


def _fused_kernel(xcols_ref, w_init_ref, b_init_ref,
                  w_blk_ref, b_blk_ref, caw1_ref, caw2_ref,
                  wih1_ref, whh1_ref, bb1_ref,
                  wih2_ref, whh2_ref, bb2_ref,
                  hw1_ref, hb1_ref, hw2_ref, hb2_ref, hw3_ref, hb3_ref,
                  out_ref,
                  pad_ref, acc_ref,
                  *, B, N, H, W, F, HL, n_blocks):
    blk = pl.program_id(0)
    BN = B * N
    HW = H * W
    HWBN = HW * BN
    Cr = caw1_ref.shape[-1]

    # ---- block 0: zero the padded buffer once (border stays zero for every
    #      block) and run conv_init (single matmul; im2col done at trace time).
    @pl.when(blk == 0)
    def _():
        pad_ref[...] = jnp.zeros(pad_ref.shape, jnp.float32)
        cin9 = xcols_ref.shape[-1]
        y0 = jnp.dot(xcols_ref[...].reshape(HWBN, cin9), w_init_ref[...],
                     preferred_element_type=jnp.float32) + b_init_ref[...]
        pad_ref[1:H + 1, 1:W + 1, :, :] = y0.reshape(H, W, BN, F)

    # ---- one ACNN block per grid step: conv3x3(pad=1) as 9 accumulating tap
    #      matmuls straight from pad_ref, accumulated in VMEM (acc_ref).
    for ky in range(3):
        for kx in range(3):
            tap = pad_ref[ky:ky + H, kx:kx + W, :, :].reshape(HWBN, F)
            contrib = jnp.dot(tap, w_blk_ref[0, ky * 3 + kx, :, :],
                              preferred_element_type=jnp.float32)
            if ky == 0 and kx == 0:
                acc_ref[...] = contrib + b_blk_ref[0, :, :]   # folded conv+BN bias
            else:
                acc_ref[...] += contrib

    # BatchNorm (eval) folded into weights; ReLU in place.
    acc_ref[...] = jnp.maximum(acc_ref[...], 0.0)

    # ---- channel attention (CBAM): shared MLP on stacked avg/max pools ----
    y3 = acc_ref[...].reshape(HW, BN, F)
    avg = jnp.mean(y3, axis=0)                      # (BN, F)
    mx = jnp.max(y3, axis=0)                        # (BN, F)
    pooled = jnp.concatenate([avg, mx], axis=0)     # (2BN, F)
    hmid = jnp.maximum(
        jnp.dot(pooled, caw1_ref[0, :, :], preferred_element_type=jnp.float32),
        0.0)                                        # (2BN, Cr)
    # Tiny K=Cr second matmul replaced by VPU broadcast-MACs.
    att2 = hmid[:, 0:1] * caw2_ref[0, 0:1, :]
    for r in range(1, Cr):
        att2 = att2 + hmid[:, r:r + 1] * caw2_ref[0, r:r + 1, :]
    att = jax.nn.sigmoid(att2[:BN] + att2[BN:])     # (BN, F)

    # Write the attended activation back into the padded buffer for the next
    # block.  Leading-dim slice -> no sublane-masked stores.  Skipped on the
    # last block (nothing reads it afterwards).
    @pl.when(blk < n_blocks - 1)
    def _():
        pad_ref[1:H + 1, 1:W + 1, :, :] = (
            acc_ref[...].reshape(HW, BN, F) * att[None, :, :]
        ).reshape(H, W, BN, F)

    # ---- last block: spatial mean -> 2-layer BiLSTM -> fc1/fc2/fc3 head ---
    @pl.when(blk == n_blocks - 1)
    def _():
        # mean_{HW}(y * att) == mean_{HW}(y) * att == avg * att (att is
        # spatially constant), so the pooled row is free.
        feat = avg * att                            # (BN, F), rows (b, t)

        # (b, t)-major -> (t, b)-major once so per-step slabs are contiguous.
        seq = jnp.concatenate(
            [feat[b * N + t:b * N + t + 1, :]
             for t in range(N) for b in range(B)], axis=0)   # (N*B, F)

        def gates(g, c):
            i = jax.nn.sigmoid(g[:, 0 * HL:1 * HL])
            f = jax.nn.sigmoid(g[:, 1 * HL:2 * HL])
            gg = jnp.tanh(g[:, 2 * HL:3 * HL])
            o = jax.nn.sigmoid(g[:, 3 * HL:4 * HL])
            c_new = f * c + i * gg
            return o * jnp.tanh(c_new), c_new

        # Bulk input projections (off the serial recurrence chain).
        gx1f = jnp.dot(seq, wih1_ref[0, :, :],
                       preferred_element_type=jnp.float32) + bb1_ref[0, :, :]
        gx1b = jnp.dot(seq, wih1_ref[1, :, :],
                       preferred_element_type=jnp.float32) + bb1_ref[1, :, :]
        whh1f = whh1_ref[0, :, :]
        whh1b = whh1_ref[1, :, :]

        zeros = jnp.zeros((B, HL), jnp.float32)
        hf, cf = zeros, zeros
        hb, cb = zeros, zeros
        out_f = [None] * N
        out_b = [None] * N
        # Layer 1: forward and backward interleaved (independent chains).
        for s in range(N):
            tf, tb = s, N - 1 - s
            gf = gx1f[tf * B:(tf + 1) * B, :] + jnp.dot(
                hf, whh1f, preferred_element_type=jnp.float32)
            gb = gx1b[tb * B:(tb + 1) * B, :] + jnp.dot(
                hb, whh1b, preferred_element_type=jnp.float32)
            hf, cf = gates(gf, cf)
            hb, cb = gates(gb, cb)
            out_f[tf] = hf
            out_b[tb] = hb

        # Layer 2 input [h_fwd | h_bwd]; bulk input projection for forward dir.
        x2 = jnp.concatenate(
            [jnp.concatenate([out_f[t], out_b[t]], axis=1) for t in range(N)],
            axis=0)                                          # (N*B, 2HL)
        gx2f = jnp.dot(x2, wih2_ref[0, :, :],
                       preferred_element_type=jnp.float32) + bb2_ref[0, :, :]
        whh2f = whh2_ref[0, :, :]
        h2, c2 = zeros, zeros
        for t in range(N):
            g = gx2f[t * B:(t + 1) * B, :] + jnp.dot(
                h2, whh2f, preferred_element_type=jnp.float32)
            h2, c2 = gates(g, c2)
        # Head uses lstm_out[:, -1, :]; the reverse direction's output at
        # position N-1 is its FIRST step from zero state -> h @ W_hh == 0.
        g_b2 = jnp.dot(x2[(N - 1) * B:N * B, :], wih2_ref[1, :, :],
                       preferred_element_type=jnp.float32) + bb2_ref[1, :, :]
        h2b, _ = gates(g_b2, zeros)

        feat2 = jnp.concatenate([h2, h2b], axis=1)           # (B, 2HL)

        # fc1 -> fc2 -> fc3 (dropout1/dropout2 are identity in eval mode).
        z1 = jnp.dot(feat2, hw1_ref[...],
                     preferred_element_type=jnp.float32) + hb1_ref[...]
        z2 = jnp.dot(z1, hw2_ref[...],
                     preferred_element_type=jnp.float32) + hb2_ref[...]
        out_ref[...] = jnp.dot(z2, hw3_ref[...],
                               preferred_element_type=jnp.float32) + hb3_ref[...]


def acnn_bilstm_forward(x, params):
    B, N, C, H, W = x.shape
    BN = B * N

    # (B,N,C,H,W) -> (H, W, BN, C): image index on the sublane axis, channels
    # on lanes.  Pad once + trace-time im2col for conv_init (one kernel matmul).
    xh = x.reshape(BN, C, H, W).transpose(2, 3, 0, 1).astype(jnp.float32)
    xp = jnp.pad(xh, ((1, 1), (1, 1), (0, 0), (0, 0)))
    xcols = jnp.concatenate(
        [xp[ky:ky + H, kx:kx + W] for ky in range(3) for kx in range(3)],
        axis=-1)                                             # (H, W, BN, 9C)

    F = params['w_init'].shape[-1]
    HL = params['whh1'].shape[1]
    Cr = params['caw1'].shape[-1]
    n_blocks = params['w_blk'].shape[0]
    fc1 = params['hw1'].shape[-1]
    fc2 = params['hw2'].shape[-1]
    out_dim = params['hw3'].shape[-1]
    cin9 = xcols.shape[-1]

    kernel = functools.partial(_fused_kernel, B=B, N=N, H=H, W=W, F=F, HL=HL,
                               n_blocks=n_blocks)

    def const(shape):                        # resident across the block grid
        return pl.BlockSpec(shape, lambda b, _s=shape: (0,) * len(_s))

    def per_blk(shape):                      # indexed by the block axis
        return pl.BlockSpec((1,) + shape,
                            lambda b, _s=shape: (b,) + (0,) * len(_s))

    return pl.pallas_call(
        kernel,
        out_shape=jax.ShapeDtypeStruct((B, out_dim), jnp.float32),
        grid=(n_blocks,),
        in_specs=[
            const((H, W, BN, cin9)),         # xcols
            const((cin9, F)),                # w_init (im2col layout)
            const((1, F)),                   # b_init
            per_blk((9, F, F)),              # w_blk  (BN folded)
            per_blk((1, F)),                 # b_blk  (BN folded)
            per_blk((F, Cr)),                # channel-attn fc1
            per_blk((Cr, F)),                # channel-attn fc2
            const((2, F, 4 * HL)),           # lstm l1 W_ih (fwd, bwd)
            const((2, HL, 4 * HL)),          # lstm l1 W_hh
            const((2, 1, 4 * HL)),           # lstm l1 bias (b_ih + b_hh)
            const((2, 2 * HL, 4 * HL)),      # lstm l2 W_ih
            const((2, HL, 4 * HL)),          # lstm l2 W_hh
            const((2, 1, 4 * HL)),           # lstm l2 bias
            const((2 * HL, fc1)),            # fc1 W
            const((1, fc1)),                 # fc1 b
            const((fc1, fc2)),               # fc2 W
            const((1, fc2)),                 # fc2 b
            const((fc2, out_dim)),           # fc3 W
            const((1, out_dim)),             # fc3 b
        ],
        out_specs=const((B, out_dim)),
        scratch_shapes=[
            pltpu.VMEM((H + 2, W + 2, BN, F), jnp.float32),  # padded activation
            pltpu.VMEM((H * W * BN, F), jnp.float32),        # conv accumulator
        ],
        compiler_params=pltpu.CompilerParams(
            dimension_semantics=("arbitrary",),
            vmem_limit_bytes=32 * 1024 * 1024),
    )(xcols, params['w_init'], params['b_init'],
      params['w_blk'], params['b_blk'], params['caw1'], params['caw2'],
      params['wih1'], params['whh1'], params['bb1'],
      params['wih2'], params['whh2'], params['bb2'],
      params['hw1'], params['hb1'], params['hw2'], params['hb2'],
      params['hw3'], params['hb3'])


# ==========================================================================
# Deterministic synthetic parameters with BN-into-conv folding and LSTM
# biases folded (b_ih + b_hh).
# ==========================================================================
def init_params(key, Cin, F, HL, *, n_blocks=7, ratio=16,
                fc1_dim=128, fc2_dim=64, out_dim=2, eps=1e-5):
    Cr = max(F // ratio, 1)

    def nxt():
        nonlocal key
        key, sub = jax.random.split(key)
        return sub

    def rnd(shape, scale=0.1):
        return (scale * jax.random.normal(nxt(), shape)).astype(jnp.float32)

    p = {}
    # conv_init as an im2col matmul; row order (ky, kx, cin) matches the
    # wrapper's trace-time im2col.
    p['w_init'] = rnd((9 * Cin, F))
    p['b_init'] = rnd((1, F))

    w_blk, b_blk, caw1, caw2 = [], [], [], []
    for _ in range(n_blocks):
        w = rnd((3, 3, F, F))
        b = rnd((1, F))
        gamma = 1.0 + rnd((F,))
        beta = rnd((F,))
        mean = rnd((F,))
        var = 1.0 + jnp.abs(rnd((F,)))
        # Fold BatchNorm2d (eval, running stats) + conv bias into the conv:
        #   w' = w * scale, b' = (b - mean) * scale + beta
        scale = gamma * jax.lax.rsqrt(var + eps)
        w_blk.append((w * scale).reshape(9, F, F))
        b_blk.append(((b - mean) * scale + beta).reshape(1, F))
        caw1.append(rnd((F, Cr)))
        caw2.append(rnd((Cr, F)))
    p['w_blk'] = jnp.stack(w_blk)      # (n_blocks, 9, F, F)
    p['b_blk'] = jnp.stack(b_blk)      # (n_blocks, 1, F)
    p['caw1'] = jnp.stack(caw1)        # (n_blocks, F, Cr)
    p['caw2'] = jnp.stack(caw2)        # (n_blocks, Cr, F)

    # BiLSTM weights kept as separate W_ih / W_hh (so the input projection
    # can be hoisted out of the recurrence); biases folded; dir 0=fwd, 1=bwd;
    # gate order i, f, g, o (PyTorch).
    p['wih1'] = jnp.stack([rnd((F, 4 * HL)) for _ in range(2)])
    p['whh1'] = jnp.stack([rnd((HL, 4 * HL)) for _ in range(2)])
    p['bb1'] = jnp.stack([rnd((1, 4 * HL)) for _ in range(2)])
    p['wih2'] = jnp.stack([rnd((2 * HL, 4 * HL)) for _ in range(2)])
    p['whh2'] = jnp.stack([rnd((HL, 4 * HL)) for _ in range(2)])
    p['bb2'] = jnp.stack([rnd((1, 4 * HL)) for _ in range(2)])

    p['hw1'] = rnd((2 * HL, fc1_dim)); p['hb1'] = rnd((1, fc1_dim))
    p['hw2'] = rnd((fc1_dim, fc2_dim)); p['hb2'] = rnd((1, fc2_dim))
    p['hw3'] = rnd((fc2_dim, out_dim)); p['hb3'] = rnd((1, out_dim))
    return p, key


if __name__ == "__main__":
    B, N = 2, 4            # batch, num_windows
    C_in, H, W = 4, 8, 8   # per-window image (input_channels=4 here)
    F = 32                 # cnn_filters  (ratio=16 -> reduced channels = 2)
    HL = 32                # lstm_hidden_size (4*HL = 128 lane-full gates)

    key = jax.random.PRNGKey(0)
    params, key = init_params(key, C_in, F, HL)
    key, xk = jax.random.split(key)
    x = jax.random.normal(xk, (B, N, C_in, H, W), dtype=jnp.float32)

    fwd = jax.jit(acnn_bilstm_forward)
    out = jax.block_until_ready(fwd(x, params))
    assert out.shape == (B, 2), out.shape
    assert bool(jnp.all(jnp.isfinite(out)))
    print("KERNEL_OK")
</pallas_src>

<mosaic_0001>
module attributes {stable_mosaic.version = 11 : i64} {
  func.func @_fused_kernel(%arg0: i32, %arg1: memref<8x8x8x36xf32, #tpu.memory_space<vmem>>, %arg2: memref<36x32xf32, #tpu.memory_space<vmem>>, %arg3: memref<1x32xf32, #tpu.memory_space<vmem>>, %arg4: memref<1x9x32x32xf32, #tpu.memory_space<vmem>>, %arg5: memref<1x1x32xf32, #tpu.memory_space<vmem>>, %arg6: memref<1x32x2xf32, #tpu.memory_space<vmem>>, %arg7: memref<1x2x32xf32, #tpu.memory_space<vmem>>, %arg8: memref<2x32x128xf32, #tpu.memory_space<vmem>>, %arg9: memref<2x32x128xf32, #tpu.memory_space<vmem>>, %arg10: memref<2x1x128xf32, #tpu.memory_space<vmem>>, %arg11: memref<2x64x128xf32, #tpu.memory_space<vmem>>, %arg12: memref<2x32x128xf32, #tpu.memory_space<vmem>>, %arg13: memref<2x1x128xf32, #tpu.memory_space<vmem>>, %arg14: memref<64x128xf32, #tpu.memory_space<vmem>>, %arg15: memref<1x128xf32, #tpu.memory_space<vmem>>, %arg16: memref<128x64xf32, #tpu.memory_space<vmem>>, %arg17: memref<1x64xf32, #tpu.memory_space<vmem>>, %arg18: memref<64x2xf32, #tpu.memory_space<vmem>>, %arg19: memref<1x2xf32, #tpu.memory_space<vmem>>, %arg20: memref<2x2xf32, #tpu.memory_space<vmem>>, %arg21: memref<10x10x8x32xf32, #tpu.memory_space<vmem>>, %arg22: memref<512x32xf32, #tpu.memory_space<vmem>>) attributes {dimension_semantics = [#tpu.dimension_semantics<arbitrary>], iteration_bounds = array<i64: 7>, scalar_prefetch = 0 : i64, scratch_operands = 2 : i64, tpu.core_type = #tpu.core_type<tc>, window_params = [{pipeline_mode = #tpu.pipeline_mode<synchronous>, transform_indices = @transform_0, window_bounds = array<i64: 8, 8, 8, 36>}, {pipeline_mode = #tpu.pipeline_mode<synchronous>, transform_indices = @transform_1, window_bounds = array<i64: 36, 32>}, {pipeline_mode = #tpu.pipeline_mode<synchronous>, transform_indices = @transform_2, window_bounds = array<i64: 1, 32>}, {transform_indices = @transform_3, window_bounds = array<i64: 1, 9, 32, 32>}, {transform_indices = @transform_4, window_bounds = array<i64: 1, 1, 32>}, {transform_indices = @transform_5, window_bounds = array<i64: 1, 32, 2>}, {transform_indices = @transform_6, window_bounds = array<i64: 1, 2, 32>}, {pipeline_mode = #tpu.pipeline_mode<synchronous>, transform_indices = @transform_7, window_bounds = array<i64: 2, 32, 128>}, {pipeline_mode = #tpu.pipeline_mode<synchronous>, transform_indices = @transform_8, window_bounds = array<i64: 2, 32, 128>}, {pipeline_mode = #tpu.pipeline_mode<synchronous>, transform_indices = @transform_9, window_bounds = array<i64: 2, 1, 128>}, {pipeline_mode = #tpu.pipeline_mode<synchronous>, transform_indices = @transform_10, window_bounds = array<i64: 2, 64, 128>}, {pipeline_mode = #tpu.pipeline_mode<synchronous>, transform_indices = @transform_11, window_bounds = array<i64: 2, 32, 128>}, {pipeline_mode = #tpu.pipeline_mode<synchronous>, transform_indices = @transform_12, window_bounds = array<i64: 2, 1, 128>}, {pipeline_mode = #tpu.pipeline_mode<synchronous>, transform_indices = @transform_13, window_bounds = array<i64: 64, 128>}, {pipeline_mode = #tpu.pipeline_mode<synchronous>, transform_indices = @transform_14, window_bounds = array<i64: 1, 128>}, {pipeline_mode = #tpu.pipeline_mode<synchronous>, transform_indices = @transform_15, window_bounds = array<i64: 128, 64>}, {pipeline_mode = #tpu.pipeline_mode<synchronous>, transform_indices = @transform_16, window_bounds = array<i64: 1, 64>}, {pipeline_mode = #tpu.pipeline_mode<synchronous>, transform_indices = @transform_17, window_bounds = array<i64: 64, 2>}, {pipeline_mode = #tpu.pipeline_mode<synchronous>, transform_indices = @transform_18, window_bounds = array<i64: 1, 2>}, {pipeline_mode = #tpu.pipeline_mode<synchronous>, transform_indices = @transform_19, window_bounds = array<i64: 2, 2>}]} {
    %c0_i32 = arith.constant 0 : i32
    %0 = arith.cmpi eq, %arg0, %c0_i32 : i32
    %1 = arith.extui %0 : i1 to i32
    %c0_i32_0 = arith.constant 0 : i32
    %2 = arith.cmpi ne, %1, %c0_i32_0 : i32
    scf.if %2 {
      %cst_134 = arith.constant 0.000000e+00 : f32
      %120 = vector.broadcast %cst_134 : f32 to vector<10x10x8x32xf32>
      %c0_135 = arith.constant 0 : index
      %c0_136 = arith.constant 0 : index
      %c0_137 = arith.constant 0 : index
      %c0_138 = arith.constant 0 : index
      %121 = vector.load %arg21[%c0_135, %c0_136, %c0_137, %c0_138] : memref<10x10x8x32xf32, #tpu.memory_space<vmem>>, vector<10x10x8x32xf32>
      tpu.vector_store %arg21[%c0_135, %c0_136, %c0_137, %c0_138], %120 {strides = array<i32>} : memref<10x10x8x32xf32, #tpu.memory_space<vmem>>, vector<10x10x8x32xf32>,
      %c0_139 = arith.constant 0 : index
      %c0_140 = arith.constant 0 : index
      %c0_141 = arith.constant 0 : index
      %c0_142 = arith.constant 0 : index
      %122 = vector.load %arg1[%c0_139, %c0_140, %c0_141, %c0_142] : memref<8x8x8x36xf32, #tpu.memory_space<vmem>>, vector<8x8x8x36xf32>
      %123 = vector.shape_cast %122 : vector<8x8x8x36xf32> to vector<512x36xf32>
      %c0_143 = arith.constant 0 : index
      %c0_144 = arith.constant 0 : index
      %124 = vector.load %arg2[%c0_143, %c0_144] : memref<36x32xf32, #tpu.memory_space<vmem>>, vector<36x32xf32>
      %cst_145 = arith.constant dense<0.000000e+00> : vector<512x32xf32>
      %125 = tpu.matmul %123, %124, %cst_145 {dimension_numbers = #tpu.dot_dimension_numbers<[1], [0], [0], [1], [0, 0, 1, 1], [], []>} : vector<512x36xf32>, vector<36x32xf32>, vector<512x32xf32> -> vector<512x32xf32>
      %c0_146 = arith.constant 0 : index
      %c0_147 = arith.constant 0 : index
      %126 = vector.load %arg3[%c0_146, %c0_147] : memref<1x32xf32, #tpu.memory_space<vmem>>, vector<1x32xf32>
      %127 = vector.broadcast %126 : vector<1x32xf32> to vector<512x32xf32>
      %128 = arith.addf %125, %127 : vector<512x32xf32>
      %129 = vector.shape_cast %128 : vector<512x32xf32> to vector<8x8x8x32xf32>
      %c1_148 = arith.constant 1 : index
      %c1_149 = arith.constant 1 : index
      %c0_150 = arith.constant 0 : index
      %c0_151 = arith.constant 0 : index
      %130 = vector.load %arg21[%c1_148, %c1_149, %c0_150, %c0_151] : memref<10x10x8x32xf32, #tpu.memory_space<vmem>>, vector<8x8x8x32xf32>
      tpu.vector_store %arg21[%c1_148, %c1_149, %c0_150, %c0_151], %129 {strides = array<i32>} : memref<10x10x8x32xf32, #tpu.memory_space<vmem>>, vector<8x8x8x32xf32>,
    } else {
    }
    %c0 = arith.constant 0 : index
    %c0_1 = arith.constant 0 : index
    %c0_2 = arith.constant 0 : index
    %c0_3 = arith.constant 0 : index
    %3 = vector.load %arg21[%c0, %c0_1, %c0_2, %c0_3] : memref<10x10x8x32xf32, #tpu.memory_space<vmem>>, vector<8x8x8x32xf32>
    %4 = vector.shape_cast %3 : vector<8x8x8x32xf32> to vector<512x32xf32>
    %c0_4 = arith.constant 0 : index
    %c0_5 = arith.constant 0 : index
    %c0_6 = arith.constant 0 : index
    %c0_7 = arith.constant 0 : index
    %5 = vector.load %arg4[%c0_4, %c0_5, %c0_6, %c0_7] : memref<1x9x32x32xf32, #tpu.memory_space<vmem>>, vector<1x1x32x32xf32>
    %6 = vector.shape_cast %5 : vector<1x1x32x32xf32> to vector<32x32xf32>
    %cst = arith.constant dense<0.000000e+00> : vector<512x32xf32>
    %7 = tpu.matmul %4, %6, %cst {dimension_numbers = #tpu.dot_dimension_numbers<[1], [0], [0], [1], [0, 0, 1, 1], [], []>} : vector<512x32xf32>, vector<32x32xf32>, vector<512x32xf32> -> vector<512x32xf32>
    %c0_8 = arith.constant 0 : index
    %c0_9 = arith.constant 0 : index
    %c0_10 = arith.constant 0 : index
    %8 = vector.load %arg5[%c0_8, %c0_9, %c0_10] : memref<1x1x32xf32, #tpu.memory_space<vmem>>, vector<1x1x32xf32>
    %9 = vector.shape_cast %8 : vector<1x1x32xf32> to vector<1x32xf32>
    %10 = vector.broadcast %9 : vector<1x32xf32> to vector<512x32xf32>
    %11 = arith.addf %7, %10 : vector<512x32xf32>
    %c0_11 = arith.constant 0 : index
    %c0_12 = arith.constant 0 : index
    %12 = vector.load %arg22[%c0_11, %c0_12] : memref<512x32xf32, #tpu.memory_space<vmem>>, vector<512x32xf32>
    tpu.vector_store %arg22[%c0_11, %c0_12], %11 {strides = array<i32>} : memref<512x32xf32, #tpu.memory_space<vmem>>, vector<512x32xf32>,
    %c0_13 = arith.constant 0 : index
    %c1 = arith.constant 1 : index
    %c0_14 = arith.constant 0 : index
    %c0_15 = arith.constant 0 : index
    %13 = vector.load %arg21[%c0_13, %c1, %c0_14, %c0_15] : memref<10x10x8x32xf32, #tpu.memory_space<vmem>>, vector<8x8x8x32xf32>
    %14 = vector.shape_cast %13 : vector<8x8x8x32xf32> to vector<512x32xf32>
    %c0_16 = arith.constant 0 : index
    %c1_17 = arith.constant 1 : index
    %c0_18 = arith.constant 0 : index
    %c0_19 = arith.constant 0 : index
    %15 = vector.load %arg4[%c0_16, %c1_17, %c0_18, %c0_19] : memref<1x9x32x32xf32, #tpu.memory_space<vmem>>, vector<1x1x32x32xf32>
    %16 = vector.shape_cast %15 : vector<1x1x32x32xf32> to vector<32x32xf32>
    %cst_20 = arith.constant dense<0.000000e+00> : vector<512x32xf32>
    %17 = tpu.matmul %14, %16, %cst_20 {dimension_numbers = #tpu.dot_dimension_numbers<[1], [0], [0], [1], [0, 0, 1, 1], [], []>} : vector<512x32xf32>, vector<32x32xf32>, vector<512x32xf32> -> vector<512x32xf32>
    %c0_21 = arith.constant 0 : index
    %c0_22 = arith.constant 0 : index
    %18 = vector.load %arg22[%c0_21, %c0_22] : memref<512x32xf32, #tpu.memory_space<vmem>>, vector<512x32xf32>
    %19 = arith.addf %18, %17 : vector<512x32xf32>
    %c0_23 = arith.constant 0 : index
    %c0_24 = arith.constant 0 : index
    %20 = vector.load %arg22[%c0_23, %c0_24] : memref<512x32xf32, #tpu.memory_space<vmem>>, vector<512x32xf32>
    tpu.vector_store %arg22[%c0_23, %c0_24], %19 {strides = array<i32>} : memref<512x32xf32, #tpu.memory_space<vmem>>, vector<512x32xf32>,
    %c0_25 = arith.constant 0 : index
    %c2 = arith.constant 2 : index
    %c0_26 = arith.constant 0 : index
    %c0_27 = arith.constant 0 : index
    %21 = vector.load %arg21[%c0_25, %c2, %c0_26, %c0_27] : memref<10x10x8x32xf32, #tpu.memory_space<vmem>>, vector<8x8x8x32xf32>
    %22 = vector.shape_cast %21 : vector<8x8x8x32xf32> to vector<512x32xf32>
    %c0_28 = arith.constant 0 : index
    %c2_29 = arith.constant 2 : index
    %c0_30 = arith.constant 0 : index
    %c0_31 = arith.constant 0 : index
    %23 = vector.load %arg4[%c0_28, %c2_29, %c0_30, %c0_31] : memref<1x9x32x32xf32, #tpu.memory_space<vmem>>, vector<1x1x32x32xf32>
    %24 = vector.shape_cast %23 : vector<1x1x32x32xf32> to vector<32x32xf32>
    %cst_32 = arith.constant dense<0.000000e+00> : vector<512x32xf32>
    %25 = tpu.matmul %22, %24, %cst_32 {dimension_numbers = #tpu.dot_dimension_numbers<[1], [0], [0], [1], [0, 0, 1, 1], [], []>} : vector<512x32xf32>, vector<32x32xf32>, vector<512x32xf32> -> vector<512x32xf32>
    %c0_33 = arith.constant 0 : index
    %c0_34 = arith.constant 0 : index
    %26 = vector.load %arg22[%c0_33, %c0_34] : memref<512x32xf32, #tpu.memory_space<vmem>>, vector<512x32xf32>
    %27 = arith.addf %26, %25 : vector<512x32xf32>
    %c0_35 = arith.constant 0 : index
    %c0_36 = arith.constant 0 : index
    %28 = vector.load %arg22[%c0_35, %c0_36] : memref<512x32xf32, #tpu.memory_space<vmem>>, vector<512x32xf32>
    tpu.vector_store %arg22[%c0_35, %c0_36], %27 {strides = array<i32>} : memref<512x32xf32, #tpu.memory_space<vmem>>, vector<512x32xf32>,
    %c1_37 = arith.constant 1 : index
    %c0_38 = arith.constant 0 : index
    %c0_39 = arith.constant 0 : index
    %c0_40 = arith.constant 0 : index
    %29 = vector.load %arg21[%c1_37, %c0_38, %c0_39, %c0_40] : memref<10x10x8x32xf32, #tpu.memory_space<vmem>>, vector<8x8x8x32xf32>
    %30 = vector.shape_cast %29 : vector<8x8x8x32xf32> to vector<512x32xf32>
    %c0_41 = arith.constant 0 : index
    %c3 = arith.constant 3 : index
    %c0_42 = arith.constant 0 : index
    %c0_43 = arith.constant 0 : index
    %31 = vector.load %arg4[%c0_41, %c3, %c0_42, %c0_43] : memref<1x9x32x32xf32, #tpu.memory_space<vmem>>, vector<1x1x32x32xf32>
    %32 = vector.shape_cast %31 : vector<1x1x32x32xf32> to vector<32x32xf32>
    %cst_44 = arith.constant dense<0.000000e+00> : vector<512x32xf32>
    %33 = tpu.matmul %30, %32, %cst_44 {dimension_numbers = #tpu.dot_dimension_numbers<[1], [0], [0], [1], [0, 0, 1, 1], [], []>} : vector<512x32xf32>, vector<32x32xf32>, vector<512x32xf32> -> vector<512x32xf32>
    %c0_45 = arith.constant 0 : index
    %c0_46 = arith.constant 0 : index
    %34 = vector.load %arg22[%c0_45, %c0_46] : memref<512x32xf32, #tpu.memory_space<vmem>>, vector<512x32xf32>
    %35 = arith.addf %34, %33 : vector<512x32xf32>
    %c0_47 = arith.constant 0 : index
    %c0_48 = arith.constant 0 : index
    %36 = vector.load %arg22[%c0_47, %c0_48] : memref<512x32xf32, #tpu.memory_space<vmem>>, vector<512x32xf32>
    tpu.vector_store %arg22[%c0_47, %c0_48], %35 {strides = array<i32>} : memref<512x32xf32, #tpu.memory_space<vmem>>, vector<512x32xf32>,
    %c1_49 = arith.constant 1 : index
    %c1_50 = arith.constant 1 : index
    %c0_51 = arith.constant 0 : index
    %c0_52 = arith.constant 0 : index
    %37 = vector.load %arg21[%c1_49, %c1_50, %c0_51, %c0_52] : memref<10x10x8x32xf32, #tpu.memory_space<vmem>>, vector<8x8x8x32xf32>
    %38 = vector.shape_cast %37 : vector<8x8x8x32xf32> to vector<512x32xf32>
    %c0_53 = arith.constant 0 : index
    %c4 = arith.constant 4 : index
    %c0_54 = arith.constant 0 : index
    %c0_55 = arith.constant 0 : index
    %39 = vector.load %arg4[%c0_53, %c4, %c0_54, %c0_55] : memref<1x9x32x32xf32, #tpu.memory_space<vmem>>, vector<1x1x32x32xf32>
    %40 = vector.shape_cast %39 : vector<1x1x32x32xf32> to vector<32x32xf32>
    %cst_56 = arith.constant dense<0.000000e+00> : vector<512x32xf32>
    %41 = tpu.matmul %38, %40, %cst_56 {dimension_numbers = #tpu.dot_dimension_numbers<[1], [0], [0], [1], [0, 0, 1, 1], [], []>} : vector<512x32xf32>, vector<32x32xf32>, vector<512x32xf32> -> vector<512x32xf32>
    %c0_57 = arith.constant 0 : index
    %c0_58 = arith.constant 0 : index
    %42 = vector.load %arg22[%c0_57, %c0_58] : memref<512x32xf32, #tpu.memory_space<vmem>>, vector<512x32xf32>
    %43 = arith.addf %42, %41 : vector<512x32xf32>
    %c0_59 = arith.constant 0 : index
    %c0_60 = arith.constant 0 : index
    %44 = vector.load %arg22[%c0_59, %c0_60] : memref<512x32xf32, #tpu.memory_space<vmem>>, vector<512x32xf32>
    tpu.vector_store %arg22[%c0_59, %c0_60], %43 {strides = array<i32>} : memref<512x32xf32, #tpu.memory_space<vmem>>, vector<512x32xf32>,
    %c1_61 = arith.constant 1 : index
    %c2_62 = arith.constant 2 : index
    %c0_63 = arith.constant 0 : index
    %c0_64 = arith.constant 0 : index
    %45 = vector.load %arg21[%c1_61, %c2_62, %c0_63, %c0_64] : memref<10x10x8x32xf32, #tpu.memory_space<vmem>>, vector<8x8x8x32xf32>
    %46 = vector.shape_cast %45 : vector<8x8x8x32xf32> to vector<512x32xf32>
    %c0_65 = arith.constant 0 : index
    %c5 = arith.constant 5 : index
    %c0_66 = arith.constant 0 : index
    %c0_67 = arith.constant 0 : index
    %47 = vector.load %arg4[%c0_65, %c5, %c0_66, %c0_67] : memref<1x9x32x32xf32, #tpu.memory_space<vmem>>, vector<1x1x32x32xf32>
    %48 = vector.shape_cast %47 : vector<1x1x32x32xf32> to vector<32x32xf32>
    %cst_68 = arith.constant dense<0.000000e+00> : vector<512x32xf32>
    %49 = tpu.matmul %46, %48, %cst_68 {dimension_numbers = #tpu.dot_dimension_numbers<[1], [0], [0], [1], [0, 0, 1, 1], [], []>} : vector<512x32xf32>, vector<32x32xf32>, vector<512x32xf32> -> vector<512x32xf32>
    %c0_69 = arith.constant 0 : index
    %c0_70 = arith.constant 0 : index
    %50 = vector.load %arg22[%c0_69, %c0_70] : memref<512x32xf32, #tpu.memory_space<vmem>>, vector<512x32xf32>
    %51 = arith.addf %50, %49 : vector<512x32xf32>
    %c0_71 = arith.constant 0 : index
    %c0_72 = arith.constant 0 : index
    %52 = vector.load %arg22[%c0_71, %c0_72] : memref<512x32xf32, #tpu.memory_space<vmem>>, vector<512x32xf32>
    tpu.vector_store %arg22[%c0_71, %c0_72], %51 {strides = array<i32>} : memref<512x32xf32, #tpu.memory_space<vmem>>, vector<512x32xf32>,
    %c2_73 = arith.constant 2 : index
    %c0_74 = arith.constant 0 : index
    %c0_75 = arith.constant 0 : index
    %c0_76 = arith.constant 0 : index
    %53 = vector.load %arg21[%c2_73, %c0_74, %c0_75, %c0_76] : memref<10x10x8x32xf32, #tpu.memory_space<vmem>>, vector<8x8x8x32xf32>
    %54 = vector.shape_cast %53 : vector<8x8x8x32xf32> to vector<512x32xf32>
    %c0_77 = arith.constant 0 : index
    %c6 = arith.constant 6 : index
    %c0_78 = arith.constant 0 : index
    %c0_79 = arith.constant 0 : index
    %55 = vector.load %arg4[%c0_77, %c6, %c0_78, %c0_79] : memref<1x9x32x32xf32, #tpu.memory_space<vmem>>, vector<1x1x32x32xf32>
    %56 = vector.shape_cast %55 : vector<1x1x32x32xf32> to vector<32x32xf32>
    %cst_80 = arith.constant dense<0.000000e+00> : vector<512x32xf32>
    %57 = tpu.matmul %54, %56, %cst_80 {dimension_numbers = #tpu.dot_dimension_numbers<[1], [0], [0], [1], [0, 0, 1, 1], [], []>} : vector<512x32xf32>, vector<32x32xf32>, vector<512x32xf32> -> vector<512x32xf32>
    %c0_81 = arith.constant 0 : index
    %c0_82 = arith.constant 0 : index
    %58 = vector.load %arg22[%c0_81, %c0_82] : memref<512x32xf32, #tpu.memory_space<vmem>>, vector<512x32xf32>
    %59 = arith.addf %58, %57 : vector<512x32xf32>
    %c0_83 = arith.constant 0 : index
    %c0_84 = arith.constant 0 : index
    %60 = vector.load %arg22[%c0_83, %c0_84] : memref<512x32xf32, #tpu.memory_space<vmem>>, vector<512x32xf32>
    tpu.vector_store %arg22[%c0_83, %c0_84], %59 {strides = array<i32>} : memref<512x32xf32, #tpu.memory_space<vmem>>, vector<512x32xf32>,
    %c2_85 = arith.constant 2 : index
    %c1_86 = arith.constant 1 : index
    %c0_87 = arith.constant 0 : index
    %c0_88 = arith.constant 0 : index
    %61 = vector.load %arg21[%c2_85, %c1_86, %c0_87, %c0_88] : memref<10x10x8x32xf32, #tpu.memory_space<vmem>>, vector<8x8x8x32xf32>
    %62 = vector.shape_cast %61 : vector<8x8x8x32xf32> to vector<512x32xf32>
    %c0_89 = arith.constant 0 : index
    %c7 = arith.constant 7 : index
    %c0_90 = arith.constant 0 : index
    %c0_91 = arith.constant 0 : index
    %63 = vector.load %arg4[%c0_89, %c7, %c0_90, %c0_91] : memref<1x9x32x32xf32, #tpu.memory_space<vmem>>, vector<1x1x32x32xf32>
    %64 = vector.shape_cast %63 : vector<1x1x32x32xf32> to vector<32x32xf32>
    %cst_92 = arith.constant dense<0.000000e+00> : vector<512x32xf32>
    %65 = tpu.matmul %62, %64, %cst_92 {dimension_numbers = #tpu.dot_dimension_numbers<[1], [0], [0], [1], [0, 0, 1, 1], [], []>} : vector<512x32xf32>, vector<32x32xf32>, vector<512x32xf32> -> vector<512x32xf32>
    %c0_93 = arith.constant 0 : index
    %c0_94 = arith.constant 0 : index
    %66 = vector.load %arg22[%c0_93, %c0_94] : memref<512x32xf32, #tpu.memory_space<vmem>>, vector<512x32xf32>
    %67 = arith.addf %66, %65 : vector<512x32xf32>
    %c0_95 = arith.constant 0 : index
    %c0_96 = arith.constant 0 : index
    %68 = vector.load %arg22[%c0_95, %c0_96] : memref<512x32xf32, #tpu.memory_space<vmem>>, vector<512x32xf32>
    tpu.vector_store %arg22[%c0_95, %c0_96], %67 {strides = array<i32>} : memref<512x32xf32, #tpu.memory_space<vmem>>, vector<512x32xf32>,
    %c2_97 = arith.constant 2 : index
    %c2_98 = arith.constant 2 : index
    %c0_99 = arith.constant 0 : index
    %c0_100 = arith.constant 0 : index
    %69 = vector.load %arg21[%c2_97, %c2_98, %c0_99, %c0_100] : memref<10x10x8x32xf32, #tpu.memory_space<vmem>>, vector<8x8x8x32xf32>
    %70 = vector.shape_cast %69 : vector<8x8x8x32xf32> to vector<512x32xf32>
    %c0_101 = arith.constant 0 : index
    %c8 = arith.constant 8 : index
    %c0_102 = arith.constant 0 : index
    %c0_103 = arith.constant 0 : index
    %71 = vector.load %arg4[%c0_101, %c8, %c0_102, %c0_103] : memref<1x9x32x32xf32, #tpu.memory_space<vmem>>, vector<1x1x32x32xf32>
    %72 = vector.shape_cast %71 : vector<1x1x32x32xf32> to vector<32x32xf32>
    %cst_104 = arith.constant dense<0.000000e+00> : vector<512x32xf32>
    %73 = tpu.matmul %70, %72, %cst_104 {dimension_numbers = #tpu.dot_dimension_numbers<[1], [0], [0], [1], [0, 0, 1, 1], [], []>} : vector<512x32xf32>, vector<32x32xf32>, vector<512x32xf32> -> vector<512x32xf32>
    %c0_105 = arith.constant 0 : index
    %c0_106 = arith.constant 0 : index
    %74 = vector.load %arg22[%c0_105, %c0_106] : memref<512x32xf32, #tpu.memory_space<vmem>>, vector<512x32xf32>
    %75 = arith.addf %74, %73 : vector<512x32xf32>
    %c0_107 = arith.constant 0 : index
    %c0_108 = arith.constant 0 : index
    %76 = vector.load %arg22[%c0_107, %c0_108] : memref<512x32xf32, #tpu.memory_space<vmem>>, vector<512x32xf32>
    tpu.vector_store %arg22[%c0_107, %c0_108], %75 {strides = array<i32>} : memref<512x32xf32, #tpu.memory_space<vmem>>, vector<512x32xf32>,
    %c0_109 = arith.constant 0 : index
    %c0_110 = arith.constant 0 : index
    %77 = vector.load %arg22[%c0_109, %c0_110] : memref<512x32xf32, #tpu.memory_space<vmem>>, vector<512x32xf32>
    %cst_111 = arith.constant 0.000000e+00 : f32
    %78 = vector.broadcast %cst_111 : f32 to vector<512x32xf32>
    %79 = arith.maximumf %77, %78 : vector<512x32xf32>
    %c0_112 = arith.constant 0 : index
    %c0_113 = arith.constant 0 : index
    %80 = vector.load %arg22[%c0_112, %c0_113] : memref<512x32xf32, #tpu.memory_space<vmem>>, vector<512x32xf32>
    tpu.vector_store %arg22[%c0_112, %c0_113], %79 {strides = array<i32>} : memref<512x32xf32, #tpu.memory_space<vmem>>, vector<512x32xf32>,
    %c0_114 = arith.constant 0 : index
    %c0_115 = arith.constant 0 : index
    %81 = vector.load %arg22[%c0_114, %c0_115] : memref<512x32xf32, #tpu.memory_space<vmem>>, vector<512x32xf32>
    %82 = vector.shape_cast %81 : vector<512x32xf32> to vector<64x8x32xf32>
    %cst_116 = arith.constant dense<0.000000e+00> : vector<8x32xf32>
    %83 = vector.multi_reduction <add>, %82, %cst_116 [0] : vector<64x8x32xf32> to vector<8x32xf32>
    %cst_117 = arith.constant 6.400000e+01 : f32
    %84 = vector.broadcast %cst_117 : f32 to vector<8x32xf32>
    %85 = arith.divf %83, %84 : vector<8x32xf32>
    %cst_118 = arith.constant dense<0xFF800000> : vector<8x32xf32>
    %86 = vector.multi_reduction <maximumf>, %82, %cst_118 [0] : vector<64x8x32xf32> to vector<8x32xf32>
    %87 = tpu.concatenate %85, %86 in 0 : vector<8x32xf32>, vector<8x32xf32> -> vector<16x32xf32>
    %c0_119 = arith.constant 0 : index
    %c0_120 = arith.constant 0 : index
    %c0_121 = arith.constant 0 : index
    %88 = vector.load %arg6[%c0_119, %c0_120, %c0_121] : memref<1x32x2xf32, #tpu.memory_space<vmem>>, vector<1x32x2xf32>
    %89 = vector.shape_cast %88 : vector<1x32x2xf32> to vector<32x2xf32>
    %cst_122 = arith.constant dense<0.000000e+00> : vector<16x2xf32>
    %90 = tpu.matmul %87, %89, %cst_122 {dimension_numbers = #tpu.dot_dimension_numbers<[1], [0], [0], [1], [0, 0, 1, 1], [], []>} : vector<16x32xf32>, vector<32x2xf32>, vector<16x2xf32> -> vector<16x2xf32>
    %cst_123 = arith.constant 0.000000e+00 : f32
    %91 = vector.broadcast %cst_123 : f32 to vector<16x2xf32>
    %92 = arith.maximumf %90, %91 : vector<16x2xf32>
    %93 = vector.extract_strided_slice %92 {offsets = [0, 0], sizes = [16, 1], strides = [1, 1]} : vector<16x2xf32> to vector<16x1xf32>
    %c0_124 = arith.constant 0 : index
    %c0_125 = arith.constant 0 : index
    %c0_126 = arith.constant 0 : index
    %94 = vector.load %arg7[%c0_124, %c0_125, %c0_126] : memref<1x2x32xf32, #tpu.memory_space<vmem>>, vector<1x1x32xf32>
    %95 = vector.shape_cast %94 : vector<1x1x32xf32> to vector<1x32xf32>
    %96 = vector.broadcast %93 : vector<16x1xf32> to vector<16x32xf32>
    %97 = vector.broadcast %95 : vector<1x32xf32> to vector<16x32xf32>
    %98 = arith.mulf %96, %97 : vector<16x32xf32>
    %99 = vector.extract_strided_slice %92 {offsets = [0, 1], sizes = [16, 1], strides = [1, 1]} : vector<16x2xf32> to vector<16x1xf32>
    %c0_127 = arith.constant 0 : index
    %c1_128 = arith.constant 1 : index
    %c0_129 = arith.constant 0 : index
    %100 = vector.load %arg7[%c0_127, %c1_128, %c0_129] : memref<1x2x32xf32, #tpu.memory_space<vmem>>, vector<1x1x32xf32>
    %101 = vector.shape_cast %100 : vector<1x1x32xf32> to vector<1x32xf32>
    %102 = vector.broadcast %99 : vector<16x1xf32> to vector<16x32xf32>
    %103 = vector.broadcast %101 : vector<1x32xf32> to vector<16x32xf32>
    %104 = arith.mulf %102, %103 : vector<16x32xf32>
    %105 = arith.addf %98, %104 : vector<16x32xf32>
    %106 = vector.extract_strided_slice %105 {offsets = [0, 0], sizes = [8, 32], strides = [1, 1]} : vector<16x32xf32> to vector<8x32xf32>
    %107 = vector.extract_strided_slice %105 {offsets = [8, 0], sizes = [8, 32], strides = [1, 1]} : vector<16x32xf32> to vector<8x32xf32>
    %108 = arith.addf %106, %107 : vector<8x32xf32>
    %109 = arith.negf %108 : vector<8x32xf32>
    %110 = math.exp %109 : vector<8x32xf32>
    %cst_130 = arith.constant 1.000000e+00 : f32
    %111 = vector.broadcast %cst_130 : f32 to vector<8x32xf32>
    %112 = arith.addf %111, %110 : vector<8x32xf32>
    %113 = arith.divf %111, %112 : vector<8x32xf32>
    %c6_i32 = arith.constant 6 : i32
    %114 = arith.cmpi slt, %arg0, %c6_i32 : i32
    %115 = arith.extui %114 : i1 to i32
    %c0_i32_131 = arith.constant 0 : i32
    %116 = arith.cmpi ne, %115, %c0_i32_131 : i32
    scf.if %116 {
      %c0_134 = arith.constant 0 : index
      %c0_135 = arith.constant 0 : index
      %120 = vector.load %arg22[%c0_134, %c0_135] : memref<512x32xf32, #tpu.memory_space<vmem>>, vector<512x32xf32>
      %121 = vector.shape_cast %120 : vector<512x32xf32> to vector<64x8x32xf32>
      %122 = vector.shape_cast %113 : vector<8x32xf32> to vector<1x8x32xf32>
      %123 = vector.broadcast %122 : vector<1x8x32xf32> to vector<64x8x32xf32>
      %124 = arith.mulf %121, %123 : vector<64x8x32xf32>
      %125 = vector.shape_cast %124 : vector<64x8x32xf32> to vector<8x8x8x32xf32>
      %c1_136 = arith.constant 1 : index
      %c1_137 = arith.constant 1 : index
      %c0_138 = arith.constant 0 : index
      %c0_139 = arith.constant 0 : index
      %126 = vector.load %arg21[%c1_136, %c1_137, %c0_138, %c0_139] : memref<10x10x8x32xf32, #tpu.memory_space<vmem>>, vector<8x8x8x32xf32>
      tpu.vector_store %arg21[%c1_136, %c1_137, %c0_138, %c0_139], %125 {strides = array<i32>} : memref<10x10x8x32xf32, #tpu.memory_space<vmem>>, vector<8x8x8x32xf32>,
    } else {
    }
    %c6_i32_132 = arith.constant 6 : i32
    %117 = arith.cmpi eq, %arg0, %c6_i32_132 : i32
    %118 = arith.extui %117 : i1 to i32
    %c0_i32_133 = arith.constant 0 : i32
    %119 = arith.cmpi ne, %118, %c0_i32_133 : i32
    scf.if %119 {
      %120 = arith.mulf %85, %113 : vector<8x32xf32>
      %121 = vector.extract_strided_slice %120 {offsets = [0, 0], sizes = [1, 32], strides = [1, 1]} : vector<8x32xf32> to vector<1x32xf32>
      %122 = vector.extract_strided_slice %120 {offsets = [4, 0], sizes = [1, 32], strides = [1, 1]} : vector<8x32xf32> to vector<1x32xf32>
      %123 = vector.extract_strided_slice %120 {offsets = [1, 0], sizes = [1, 32], strides = [1, 1]} : vector<8x32xf32> to vector<1x32xf32>
      %124 = vector.extract_strided_slice %120 {offsets = [5, 0], sizes = [1, 32], strides = [1, 1]} : vector<8x32xf32> to vector<1x32xf32>
      %125 = vector.extract_strided_slice %120 {offsets = [2, 0], sizes = [1, 32], strides = [1, 1]} : vector<8x32xf32> to vector<1x32xf32>
      %126 = vector.extract_strided_slice %120 {offsets = [6, 0], sizes = [1, 32], strides = [1, 1]} : vector<8x32xf32> to vector<1x32xf32>
      %127 = vector.extract_strided_slice %120 {offsets = [3, 0], sizes = [1, 32], strides = [1, 1]} : vector<8x32xf32> to vector<1x32xf32>
      %128 = vector.extract_strided_slice %120 {offsets = [7, 0], sizes = [1, 32], strides = [1, 1]} : vector<8x32xf32> to vector<1x32xf32>
      %129 = tpu.concatenate %121, %122, %123, %124, %125, %126, %127, %128 in 0 : vector<1x32xf32>, vector<1x32xf32>, vector<1x32xf32>, vector<1x32xf32>, vector<1x32xf32>, vector<1x32xf32>, vector<1x32xf32>, vector<1x32xf32> -> vector<8x32xf32>
      %c0_134 = arith.constant 0 : index
      %c0_135 = arith.constant 0 : index
      %c0_136 = arith.constant 0 : index
      %130 = vector.load %arg8[%c0_134, %c0_135, %c0_136] : memref<2x32x128xf32, #tpu.memory_space<vmem>>, vector<1x32x128xf32>
      %131 = vector.shape_cast %130 : vector<1x32x128xf32> to vector<32x128xf32>
      %cst_137 = arith.constant dense<0.000000e+00> : vector<8x128xf32>
      %132 = tpu.matmul %129, %131, %cst_137 {dimension_numbers = #tpu.dot_dimension_numbers<[1], [0], [0], [1], [0, 0, 1, 1], [], []>} : vector<8x32xf32>, vector<32x128xf32>, vector<8x128xf32> -> vector<8x128xf32>
      %c0_138 = arith.constant 0 : index
      %c0_139 = arith.constant 0 : index
      %c0_140 = arith.constant 0 : index
      %133 = vector.load %arg10[%c0_138, %c0_139, %c0_140] : memref<2x1x128xf32, #tpu.memory_space<vmem>>, vector<1x1x128xf32>
      %134 = vector.shape_cast %133 : vector<1x1x128xf32> to vector<1x128xf32>
      %135 = vector.broadcast %134 : vector<1x128xf32> to vector<8x128xf32>
      %136 = arith.addf %132, %135 : vector<8x128xf32>
      %c1_141 = arith.constant 1 : index
      %c0_142 = arith.constant 0 : index
      %c0_143 = arith.constant 0 : index
      %137 = vector.load %arg8[%c1_141, %c0_142, %c0_143] : memref<2x32x128xf32, #tpu.memory_space<vmem>>, vector<1x32x128xf32>
      %138 = vector.shape_cast %137 : vector<1x32x128xf32> to vector<32x128xf32>
      %cst_144 = arith.constant dense<0.000000e+00> : vector<8x128xf32>
      %139 = tpu.matmul %129, %138, %cst_144 {dimension_numbers = #tpu.dot_dimension_numbers<[1], [0], [0], [1], [0, 0, 1, 1], [], []>} : vector<8x32xf32>, vector<32x128xf32>, vector<8x128xf32> -> vector<8x128xf32>
      %c1_145 = arith.constant 1 : index
      %c0_146 = arith.constant 0 : index
      %c0_147 = arith.constant 0 : index
      %140 = vector.load %arg10[%c1_145, %c0_146, %c0_147] : memref<2x1x128xf32, #tpu.memory_space<vmem>>, vector<1x1x128xf32>
      %141 = vector.shape_cast %140 : vector<1x1x128xf32> to vector<1x128xf32>
      %142 = vector.broadcast %141 : vector<1x128xf32> to vector<8x128xf32>
      %143 = arith.addf %139, %142 : vector<8x128xf32>
      %c0_148 = arith.constant 0 : index
      %c0_149 = arith.constant 0 : index
      %c0_150 = arith.constant 0 : index
      %144 = vector.load %arg9[%c0_148, %c0_149, %c0_150] : memref<2x32x128xf32, #tpu.memory_space<vmem>>, vector<1x32x128xf32>
      %145 = vector.shape_cast %144 : vector<1x32x128xf32> to vector<32x128xf32>
      %c1_151 = arith.constant 1 : index
      %c0_152 = arith.constant 0 : index
      %c0_153 = arith.constant 0 : index
      %146 = vector.load %arg9[%c1_151, %c0_152, %c0_153] : memref<2x32x128xf32, #tpu.memory_space<vmem>>, vector<1x32x128xf32>
      %147 = vector.shape_cast %146 : vector<1x32x128xf32> to vector<32x128xf32>
      %cst_154 = arith.constant 0.000000e+00 : f32
      %148 = vector.broadcast %cst_154 : f32 to vector<2x32xf32>
      %149 = vector.extract_strided_slice %136 {offsets = [0, 0], sizes = [2, 128], strides = [1, 1]} : vector<8x128xf32> to vector<2x128xf32>
      %cst_155 = arith.constant dense<0.000000e+00> : vector<2x128xf32>
      %150 = tpu.matmul %148, %145, %cst_155 {dimension_numbers = #tpu.dot_dimension_numbers<[1], [0], [0], [1], [0, 0, 1, 1], [], []>} : vector<2x32xf32>, vector<32x128xf32>, vector<2x128xf32> -> vector<2x128xf32>
      %151 = arith.addf %149, %150 : vector<2x128xf32>
      %152 = vector.extract_strided_slice %143 {offsets = [6, 0], sizes = [2, 128], strides = [1, 1]} : vector<8x128xf32> to vector<2x128xf32>
      %cst_156 = arith.constant dense<0.000000e+00> : vector<2x128xf32>
      %153 = tpu.matmul %148, %147, %cst_156 {dimension_numbers = #tpu.dot_dimension_numbers<[1], [0], [0], [1], [0, 0, 1, 1], [], []>} : vector<2x32xf32>, vector<32x128xf32>, vector<2x128xf32> -> vector<2x128xf32>
      %154 = arith.addf %152, %153 : vector<2x128xf32>
      %155 = vector.extract_strided_slice %151 {offsets = [0, 0], sizes = [2, 32], strides = [1, 1]} : vector<2x128xf32> to vector<2x32xf32>
      %156 = arith.negf %155 : vector<2x32xf32>
      %157 = math.exp %156 : vector<2x32xf32>
      %cst_157 = arith.constant 1.000000e+00 : f32
      %158 = vector.broadcast %cst_157 : f32 to vector<2x32xf32>
      %159 = arith.addf %158, %157 : vector<2x32xf32>
      %160 = arith.divf %158, %159 : vector<2x32xf32>
      %161 = vector.extract_strided_slice %151 {offsets = [0, 32], sizes = [2, 32], strides = [1, 1]} : vector<2x128xf32> to vector<2x32xf32>
      %162 = arith.negf %161 : vector<2x32xf32>
      %163 = math.exp %162 : vector<2x32xf32>
      %cst_158 = arith.constant 1.000000e+00 : f32
      %164 = vector.broadcast %cst_158 : f32 to vector<2x32xf32>
      %165 = arith.addf %164, %163 : vector<2x32xf32>
      %166 = arith.divf %164, %165 : vector<2x32xf32>
      %167 = vector.extract_strided_slice %151 {offsets = [0, 64], sizes = [2, 32], strides = [1, 1]} : vector<2x128xf32> to vector<2x32xf32>
      %168 = math.tanh %167 : vector<2x32xf32>
      %169 = vector.extract_strided_slice %151 {offsets = [0, 96], sizes = [2, 32], strides = [1, 1]} : vector<2x128xf32> to vector<2x32xf32>
      %170 = arith.negf %169 : vector<2x32xf32>
      %171 = math.exp %170 : vector<2x32xf32>
      %cst_159 = arith.constant 1.000000e+00 : f32
      %172 = vector.broadcast %cst_159 : f32 to vector<2x32xf32>
      %173 = arith.addf %172, %171 : vector<2x32xf32>
      %174 = arith.divf %172, %173 : vector<2x32xf32>
      %175 = arith.mulf %166, %148 : vector<2x32xf32>
      %176 = arith.mulf %160, %168 : vector<2x32xf32>
      %177 = arith.addf %175, %176 : vector<2x32xf32>
      %178 = math.tanh %177 : vector<2x32xf32>
      %179 = arith.mulf %174, %178 : vector<2x32xf32>
      %180 = vector.extract_strided_slice %154 {offsets = [0, 0], sizes = [2, 32], strides = [1, 1]} : vector<2x128xf32> to vector<2x32xf32>
      %181 = arith.negf %180 : vector<2x32xf32>
      %182 = math.exp %181 : vector<2x32xf32>
      %cst_160 = arith.constant 1.000000e+00 : f32
      %183 = vector.broadcast %cst_160 : f32 to vector<2x32xf32>
      %184 = arith.addf %183, %182 : vector<2x32xf32>
      %185 = arith.divf %183, %184 : vector<2x32xf32>
      %186 = vector.extract_strided_slice %154 {offsets = [0, 32], sizes = [2, 32], strides = [1, 1]} : vector<2x128xf32> to vector<2x32xf32>
      %187 = arith.negf %186 : vector<2x32xf32>
      %188 = math.exp %187 : vector<2x32xf32>
      %cst_161 = arith.constant 1.000000e+00 : f32
      %189 = vector.broadcast %cst_161 : f32 to vector<2x32xf32>
      %190 = arith.addf %189, %188 : vector<2x32xf32>
      %191 = arith.divf %189, %190 : vector<2x32xf32>
      %192 = vector.extract_strided_slice %154 {offsets = [0, 64], sizes = [2, 32], strides = [1, 1]} : vector<2x128xf32> to vector<2x32xf32>
      %193 = math.tanh %192 : vector<2x32xf32>
      %194 = vector.extract_strided_slice %154 {offsets = [0, 96], sizes = [2, 32], strides = [1, 1]} : vector<2x128xf32> to vector<2x32xf32>
      %195 = arith.negf %194 : vector<2x32xf32>
      %196 = math.exp %195 : vector<2x32xf32>
      %cst_162 = arith.constant 1.000000e+00 : f32
      %197 = vector.broadcast %cst_162 : f32 to vector<2x32xf32>
      %198 = arith.addf %197, %196 : vector<2x32xf32>
      %199 = arith.divf %197, %198 : vector<2x32xf32>
      %200 = arith.mulf %191, %148 : vector<2x32xf32>
      %201 = arith.mulf %185, %193 : vector<2x32xf32>
      %202 = arith.addf %200, %201 : vector<2x32xf32>
      %203 = math.tanh %202 : vector<2x32xf32>
      %204 = arith.mulf %199, %203 : vector<2x32xf32>
      %205 = vector.extract_strided_slice %136 {offsets = [2, 0], sizes = [2, 128], strides = [1, 1]} : vector<8x128xf32> to vector<2x128xf32>
      %cst_163 = arith.constant dense<0.000000e+00> : vector<2x128xf32>
      %206 = tpu.matmul %179, %145, %cst_163 {dimension_numbers = #tpu.dot_dimension_numbers<[1], [0], [0], [1], [0, 0, 1, 1], [], []>} : vector<2x32xf32>, vector<32x128xf32>, vector<2x128xf32> -> vector<2x128xf32>
      %207 = arith.addf %205, %206 : vector<2x128xf32>
      %208 = vector.extract_strided_slice %143 {offsets = [4, 0], sizes = [2, 128], strides = [1, 1]} : vector<8x128xf32> to vector<2x128xf32>
      %cst_164 = arith.constant dense<0.000000e+00> : vector<2x128xf32>
      %209 = tpu.matmul %204, %147, %cst_164 {dimension_numbers = #tpu.dot_dimension_numbers<[1], [0], [0], [1], [0, 0, 1, 1], [], []>} : vector<2x32xf32>, vector<32x128xf32>, vector<2x128xf32> -> vector<2x128xf32>
      %210 = arith.addf %208, %209 : vector<2x128xf32>
      %211 = vector.extract_strided_slice %207 {offsets = [0, 0], sizes = [2, 32], strides = [1, 1]} : vector<2x128xf32> to vector<2x32xf32>
      %212 = arith.negf %211 : vector<2x32xf32>
      %213 = math.exp %212 : vector<2x32xf32>
      %cst_165 = arith.constant 1.000000e+00 : f32
      %214 = vector.broadcast %cst_165 : f32 to vector<2x32xf32>
      %215 = arith.addf %214, %213 : vector<2x32xf32>
      %216 = arith.divf %214, %215 : vector<2x32xf32>
      %217 = vector.extract_strided_slice %207 {offsets = [0, 32], sizes = [2, 32], strides = [1, 1]} : vector<2x128xf32> to vector<2x32xf32>
      %218 = arith.negf %217 : vector<2x32xf32>
      %219 = math.exp %218 : vector<2x32xf32>
      %cst_166 = arith.constant 1.000000e+00 : f32
      %220 = vector.broadcast %cst_166 : f32 to vector<2x32xf32>
      %221 = arith.addf %220, %219 : vector<2x32xf32>
      %222 = arith.divf %220, %221 : vector<2x32xf32>
      %223 = vector.extract_strided_slice %207 {offsets = [0, 64], sizes = [2, 32], strides = [1, 1]} : vector<2x128xf32> to vector<2x32xf32>
      %224 = math.tanh %223 : vector<2x32xf32>
      %225 = vector.extract_strided_slice %207 {offsets = [0, 96], sizes = [2, 32], strides = [1, 1]} : vector<2x128xf32> to vector<2x32xf32>
      %226 = arith.negf %225 : vector<2x32xf32>
      %227 = math.exp %226 : vector<2x32xf32>
      %cst_167 = arith.constant 1.000000e+00 : f32
      %228 = vector.broadcast %cst_167 : f32 to vector<2x32xf32>
      %229 = arith.addf %228, %227 : vector<2x32xf32>
      %230 = arith.divf %228, %229 : vector<2x32xf32>
      %231 = arith.mulf %222, %177 : vector<2x32xf32>
      %232 = arith.mulf %216, %224 : vector<2x32xf32>
      %233 = arith.addf %231, %232 : vector<2x32xf32>
      %234 = math.tanh %233 : vector<2x32xf32>
      %235 = arith.mulf %230, %234 : vector<2x32xf32>
      %236 = vector.extract_strided_slice %210 {offsets = [0, 0], sizes = [2, 32], strides = [1, 1]} : vector<2x128xf32> to vector<2x32xf32>
      %237 = arith.negf %236 : vector<2x32xf32>
      %238 = math.exp %237 : vector<2x32xf32>
      %cst_168 = arith.constant 1.000000e+00 : f32
      %239 = vector.broadcast %cst_168 : f32 to vector<2x32xf32>
      %240 = arith.addf %239, %238 : vector<2x32xf32>
      %241 = arith.divf %239, %240 : vector<2x32xf32>
      %242 = vector.extract_strided_slice %210 {offsets = [0, 32], sizes = [2, 32], strides = [1, 1]} : vector<2x128xf32> to vector<2x32xf32>
      %243 = arith.negf %242 : vector<2x32xf32>
      %244 = math.exp %243 : vector<2x32xf32>
      %cst_169 = arith.constant 1.000000e+00 : f32
      %245 = vector.broadcast %cst_169 : f32 to vector<2x32xf32>
      %246 = arith.addf %245, %244 : vector<2x32xf32>
      %247 = arith.divf %245, %246 : vector<2x32xf32>
      %248 = vector.extract_strided_slice %210 {offsets = [0, 64], sizes = [2, 32], strides = [1, 1]} : vector<2x128xf32> to vector<2x32xf32>
      %249 = math.tanh %248 : vector<2x32xf32>
      %250 = vector.extract_strided_slice %210 {offsets = [0, 96], sizes = [2, 32], strides = [1, 1]} : vector<2x128xf32> to vector<2x32xf32>
      %251 = arith.negf %250 : vector<2x32xf32>
      %252 = math.exp %251 : vector<2x32xf32>
      %cst_170 = arith.constant 1.000000e+00 : f32
      %253 = vector.broadcast %cst_170 : f32 to vector<2x32xf32>
      %254 = arith.addf %253, %252 : vector<2x32xf32>
      %255 = arith.divf %253, %254 : vector<2x32xf32>
      %256 = arith.mulf %247, %202 : vector<2x32xf32>
      %257 = arith.mulf %241, %249 : vector<2x32xf32>
      %258 = arith.addf %256, %257 : vector<2x32xf32>
      %259 = math.tanh %258 : vector<2x32xf32>
      %260 = arith.mulf %255, %259 : vector<2x32xf32>
      %261 = vector.extract_strided_slice %136 {offsets = [4, 0], sizes = [2, 128], strides = [1, 1]} : vector<8x128xf32> to vector<2x128xf32>
      %cst_171 = arith.constant dense<0.000000e+00> : vector<2x128xf32>
      %262 = tpu.matmul %235, %145, %cst_171 {dimension_numbers = #tpu.dot_dimension_numbers<[1], [0], [0], [1], [0, 0, 1, 1], [], []>} : vector<2x32xf32>, vector<32x128xf32>, vector<2x128xf32> -> vector<2x128xf32>
      %263 = arith.addf %261, %262 : vector<2x128xf32>
      %264 = vector.extract_strided_slice %143 {offsets = [2, 0], sizes = [2, 128], strides = [1, 1]} : vector<8x128xf32> to vector<2x128xf32>
      %cst_172 = arith.constant dense<0.000000e+00> : vector<2x128xf32>
      %265 = tpu.matmul %260, %147, %cst_172 {dimension_numbers = #tpu.dot_dimension_numbers<[1], [0], [0], [1], [0, 0, 1, 1], [], []>} : vector<2x32xf32>, vector<32x128xf32>, vector<2x128xf32> -> vector<2x128xf32>
      %266 = arith.addf %264, %265 : vector<2x128xf32>
      %267 = vector.extract_strided_slice %263 {offsets = [0, 0], sizes = [2, 32], strides = [1, 1]} : vector<2x128xf32> to vector<2x32xf32>
      %268 = arith.negf %267 : vector<2x32xf32>
      %269 = math.exp %268 : vector<2x32xf32>
      %cst_173 = arith.constant 1.000000e+00 : f32
      %270 = vector.broadcast %cst_173 : f32 to vector<2x32xf32>
      %271 = arith.addf %270, %269 : vector<2x32xf32>
      %272 = arith.divf %270, %271 : vector<2x32xf32>
      %273 = vector.extract_strided_slice %263 {offsets = [0, 32], sizes = [2, 32], strides = [1, 1]} : vector<2x128xf32> to vector<2x32xf32>
      %274 = arith.negf %273 : vector<2x32xf32>
      %275 = math.exp %274 : vector<2x32xf32>
      %cst_174 = arith.constant 1.000000e+00 : f32
      %276 = vector.broadcast %cst_174 : f32 to vector<2x32xf32>
      %277 = arith.addf %276, %275 : vector<2x32xf32>
      %278 = arith.divf %276, %277 : vector<2x32xf32>
      %279 = vector.extract_strided_slice %263 {offsets = [0, 64], sizes = [2, 32], strides = [1, 1]} : vector<2x128xf32> to vector<2x32xf32>
      %280 = math.tanh %279 : vector<2x32xf32>
      %281 = vector.extract_strided_slice %263 {offsets = [0, 96], sizes = [2, 32], strides = [1, 1]} : vector<2x128xf32> to vector<2x32xf32>
      %282 = arith.negf %281 : vector<2x32xf32>
      %283 = math.exp %282 : vector<2x32xf32>
      %cst_175 = arith.constant 1.000000e+00 : f32
      %284 = vector.broadcast %cst_175 : f32 to vector<2x32xf32>
      %285 = arith.addf %284, %283 : vector<2x32xf32>
      %286 = arith.divf %284, %285 : vector<2x32xf32>
      %287 = arith.mulf %278, %233 : vector<2x32xf32>
      %288 = arith.mulf %272, %280 : vector<2x32xf32>
      %289 = arith.addf %287, %288 : vector<2x32xf32>
      %290 = math.tanh %289 : vector<2x32xf32>
      %291 = arith.mulf %286, %290 : vector<2x32xf32>
      %292 = vector.extract_strided_slice %266 {offsets = [0, 0], sizes = [2, 32], strides = [1, 1]} : vector<2x128xf32> to vector<2x32xf32>
      %293 = arith.negf %292 : vector<2x32xf32>
      %294 = math.exp %293 : vector<2x32xf32>
      %cst_176 = arith.constant 1.000000e+00 : f32
      %295 = vector.broadcast %cst_176 : f32 to vector<2x32xf32>
      %296 = arith.addf %295, %294 : vector<2x32xf32>
      %297 = arith.divf %295, %296 : vector<2x32xf32>
      %298 = vector.extract_strided_slice %266 {offsets = [0, 32], sizes = [2, 32], strides = [1, 1]} : vector<2x128xf32> to vector<2x32xf32>
      %299 = arith.negf %298 : vector<2x32xf32>
      %300 = math.exp %299 : vector<2x32xf32>
      %cst_177 = arith.constant 1.000000e+00 : f32
      %301 = vector.broadcast %cst_177 : f32 to vector<2x32xf32>
      %302 = arith.addf %301, %300 : vector<2x32xf32>
      %303 = arith.divf %301, %302 : vector<2x32xf32>
      %304 = vector.extract_strided_slice %266 {offsets = [0, 64], sizes = [2, 32], strides = [1, 1]} : vector<2x128xf32> to vector<2x32xf32>
      %305 = math.tanh %304 : vector<2x32xf32>
      %306 = vector.extract_strided_slice %266 {offsets = [0, 96], sizes = [2, 32], strides = [1, 1]} : vector<2x128xf32> to vector<2x32xf32>
      %307 = arith.negf %306 : vector<2x32xf32>
      %308 = math.exp %307 : vector<2x32xf32>
      %cst_178 = arith.constant 1.000000e+00 : f32
      %309 = vector.broadcast %cst_178 : f32 to vector<2x32xf32>
      %310 = arith.addf %309, %308 : vector<2x32xf32>
      %311 = arith.divf %309, %310 : vector<2x32xf32>
      %312 = arith.mulf %303, %258 : vector<2x32xf32>
      %313 = arith.mulf %297, %305 : vector<2x32xf32>
      %314 = arith.addf %312, %313 : vector<2x32xf32>
      %315 = math.tanh %314 : vector<2x32xf32>
      %316 = arith.mulf %311, %315 : vector<2x32xf32>
      %317 = vector.extract_strided_slice %136 {offsets = [6, 0], sizes = [2, 128], strides = [1, 1]} : vector<8x128xf32> to vector<2x128xf32>
      %cst_179 = arith.constant dense<0.000000e+00> : vector<2x128xf32>
      %318 = tpu.matmul %291, %145, %cst_179 {dimension_numbers = #tpu.dot_dimension_numbers<[1], [0], [0], [1], [0, 0, 1, 1], [], []>} : vector<2x32xf32>, vector<32x128xf32>, vector<2x128xf32> -> vector<2x128xf32>
      %319 = arith.addf %317, %318 : vector<2x128xf32>
      %320 = vector.extract_strided_slice %143 {offsets = [0, 0], sizes = [2, 128], strides = [1, 1]} : vector<8x128xf32> to vector<2x128xf32>
      %cst_180 = arith.constant dense<0.000000e+00> : vector<2x128xf32>
      %321 = tpu.matmul %316, %147, %cst_180 {dimension_numbers = #tpu.dot_dimension_numbers<[1], [0], [0], [1], [0, 0, 1, 1], [], []>} : vector<2x32xf32>, vector<32x128xf32>, vector<2x128xf32> -> vector<2x128xf32>
      %322 = arith.addf %320, %321 : vector<2x128xf32>
      %323 = vector.extract_strided_slice %319 {offsets = [0, 0], sizes = [2, 32], strides = [1, 1]} : vector<2x128xf32> to vector<2x32xf32>
      %324 = arith.negf %323 : vector<2x32xf32>
      %325 = math.exp %324 : vector<2x32xf32>
      %cst_181 = arith.constant 1.000000e+00 : f32
      %326 = vector.broadcast %cst_181 : f32 to vector<2x32xf32>
      %327 = arith.addf %326, %325 : vector<2x32xf32>
      %328 = arith.divf %326, %327 : vector<2x32xf32>
      %329 = vector.extract_strided_slice %319 {offsets = [0, 32], sizes = [2, 32], strides = [1, 1]} : vector<2x128xf32> to vector<2x32xf32>
      %330 = arith.negf %329 : vector<2x32xf32>
      %331 = math.exp %330 : vector<2x32xf32>
      %cst_182 = arith.constant 1.000000e+00 : f32
      %332 = vector.broadcast %cst_182 : f32 to vector<2x32xf32>
      %333 = arith.addf %332, %331 : vector<2x32xf32>
      %334 = arith.divf %332, %333 : vector<2x32xf32>
      %335 = vector.extract_strided_slice %319 {offsets = [0, 64], sizes = [2, 32], strides = [1, 1]} : vector<2x128xf32> to vector<2x32xf32>
      %336 = math.tanh %335 : vector<2x32xf32>
      %337 = vector.extract_strided_slice %319 {offsets = [0, 96], sizes = [2, 32], strides = [1, 1]} : vector<2x128xf32> to vector<2x32xf32>
      %338 = arith.negf %337 : vector<2x32xf32>
      %339 = math.exp %338 : vector<2x32xf32>
      %cst_183 = arith.constant 1.000000e+00 : f32
      %340 = vector.broadcast %cst_183 : f32 to vector<2x32xf32>
      %341 = arith.addf %340, %339 : vector<2x32xf32>
      %342 = arith.divf %340, %341 : vector<2x32xf32>
      %343 = arith.mulf %334, %289 : vector<2x32xf32>
      %344 = arith.mulf %328, %336 : vector<2x32xf32>
      %345 = arith.addf %343, %344 : vector<2x32xf32>
      %346 = math.tanh %345 : vector<2x32xf32>
      %347 = arith.mulf %342, %346 : vector<2x32xf32>
      %348 = vector.extract_strided_slice %322 {offsets = [0, 0], sizes = [2, 32], strides = [1, 1]} : vector<2x128xf32> to vector<2x32xf32>
      %349 = arith.negf %348 : vector<2x32xf32>
      %350 = math.exp %349 : vector<2x32xf32>
      %cst_184 = arith.constant 1.000000e+00 : f32
      %351 = vector.broadcast %cst_184 : f32 to vector<2x32xf32>
      %352 = arith.addf %351, %350 : vector<2x32xf32>
      %353 = arith.divf %351, %352 : vector<2x32xf32>
      %354 = vector.extract_strided_slice %322 {offsets = [0, 32], sizes = [2, 32], strides = [1, 1]} : vector<2x128xf32> to vector<2x32xf32>
      %355 = arith.negf %354 : vector<2x32xf32>
      %356 = math.exp %355 : vector<2x32xf32>
      %cst_185 = arith.constant 1.000000e+00 : f32
      %357 = vector.broadcast %cst_185 : f32 to vector<2x32xf32>
      %358 = arith.addf %357, %356 : vector<2x32xf32>
      %359 = arith.divf %357, %358 : vector<2x32xf32>
      %360 = vector.extract_strided_slice %322 {offsets = [0, 64], sizes = [2, 32], strides = [1, 1]} : vector<2x128xf32> to vector<2x32xf32>
      %361 = math.tanh %360 : vector<2x32xf32>
      %362 = vector.extract_strided_slice %322 {offsets = [0, 96], sizes = [2, 32], strides = [1, 1]} : vector<2x128xf32> to vector<2x32xf32>
      %363 = arith.negf %362 : vector<2x32xf32>
      %364 = math.exp %363 : vector<2x32xf32>
      %cst_186 = arith.constant 1.000000e+00 : f32
      %365 = vector.broadcast %cst_186 : f32 to vector<2x32xf32>
      %366 = arith.addf %365, %364 : vector<2x32xf32>
      %367 = arith.divf %365, %366 : vector<2x32xf32>
      %368 = arith.mulf %359, %314 : vector<2x32xf32>
      %369 = arith.mulf %353, %361 : vector<2x32xf32>
      %370 = arith.addf %368, %369 : vector<2x32xf32>
      %371 = math.tanh %370 : vector<2x32xf32>
      %372 = arith.mulf %367, %371 : vector<2x32xf32>
      %373 = tpu.concatenate %179, %372 in 1 : vector<2x32xf32>, vector<2x32xf32> -> vector<2x64xf32>
      %374 = tpu.concatenate %235, %316 in 1 : vector<2x32xf32>, vector<2x32xf32> -> vector<2x64xf32>
      %375 = tpu.concatenate %291, %260 in 1 : vector<2x32xf32>, vector<2x32xf32> -> vector<2x64xf32>
      %376 = tpu.concatenate %347, %204 in 1 : vector<2x32xf32>, vector<2x32xf32> -> vector<2x64xf32>
      %377 = tpu.concatenate %373, %374, %375, %376 in 0 : vector<2x64xf32>, vector<2x64xf32>, vector<2x64xf32>, vector<2x64xf32> -> vector<8x64xf32>
      %c0_187 = arith.constant 0 : index
      %c0_188 = arith.constant 0 : index
      %c0_189 = arith.constant 0 : index
      %378 = vector.load %arg11[%c0_187, %c0_188, %c0_189] : memref<2x64x128xf32, #tpu.memory_space<vmem>>, vector<1x64x128xf32>
      %379 = vector.shape_cast %378 : vector<1x64x128xf32> to vector<64x128xf32>
      %cst_190 = arith.constant dense<0.000000e+00> : vector<8x128xf32>
      %380 = tpu.matmul %377, %379, %cst_190 {dimension_numbers = #tpu.dot_dimension_numbers<[1], [0], [0], [1], [0, 0, 1, 1], [], []>} : vector<8x64xf32>, vector<64x128xf32>, vector<8x128xf32> -> vector<8x128xf32>
      %c0_191 = arith.constant 0 : index
      %c0_192 = arith.constant 0 : index
      %c0_193 = arith.constant 0 : index
      %381 = vector.load %arg13[%c0_191, %c0_192, %c0_193] : memref<2x1x128xf32, #tpu.memory_space<vmem>>, vector<1x1x128xf32>
      %382 = vector.shape_cast %381 : vector<1x1x128xf32> to vector<1x128xf32>
      %383 = vector.broadcast %382 : vector<1x128xf32> to vector<8x128xf32>
      %384 = arith.addf %380, %383 : vector<8x128xf32>
      %c0_194 = arith.constant 0 : index
      %c0_195 = arith.constant 0 : index
      %c0_196 = arith.constant 0 : index
      %385 = vector.load %arg12[%c0_194, %c0_195, %c0_196] : memref<2x32x128xf32, #tpu.memory_space<vmem>>, vector<1x32x128xf32>
      %386 = vector.shape_cast %385 : vector<1x32x128xf32> to vector<32x128xf32>
      %387 = vector.extract_strided_slice %384 {offsets = [0, 0], sizes = [2, 128], strides = [1, 1]} : vector<8x128xf32> to vector<2x128xf32>
      %cst_197 = arith.constant dense<0.000000e+00> : vector<2x128xf32>
      %388 = tpu.matmul %148, %386, %cst_197 {dimension_numbers = #tpu.dot_dimension_numbers<[1], [0], [0], [1], [0, 0, 1, 1], [], []>} : vector<2x32xf32>, vector<32x128xf32>, vector<2x128xf32> -> vector<2x128xf32>
      %389 = arith.addf %387, %388 : vector<2x128xf32>
      %390 = vector.extract_strided_slice %389 {offsets = [0, 0], sizes = [2, 32], strides = [1, 1]} : vector<2x128xf32> to vector<2x32xf32>
      %391 = arith.negf %390 : vector<2x32xf32>
      %392 = math.exp %391 : vector<2x32xf32>
      %cst_198 = arith.constant 1.000000e+00 : f32
      %393 = vector.broadcast %cst_198 : f32 to vector<2x32xf32>
      %394 = arith.addf %393, %392 : vector<2x32xf32>
      %395 = arith.divf %393, %394 : vector<2x32xf32>
      %396 = vector.extract_strided_slice %389 {offsets = [0, 32], sizes = [2, 32], strides = [1, 1]} : vector<2x128xf32> to vector<2x32xf32>
      %397 = arith.negf %396 : vector<2x32xf32>
      %398 = math.exp %397 : vector<2x32xf32>
      %cst_199 = arith.constant 1.000000e+00 : f32
      %399 = vector.broadcast %cst_199 : f32 to vector<2x32xf32>
      %400 = arith.addf %399, %398 : vector<2x32xf32>
      %401 = arith.divf %399, %400 : vector<2x32xf32>
      %402 = vector.extract_strided_slice %389 {offsets = [0, 64], sizes = [2, 32], strides = [1, 1]} : vector<2x128xf32> to vector<2x32xf32>
      %403 = math.tanh %402 : vector<2x32xf32>
      %404 = vector.extract_strided_slice %389 {offsets = [0, 96], sizes = [2, 32], strides = [1, 1]} : vector<2x128xf32> to vector<2x32xf32>
      %405 = arith.negf %404 : vector<2x32xf32>
      %406 = math.exp %405 : vector<2x32xf32>
      %cst_200 = arith.constant 1.000000e+00 : f32
      %407 = vector.broadcast %cst_200 : f32 to vector<2x32xf32>
      %408 = arith.addf %407, %406 : vector<2x32xf32>
      %409 = arith.divf %407, %408 : vector<2x32xf32>
      %410 = arith.mulf %401, %148 : vector<2x32xf32>
      %411 = arith.mulf %395, %403 : vector<2x32xf32>
      %412 = arith.addf %410, %411 : vector<2x32xf32>
      %413 = math.tanh %412 : vector<2x32xf32>
      %414 = arith.mulf %409, %413 : vector<2x32xf32>
      %415 = vector.extract_strided_slice %384 {offsets = [2, 0], sizes = [2, 128], strides = [1, 1]} : vector<8x128xf32> to vector<2x128xf32>
      %cst_201 = arith.constant dense<0.000000e+00> : vector<2x128xf32>
      %416 = tpu.matmul %414, %386, %cst_201 {dimension_numbers = #tpu.dot_dimension_numbers<[1], [0], [0], [1], [0, 0, 1, 1], [], []>} : vector<2x32xf32>, vector<32x128xf32>, vector<2x128xf32> -> vector<2x128xf32>
      %417 = arith.addf %415, %416 : vector<2x128xf32>
      %418 = vector.extract_strided_slice %417 {offsets = [0, 0], sizes = [2, 32], strides = [1, 1]} : vector<2x128xf32> to vector<2x32xf32>
      %419 = arith.negf %418 : vector<2x32xf32>
      %420 = math.exp %419 : vector<2x32xf32>
      %cst_202 = arith.constant 1.000000e+00 : f32
      %421 = vector.broadcast %cst_202 : f32 to vector<2x32xf32>
      %422 = arith.addf %421, %420 : vector<2x32xf32>
      %423 = arith.divf %421, %422 : vector<2x32xf32>
      %424 = vector.extract_strided_slice %417 {offsets = [0, 32], sizes = [2, 32], strides = [1, 1]} : vector<2x128xf32> to vector<2x32xf32>
      %425 = arith.negf %424 : vector<2x32xf32>
      %426 = math.exp %425 : vector<2x32xf32>
      %cst_203 = arith.constant 1.000000e+00 : f32
      %427 = vector.broadcast %cst_203 : f32 to vector<2x32xf32>
      %428 = arith.addf %427, %426 : vector<2x32xf32>
      %429 = arith.divf %427, %428 : vector<2x32xf32>
      %430 = vector.extract_strided_slice %417 {offsets = [0, 64], sizes = [2, 32], strides = [1, 1]} : vector<2x128xf32> to vector<2x32xf32>
      %431 = math.tanh %430 : vector<2x32xf32>
      %432 = vector.extract_strided_slice %417 {offsets = [0, 96], sizes = [2, 32], strides = [1, 1]} : vector<2x128xf32> to vector<2x32xf32>
      %433 = arith.negf %432 : vector<2x32xf32>
      %434 = math.exp %433 : vector<2x32xf32>
      %cst_204 = arith.constant 1.000000e+00 : f32
      %435 = vector.broadcast %cst_204 : f32 to vector<2x32xf32>
      %436 = arith.addf %435, %434 : vector<2x32xf32>
      %437 = arith.divf %435, %436 : vector<2x32xf32>
      %438 = arith.mulf %429, %412 : vector<2x32xf32>
      %439 = arith.mulf %423, %431 : vector<2x32xf32>
      %440 = arith.addf %438, %439 : vector<2x32xf32>
      %441 = math.tanh %440 : vector<2x32xf32>
      %442 = arith.mulf %437, %441 : vector<2x32xf32>
      %443 = vector.extract_strided_slice %384 {offsets = [4, 0], sizes = [2, 128], strides = [1, 1]} : vector<8x128xf32> to vector<2x128xf32>
      %cst_205 = arith.constant dense<0.000000e+00> : vector<2x128xf32>
      %444 = tpu.matmul %442, %386, %cst_205 {dimension_numbers = #tpu.dot_dimension_numbers<[1], [0], [0], [1], [0, 0, 1, 1], [], []>} : vector<2x32xf32>, vector<32x128xf32>, vector<2x128xf32> -> vector<2x128xf32>
      %445 = arith.addf %443, %444 : vector<2x128xf32>
      %446 = vector.extract_strided_slice %445 {offsets = [0, 0], sizes = [2, 32], strides = [1, 1]} : vector<2x128xf32> to vector<2x32xf32>
      %447 = arith.negf %446 : vector<2x32xf32>
      %448 = math.exp %447 : vector<2x32xf32>
      %cst_206 = arith.constant 1.000000e+00 : f32
      %449 = vector.broadcast %cst_206 : f32 to vector<2x32xf32>
      %450 = arith.addf %449, %448 : vector<2x32xf32>
      %451 = arith.divf %449, %450 : vector<2x32xf32>
      %452 = vector.extract_strided_slice %445 {offsets = [0, 32], sizes = [2, 32], strides = [1, 1]} : vector<2x128xf32> to vector<2x32xf32>
      %453 = arith.negf %452 : vector<2x32xf32>
      %454 = math.exp %453 : vector<2x32xf32>
      %cst_207 = arith.constant 1.000000e+00 : f32
      %455 = vector.broadcast %cst_207 : f32 to vector<2x32xf32>
      %456 = arith.addf %455, %454 : vector<2x32xf32>
      %457 = arith.divf %455, %456 : vector<2x32xf32>
      %458 = vector.extract_strided_slice %445 {offsets = [0, 64], sizes = [2, 32], strides = [1, 1]} : vector<2x128xf32> to vector<2x32xf32>
      %459 = math.tanh %458 : vector<2x32xf32>
      %460 = vector.extract_strided_slice %445 {offsets = [0, 96], sizes = [2, 32], strides = [1, 1]} : vector<2x128xf32> to vector<2x32xf32>
      %461 = arith.negf %460 : vector<2x32xf32>
      %462 = math.exp %461 : vector<2x32xf32>
      %cst_208 = arith.constant 1.000000e+00 : f32
      %463 = vector.broadcast %cst_208 : f32 to vector<2x32xf32>
      %464 = arith.addf %463, %462 : vector<2x32xf32>
      %465 = arith.divf %463, %464 : vector<2x32xf32>
      %466 = arith.mulf %457, %440 : vector<2x32xf32>
      %467 = arith.mulf %451, %459 : vector<2x32xf32>
      %468 = arith.addf %466, %467 : vector<2x32xf32>
      %469 = math.tanh %468 : vector<2x32xf32>
      %470 = arith.mulf %465, %469 : vector<2x32xf32>
      %471 = vector.extract_strided_slice %384 {offsets = [6, 0], sizes = [2, 128], strides = [1, 1]} : vector<8x128xf32> to vector<2x128xf32>
      %cst_209 = arith.constant dense<0.000000e+00> : vector<2x128xf32>
      %472 = tpu.matmul %470, %386, %cst_209 {dimension_numbers = #tpu.dot_dimension_numbers<[1], [0], [0], [1], [0, 0, 1, 1], [], []>} : vector<2x32xf32>, vector<32x128xf32>, vector<2x128xf32> -> vector<2x128xf32>
      %473 = arith.addf %471, %472 : vector<2x128xf32>
      %474 = vector.extract_strided_slice %473 {offsets = [0, 0], sizes = [2, 32], strides = [1, 1]} : vector<2x128xf32> to vector<2x32xf32>
      %475 = arith.negf %474 : vector<2x32xf32>
      %476 = math.exp %475 : vector<2x32xf32>
      %cst_210 = arith.constant 1.000000e+00 : f32
      %477 = vector.broadcast %cst_210 : f32 to vector<2x32xf32>
      %478 = arith.addf %477, %476 : vector<2x32xf32>
      %479 = arith.divf %477, %478 : vector<2x32xf32>
      %480 = vector.extract_strided_slice %473 {offsets = [0, 32], sizes = [2, 32], strides = [1, 1]} : vector<2x128xf32> to vector<2x32xf32>
      %481 = arith.negf %480 : vector<2x32xf32>
      %482 = math.exp %481 : vector<2x32xf32>
      %cst_211 = arith.constant 1.000000e+00 : f32
      %483 = vector.broadcast %cst_211 : f32 to vector<2x32xf32>
      %484 = arith.addf %483, %482 : vector<2x32xf32>
      %485 = arith.divf %483, %484 : vector<2x32xf32>
      %486 = vector.extract_strided_slice %473 {offsets = [0, 64], sizes = [2, 32], strides = [1, 1]} : vector<2x128xf32> to vector<2x32xf32>
      %487 = math.tanh %486 : vector<2x32xf32>
      %488 = vector.extract_strided_slice %473 {offsets = [0, 96], sizes = [2, 32], strides = [1, 1]} : vector<2x128xf32> to vector<2x32xf32>
      %489 = arith.negf %488 : vector<2x32xf32>
      %490 = math.exp %489 : vector<2x32xf32>
      %cst_212 = arith.constant 1.000000e+00 : f32
      %491 = vector.broadcast %cst_212 : f32 to vector<2x32xf32>
      %492 = arith.addf %491, %490 : vector<2x32xf32>
      %493 = arith.divf %491, %492 : vector<2x32xf32>
      %494 = arith.mulf %485, %468 : vector<2x32xf32>
      %495 = arith.mulf %479, %487 : vector<2x32xf32>
      %496 = arith.addf %494, %495 : vector<2x32xf32>
      %497 = math.tanh %496 : vector<2x32xf32>
      %498 = arith.mulf %493, %497 : vector<2x32xf32>
      %499 = vector.extract_strided_slice %377 {offsets = [6, 0], sizes = [2, 64], strides = [1, 1]} : vector<8x64xf32> to vector<2x64xf32>
      %c1_213 = arith.constant 1 : index
      %c0_214 = arith.constant 0 : index
      %c0_215 = arith.constant 0 : index
      %500 = vector.load %arg11[%c1_213, %c0_214, %c0_215] : memref<2x64x128xf32, #tpu.memory_space<vmem>>, vector<1x64x128xf32>
      %501 = vector.shape_cast %500 : vector<1x64x128xf32> to vector<64x128xf32>
      %cst_216 = arith.constant dense<0.000000e+00> : vector<2x128xf32>
      %502 = tpu.matmul %499, %501, %cst_216 {dimension_numbers = #tpu.dot_dimension_numbers<[1], [0], [0], [1], [0, 0, 1, 1], [], []>} : vector<2x64xf32>, vector<64x128xf32>, vector<2x128xf32> -> vector<2x128xf32>
      %c1_217 = arith.constant 1 : index
      %c0_218 = arith.constant 0 : index
      %c0_219 = arith.constant 0 : index
      %503 = vector.load %arg13[%c1_217, %c0_218, %c0_219] : memref<2x1x128xf32, #tpu.memory_space<vmem>>, vector<1x1x128xf32>
      %504 = vector.shape_cast %503 : vector<1x1x128xf32> to vector<1x128xf32>
      %505 = vector.broadcast %504 : vector<1x128xf32> to vector<2x128xf32>
      %506 = arith.addf %502, %505 : vector<2x128xf32>
      %507 = vector.extract_strided_slice %506 {offsets = [0, 0], sizes = [2, 32], strides = [1, 1]} : vector<2x128xf32> to vector<2x32xf32>
      %508 = arith.negf %507 : vector<2x32xf32>
      %509 = math.exp %508 : vector<2x32xf32>
      %cst_220 = arith.constant 1.000000e+00 : f32
      %510 = vector.broadcast %cst_220 : f32 to vector<2x32xf32>
      %511 = arith.addf %510, %509 : vector<2x32xf32>
      %512 = arith.divf %510, %511 : vector<2x32xf32>
      %513 = vector.extract_strided_slice %506 {offsets = [0, 32], sizes = [2, 32], strides = [1, 1]} : vector<2x128xf32> to vector<2x32xf32>
      %514 = arith.negf %513 : vector<2x32xf32>
      %515 = math.exp %514 : vector<2x32xf32>
      %cst_221 = arith.constant 1.000000e+00 : f32
      %516 = vector.broadcast %cst_221 : f32 to vector<2x32xf32>
      %517 = arith.addf %516, %515 : vector<2x32xf32>
      %518 = arith.divf %516, %517 : vector<2x32xf32>
      %519 = vector.extract_strided_slice %506 {offsets = [0, 64], sizes = [2, 32], strides = [1, 1]} : vector<2x128xf32> to vector<2x32xf32>
      %520 = math.tanh %519 : vector<2x32xf32>
      %521 = vector.extract_strided_slice %506 {offsets = [0, 96], sizes = [2, 32], strides = [1, 1]} : vector<2x128xf32> to vector<2x32xf32>
      %522 = arith.negf %521 : vector<2x32xf32>
      %523 = math.exp %522 : vector<2x32xf32>
      %cst_222 = arith.constant 1.000000e+00 : f32
      %524 = vector.broadcast %cst_222 : f32 to vector<2x32xf32>
      %525 = arith.addf %524, %523 : vector<2x32xf32>
      %526 = arith.divf %524, %525 : vector<2x32xf32>
      %527 = arith.mulf %518, %148 : vector<2x32xf32>
      %528 = arith.mulf %512, %520 : vector<2x32xf32>
      %529 = arith.addf %527, %528 : vector<2x32xf32>
      %530 = math.tanh %529 : vector<2x32xf32>
      %531 = arith.mulf %526, %530 : vector<2x32xf32>
      %532 = tpu.concatenate %498, %531 in 1 : vector<2x32xf32>, vector<2x32xf32> -> vector<2x64xf32>
      %c0_223 = arith.constant 0 : index
      %c0_224 = arith.constant 0 : index
      %533 = vector.load %arg14[%c0_223, %c0_224] : memref<64x128xf32, #tpu.memory_space<vmem>>, vector<64x128xf32>
      %cst_225 = arith.constant dense<0.000000e+00> : vector<2x128xf32>
      %534 = tpu.matmul %532, %533, %cst_225 {dimension_numbers = #tpu.dot_dimension_numbers<[1], [0], [0], [1], [0, 0, 1, 1], [], []>} : vector<2x64xf32>, vector<64x128xf32>, vector<2x128xf32> -> vector<2x128xf32>
      %c0_226 = arith.constant 0 : index
      %c0_227 = arith.constant 0 : index
      %535 = vector.load %arg15[%c0_226, %c0_227] : memref<1x128xf32, #tpu.memory_space<vmem>>, vector<1x128xf32>
      %536 = vector.broadcast %535 : vector<1x128xf32> to vector<2x128xf32>
      %537 = arith.addf %534, %536 : vector<2x128xf32>
      %c0_228 = arith.constant 0 : index
      %c0_229 = arith.constant 0 : index
      %538 = vector.load %arg16[%c0_228, %c0_229] : memref<128x64xf32, #tpu.memory_space<vmem>>, vector<128x64xf32>
      %cst_230 = arith.constant dense<0.000000e+00> : vector<2x64xf32>
      %539 = tpu.matmul %537, %538, %cst_230 {dimension_numbers = #tpu.dot_dimension_numbers<[1], [0], [0], [1], [0, 0, 1, 1], [], []>} : vector<2x128xf32>, vector<128x64xf32>, vector<2x64xf32> -> vector<2x64xf32>
      %c0_231 = arith.constant 0 : index
      %c0_232 = arith.constant 0 : index
      %540 = vector.load %arg17[%c0_231, %c0_232] : memref<1x64xf32, #tpu.memory_space<vmem>>, vector<1x64xf32>
      %541 = vector.broadcast %540 : vector<1x64xf32> to vector<2x64xf32>
      %542 = arith.addf %539, %541 : vector<2x64xf32>
      %c0_233 = arith.constant 0 : index
      %c0_234 = arith.constant 0 : index
      %543 = vector.load %arg18[%c0_233, %c0_234] : memref<64x2xf32, #tpu.memory_space<vmem>>, vector<64x2xf32>
      %cst_235 = arith.constant dense<0.000000e+00> : vector<2x2xf32>
      %544 = tpu.matmul %542, %543, %cst_235 {dimension_numbers = #tpu.dot_dimension_numbers<[1], [0], [0], [1], [0, 0, 1, 1], [], []>} : vector<2x64xf32>, vector<64x2xf32>, vector<2x2xf32> -> vector<2x2xf32>
      %c0_236 = arith.constant 0 : index
      %c0_237 = arith.constant 0 : index
      %545 = vector.load %arg19[%c0_236, %c0_237] : memref<1x2xf32, #tpu.memory_space<vmem>>, vector<1x2xf32>
      %546 = vector.broadcast %545 : vector<1x2xf32> to vector<2x2xf32>
      %547 = arith.addf %544, %546 : vector<2x2xf32>
      %c0_238 = arith.constant 0 : index
      %c0_239 = arith.constant 0 : index
      %548 = vector.load %arg20[%c0_238, %c0_239] : memref<2x2xf32, #tpu.memory_space<vmem>>, vector<2x2xf32>
      tpu.vector_store %arg20[%c0_238, %c0_239], %547 {strides = array<i32>} : memref<2x2xf32, #tpu.memory_space<vmem>>, vector<2x2xf32>,
    } else {
    }
    return
  }
  func.func @transform_0(%arg0: i32) -> (i32, i32, i32, i32) {
    %c0_i32 = arith.constant 0 : i32
    %c0_i32_0 = arith.constant 0 : i32
    %c0_i32_1 = arith.constant 0 : i32
    %c0_i32_2 = arith.constant 0 : i32
    %c0_i32_3 = arith.constant 0 : i32
    return %c0_i32, %c0_i32_0, %c0_i32_1, %c0_i32_2 : i32, i32, i32, i32
  }
  func.func @transform_1(%arg0: i32) -> (i32, i32) {
    %c0_i32 = arith.constant 0 : i32
    %c0_i32_0 = arith.constant 0 : i32
    %c0_i32_1 = arith.constant 0 : i32
    return %c0_i32, %c0_i32_0 : i32, i32
  }
  func.func @transform_2(%arg0: i32) -> (i32, i32) {
    %c0_i32 = arith.constant 0 : i32
    %c0_i32_0 = arith.constant 0 : i32
    %c0_i32_1 = arith.constant 0 : i32
    return %c0_i32, %c0_i32_0 : i32, i32
  }
  func.func @transform_3(%arg0: i32) -> (i32, i32, i32, i32) {
    %c0_i32 = arith.constant 0 : i32
    %c0_i32_0 = arith.constant 0 : i32
    %c0_i32_1 = arith.constant 0 : i32
    %c0_i32_2 = arith.constant 0 : i32
    return %arg0, %c0_i32, %c0_i32_0, %c0_i32_1 : i32, i32, i32, i32
  }
  func.func @transform_4(%arg0: i32) -> (i32, i32, i32) {
    %c0_i32 = arith.constant 0 : i32
    %c0_i32_0 = arith.constant 0 : i32
    %c0_i32_1 = arith.constant 0 : i32
    return %arg0, %c0_i32, %c0_i32_0 : i32, i32, i32
  }
  func.func @transform_5(%arg0: i32) -> (i32, i32, i32) {
    %c0_i32 = arith.constant 0 : i32
    %c0_i32_0 = arith.constant 0 : i32
    %c0_i32_1 = arith.constant 0 : i32
    return %arg0, %c0_i32, %c0_i32_0 : i32, i32, i32
  }
  func.func @transform_6(%arg0: i32) -> (i32, i32, i32) {
    %c0_i32 = arith.constant 0 : i32
    %c0_i32_0 = arith.constant 0 : i32
    %c0_i32_1 = arith.constant 0 : i32
    return %arg0, %c0_i32, %c0_i32_0 : i32, i32, i32
  }
  func.func @transform_7(%arg0: i32) -> (i32, i32, i32) {
    %c0_i32 = arith.constant 0 : i32
    %c0_i32_0 = arith.constant 0 : i32
    %c0_i32_1 = arith.constant 0 : i32
    %c0_i32_2 = arith.constant 0 : i32
    return %c0_i32, %c0_i32_0, %c0_i32_1 : i32, i32, i32
  }
  func.func @transform_8(%arg0: i32) -> (i32, i32, i32) {
    %c0_i32 = arith.constant 0 : i32
    %c0_i32_0 = arith.constant 0 : i32
    %c0_i32_1 = arith.constant 0 : i32
    %c0_i32_2 = arith.constant 0 : i32
    return %c0_i32, %c0_i32_0, %c0_i32_1 : i32, i32, i32
  }
  func.func @transform_9(%arg0: i32) -> (i32, i32, i32) {
    %c0_i32 = arith.constant 0 : i32
    %c0_i32_0 = arith.constant 0 : i32
    %c0_i32_1 = arith.constant 0 : i32
    %c0_i32_2 = arith.constant 0 : i32
    return %c0_i32, %c0_i32_0, %c0_i32_1 : i32, i32, i32
  }
  func.func @transform_10(%arg0: i32) -> (i32, i32, i32) {
    %c0_i32 = arith.constant 0 : i32
    %c0_i32_0 = arith.constant 0 : i32
    %c0_i32_1 = arith.constant 0 : i32
    %c0_i32_2 = arith.constant 0 : i32
    return %c0_i32, %c0_i32_0, %c0_i32_1 : i32, i32, i32
  }
  func.func @transform_11(%arg0: i32) -> (i32, i32, i32) {
    %c0_i32 = arith.constant 0 : i32
    %c0_i32_0 = arith.constant 0 : i32
    %c0_i32_1 = arith.constant 0 : i32
    %c0_i32_2 = arith.constant 0 : i32
    return %c0_i32, %c0_i32_0, %c0_i32_1 : i32, i32, i32
  }
  func.func @transform_12(%arg0: i32) -> (i32, i32, i32) {
    %c0_i32 = arith.constant 0 : i32
    %c0_i32_0 = arith.constant 0 : i32
    %c0_i32_1 = arith.constant 0 : i32
    %c0_i32_2 = arith.constant 0 : i32
    return %c0_i32, %c0_i32_0, %c0_i32_1 : i32, i32, i32
  }
  func.func @transform_13(%arg0: i32) -> (i32, i32) {
    %c0_i32 = arith.constant 0 : i32
    %c0_i32_0 = arith.constant 0 : i32
    %c0_i32_1 = arith.constant 0 : i32
    return %c0_i32, %c0_i32_0 : i32, i32
  }
  func.func @transform_14(%arg0: i32) -> (i32, i32) {
    %c0_i32 = arith.constant 0 : i32
    %c0_i32_0 = arith.constant 0 : i32
    %c0_i32_1 = arith.constant 0 : i32
    return %c0_i32, %c0_i32_0 : i32, i32
  }
  func.func @transform_15(%arg0: i32) -> (i32, i32) {
    %c0_i32 = arith.constant 0 : i32
    %c0_i32_0 = arith.constant 0 : i32
    %c0_i32_1 = arith.constant 0 : i32
    return %c0_i32, %c0_i32_0 : i32, i32
  }
  func.func @transform_16(%arg0: i32) -> (i32, i32) {
    %c0_i32 = arith.constant 0 : i32
    %c0_i32_0 = arith.constant 0 : i32
    %c0_i32_1 = arith.constant 0 : i32
    return %c0_i32, %c0_i32_0 : i32, i32
  }
  func.func @transform_17(%arg0: i32) -> (i32, i32) {
    %c0_i32 = arith.constant 0 : i32
    %c0_i32_0 = arith.constant 0 : i32
    %c0_i32_1 = arith.constant 0 : i32
    return %c0_i32, %c0_i32_0 : i32, i32
  }
  func.func @transform_18(%arg0: i32) -> (i32, i32) {
    %c0_i32 = arith.constant 0 : i32
    %c0_i32_0 = arith.constant 0 : i32
    %c0_i32_1 = arith.constant 0 : i32
    return %c0_i32, %c0_i32_0 : i32, i32
  }
  func.func @transform_19(%arg0: i32) -> (i32, i32) {
    %c0_i32 = arith.constant 0 : i32
    %c0_i32_0 = arith.constant 0 : i32
    %c0_i32_1 = arith.constant 0 : i32
    return %c0_i32, %c0_i32_0 : i32, i32
  }
}

</mosaic_0001>

<llo_original>
// kernel: acnn_bilstm_forward.1
$region0: #{acnn_bilstm_forward.1}
  #allocation0 [shape = 'u32[]', space=smem, size = 0x4, offset = 0x4, fixed_abs, tag = 'smem constant byte address 0x4 - core index']
  #allocation1 [shape = 'u32[72,128]{1,0:T(1,128)}', space=vmem, size = 0x9000, scoped, tag = 'internal scratch']
  #allocation2 [shape = 'f32[10,10,8,32]{3,2,1,0:T(8,128)}', space=vmem, size = 0x64000, scoped, tag = 'scratch operand']
  #allocation3 [shape = 'f32[512,32]{1,0:T(8,128)}', space=vmem, size = 0x40000, scoped, tag = 'scratch operand']
  %s0 = inlined_call_operand.vmem [shape: f32[8,8,8,36], index: 0, kind: input, shape index: {}]
  %s1 = inlined_call_operand.vmem [shape: f32[36,32], index: 1, kind: input, shape index: {}]
  %s2 = inlined_call_operand.vmem [shape: f32[1,32], index: 2, kind: input, shape index: {}]
  %s3 = inlined_call_operand.vmem [shape: f32[7,9,32,32], index: 3, kind: input, shape index: {}]
  %s4 = inlined_call_operand.vmem [shape: f32[7,1,32], index: 4, kind: input, shape index: {}]
  %s5 = inlined_call_operand.vmem [shape: f32[7,32,2], index: 5, kind: input, shape index: {}]
  %s6 = inlined_call_operand.vmem [shape: f32[7,2,32], index: 6, kind: input, shape index: {}]
  %s7 = inlined_call_operand.vmem [shape: f32[2,32,128], index: 7, kind: input, shape index: {}]
  %s8 = inlined_call_operand.vmem [shape: f32[2,32,128], index: 8, kind: input, shape index: {}]
  %s9 = inlined_call_operand.vmem [shape: f32[2,1,128], index: 9, kind: input, shape index: {}]
  %s10 = inlined_call_operand.vmem [shape: f32[2,64,128], index: 10, kind: input, shape index: {}]
  %s11 = inlined_call_operand.vmem [shape: f32[2,32,128], index: 11, kind: input, shape index: {}]
  %s12 = inlined_call_operand.vmem [shape: f32[2,1,128], index: 12, kind: input, shape index: {}]
  %s13 = inlined_call_operand.vmem [shape: f32[64,128], index: 13, kind: input, shape index: {}]
  %s14 = inlined_call_operand.vmem [shape: f32[1,128], index: 14, kind: input, shape index: {}]
  %s15 = inlined_call_operand.vmem [shape: f32[128,64], index: 15, kind: input, shape index: {}]
  %s16 = inlined_call_operand.vmem [shape: f32[1,64], index: 16, kind: input, shape index: {}]
  %s17 = inlined_call_operand.vmem [shape: f32[64,2], index: 17, kind: input, shape index: {}]
  %s18 = inlined_call_operand.vmem [shape: f32[1,2], index: 18, kind: input, shape index: {}]
  %s19 = inlined_call_operand.hbm [shape: f32[2,2], index: 19, kind: output, shape index: {}]
  %s20 = sld [smem:[#allocation0]]
  $region121: #{acnn_bilstm_forward.1} parent=0
    _
  %s22 = ssub.s32 1, %s20
  %s23 = scalar_select 0, %s22, %s20
  $region1: #{acnn_bilstm_forward.1} parent=0
    #allocation4 [shape = 'u8[1024]{0}', space=vmem, size = 0x400, scoped, tag = 'output window, operand 0, single buffered']
    #allocation5 [shape = 's32[2]{0}', space=sflag, size = 0x8, scoped, tag = 'scoped memory for acnn_bilstm_forward.1']
    %24 = vsyncpa [#allocation5], 0
    loop: start=0, step=1, limit=9
    $region2: #{acnn_bilstm_forward.1} parent=1 // loop_pre_header
      _
    $region3: #{acnn_bilstm_forward.1} parent=1 // loop_header
      %s26 = sphi 0, %s30
      %p27 = scmp.ge.s32.totalorder %s26, 9
      %s34 = sphi 0, %s34
      %s36 = sphi 0, %s34
      %s37 = sphi 0, %s36
      %s51 = sphi 0, %s37
      %s55 = sphi 0, %s55
      %s57 = sphi 0, %s55
      %s58 = sphi 0, %s57
      %s72 = sphi 0, %s58
      %s76 = sphi 0, %s76
      %s78 = sphi 0, %s76
      %s79 = sphi 0, %s78
      %s93 = sphi 0, %s79
      %s99 = sphi 0, %s101
      %s102 = sphi 0, %s99
      %s103 = sphi 0, %s102
      %s119 = sphi 0, %s103
      %s125 = sphi 0, %s127
      %s128 = sphi 0, %s125
      %s129 = sphi 0, %s128
      %s145 = sphi 0, %s129
      %s151 = sphi 0, %s153
      %s154 = sphi 0, %s151
      %s155 = sphi 0, %s154
      %s171 = sphi 0, %s155
      %s177 = sphi 0, %s179
      %s180 = sphi 0, %s177
      %s181 = sphi 0, %s180
      %s197 = sphi 0, %s181
      %s201 = sphi 0, %s201
      %s203 = sphi 0, %s201
      %s204 = sphi 0, %s203
      %s218 = sphi 0, %s204
      %s222 = sphi 0, %s222
      %s224 = sphi 0, %s222
      %s225 = sphi 0, %s224
      %s239 = sphi 0, %s225
      %s243 = sphi 0, %s243
      %s245 = sphi 0, %s243
      %s246 = sphi 0, %s245
      %s260 = sphi 0, %s246
      %s264 = sphi 0, %s264
      %s266 = sphi 0, %s264
      %s267 = sphi 0, %s266
      %s281 = sphi 0, %s267
      %s285 = sphi 0, %s285
      %s287 = sphi 0, %s285
      %s288 = sphi 0, %s287
      %s302 = sphi 0, %s288
      %s306 = sphi 0, %s306
      %s308 = sphi 0, %s306
      %s309 = sphi 0, %s308
      %s323 = sphi 0, %s309
      %s327 = sphi 0, %s327
      %s329 = sphi 0, %s327
      %s330 = sphi 0, %s329
      %s344 = sphi 0, %s330
      %s348 = sphi 0, %s348
      %s350 = sphi 0, %s348
      %s351 = sphi 0, %s350
      %s365 = sphi 0, %s351
      %s369 = sphi 0, %s369
      %s371 = sphi 0, %s369
      %s372 = sphi 0, %s371
      %s386 = sphi 0, %s372
      %s390 = sphi 0, %s390
      %s392 = sphi 0, %s390
      %s393 = sphi 0, %s392
      %s407 = sphi 0, %s393
      %s411 = sphi 0, %s411
      %s413 = sphi 0, %s411
      %s414 = sphi 0, %s413
      %s428 = sphi 0, %s414
      %s432 = sphi 0, %s432
      %s434 = sphi 0, %s432
      %s435 = sphi 0, %s434
      %s449 = sphi 0, %s435
      %s453 = sphi 0, %s453
      %s455 = sphi 0, %s453
      %s456 = sphi 0, %s455
      %s470 = sphi 0, %s456
    $region4: #{acnn_bilstm_forward.1} parent=1 // loop_header_branch
      %29 = sbr.rel (%p27) target = $region8
    $region5: #{acnn_bilstm_forward.1} parent=1 // loop_body
      %s31 = ssub.s32 %s26, 1
      %s32 = ssub.s32 %s26, 2
      %s33 = sadd.s32 %s26, 1
      %s35 = sadd.s32 %s34, 1
      %p38 = scmp.eq.s32.totalorder %s26, 6
      %p39 = scmp.ne.s32.totalorder %s34, %s36
      %p40 = scmp.eq.s32.totalorder %s26, 0
      %p41 = por %p39, %p40
      %p42 = scmp.ne.s32.totalorder %s34, %s36
      %p43 = scmp.eq.s32.totalorder %s31, 6
      %p44 = por %p42, %p43
      %p45 = scmp.ne.s32.totalorder %s36, %s37
      %p46 = scmp.eq.s32.totalorder %s31, 0
      %p47 = por %p45, %p46
      %p48 = scmp.ne.s32.totalorder %s36, %s37
      %p49 = scmp.eq.s32.totalorder %s32, 6
      %p50 = por %p48, %p49
      %p52 = scmp.ne.s32.totalorder %s37, %s51
      %p53 = scmp.eq.s32.totalorder %s32, 0
      %p54 = por %p52, %p53
      %s56 = sadd.s32 %s55, 1
      %p59 = scmp.eq.s32.totalorder %s26, 6
      %p60 = scmp.ne.s32.totalorder %s55, %s57
      %p61 = scmp.eq.s32.totalorder %s26, 0
      %p62 = por %p60, %p61
      %p63 = scmp.ne.s32.totalorder %s55, %s57
      %p64 = scmp.eq.s32.totalorder %s31, 6
      %p65 = por %p63, %p64
      %p66 = scmp.ne.s32.totalorder %s57, %s58
      %p67 = scmp.eq.s32.totalorder %s31, 0
      %p68 = por %p66, %p67
      %p69 = scmp.ne.s32.totalorder %s57, %s58
      %p70 = scmp.eq.s32.totalorder %s32, 6
      %p71 = por %p69, %p70
      %p73 = scmp.ne.s32.totalorder %s58, %s72
      %p74 = scmp.eq.s32.totalorder %s32, 0
      %p75 = por %p73, %p74
      %s77 = sadd.s32 %s76, 1
      %p80 = scmp.eq.s32.totalorder %s26, 6
      %p81 = scmp.ne.s32.totalorder %s76, %s78
      %p82 = scmp.eq.s32.totalorder %s26, 0
      %p83 = por %p81, %p82
      %p84 = scmp.ne.s32.totalorder %s76, %s78
      %p85 = scmp.eq.s32.totalorder %s31, 6
      %p86 = por %p84, %p85
      %p87 = scmp.ne.s32.totalorder %s78, %s79
      %p88 = scmp.eq.s32.totalorder %s31, 0
      %p89 = por %p87, %p88
      %p90 = scmp.ne.s32.totalorder %s78, %s79
      %p91 = scmp.eq.s32.totalorder %s32, 6
      %p92 = por %p90, %p91
      %p94 = scmp.ne.s32.totalorder %s79, %s93
      %p95 = scmp.eq.s32.totalorder %s32, 0
      %p96 = por %p94, %p95
      %s97 = ssub.s32 %s26, %s33
      %p98 = scmp.eq.s32.totalorder %s97, 0
      %s100 = sadd.s32 %s99, 1
      %s101 = scalar_select %p98, %s99, %s100
      %p104 = pneg %p98
      %p105 = scmp.eq.s32.totalorder %s26, 6
      %p106 = por %p104, %p105
      %p107 = scmp.ne.s32.totalorder %s99, %s102
      %p108 = scmp.eq.s32.totalorder %s26, 0
      %p109 = por %p107, %p108
      %p110 = scmp.ne.s32.totalorder %s99, %s102
      %p111 = scmp.eq.s32.totalorder %s31, 6
      %p112 = por %p110, %p111
      %p113 = scmp.ne.s32.totalorder %s102, %s103
      %p114 = scmp.eq.s32.totalorder %s31, 0
      %p115 = por %p113, %p114
      %p116 = scmp.ne.s32.totalorder %s102, %s103
      %p117 = scmp.eq.s32.totalorder %s32, 6
      %p118 = por %p116, %p117
      %p120 = scmp.ne.s32.totalorder %s103, %s119
      %p121 = scmp.eq.s32.totalorder %s32, 0
      %p122 = por %p120, %p121
      %s123 = ssub.s32 %s26, %s33
      %p124 = scmp.eq.s32.totalorder %s123, 0
      %s126 = sadd.s32 %s125, 1
      %s127 = scalar_select %p124, %s125, %s126
      %p130 = pneg %p124
      %p131 = scmp.eq.s32.totalorder %s26, 6
      %p132 = por %p130, %p131
      %p133 = scmp.ne.s32.totalorder %s125, %s128
      %p134 = scmp.eq.s32.totalorder %s26, 0
      %p135 = por %p133, %p134
      %p136 = scmp.ne.s32.totalorder %s125, %s128
      %p137 = scmp.eq.s32.totalorder %s31, 6
      %p138 = por %p136, %p137
      %p139 = scmp.ne.s32.totalorder %s128, %s129
      %p140 = scmp.eq.s32.totalorder %s31, 0
      %p141 = por %p139, %p140
      %p142 = scmp.ne.s32.totalorder %s128, %s129
      %p143 = scmp.eq.s32.totalorder %s32, 6
      %p144 = por %p142, %p143
      %p146 = scmp.ne.s32.totalorder %s129, %s145
      %p147 = scmp.eq.s32.totalorder %s32, 0
      %p148 = por %p146, %p147
      %s149 = ssub.s32 %s26, %s33
      %p150 = scmp.eq.s32.totalorder %s149, 0
      %s152 = sadd.s32 %s151, 1
      %s153 = scalar_select %p150, %s151, %s152
      %p156 = pneg %p150
      %p157 = scmp.eq.s32.totalorder %s26, 6
      %p158 = por %p156, %p157
      %p159 = scmp.ne.s32.totalorder %s151, %s154
      %p160 = scmp.eq.s32.totalorder %s26, 0
      %p161 = por %p159, %p160
      %p162 = scmp.ne.s32.totalorder %s151, %s154
      %p163 = scmp.eq.s32.totalorder %s31, 6
      %p164 = por %p162, %p163
      %p165 = scmp.ne.s32.totalorder %s154, %s155
      %p166 = scmp.eq.s32.totalorder %s31, 0
      %p167 = por %p165, %p166
      %p168 = scmp.ne.s32.totalorder %s154, %s155
      %p169 = scmp.eq.s32.totalorder %s32, 6
      %p170 = por %p168, %p169
      %p172 = scmp.ne.s32.totalorder %s155, %s171
      %p173 = scmp.eq.s32.totalorder %s32, 0
      %p174 = por %p172, %p173
      %s175 = ssub.s32 %s26, %s33
      %p176 = scmp.eq.s32.totalorder %s175, 0
      %s178 = sadd.s32 %s177, 1
      %s179 = scalar_select %p176, %s177, %s178
      %p182 = pneg %p176
      %p183 = scmp.eq.s32.totalorder %s26, 6
      %p184 = por %p182, %p183
      %p185 = scmp.ne.s32.totalorder %s177, %s180
      %p186 = scmp.eq.s32.totalorder %s26, 0
      %p187 = por %p185, %p186
      %p188 = scmp.ne.s32.totalorder %s177, %s180
      %p189 = scmp.eq.s32.totalorder %s31, 6
      %p190 = por %p188, %p189
      %p191 = scmp.ne.s32.totalorder %s180, %s181
      %p192 = scmp.eq.s32.totalorder %s31, 0
      %p193 = por %p191, %p192
      %p194 = scmp.ne.s32.totalorder %s180, %s181
      %p195 = scmp.eq.s32.totalorder %s32, 6
      %p196 = por %p194, %p195
      %p198 = scmp.ne.s32.totalorder %s181, %s197
      %p199 = scmp.eq.s32.totalorder %s32, 0
      %p200 = por %p198, %p199
      %s202 = sadd.s32 %s201, 1
      %p205 = scmp.eq.s32.totalorder %s26, 6
      %p206 = scmp.ne.s32.totalorder %s201, %s203
      %p207 = scmp.eq.s32.totalorder %s26, 0
      %p208 = por %p206, %p207
      %p209 = scmp.ne.s32.totalorder %s201, %s203
      %p210 = scmp.eq.s32.totalorder %s31, 6
      %p211 = por %p209, %p210
      %p212 = scmp.ne.s32.totalorder %s203, %s204
      %p213 = scmp.eq.s32.totalorder %s31, 0
      %p214 = por %p212, %p213
      %p215 = scmp.ne.s32.totalorder %s203, %s204
      %p216 = scmp.eq.s32.totalorder %s32, 6
      %p217 = por %p215, %p216
      %p219 = scmp.ne.s32.totalorder %s204, %s218
      %p220 = scmp.eq.s32.totalorder %s32, 0
      %p221 = por %p219, %p220
      %s223 = sadd.s32 %s222, 1
      %p226 = scmp.eq.s32.totalorder %s26, 6
      %p227 = scmp.ne.s32.totalorder %s222, %s224
      %p228 = scmp.eq.s32.totalorder %s26, 0
      %p229 = por %p227, %p228
      %p230 = scmp.ne.s32.totalorder %s222, %s224
      %p231 = scmp.eq.s32.totalorder %s31, 6
      %p232 = por %p230, %p231
      %p233 = scmp.ne.s32.totalorder %s224, %s225
      %p234 = scmp.eq.s32.totalorder %s31, 0
      %p235 = por %p233, %p234
      %p236 = scmp.ne.s32.totalorder %s224, %s225
      %p237 = scmp.eq.s32.totalorder %s32, 6
      %p238 = por %p236, %p237
      %p240 = scmp.ne.s32.totalorder %s225, %s239
      %p241 = scmp.eq.s32.totalorder %s32, 0
      %p242 = por %p240, %p241
      %s244 = sadd.s32 %s243, 1
      %p247 = scmp.eq.s32.totalorder %s26, 6
      %p248 = scmp.ne.s32.totalorder %s243, %s245
      %p249 = scmp.eq.s32.totalorder %s26, 0
      %p250 = por %p248, %p249
      %p251 = scmp.ne.s32.totalorder %s243, %s245
      %p252 = scmp.eq.s32.totalorder %s31, 6
      %p253 = por %p251, %p252
      %p254 = scmp.ne.s32.totalorder %s245, %s246
      %p255 = scmp.eq.s32.totalorder %s31, 0
      %p256 = por %p254, %p255
      %p257 = scmp.ne.s32.totalorder %s245, %s246
      %p258 = scmp.eq.s32.totalorder %s32, 6
      %p259 = por %p257, %p258
      %p261 = scmp.ne.s32.totalorder %s246, %s260
      %p262 = scmp.eq.s32.totalorder %s32, 0
      %p263 = por %p261, %p262
      %s265 = sadd.s32 %s264, 1
      %p268 = scmp.eq.s32.totalorder %s26, 6
      %p269 = scmp.ne.s32.totalorder %s264, %s266
      %p270 = scmp.eq.s32.totalorder %s26, 0
      %p271 = por %p269, %p270
      %p272 = scmp.ne.s32.totalorder %s264, %s266
      %p273 = scmp.eq.s32.totalorder %s31, 6
      %p274 = por %p272, %p273
      %p275 = scmp.ne.s32.totalorder %s266, %s267
      %p276 = scmp.eq.s32.totalorder %s31, 0
      %p277 = por %p275, %p276
      %p278 = scmp.ne.s32.totalorder %s266, %s267
      %p279 = scmp.eq.s32.totalorder %s32, 6
      %p280 = por %p278, %p279
      %p282 = scmp.ne.s32.totalorder %s267, %s281
      %p283 = scmp.eq.s32.totalorder %s32, 0
      %p284 = por %p282, %p283
      %s286 = sadd.s32 %s285, 1
      %p289 = scmp.eq.s32.totalorder %s26, 6
      %p290 = scmp.ne.s32.totalorder %s285, %s287
      %p291 = scmp.eq.s32.totalorder %s26, 0
      %p292 = por %p290, %p291
      %p293 = scmp.ne.s32.totalorder %s285, %s287
      %p294 = scmp.eq.s32.totalorder %s31, 6
      %p295 = por %p293, %p294
      %p296 = scmp.ne.s32.totalorder %s287, %s288
      %p297 = scmp.eq.s32.totalorder %s31, 0
      %p298 = por %p296, %p297
      %p299 = scmp.ne.s32.totalorder %s287, %s288
      %p300 = scmp.eq.s32.totalorder %s32, 6
      %p301 = por %p299, %p300
      %p303 = scmp.ne.s32.totalorder %s288, %s302
      %p304 = scmp.eq.s32.totalorder %s32, 0
      %p305 = por %p303, %p304
      %s307 = sadd.s32 %s306, 1
      %p310 = scmp.eq.s32.totalorder %s26, 6
      %p311 = scmp.ne.s32.totalorder %s306, %s308
      %p312 = scmp.eq.s32.totalorder %s26, 0
      %p313 = por %p311, %p312
      %p314 = scmp.ne.s32.totalorder %s306, %s308
      %p315 = scmp.eq.s32.totalorder %s31, 6
      %p316 = por %p314, %p315
      %p317 = scmp.ne.s32.totalorder %s308, %s309
      %p318 = scmp.eq.s32.totalorder %s31, 0
      %p319 = por %p317, %p318
      %p320 = scmp.ne.s32.totalorder %s308, %s309
      %p321 = scmp.eq.s32.totalorder %s32, 6
      %p322 = por %p320, %p321
      %p324 = scmp.ne.s32.totalorder %s309, %s323
      %p325 = scmp.eq.s32.totalorder %s32, 0
      %p326 = por %p324, %p325
      %s328 = sadd.s32 %s327, 1
      %p331 = scmp.eq.s32.totalorder %s26, 6
      %p332 = scmp.ne.s32.totalorder %s327, %s329
      %p333 = scmp.eq.s32.totalorder %s26, 0
      %p334 = por %p332, %p333
      %p335 = scmp.ne.s32.totalorder %s327, %s329
      %p336 = scmp.eq.s32.totalorder %s31, 6
      %p337 = por %p335, %p336
      %p338 = scmp.ne.s32.totalorder %s329, %s330
      %p339 = scmp.eq.s32.totalorder %s31, 0
      %p340 = por %p338, %p339
      %p341 = scmp.ne.s32.totalorder %s329, %s330
      %p342 = scmp.eq.s32.totalorder %s32, 6
      %p343 = por %p341, %p342
      %p345 = scmp.ne.s32.totalorder %s330, %s344
      %p346 = scmp.eq.s32.totalorder %s32, 0
      %p347 = por %p345, %p346
      %s349 = sadd.s32 %s348, 1
      %p352 = scmp.eq.s32.totalorder %s26, 6
      %p353 = scmp.ne.s32.totalorder %s348, %s350
      %p354 = scmp.eq.s32.totalorder %s26, 0
      %p355 = por %p353, %p354
      %p356 = scmp.ne.s32.totalorder %s348, %s350
      %p357 = scmp.eq.s32.totalorder %s31, 6
      %p358 = por %p356, %p357
      %p359 = scmp.ne.s32.totalorder %s350, %s351
      %p360 = scmp.eq.s32.totalorder %s31, 0
      %p361 = por %p359, %p360
      %p362 = scmp.ne.s32.totalorder %s350, %s351
      %p363 = scmp.eq.s32.totalorder %s32, 6
      %p364 = por %p362, %p363
      %p366 = scmp.ne.s32.totalorder %s351, %s365
      %p367 = scmp.eq.s32.totalorder %s32, 0
      %p368 = por %p366, %p367
      %s370 = sadd.s32 %s369, 1
      %p373 = scmp.eq.s32.totalorder %s26, 6
      %p374 = scmp.ne.s32.totalorder %s369, %s371
      %p375 = scmp.eq.s32.totalorder %s26, 0
      %p376 = por %p374, %p375
      %p377 = scmp.ne.s32.totalorder %s369, %s371
      %p378 = scmp.eq.s32.totalorder %s31, 6
      %p379 = por %p377, %p378
      %p380 = scmp.ne.s32.totalorder %s371, %s372
      %p381 = scmp.eq.s32.totalorder %s31, 0
      %p382 = por %p380, %p381
      %p383 = scmp.ne.s32.totalorder %s371, %s372
      %p384 = scmp.eq.s32.totalorder %s32, 6
      %p385 = por %p383, %p384
      %p387 = scmp.ne.s32.totalorder %s372, %s386
      %p388 = scmp.eq.s32.totalorder %s32, 0
      %p389 = por %p387, %p388
      %s391 = sadd.s32 %s390, 1
      %p394 = scmp.eq.s32.totalorder %s26, 6
      %p395 = scmp.ne.s32.totalorder %s390, %s392
      %p396 = scmp.eq.s32.totalorder %s26, 0
      %p397 = por %p395, %p396
      %p398 = scmp.ne.s32.totalorder %s390, %s392
      %p399 = scmp.eq.s32.totalorder %s31, 6
      %p400 = por %p398, %p399
      %p401 = scmp.ne.s32.totalorder %s392, %s393
      %p402 = scmp.eq.s32.totalorder %s31, 0
      %p403 = por %p401, %p402
      %p404 = scmp.ne.s32.totalorder %s392, %s393
      %p405 = scmp.eq.s32.totalorder %s32, 6
      %p406 = por %p404, %p405
      %p408 = scmp.ne.s32.totalorder %s393, %s407
      %p409 = scmp.eq.s32.totalorder %s32, 0
      %p410 = por %p408, %p409
      %s412 = sadd.s32 %s411, 1
      %p415 = scmp.eq.s32.totalorder %s26, 6
      %p416 = scmp.ne.s32.totalorder %s411, %s413
      %p417 = scmp.eq.s32.totalorder %s26, 0
      %p418 = por %p416, %p417
      %p419 = scmp.ne.s32.totalorder %s411, %s413
      %p420 = scmp.eq.s32.totalorder %s31, 6
      %p421 = por %p419, %p420
      %p422 = scmp.ne.s32.totalorder %s413, %s414
      %p423 = scmp.eq.s32.totalorder %s31, 0
      %p424 = por %p422, %p423
      %p425 = scmp.ne.s32.totalorder %s413, %s414
      %p426 = scmp.eq.s32.totalorder %s32, 6
      %p427 = por %p425, %p426
      %p429 = scmp.ne.s32.totalorder %s414, %s428
      %p430 = scmp.eq.s32.totalorder %s32, 0
      %p431 = por %p429, %p430
      %s433 = sadd.s32 %s432, 1
      %p436 = scmp.eq.s32.totalorder %s26, 6
      %p437 = scmp.ne.s32.totalorder %s432, %s434
      %p438 = scmp.eq.s32.totalorder %s26, 0
      %p439 = por %p437, %p438
      %p440 = scmp.ne.s32.totalorder %s432, %s434
      %p441 = scmp.eq.s32.totalorder %s31, 6
      %p442 = por %p440, %p441
      %p443 = scmp.ne.s32.totalorder %s434, %s435
      %p444 = scmp.eq.s32.totalorder %s31, 0
      %p445 = por %p443, %p444
      %p446 = scmp.ne.s32.totalorder %s434, %s435
      %p447 = scmp.eq.s32.totalorder %s32, 6
      %p448 = por %p446, %p447
      %p450 = scmp.ne.s32.totalorder %s435, %s449
      %p451 = scmp.eq.s32.totalorder %s32, 0
      %p452 = por %p450, %p451
      %s454 = sadd.s32 %s453, 1
      %p457 = scmp.eq.s32.totalorder %s26, 6
      %p458 = scmp.ne.s32.totalorder %s453, %s455
      %p459 = scmp.eq.s32.totalorder %s26, 0
      %p460 = por %p458, %p459
      %p461 = scmp.ne.s32.totalorder %s453, %s455
      %p462 = scmp.eq.s32.totalorder %s31, 6
      %p463 = por %p461, %p462
      %p464 = scmp.ne.s32.totalorder %s455, %s456
      %p465 = scmp.eq.s32.totalorder %s31, 0
      %p466 = por %p464, %p465
      %p467 = scmp.ne.s32.totalorder %s455, %s456
      %p468 = scmp.eq.s32.totalorder %s32, 6
      %p469 = por %p467, %p468
      %p471 = scmp.ne.s32.totalorder %s456, %s470
      %p472 = scmp.eq.s32.totalorder %s32, 0
      %p473 = por %p471, %p472
      %p474 = scmp.le.s32.totalorder 1, %s26
      %p475 = scmp.lt.s32.totalorder %s26, 8
      %p476 = pnand %p474, %p475
      %p477 = pneg %p476
      // Predicated region
      $region9: #{acnn_bilstm_forward.1} parent=5 // pred_check
        _
      $region10: #{acnn_bilstm_forward.1} parent=5 // pred_check_branch
        %479 = sbr.rel (%p476) target = $region12
      $region11: #{acnn_bilstm_forward.1} parent=5 // pred_region
        %s480 = ssub.s32 %s26, 1
        // Predicated region
        $region13: #{acnn_bilstm_forward.1} parent=11 // pred_check
          %p481 = pneg %p47
        $region14: #{acnn_bilstm_forward.1} parent=11 // pred_check_branch
          %483 = sbr.rel (%p481) target = $region16
        $region15: #{acnn_bilstm_forward.1} parent=11 // pred_region
          _
        $region16: #{acnn_bilstm_forward.1} parent=11 // pred_fallthru
          _
        // Predicated region
        $region17: #{acnn_bilstm_forward.1} parent=11 // pred_check
          %p484 = pneg %p68
        $region18: #{acnn_bilstm_forward.1} parent=11 // pred_check_branch
          %486 = sbr.rel (%p484) target = $region20
        $region19: #{acnn_bilstm_forward.1} parent=11 // pred_region
          _
        $region20: #{acnn_bilstm_forward.1} parent=11 // pred_fallthru
          _
        // Predicated region
        $region21: #{acnn_bilstm_forward.1} parent=11 // pred_check
          %p487 = pneg %p89
        $region22: #{acnn_bilstm_forward.1} parent=11 // pred_check_branch
          %489 = sbr.rel (%p487) target = $region24
        $region23: #{acnn_bilstm_forward.1} parent=11 // pred_region
          _
        $region24: #{acnn_bilstm_forward.1} parent=11 // pred_fallthru
          _
        // Predicated region
        $region25: #{acnn_bilstm_forward.1} parent=11 // pred_check
          %p490 = pneg %p214
        $region26: #{acnn_bilstm_forward.1} parent=11 // pred_check_branch
          %492 = sbr.rel (%p490) target = $region28
        $region27: #{acnn_bilstm_forward.1} parent=11 // pred_region
          _
        $region28: #{acnn_bilstm_forward.1} parent=11 // pred_fallthru
          _
        // Predicated region
        $region29: #{acnn_bilstm_forward.1} parent=11 // pred_check
          %p493 = pneg %p235
        $region30: #{acnn_bilstm_forward.1} parent=11 // pred_check_branch
          %495 = sbr.rel (%p493) target = $region32
        $region31: #{acnn_bilstm_forward.1} parent=11 // pred_region
          _
        $region32: #{acnn_bilstm_forward.1} parent=11 // pred_fallthru
          _
        // Predicated region
        $region33: #{acnn_bilstm_forward.1} parent=11 // pred_check
          %p496 = pneg %p256
        $region34: #{acnn_bilstm_forward.1} parent=11 // pred_check_branch
          %498 = sbr.rel (%p496) target = $region36
        $region35: #{acnn_bilstm_forward.1} parent=11 // pred_region
          _
        $region36: #{acnn_bilstm_forward.1} parent=11 // pred_fallthru
          _
        // Predicated region
        $region37: #{acnn_bilstm_forward.1} parent=11 // pred_check
          %p499 = pneg %p277
        $region38: #{acnn_bilstm_forward.1} parent=11 // pred_check_branch
          %501 = sbr.rel (%p499) target = $region40
        $region39: #{acnn_bilstm_forward.1} parent=11 // pred_region
          _
        $region40: #{acnn_bilstm_forward.1} parent=11 // pred_fallthru
          _
        // Predicated region
        $region41: #{acnn_bilstm_forward.1} parent=11 // pred_check
          %p502 = pneg %p298
        $region42: #{acnn_bilstm_forward.1} parent=11 // pred_check_branch
          %504 = sbr.rel (%p502) target = $region44
        $region43: #{acnn_bilstm_forward.1} parent=11 // pred_region
          _
        $region44: #{acnn_bilstm_forward.1} parent=11 // pred_fallthru
          _
        // Predicated region
        $region45: #{acnn_bilstm_forward.1} parent=11 // pred_check
          %p505 = pneg %p319
        $region46: #{acnn_bilstm_forward.1} parent=11 // pred_check_branch
          %507 = sbr.rel (%p505) target = $region48
        $region47: #{acnn_bilstm_forward.1} parent=11 // pred_region
          _
        $region48: #{acnn_bilstm_forward.1} parent=11 // pred_fallthru
          _
        // Predicated region
        $region49: #{acnn_bilstm_forward.1} parent=11 // pred_check
          %p508 = pneg %p340
        $region50: #{acnn_bilstm_forward.1} parent=11 // pred_check_branch
          %510 = sbr.rel (%p508) target = $region52
        $region51: #{acnn_bilstm_forward.1} parent=11 // pred_region
          _
        $region52: #{acnn_bilstm_forward.1} parent=11 // pred_fallthru
          _
        // Predicated region
        $region53: #{acnn_bilstm_forward.1} parent=11 // pred_check
          %p511 = pneg %p361
        $region54: #{acnn_bilstm_forward.1} parent=11 // pred_check_branch
          %513 = sbr.rel (%p511) target = $region56
        $region55: #{acnn_bilstm_forward.1} parent=11 // pred_region
          _
        $region56: #{acnn_bilstm_forward.1} parent=11 // pred_fallthru
          _
        // Predicated region
        $region57: #{acnn_bilstm_forward.1} parent=11 // pred_check
          %p514 = pneg %p382
        $region58: #{acnn_bilstm_forward.1} parent=11 // pred_check_branch
          %516 = sbr.rel (%p514) target = $region60
        $region59: #{acnn_bilstm_forward.1} parent=11 // pred_region
          _
        $region60: #{acnn_bilstm_forward.1} parent=11 // pred_fallthru
          _
        // Predicated region
        $region61: #{acnn_bilstm_forward.1} parent=11 // pred_check
          %p517 = pneg %p403
        $region62: #{acnn_bilstm_forward.1} parent=11 // pred_check_branch
          %519 = sbr.rel (%p517) target = $region64
        $region63: #{acnn_bilstm_forward.1} parent=11 // pred_region
          _
        $region64: #{acnn_bilstm_forward.1} parent=11 // pred_fallthru
          _
        // Predicated region
        $region65: #{acnn_bilstm_forward.1} parent=11 // pred_check
          %p520 = pneg %p424
        $region66: #{acnn_bilstm_forward.1} parent=11 // pred_check_branch
          %522 = sbr.rel (%p520) target = $region68
        $region67: #{acnn_bilstm_forward.1} parent=11 // pred_region
          _
        $region68: #{acnn_bilstm_forward.1} parent=11 // pred_fallthru
          _
        // Predicated region
        $region69: #{acnn_bilstm_forward.1} parent=11 // pred_check
          %p523 = pneg %p445
        $region70: #{acnn_bilstm_forward.1} parent=11 // pred_check_branch
          %525 = sbr.rel (%p523) target = $region72
        $region71: #{acnn_bilstm_forward.1} parent=11 // pred_region
          _
        $region72: #{acnn_bilstm_forward.1} parent=11 // pred_fallthru
          _
      $region12: #{acnn_bilstm_forward.1} parent=5 // pred_fallthru
        _
      %p526 = scmp.lt.s32.totalorder %s26, 7
      // Predicated region
      $region73: #{acnn_bilstm_forward.1} parent=5 // pred_check
        %p527 = pneg %p526
      $region74: #{acnn_bilstm_forward.1} parent=5 // pred_check_branch
        %529 = sbr.rel (%p527) target = $region76
      $region75: #{acnn_bilstm_forward.1} parent=5 // pred_region
        // Predicated region
        $region77: #{acnn_bilstm_forward.1} parent=75 // pred_check
          %p530 = pneg %p109
        $region78: #{acnn_bilstm_forward.1} parent=75 // pred_check_branch
          %532 = sbr.rel (%p530) target = $region80
        $region79: #{acnn_bilstm_forward.1} parent=75 // pred_region
          %p533 = scmp.lt.s32.totalorder %s26, 6
          %s534 = scalar_select %p533, %s26, 6
          %s535 = smul.addr %s534, 36
          %s536 = smul.addr %s535, 8
          %s537 = scalar_lea.vmem %s3, %s536
        $region80: #{acnn_bilstm_forward.1} parent=75 // pred_fallthru
          _
        // Predicated region
        $region81: #{acnn_bilstm_forward.1} parent=75 // pred_check
          %p538 = pneg %p135
        $region82: #{acnn_bilstm_forward.1} parent=75 // pred_check_branch
          %540 = sbr.rel (%p538) target = $region84
        $region83: #{acnn_bilstm_forward.1} parent=75 // pred_region
          %p541 = scmp.lt.s32.totalorder %s26, 6
          %s542 = scalar_select %p541, %s26, 6
          %s543 = scalar_lea.vmem %s4, %s542
        $region84: #{acnn_bilstm_forward.1} parent=75 // pred_fallthru
          _
        // Predicated region
        $region85: #{acnn_bilstm_forward.1} parent=75 // pred_check
          %p544 = pneg %p161
        $region86: #{acnn_bilstm_forward.1} parent=75 // pred_check_branch
          %546 = sbr.rel (%p544) target = $region88
        $region87: #{acnn_bilstm_forward.1} parent=75 // pred_region
          %p547 = scmp.lt.s32.totalorder %s26, 6
          %s548 = scalar_select %p547, %s26, 6
          %s549 = smul.addr %s548, 4
          %s550 = smul.addr %s549, 8
          %s551 = scalar_lea.vmem %s5, %s550
        $region88: #{acnn_bilstm_forward.1} parent=75 // pred_fallthru
          _
        // Predicated region
        $region89: #{acnn_bilstm_forward.1} parent=75 // pred_check
          %p552 = pneg %p187
        $region90: #{acnn_bilstm_forward.1} parent=75 // pred_check_branch
          %554 = sbr.rel (%p552) target = $region92
        $region91: #{acnn_bilstm_forward.1} parent=75 // pred_region
          %p555 = scmp.lt.s32.totalorder %s26, 6
          %s556 = scalar_select %p555, %s26, 6
          %s557 = smul.addr %s556, 2
          %s558 = scalar_lea.vmem %s6, %s557
        $region92: #{acnn_bilstm_forward.1} parent=75 // pred_fallthru
          _
      $region76: #{acnn_bilstm_forward.1} parent=5 // pred_fallthru
        _
      %p559 = scmp.le.s32.totalorder 1, %s26
      %p560 = scmp.lt.s32.totalorder %s26, 8
      %p561 = pnand %p559, %p560
      %p562 = pneg %p561
      // Predicated region
      $region93: #{acnn_bilstm_forward.1} parent=5 // pred_check
        _
      $region94: #{acnn_bilstm_forward.1} parent=5 // pred_check_branch
        %564 = sbr.rel (%p561) target = $region96
      $region95: #{acnn_bilstm_forward.1} parent=5 // pred_region
        %s565 = ssub.s32 %s26, 1
        %p566 = pneg %p47
        %p567 = pneg %p44
        %p568 = pneg %p68
        %p569 = pneg %p65
        %p570 = pneg %p89
        %p571 = pneg %p86
        %p572 = scmp.lt.s32.totalorder %s31, 6
        %s573 = scalar_select %p572, %s31, 6
        %s574 = smul.addr %s573, 36
        %s575 = smul.addr %s574, 8
        %s576 = scalar_lea.vmem %s3, %s575
        %p577 = pneg %p115
        %p578 = pneg %p112
        %p579 = scmp.lt.s32.totalorder %s31, 6
        %s580 = scalar_select %p579, %s31, 6
        %s581 = scalar_lea.vmem %s4, %s580
        %p582 = pneg %p141
        %p583 = pneg %p138
        %p584 = scmp.lt.s32.totalorder %s31, 6
        %s585 = scalar_select %p584, %s31, 6
        %s586 = smul.addr %s585, 4
        %s587 = smul.addr %s586, 8
        %s588 = scalar_lea.vmem %s5, %s587
        %p589 = pneg %p167
        %p590 = pneg %p164
        %p591 = scmp.lt.s32.totalorder %s31, 6
        %s592 = scalar_select %p591, %s31, 6
        %s593 = smul.addr %s592, 2
        %s594 = scalar_lea.vmem %s6, %s593
        %p595 = pneg %p193
        %p596 = pneg %p190
        %p597 = pneg %p214
        %p598 = pneg %p211
        %p599 = pneg %p235
        %p600 = pneg %p232
        %p601 = pneg %p256
        %p602 = pneg %p253
        %p603 = pneg %p277
        %p604 = pneg %p274
        %p605 = pneg %p298
        %p606 = pneg %p295
        %p607 = pneg %p319
        %p608 = pneg %p316
        %p609 = pneg %p340
        %p610 = pneg %p337
        %p611 = pneg %p361
        %p612 = pneg %p358
        %p613 = pneg %p382
        %p614 = pneg %p379
        %p615 = pneg %p403
        %p616 = pneg %p400
        %p617 = pneg %p424
        %p618 = pneg %p421
        %p619 = pneg %p445
        %p620 = pneg %p442
        %p621 = pneg %p466
        %p622 = pneg %p463
        %p623 = scmp.lt.s32.totalorder %s31, 6
        %s624 = scalar_select %p623, %s31, 6
        %s625 = smul.addr %s624, 36
        %s626 = smul.addr %s625, 8
        %s627 = scalar_lea.vmem %s3, %s626
        %p628 = scmp.lt.s32.totalorder %s31, 6
        %s629 = scalar_select %p628, %s31, 6
        %s630 = scalar_lea.vmem %s4, %s629
        %p631 = scmp.lt.s32.totalorder %s31, 6
        %s632 = scalar_select %p631, %s31, 6
        %s633 = smul.addr %s632, 4
        %s634 = smul.addr %s633, 8
        %s635 = scalar_lea.vmem %s5, %s634
        %p636 = scmp.lt.s32.totalorder %s31, 6
        %s637 = scalar_select %p636, %s31, 6
        %s638 = smul.addr %s637, 2
        %s639 = scalar_lea.vmem %s6, %s638
        %p640 = scmp.eq.s32.totalorder %s31, 0
        // Predicated region
        $region97: #{acnn_bilstm_forward.1} parent=95 // pred_check
          %p641 = pneg %p640
        $region98: #{acnn_bilstm_forward.1} parent=95 // pred_check_branch
          %643 = sbr.rel (%p641) target = $region100
        $region99: #{acnn_bilstm_forward.1} parent=95 // pred_region
          %vm644 = vcmask 261120
          %645 = vst.msk [vmem:[#allocation2] sm:$0xff] %vm644, 0.0
          %646 = vst.msk [vmem:[#allocation2 + $0x8] sm:$0xff] %vm644, 0.0
          %647 = vst.msk [vmem:[#allocation2 + $0x10] sm:$0xff] %vm644, 0.0
          %648 = vst.msk [vmem:[#allocation2 + $0x18] sm:$0xff] %vm644, 0.0
          %649 = vst.msk [vmem:[#allocation2 + $0x20] sm:$0xff] %vm644, 0.0
          %650 = vst.msk [vmem:[#allocation2 + $0x28] sm:$0xff] %vm644, 0.0
          %651 = vst.msk [vmem:[#allocation2 + $0x30] sm:$0xff] %vm644, 0.0
          %652 = vst.msk [vmem:[#allocation2 + $0x38] sm:$0xff] %vm644, 0.0
          %653 = vst.msk [vmem:[#allocation2 + $0x40] sm:$0xff] %vm644, 0.0
          %654 = vst.msk [vmem:[#allocation2 + $0x48] sm:$0xff] %vm644, 0.0
          %655 = vst.msk [vmem:[#allocation2 + $0x50] sm:$0xff] %vm644, 0.0
          %656 = vst.msk [vmem:[#allocation2 + $0x58] sm:$0xff] %vm644, 0.0
          %657 = vst.msk [vmem:[#allocation2 + $0x60] sm:$0xff] %vm644, 0.0
          %658 = vst.msk [vmem:[#allocation2 + $0x68] sm:$0xff] %vm644, 0.0
          %659 = vst.msk [vmem:[#allocation2 + $0x70] sm:$0xff] %vm644, 0.0
          %660 = vst.msk [vmem:[#allocation2 + $0x78] sm:$0xff] %vm644, 0.0
          %661 = vst.msk [vmem:[#allocation2 + $0x80] sm:$0xff] %vm644, 0.0
          %662 = vst.msk [vmem:[#allocation2 + $0x88] sm:$0xff] %vm644, 0.0
          %663 = vst.msk [vmem:[#allocation2 + $0x90] sm:$0xff] %vm644, 0.0
          %664 = vst.msk [vmem:[#allocation2 + $0x98] sm:$0xff] %vm644, 0.0
          %665 = vst.msk [vmem:[#allocation2 + $0xa0] sm:$0xff] %vm644, 0.0
          %666 = vst.msk [vmem:[#allocation2 + $0xa8] sm:$0xff] %vm644, 0.0
          %667 = vst.msk [vmem:[#allocation2 + $0xb0] sm:$0xff] %vm644, 0.0
          %668 = vst.msk [vmem:[#allocation2 + $0xb8] sm:$0xff] %vm644, 0.0
          %669 = vst.msk [vmem:[#allocation2 + $0xc0] sm:$0xff] %vm644, 0.0
          %670 = vst.msk [vmem:[#allocation2 + $0xc8] sm:$0xff] %vm644, 0.0
          %671 = vst.msk [vmem:[#allocation2 + $0xd0] sm:$0xff] %vm644, 0.0
          %672 = vst.msk [vmem:[#allocation2 + $0xd8] sm:$0xff] %vm644, 0.0
          %673 = vst.msk [vmem:[#allocation2 + $0xe0] sm:$0xff] %vm644, 0.0
          %674 = vst.msk [vmem:[#allocation2 + $0xe8] sm:$0xff] %vm644, 0.0
          %675 = vst.msk [vmem:[#allocation2 + $0xf0] sm:$0xff] %vm644, 0.0
          %676 = vst.msk [vmem:[#allocation2 + $0xf8] sm:$0xff] %vm644, 0.0
          %677 = vst.msk [vmem:[#allocation2 + $0x100] sm:$0xff] %vm644, 0.0
          %678 = vst.msk [vmem:[#allocation2 + $0x108] sm:$0xff] %vm644, 0.0
          %679 = vst.msk [vmem:[#allocation2 + $0x110] sm:$0xff] %vm644, 0.0
          %680 = vst.msk [vmem:[#allocation2 + $0x118] sm:$0xff] %vm644, 0.0
          %681 = vst.msk [vmem:[#allocation2 + $0x120] sm:$0xff] %vm644, 0.0
          %682 = vst.msk [vmem:[#allocation2 + $0x128] sm:$0xff] %vm644, 0.0
          %683 = vst.msk [vmem:[#allocation2 + $0x130] sm:$0xff] %vm644, 0.0
          %684 = vst.msk [vmem:[#allocation2 + $0x138] sm:$0xff] %vm644, 0.0
          %685 = vst.msk [vmem:[#allocation2 + $0x140] sm:$0xff] %vm644, 0.0
          %686 = vst.msk [vmem:[#allocation2 + $0x148] sm:$0xff] %vm644, 0.0
          %687 = vst.msk [vmem:[#allocation2 + $0x150] sm:$0xff] %vm644, 0.0
          %688 = vst.msk [vmem:[#allocation2 + $0x158] sm:$0xff] %vm644, 0.0
          %689 = vst.msk [vmem:[#allocation2 + $0x160] sm:$0xff] %vm644, 0.0
          %690 = vst.msk [vmem:[#allocation2 + $0x168] sm:$0xff] %vm644, 0.0
          %691 = vst.msk [vmem:[#allocation2 + $0x170] sm:$0xff] %vm644, 0.0
          %692 = vst.msk [vmem:[#allocation2 + $0x178] sm:$0xff] %vm644, 0.0
          %693 = vst.msk [vmem:[#allocation2 + $0x180] sm:$0xff] %vm644, 0.0
          %694 = vst.msk [vmem:[#allocation2 + $0x188] sm:$0xff] %vm644, 0.0
          %695 = vst.msk [vmem:[#allocation2 + $0x190] sm:$0xff] %vm644, 0.0
          %696 = vst.msk [vmem:[#allocation2 + $0x198] sm:$0xff] %vm644, 0.0
          %697 = vst.msk [vmem:[#allocation2 + $0x1a0] sm:$0xff] %vm644, 0.0
          %698 = vst.msk [vmem:[#allocation2 + $0x1a8] sm:$0xff] %vm644, 0.0
          %699 = vst.msk [vmem:[#allocation2 + $0x1b0] sm:$0xff] %vm644, 0.0
          %700 = vst.msk [vmem:[#allocation2 + $0x1b8] sm:$0xff] %vm644, 0.0
          %701 = vst.msk [vmem:[#allocation2 + $0x1c0] sm:$0xff] %vm644, 0.0
          %702 = vst.msk [vmem:[#allocation2 + $0x1c8] sm:$0xff] %vm644, 0.0
          %703 = vst.msk [vmem:[#allocation2 + $0x1d0] sm:$0xff] %vm644, 0.0
          %704 = vst.msk [vmem:[#allocation2 + $0x1d8] sm:$0xff] %vm644, 0.0
          %705 = vst.msk [vmem:[#allocation2 + $0x1e0] sm:$0xff] %vm644, 0.0
          %706 = vst.msk [vmem:[#allocation2 + $0x1e8] sm:$0xff] %vm644, 0.0
          %707 = vst.msk [vmem:[#allocation2 + $0x1f0] sm:$0xff] %vm644, 0.0
          %708 = vst.msk [vmem:[#allocation2 + $0x1f8] sm:$0xff] %vm644, 0.0
          %709 = vst.msk [vmem:[#allocation2 + $0x200] sm:$0xff] %vm644, 0.0
          %710 = vst.msk [vmem:[#allocation2 + $0x208] sm:$0xff] %vm644, 0.0
          %711 = vst.msk [vmem:[#allocation2 + $0x210] sm:$0xff] %vm644, 0.0
          %712 = vst.msk [vmem:[#allocation2 + $0x218] sm:$0xff] %vm644, 0.0
          %713 = vst.msk [vmem:[#allocation2 + $0x220] sm:$0xff] %vm644, 0.0
          %714 = vst.msk [vmem:[#allocation2 + $0x228] sm:$0xff] %vm644, 0.0
          %715 = vst.msk [vmem:[#allocation2 + $0x230] sm:$0xff] %vm644, 0.0
          %716 = vst.msk [vmem:[#allocation2 + $0x238] sm:$0xff] %vm644, 0.0
          %717 = vst.msk [vmem:[#allocation2 + $0x240] sm:$0xff] %vm644, 0.0
          %718 = vst.msk [vmem:[#allocation2 + $0x248] sm:$0xff] %vm644, 0.0
          %719 = vst.msk [vmem:[#allocation2 + $0x250] sm:$0xff] %vm644, 0.0
          %720 = vst.msk [vmem:[#allocation2 + $0x258] sm:$0xff] %vm644, 0.0
          %721 = vst.msk [vmem:[#allocation2 + $0x260] sm:$0xff] %vm644, 0.0
          %722 = vst.msk [vmem:[#allocation2 + $0x268] sm:$0xff] %vm644, 0.0
          %723 = vst.msk [vmem:[#allocation2 + $0x270] sm:$0xff] %vm644, 0.0
          %724 = vst.msk [vmem:[#allocation2 + $0x278] sm:$0xff] %vm644, 0.0
          %725 = vst.msk [vmem:[#allocation2 + $0x280] sm:$0xff] %vm644, 0.0
          %726 = vst.msk [vmem:[#allocation2 + $0x288] sm:$0xff] %vm644, 0.0
          %727 = vst.msk [vmem:[#allocation2 + $0x290] sm:$0xff] %vm644, 0.0
          %728 = vst.msk [vmem:[#allocation2 + $0x298] sm:$0xff] %vm644, 0.0
          %729 = vst.msk [vmem:[#allocation2 + $0x2a0] sm:$0xff] %vm644, 0.0
          %730 = vst.msk [vmem:[#allocation2 + $0x2a8] sm:$0xff] %vm644, 0.0
          %731 = vst.msk [vmem:[#allocation2 + $0x2b0] sm:$0xff] %vm644, 0.0
          %732 = vst.msk [vmem:[#allocation2 + $0x2b8] sm:$0xff] %vm644, 0.0
          %733 = vst.msk [vmem:[#allocation2 + $0x2c0] sm:$0xff] %vm644, 0.0
          %734 = vst.msk [vmem:[#allocation2 + $0x2c8] sm:$0xff] %vm644, 0.0
          %735 = vst.msk [vmem:[#allocation2 + $0x2d0] sm:$0xff] %vm644, 0.0
          %736 = vst.msk [vmem:[#allocation2 + $0x2d8] sm:$0xff] %vm644, 0.0
          %737 = vst.msk [vmem:[#allocation2 + $0x2e0] sm:$0xff] %vm644, 0.0
          %738 = vst.msk [vmem:[#allocation2 + $0x2e8] sm:$0xff] %vm644, 0.0
          %739 = vst.msk [vmem:[#allocation2 + $0x2f0] sm:$0xff] %vm644, 0.0
          %740 = vst.msk [vmem:[#allocation2 + $0x2f8] sm:$0xff] %vm644, 0.0
          %741 = vst.msk [vmem:[#allocation2 + $0x300] sm:$0xff] %vm644, 0.0
          %742 = vst.msk [vmem:[#allocation2 + $0x308] sm:$0xff] %vm644, 0.0
          %743 = vst.msk [vmem:[#allocation2 + $0x310] sm:$0xff] %vm644, 0.0
          %744 = vst.msk [vmem:[#allocation2 + $0x318] sm:$0xff] %vm644, 0.0
          %v745 = vld [vmem:[%s0] sm:$0xff]
          %v746 = vld [vmem:[%s0 + $0x8] sm:$0xff]
          %v747 = vld [vmem:[%s0 + $0x10] sm:$0xff]
          %v748 = vld [vmem:[%s0 + $0x18] sm:$0xff]
          %v749 = vld [vmem:[%s0 + $0x20] sm:$0xff]
          %v750 = vld [vmem:[%s0 + $0x28] sm:$0xff]
          %v751 = vld [vmem:[%s0 + $0x30] sm:$0xff]
          %v752 = vld [vmem:[%s0 + $0x38] sm:$0xff]
          %v753 = vld [vmem:[%s0 + $0x40] sm:$0xff]
          %v754 = vld [vmem:[%s0 + $0x48] sm:$0xff]
          %v755 = vld [vmem:[%s0 + $0x50] sm:$0xff]
          %v756 = vld [vmem:[%s0 + $0x58] sm:$0xff]
          %v757 = vld [vmem:[%s0 + $0x60] sm:$0xff]
          %v758 = vld [vmem:[%s0 + $0x68] sm:$0xff]
          %v759 = vld [vmem:[%s0 + $0x70] sm:$0xff]
          %v760 = vld [vmem:[%s0 + $0x78] sm:$0xff]
          %v761 = vld [vmem:[%s0 + $0x80] sm:$0xff]
          %v762 = vld [vmem:[%s0 + $0x88] sm:$0xff]
          %v763 = vld [vmem:[%s0 + $0x90] sm:$0xff]
          %v764 = vld [vmem:[%s0 + $0x98] sm:$0xff]
          %v765 = vld [vmem:[%s0 + $0xa0] sm:$0xff]
          %v766 = vld [vmem:[%s0 + $0xa8] sm:$0xff]
          %v767 = vld [vmem:[%s0 + $0xb0] sm:$0xff]
          %v768 = vld [vmem:[%s0 + $0xb8] sm:$0xff]
          %v769 = vld [vmem:[%s0 + $0xc0] sm:$0xff]
          %v770 = vld [vmem:[%s0 + $0xc8] sm:$0xff]
          %v771 = vld [vmem:[%s0 + $0xd0] sm:$0xff]
          %v772 = vld [vmem:[%s0 + $0xd8] sm:$0xff]
          %v773 = vld [vmem:[%s0 + $0xe0] sm:$0xff]
          %v774 = vld [vmem:[%s0 + $0xe8] sm:$0xff]
          %v775 = vld [vmem:[%s0 + $0xf0] sm:$0xff]
          %v776 = vld [vmem:[%s0 + $0xf8] sm:$0xff]
          %v777 = vld [vmem:[%s0 + $0x100] sm:$0xff]
          %v778 = vld [vmem:[%s0 + $0x108] sm:$0xff]
          %v779 = vld [vmem:[%s0 + $0x110] sm:$0xff]
          %v780 = vld [vmem:[%s0 + $0x118] sm:$0xff]
          %v781 = vld [vmem:[%s0 + $0x120] sm:$0xff]
          %v782 = vld [vmem:[%s0 + $0x128] sm:$0xff]
          %v783 = vld [vmem:[%s0 + $0x130] sm:$0xff]
          %v784 = vld [vmem:[%s0 + $0x138] sm:$0xff]
          %v785 = vld [vmem:[%s0 + $0x140] sm:$0xff]
          %v786 = vld [vmem:[%s0 + $0x148] sm:$0xff]
          %v787 = vld [vmem:[%s0 + $0x150] sm:$0xff]
          %v788 = vld [vmem:[%s0 + $0x158] sm:$0xff]
          %v789 = vld [vmem:[%s0 + $0x160] sm:$0xff]
          %v790 = vld [vmem:[%s0 + $0x168] sm:$0xff]
          %v791 = vld [vmem:[%s0 + $0x170] sm:$0xff]
          %v792 = vld [vmem:[%s0 + $0x178] sm:$0xff]
          %v793 = vld [vmem:[%s0 + $0x180] sm:$0xff]
          %v794 = vld [vmem:[%s0 + $0x188] sm:$0xff]
          %v795 = vld [vmem:[%s0 + $0x190] sm:$0xff]
          %v796 = vld [vmem:[%s0 + $0x198] sm:$0xff]
          %v797 = vld [vmem:[%s0 + $0x1a0] sm:$0xff]
          %v798 = vld [vmem:[%s0 + $0x1a8] sm:$0xff]
          %v799 = vld [vmem:[%s0 + $0x1b0] sm:$0xff]
          %v800 = vld [vmem:[%s0 + $0x1b8] sm:$0xff]
          %v801 = vld [vmem:[%s0 + $0x1c0] sm:$0xff]
          %v802 = vld [vmem:[%s0 + $0x1c8] sm:$0xff]
          %v803 = vld [vmem:[%s0 + $0x1d0] sm:$0xff]
          %v804 = vld [vmem:[%s0 + $0x1d8] sm:$0xff]
          %v805 = vld [vmem:[%s0 + $0x1e0] sm:$0xff]
          %v806 = vld [vmem:[%s0 + $0x1e8] sm:$0xff]
          %v807 = vld [vmem:[%s0 + $0x1f0] sm:$0xff]
          %v808 = vld [vmem:[%s0 + $0x1f8] sm:$0xff]
          %v809 = vld [vmem:[%s1] sm:$0xff]
          %v810 = vld [vmem:[%s1 + $0x8] sm:$0xff]
          %v811 = vld [vmem:[%s1 + $0x10] sm:$0xff]
          %v812 = vld [vmem:[%s1 + $0x18] sm:$0xff]
          %v813 = vld [vmem:[%s1 + $0x20] sm:$0xf]
          %v814 = vld [vmem:[%s2] sm:$0x1]
          %v816 = vperm.slane %v814, 0
          %vm818 = vcmask 293888
          %v820 = vsel %vm818, %v745, 0
          %v823 = vsel %vm818, %v746, 0
          %v826 = vsel %vm818, %v747, 0
          %v829 = vsel %vm818, %v748, 0
          %v832 = vsel %vm818, %v749, 0
          %v835 = vsel %vm818, %v750, 0
          %v838 = vsel %vm818, %v751, 0
          %v841 = vsel %vm818, %v752, 0
          %v844 = vsel %vm818, %v753, 0
          %v847 = vsel %vm818, %v754, 0
          %v850 = vsel %vm818, %v755, 0
          %v853 = vsel %vm818, %v756, 0
          %v856 = vsel %vm818, %v757, 0
          %v859 = vsel %vm818, %v758, 0
          %v862 = vsel %vm818, %v759, 0
          %v865 = vsel %vm818, %v760, 0
          %v868 = vsel %vm818, %v761, 0
          %v871 = vsel %vm818, %v762, 0
          %v874 = vsel %vm818, %v763, 0
          %v877 = vsel %vm818, %v764, 0
          %v880 = vsel %vm818, %v765, 0
          %v883 = vsel %vm818, %v766, 0
          %v886 = vsel %vm818, %v767, 0
          %v889 = vsel %vm818, %v768, 0
          %v892 = vsel %vm818, %v769, 0
          %v895 = vsel %vm818, %v770, 0
          %v898 = vsel %vm818, %v771, 0
          %v901 = vsel %vm818, %v772, 0
          %v904 = vsel %vm818, %v773, 0
          %v907 = vsel %vm818, %v774, 0
          %v910 = vsel %vm818, %v775, 0
          %v913 = vsel %vm818, %v776, 0
          %v916 = vsel %vm818, %v777, 0
          %v919 = vsel %vm818, %v778, 0
          %v922 = vsel %vm818, %v779, 0
          %v925 = vsel %vm818, %v780, 0
          %v928 = vsel %vm818, %v781, 0
          %v931 = vsel %vm818, %v782, 0
          %v934 = vsel %vm818, %v783, 0
          %v937 = vsel %vm818, %v784, 0
          %v940 = vsel %vm818, %v785, 0
          %v943 = vsel %vm818, %v786, 0
          %v946 = vsel %vm818, %v787, 0
          %v949 = vsel %vm818, %v788, 0
          %v952 = vsel %vm818, %v789, 0
          %v955 = vsel %vm818, %v790, 0
          %v958 = vsel %vm818, %v791, 0
          %v961 = vsel %vm818, %v792, 0
          %v964 = vsel %vm818, %v793, 0
          %v967 = vsel %vm818, %v794, 0
          %v970 = vsel %vm818, %v795, 0
          %v973 = vsel %vm818, %v796, 0
          %v976 = vsel %vm818, %v797, 0
          %v979 = vsel %vm818, %v798, 0
          %v982 = vsel %vm818, %v799, 0
          %v985 = vsel %vm818, %v800, 0
          %v988 = vsel %vm818, %v801, 0
          %v991 = vsel %vm818, %v802, 0
          %v994 = vsel %vm818, %v803, 0
          %v997 = vsel %vm818, %v804, 0
          %v1000 = vsel %vm818, %v805, 0
          %v1003 = vsel %vm818, %v806, 0
          %v1006 = vsel %vm818, %v807, 0
          %v1009 = vsel %vm818, %v808, 0
          %vm1011 = vcmask 1043456
          %v1013 = vsel %vm1011, %v813, 0
          %1015 = vmatpush.msra.mxu0 0.0
          %1016 = vmatpush.msra.mxu0 0.0
          %1017 = vmatpush.msra.mxu0 0.0
          %1018 = vmatpush.msra.mxu0 0.0
          %1019 = vmatpush.msra.mxu0 0.0
          %1020 = vmatpush.msra.mxu0 0.0
          %1021 = vmatpush.msra.mxu0 0.0
          %1022 = vmatpush.msra.mxu0 0.0
          %1023 = vmatpush.msra.mxu0 0.0
          %1024 = vmatpush.msra.mxu0 0.0
          %1025 = vmatpush.msra.mxu0 0.0
          %1026 = vmatpush.msra.mxu0 %v1013
          %1027 = vmatpush.msra.mxu0 %v812
          %1028 = vmatpush.msra.mxu0 %v811
          %1029 = vmatpush.msra.mxu0 %v810
          %1030 = vmatpush.msra.mxu0 %v809
          %1031 = vmatmul.f32.gmra.mxu0 %v820
          %v1032 = vpop.f32.mrf.mxu0
          %v1033 = vadd.f32 %v816, %v1032
          %1034 = vmatmul.f32.gmra.mxu0 %v823
          %v1035 = vpop.f32.mrf.mxu0
          %v1036 = vadd.f32 %v816, %v1035
          %1037 = vmatmul.f32.gmra.mxu0 %v826
          %v1038 = vpop.f32.mrf.mxu0
          %v1039 = vadd.f32 %v816, %v1038
          %1040 = vmatmul.f32.gmra.mxu0 %v829
          %v1041 = vpop.f32.mrf.mxu0
          %v1042 = vadd.f32 %v816, %v1041
          %1043 = vmatmul.f32.gmra.mxu0 %v832
          %v1044 = vpop.f32.mrf.mxu0
          %v1045 = vadd.f32 %v816, %v1044
          %1046 = vmatmul.f32.gmra.mxu0 %v835
          %v1047 = vpop.f32.mrf.mxu0
          %v1048 = vadd.f32 %v816, %v1047
          %1049 = vmatmul.f32.gmra.mxu0 %v838
          %v1050 = vpop.f32.mrf.mxu0
          %v1051 = vadd.f32 %v816, %v1050
          %1052 = vmatmul.f32.gmra.mxu0 %v841
          %v1053 = vpop.f32.mrf.mxu0
          %v1054 = vadd.f32 %v816, %v1053
          %1055 = vmatmul.f32.gmra.mxu0 %v844
          %v1056 = vpop.f32.mrf.mxu0
          %v1057 = vadd.f32 %v816, %v1056
          %1058 = vmatmul.f32.gmra.mxu0 %v847
          %v1059 = vpop.f32.mrf.mxu0
          %v1060 = vadd.f32 %v816, %v1059
          %1061 = vmatmul.f32.gmra.mxu0 %v850
          %v1062 = vpop.f32.mrf.mxu0
          %v1063 = vadd.f32 %v816, %v1062
          %1064 = vmatmul.f32.gmra.mxu0 %v853
          %v1065 = vpop.f32.mrf.mxu0
          %v1066 = vadd.f32 %v816, %v1065
          %1067 = vmatmul.f32.gmra.mxu0 %v856
          %v1068 = vpop.f32.mrf.mxu0
          %v1069 = vadd.f32 %v816, %v1068
          %1070 = vmatmul.f32.gmra.mxu0 %v859
          %v1071 = vpop.f32.mrf.mxu0
          %v1072 = vadd.f32 %v816, %v1071
          %1073 = vmatmul.f32.gmra.mxu0 %v862
          %v1074 = vpop.f32.mrf.mxu0
          %v1075 = vadd.f32 %v816, %v1074
          %1076 = vmatmul.f32.gmra.mxu0 %v865
          %v1077 = vpop.f32.mrf.mxu0
          %v1078 = vadd.f32 %v816, %v1077
          %1079 = vmatmul.f32.gmra.mxu0 %v868
          %v1080 = vpop.f32.mrf.mxu0
          %v1081 = vadd.f32 %v816, %v1080
          %1082 = vmatmul.f32.gmra.mxu0 %v871
          %v1083 = vpop.f32.mrf.mxu0
          %v1084 = vadd.f32 %v816, %v1083
          %1085 = vmatmul.f32.gmra.mxu0 %v874
          %v1086 = vpop.f32.mrf.mxu0
          %v1087 = vadd.f32 %v816, %v1086
          %1088 = vmatmul.f32.gmra.mxu0 %v877
          %v1089 = vpop.f32.mrf.mxu0
          %v1090 = vadd.f32 %v816, %v1089
          %1091 = vmatmul.f32.gmra.mxu0 %v880
          %v1092 = vpop.f32.mrf.mxu0
          %v1093 = vadd.f32 %v816, %v1092
          %1094 = vmatmul.f32.gmra.mxu0 %v883
          %v1095 = vpop.f32.mrf.mxu0
          %v1096 = vadd.f32 %v816, %v1095
          %1097 = vmatmul.f32.gmra.mxu0 %v886
          %v1098 = vpop.f32.mrf.mxu0
          %v1099 = vadd.f32 %v816, %v1098
          %1100 = vmatmul.f32.gmra.mxu0 %v889
          %v1101 = vpop.f32.mrf.mxu0
          %v1102 = vadd.f32 %v816, %v1101
          %1103 = vmatmul.f32.gmra.mxu0 %v892
          %v1104 = vpop.f32.mrf.mxu0
          %v1105 = vadd.f32 %v816, %v1104
          %1106 = vmatmul.f32.gmra.mxu0 %v895
          %v1107 = vpop.f32.mrf.mxu0
          %v1108 = vadd.f32 %v816, %v1107
          %1109 = vmatmul.f32.gmra.mxu0 %v898
          %v1110 = vpop.f32.mrf.mxu0
          %v1111 = vadd.f32 %v816, %v1110
          %1112 = vmatmul.f32.gmra.mxu0 %v901
          %v1113 = vpop.f32.mrf.mxu0
          %v1114 = vadd.f32 %v816, %v1113
          %1115 = vmatmul.f32.gmra.mxu0 %v904
          %v1116 = vpop.f32.mrf.mxu0
          %v1117 = vadd.f32 %v816, %v1116
          %1118 = vmatmul.f32.gmra.mxu0 %v907
          %v1119 = vpop.f32.mrf.mxu0
          %v1120 = vadd.f32 %v816, %v1119
          %1121 = vmatmul.f32.gmra.mxu0 %v910
          %v1122 = vpop.f32.mrf.mxu0
          %v1123 = vadd.f32 %v816, %v1122
          %1124 = vmatmul.f32.gmra.mxu0 %v913
          %v1125 = vpop.f32.mrf.mxu0
          %v1126 = vadd.f32 %v816, %v1125
          %1127 = vmatmul.f32.gmra.mxu0 %v916
          %v1128 = vpop.f32.mrf.mxu0
          %v1129 = vadd.f32 %v816, %v1128
          %1130 = vmatmul.f32.gmra.mxu0 %v919
          %v1131 = vpop.f32.mrf.mxu0
          %v1132 = vadd.f32 %v816, %v1131
          %1133 = vmatmul.f32.gmra.mxu0 %v922
          %v1134 = vpop.f32.mrf.mxu0
          %v1135 = vadd.f32 %v816, %v1134
          %1136 = vmatmul.f32.gmra.mxu0 %v925
          %v1137 = vpop.f32.mrf.mxu0
          %v1138 = vadd.f32 %v816, %v1137
          %1139 = vmatmul.f32.gmra.mxu0 %v928
          %v1140 = vpop.f32.mrf.mxu0
          %v1141 = vadd.f32 %v816, %v1140
          %1142 = vmatmul.f32.gmra.mxu0 %v931
          %v1143 = vpop.f32.mrf.mxu0
          %v1144 = vadd.f32 %v816, %v1143
          %1145 = vmatmul.f32.gmra.mxu0 %v934
          %v1146 = vpop.f32.mrf.mxu0
          %v1147 = vadd.f32 %v816, %v1146
          %1148 = vmatmul.f32.gmra.mxu0 %v937
          %v1149 = vpop.f32.mrf.mxu0
          %v1150 = vadd.f32 %v816, %v1149
          %1151 = vmatmul.f32.gmra.mxu0 %v940
          %v1152 = vpop.f32.mrf.mxu0
          %v1153 = vadd.f32 %v816, %v1152
          %1154 = vmatmul.f32.gmra.mxu0 %v943
          %v1155 = vpop.f32.mrf.mxu0
          %v1156 = vadd.f32 %v816, %v1155
          %1157 = vmatmul.f32.gmra.mxu0 %v946
          %v1158 = vpop.f32.mrf.mxu0
          %v1159 = vadd.f32 %v816, %v1158
          %1160 = vmatmul.f32.gmra.mxu0 %v949
          %v1161 = vpop.f32.mrf.mxu0
          %v1162 = vadd.f32 %v816, %v1161
          %1163 = vmatmul.f32.gmra.mxu0 %v952
          %v1164 = vpop.f32.mrf.mxu0
          %v1165 = vadd.f32 %v816, %v1164
          %1166 = vmatmul.f32.gmra.mxu0 %v955
          %v1167 = vpop.f32.mrf.mxu0
          %v1168 = vadd.f32 %v816, %v1167
          %1169 = vmatmul.f32.gmra.mxu0 %v958
          %v1170 = vpop.f32.mrf.mxu0
          %v1171 = vadd.f32 %v816, %v1170
          %1172 = vmatmul.f32.gmra.mxu0 %v961
          %v1173 = vpop.f32.mrf.mxu0
          %v1174 = vadd.f32 %v816, %v1173
          %1175 = vmatmul.f32.gmra.mxu0 %v964
          %v1176 = vpop.f32.mrf.mxu0
          %v1177 = vadd.f32 %v816, %v1176
          %1178 = vmatmul.f32.gmra.mxu0 %v967
          %v1179 = vpop.f32.mrf.mxu0
          %v1180 = vadd.f32 %v816, %v1179
          %1181 = vmatmul.f32.gmra.mxu0 %v970
          %v1182 = vpop.f32.mrf.mxu0
          %v1183 = vadd.f32 %v816, %v1182
          %1184 = vmatmul.f32.gmra.mxu0 %v973
          %v1185 = vpop.f32.mrf.mxu0
          %v1186 = vadd.f32 %v816, %v1185
          %1187 = vmatmul.f32.gmra.mxu0 %v976
          %v1188 = vpop.f32.mrf.mxu0
          %v1189 = vadd.f32 %v816, %v1188
          %1190 = vmatmul.f32.gmra.mxu0 %v979
          %v1191 = vpop.f32.mrf.mxu0
          %v1192 = vadd.f32 %v816, %v1191
          %1193 = vmatmul.f32.gmra.mxu0 %v982
          %v1194 = vpop.f32.mrf.mxu0
          %v1195 = vadd.f32 %v816, %v1194
          %1196 = vmatmul.f32.gmra.mxu0 %v985
          %v1197 = vpop.f32.mrf.mxu0
          %v1198 = vadd.f32 %v816, %v1197
          %1199 = vmatmul.f32.gmra.mxu0 %v988
          %v1200 = vpop.f32.mrf.mxu0
          %v1201 = vadd.f32 %v816, %v1200
          %1202 = vmatmul.f32.gmra.mxu0 %v991
          %v1203 = vpop.f32.mrf.mxu0
          %v1204 = vadd.f32 %v816, %v1203
          %1205 = vmatmul.f32.gmra.mxu0 %v994
          %v1206 = vpop.f32.mrf.mxu0
          %v1207 = vadd.f32 %v816, %v1206
          %1208 = vmatmul.f32.gmra.mxu0 %v997
          %v1209 = vpop.f32.mrf.mxu0
          %v1210 = vadd.f32 %v816, %v1209
          %1211 = vmatmul.f32.gmra.mxu0 %v1000
          %v1212 = vpop.f32.mrf.mxu0
          %v1213 = vadd.f32 %v816, %v1212
          %1214 = vmatmul.f32.gmra.mxu0 %v1003
          %v1215 = vpop.f32.mrf.mxu0
          %v1216 = vadd.f32 %v816, %v1215
          %1217 = vmatmul.f32.gmra.mxu0 %v1006
          %v1218 = vpop.f32.mrf.mxu0
          %v1219 = vadd.f32 %v816, %v1218
          %1220 = vmatmul.f32.gmra.mxu0 %v1009
          %v1221 = vpop.f32.mrf.mxu0
          %v1222 = vadd.f32 %v816, %v1221
          %1223 = vdwg.mxu0
          %s1224 = scalar_lea.vmem [#allocation2], 88
          %1225 = vst.msk [vmem:[%s1224] sm:$0xff] %vm644, %v1033
          %1226 = vst.msk [vmem:[%s1224 + $0x8] sm:$0xff] %vm644, %v1036
          %1227 = vst.msk [vmem:[%s1224 + $0x10] sm:$0xff] %vm644, %v1039
          %1228 = vst.msk [vmem:[%s1224 + $0x18] sm:$0xff] %vm644, %v1042
          %1229 = vst.msk [vmem:[%s1224 + $0x20] sm:$0xff] %vm644, %v1045
          %1230 = vst.msk [vmem:[%s1224 + $0x28] sm:$0xff] %vm644, %v1048
          %1231 = vst.msk [vmem:[%s1224 + $0x30] sm:$0xff] %vm644, %v1051
          %1232 = vst.msk [vmem:[%s1224 + $0x38] sm:$0xff] %vm644, %v1054
          %1233 = vst.msk [vmem:[%s1224 + $0x50] sm:$0xff] %vm644, %v1057
          %1234 = vst.msk [vmem:[%s1224 + $0x58] sm:$0xff] %vm644, %v1060
          %1235 = vst.msk [vmem:[%s1224 + $0x60] sm:$0xff] %vm644, %v1063
          %1236 = vst.msk [vmem:[%s1224 + $0x68] sm:$0xff] %vm644, %v1066
          %1237 = vst.msk [vmem:[%s1224 + $0x70] sm:$0xff] %vm644, %v1069
          %1238 = vst.msk [vmem:[%s1224 + $0x78] sm:$0xff] %vm644, %v1072
          %1239 = vst.msk [vmem:[%s1224 + $0x80] sm:$0xff] %vm644, %v1075
          %1240 = vst.msk [vmem:[%s1224 + $0x88] sm:$0xff] %vm644, %v1078
          %1241 = vst.msk [vmem:[%s1224 + $0xa0] sm:$0xff] %vm644, %v1081
          %1242 = vst.msk [vmem:[%s1224 + $0xa8] sm:$0xff] %vm644, %v1084
          %1243 = vst.msk [vmem:[%s1224 + $0xb0] sm:$0xff] %vm644, %v1087
          %1244 = vst.msk [vmem:[%s1224 + $0xb8] sm:$0xff] %vm644, %v1090
          %1245 = vst.msk [vmem:[%s1224 + $0xc0] sm:$0xff] %vm644, %v1093
          %1246 = vst.msk [vmem:[%s1224 + $0xc8] sm:$0xff] %vm644, %v1096
          %1247 = vst.msk [vmem:[%s1224 + $0xd0] sm:$0xff] %vm644, %v1099
          %1248 = vst.msk [vmem:[%s1224 + $0xd8] sm:$0xff] %vm644, %v1102
          %1249 = vst.msk [vmem:[%s1224 + $0xf0] sm:$0xff] %vm644, %v1105
          %1250 = vst.msk [vmem:[%s1224 + $0xf8] sm:$0xff] %vm644, %v1108
          %1251 = vst.msk [vmem:[%s1224 + $0x100] sm:$0xff] %vm644, %v1111
          %1252 = vst.msk [vmem:[%s1224 + $0x108] sm:$0xff] %vm644, %v1114
          %1253 = vst.msk [vmem:[%s1224 + $0x110] sm:$0xff] %vm644, %v1117
          %1254 = vst.msk [vmem:[%s1224 + $0x118] sm:$0xff] %vm644, %v1120
          %1255 = vst.msk [vmem:[%s1224 + $0x120] sm:$0xff] %vm644, %v1123
          %1256 = vst.msk [vmem:[%s1224 + $0x128] sm:$0xff] %vm644, %v1126
          %1257 = vst.msk [vmem:[%s1224 + $0x140] sm:$0xff] %vm644, %v1129
          %1258 = vst.msk [vmem:[%s1224 + $0x148] sm:$0xff] %vm644, %v1132
          %1259 = vst.msk [vmem:[%s1224 + $0x150] sm:$0xff] %vm644, %v1135
          %1260 = vst.msk [vmem:[%s1224 + $0x158] sm:$0xff] %vm644, %v1138
          %1261 = vst.msk [vmem:[%s1224 + $0x160] sm:$0xff] %vm644, %v1141
          %1262 = vst.msk [vmem:[%s1224 + $0x168] sm:$0xff] %vm644, %v1144
          %1263 = vst.msk [vmem:[%s1224 + $0x170] sm:$0xff] %vm644, %v1147
          %1264 = vst.msk [vmem:[%s1224 + $0x178] sm:$0xff] %vm644, %v1150
          %1265 = vst.msk [vmem:[%s1224 + $0x190] sm:$0xff] %vm644, %v1153
          %1266 = vst.msk [vmem:[%s1224 + $0x198] sm:$0xff] %vm644, %v1156
          %1267 = vst.msk [vmem:[%s1224 + $0x1a0] sm:$0xff] %vm644, %v1159
          %1268 = vst.msk [vmem:[%s1224 + $0x1a8] sm:$0xff] %vm644, %v1162
          %1269 = vst.msk [vmem:[%s1224 + $0x1b0] sm:$0xff] %vm644, %v1165
          %1270 = vst.msk [vmem:[%s1224 + $0x1b8] sm:$0xff] %vm644, %v1168
          %1271 = vst.msk [vmem:[%s1224 + $0x1c0] sm:$0xff] %vm644, %v1171
          %1272 = vst.msk [vmem:[%s1224 + $0x1c8] sm:$0xff] %vm644, %v1174
          %1273 = vst.msk [vmem:[%s1224 + $0x1e0] sm:$0xff] %vm644, %v1177
          %1274 = vst.msk [vmem:[%s1224 + $0x1e8] sm:$0xff] %vm644, %v1180
          %1275 = vst.msk [vmem:[%s1224 + $0x1f0] sm:$0xff] %vm644, %v1183
          %1276 = vst.msk [vmem:[%s1224 + $0x1f8] sm:$0xff] %vm644, %v1186
          %1277 = vst.msk [vmem:[%s1224 + $0x200] sm:$0xff] %vm644, %v1189
          %1278 = vst.msk [vmem:[%s1224 + $0x208] sm:$0xff] %vm644, %v1192
          %1279 = vst.msk [vmem:[%s1224 + $0x210] sm:$0xff] %vm644, %v1195
          %1280 = vst.msk [vmem:[%s1224 + $0x218] sm:$0xff] %vm644, %v1198
          %1281 = vst.msk [vmem:[%s1224 + $0x230] sm:$0xff] %vm644, %v1201
          %1282 = vst.msk [vmem:[%s1224 + $0x238] sm:$0xff] %vm644, %v1204
          %1283 = vst.msk [vmem:[%s1224 + $0x240] sm:$0xff] %vm644, %v1207
          %1284 = vst.msk [vmem:[%s1224 + $0x248] sm:$0xff] %vm644, %v1210
          %1285 = vst.msk [vmem:[%s1224 + $0x250] sm:$0xff] %vm644, %v1213
          %1286 = vst.msk [vmem:[%s1224 + $0x258] sm:$0xff] %vm644, %v1216
          %1287 = vst.msk [vmem:[%s1224 + $0x260] sm:$0xff] %vm644, %v1219
          %1288 = vst.msk [vmem:[%s1224 + $0x268] sm:$0xff] %vm644, %v1222
        $region100: #{acnn_bilstm_forward.1} parent=95 // pred_fallthru
          _
        %v1289 = vld [vmem:[#allocation2] sm:$0xff]
        %v1290 = vld [vmem:[#allocation2 + $0x8] sm:$0xff]
        %v1291 = vld [vmem:[#allocation2 + $0x10] sm:$0xff]
        %v1292 = vld [vmem:[#allocation2 + $0x18] sm:$0xff]
        %v1293 = vld [vmem:[#allocation2 + $0x20] sm:$0xff]
        %v1294 = vld [vmem:[#allocation2 + $0x28] sm:$0xff]
        %v1295 = vld [vmem:[#allocation2 + $0x30] sm:$0xff]
        %v1296 = vld [vmem:[#allocation2 + $0x38] sm:$0xff]
        %v1297 = vld [vmem:[#allocation2 + $0x50] sm:$0xff]
        %v1298 = vld [vmem:[#allocation2 + $0x58] sm:$0xff]
        %v1299 = vld [vmem:[#allocation2 + $0x60] sm:$0xff]
        %v1300 = vld [vmem:[#allocation2 + $0x68] sm:$0xff]
        %v1301 = vld [vmem:[#allocation2 + $0x70] sm:$0xff]
        %v1302 = vld [vmem:[#allocation2 + $0x78] sm:$0xff]
        %v1303 = vld [vmem:[#allocation2 + $0x80] sm:$0xff]
        %v1304 = vld [vmem:[#allocation2 + $0x88] sm:$0xff]
        %v1305 = vld [vmem:[#allocation2 + $0xa0] sm:$0xff]
        %v1306 = vld [vmem:[#allocation2 + $0xa8] sm:$0xff]
        %v1307 = vld [vmem:[#allocation2 + $0xb0] sm:$0xff]
        %v1308 = vld [vmem:[#allocation2 + $0xb8] sm:$0xff]
        %v1309 = vld [vmem:[#allocation2 + $0xc0] sm:$0xff]
        %v1310 = vld [vmem:[#allocation2 + $0xc8] sm:$0xff]
        %v1311 = vld [vmem:[#allocation2 + $0xd0] sm:$0xff]
        %v1312 = vld [vmem:[#allocation2 + $0xd8] sm:$0xff]
        %v1313 = vld [vmem:[#allocation2 + $0xf0] sm:$0xff]
        %v1314 = vld [vmem:[#allocation2 + $0xf8] sm:$0xff]
        %v1315 = vld [vmem:[#allocation2 + $0x100] sm:$0xff]
        %v1316 = vld [vmem:[#allocation2 + $0x108] sm:$0xff]
        %v1317 = vld [vmem:[#allocation2 + $0x110] sm:$0xff]
        %v1318 = vld [vmem:[#allocation2 + $0x118] sm:$0xff]
        %v1319 = vld [vmem:[#allocation2 + $0x120] sm:$0xff]
        %v1320 = vld [vmem:[#allocation2 + $0x128] sm:$0xff]
        %v1321 = vld [vmem:[#allocation2 + $0x140] sm:$0xff]
        %v1322 = vld [vmem:[#allocation2 + $0x148] sm:$0xff]
        %v1323 = vld [vmem:[#allocation2 + $0x150] sm:$0xff]
        %v1324 = vld [vmem:[#allocation2 + $0x158] sm:$0xff]
        %v1325 = vld [vmem:[#allocation2 + $0x160] sm:$0xff]
        %v1326 = vld [vmem:[#allocation2 + $0x168] sm:$0xff]
        %v1327 = vld [vmem:[#allocation2 + $0x170] sm:$0xff]
        %v1328 = vld [vmem:[#allocation2 + $0x178] sm:$0xff]
        %v1329 = vld [vmem:[#allocation2 + $0x190] sm:$0xff]
        %v1330 = vld [vmem:[#allocation2 + $0x198] sm:$0xff]
        %v1331 = vld [vmem:[#allocation2 + $0x1a0] sm:$0xff]
        %v1332 = vld [vmem:[#allocation2 + $0x1a8] sm:$0xff]
        %v1333 = vld [vmem:[#allocation2 + $0x1b0] sm:$0xff]
        %v1334 = vld [vmem:[#allocation2 + $0x1b8] sm:$0xff]
        %v1335 = vld [vmem:[#allocation2 + $0x1c0] sm:$0xff]
        %v1336 = vld [vmem:[#allocation2 + $0x1c8] sm:$0xff]
        %v1337 = vld [vmem:[#allocation2 + $0x1e0] sm:$0xff]
        %v1338 = vld [vmem:[#allocation2 + $0x1e8] sm:$0xff]
        %v1339 = vld [vmem:[#allocation2 + $0x1f0] sm:$0xff]
        %v1340 = vld [vmem:[#allocation2 + $0x1f8] sm:$0xff]
        %v1341 = vld [vmem:[#allocation2 + $0x200] sm:$0xff]
        %v1342 = vld [vmem:[#allocation2 + $0x208] sm:$0xff]
        %v1343 = vld [vmem:[#allocation2 + $0x210] sm:$0xff]
        %v1344 = vld [vmem:[#allocation2 + $0x218] sm:$0xff]
        %v1345 = vld [vmem:[#allocation2 + $0x230] sm:$0xff]
        %v1346 = vld [vmem:[#allocation2 + $0x238] sm:$0xff]
        %v1347 = vld [vmem:[#allocation2 + $0x240] sm:$0xff]
        %v1348 = vld [vmem:[#allocation2 + $0x248] sm:$0xff]
        %v1349 = vld [vmem:[#allocation2 + $0x250] sm:$0xff]
        %v1350 = vld [vmem:[#allocation2 + $0x258] sm:$0xff]
        %v1351 = vld [vmem:[#allocation2 + $0x260] sm:$0xff]
        %v1352 = vld [vmem:[#allocation2 + $0x268] sm:$0xff]
        %v1353 = vld [vmem:[%s627] sm:$0xff]
        %v1354 = vld [vmem:[%s627 + $0x8] sm:$0xff]
        %v1355 = vld [vmem:[%s627 + $0x10] sm:$0xff]
        %v1356 = vld [vmem:[%s627 + $0x18] sm:$0xff]
        %v1357 = vld [vmem:[%s630] sm:$0x1]
        %v1359 = vperm.slane %v1357, 0
        %vm1361 = vcmask 261120
        %v1363 = vsel %vm1361, %v1289, 0
        %v1366 = vsel %vm1361, %v1290, 0
        %v1369 = vsel %vm1361, %v1291, 0
        %v1372 = vsel %vm1361, %v1292, 0
        %v1375 = vsel %vm1361, %v1293, 0
        %v1378 = vsel %vm1361, %v1294, 0
        %v1381 = vsel %vm1361, %v1295, 0
        %v1384 = vsel %vm1361, %v1296, 0
        %v1387 = vsel %vm1361, %v1297, 0
        %v1390 = vsel %vm1361, %v1298, 0
        %v1393 = vsel %vm1361, %v1299, 0
        %v1396 = vsel %vm1361, %v1300, 0
        %v1399 = vsel %vm1361, %v1301, 0
        %v1402 = vsel %vm1361, %v1302, 0
        %v1405 = vsel %vm1361, %v1303, 0
        %v1408 = vsel %vm1361, %v1304, 0
        %v1411 = vsel %vm1361, %v1305, 0
        %v1414 = vsel %vm1361, %v1306, 0
        %v1417 = vsel %vm1361, %v1307, 0
        %v1420 = vsel %vm1361, %v1308, 0
        %v1423 = vsel %vm1361, %v1309, 0
        %v1426 = vsel %vm1361, %v1310, 0
        %v1429 = vsel %vm1361, %v1311, 0
        %v1432 = vsel %vm1361, %v1312, 0
        %v1435 = vsel %vm1361, %v1313, 0
        %v1438 = vsel %vm1361, %v1314, 0
        %v1441 = vsel %vm1361, %v1315, 0
        %v1444 = vsel %vm1361, %v1316, 0
        %v1447 = vsel %vm1361, %v1317, 0
        %v1450 = vsel %vm1361, %v1318, 0
        %v1453 = vsel %vm1361, %v1319, 0
        %v1456 = vsel %vm1361, %v1320, 0
        %v1459 = vsel %vm1361, %v1321, 0
        %v1462 = vsel %vm1361, %v1322, 0
        %v1465 = vsel %vm1361, %v1323, 0
        %v1468 = vsel %vm1361, %v1324, 0
        %v1471 = vsel %vm1361, %v1325, 0
        %v1474 = vsel %vm1361, %v1326, 0
        %v1477 = vsel %vm1361, %v1327, 0
        %v1480 = vsel %vm1361, %v1328, 0
        %v1483 = vsel %vm1361, %v1329, 0
        %v1486 = vsel %vm1361, %v1330, 0
        %v1489 = vsel %vm1361, %v1331, 0
        %v1492 = vsel %vm1361, %v1332, 0
        %v1495 = vsel %vm1361, %v1333, 0
        %v1498 = vsel %vm1361, %v1334, 0
        %v1501 = vsel %vm1361, %v1335, 0
        %v1504 = vsel %vm1361, %v1336, 0
        %v1507 = vsel %vm1361, %v1337, 0
        %v1510 = vsel %vm1361, %v1338, 0
        %v1513 = vsel %vm1361, %v1339, 0
        %v1516 = vsel %vm1361, %v1340, 0
        %v1519 = vsel %vm1361, %v1341, 0
        %v1522 = vsel %vm1361, %v1342, 0
        %v1525 = vsel %vm1361, %v1343, 0
        %v1528 = vsel %vm1361, %v1344, 0
        %v1531 = vsel %vm1361, %v1345, 0
        %v1534 = vsel %vm1361, %v1346, 0
        %v1537 = vsel %vm1361, %v1347, 0
        %v1540 = vsel %vm1361, %v1348, 0
        %v1543 = vsel %vm1361, %v1349, 0
        %v1546 = vsel %vm1361, %v1350, 0
        %v1549 = vsel %vm1361, %v1351, 0
        %v1552 = vsel %vm1361, %v1352, 0
        %1554 = vmatpush.msra.mxu0 0.0
        %1555 = vmatpush.msra.mxu0 0.0
        %1556 = vmatpush.msra.mxu0 0.0
        %1557 = vmatpush.msra.mxu0 0.0
        %1558 = vmatpush.msra.mxu0 0.0
        %1559 = vmatpush.msra.mxu0 0.0
        %1560 = vmatpush.msra.mxu0 0.0
        %1561 = vmatpush.msra.mxu0 0.0
        %1562 = vmatpush.msra.mxu0 0.0
        %1563 = vmatpush.msra.mxu0 0.0
        %1564 = vmatpush.msra.mxu0 0.0
        %1565 = vmatpush.msra.mxu0 0.0
        %1566 = vmatpush.msra.mxu0 %v1356
        %1567 = vmatpush.msra.mxu0 %v1355
        %1568 = vmatpush.msra.mxu0 %v1354
        %1569 = vmatpush.msra.mxu0 %v1353
        %1570 = vmatmul.f32.gmra.mxu0 %v1363
        %v1571 = vpop.f32.mrf.mxu0
        %v1572 = vadd.f32 %v1359, %v1571
        %1573 = vmatmul.f32.gmra.mxu0 %v1366
        %v1574 = vpop.f32.mrf.mxu0
        %v1575 = vadd.f32 %v1359, %v1574
        %1576 = vmatmul.f32.gmra.mxu0 %v1369
        %v1577 = vpop.f32.mrf.mxu0
        %v1578 = vadd.f32 %v1359, %v1577
        %1579 = vmatmul.f32.gmra.mxu0 %v1372
        %v1580 = vpop.f32.mrf.mxu0
        %v1581 = vadd.f32 %v1359, %v1580
        %1582 = vmatmul.f32.gmra.mxu0 %v1375
        %v1583 = vpop.f32.mrf.mxu0
        %v1584 = vadd.f32 %v1359, %v1583
        %1585 = vmatmul.f32.gmra.mxu0 %v1378
        %v1586 = vpop.f32.mrf.mxu0
        %v1587 = vadd.f32 %v1359, %v1586
        %1588 = vmatmul.f32.gmra.mxu0 %v1381
        %v1589 = vpop.f32.mrf.mxu0
        %v1590 = vadd.f32 %v1359, %v1589
        %1591 = vmatmul.f32.gmra.mxu0 %v1384
        %v1592 = vpop.f32.mrf.mxu0
        %v1593 = vadd.f32 %v1359, %v1592
        %1594 = vmatmul.f32.gmra.mxu0 %v1387
        %v1595 = vpop.f32.mrf.mxu0
        %v1596 = vadd.f32 %v1359, %v1595
        %1597 = vmatmul.f32.gmra.mxu0 %v1390
        %v1598 = vpop.f32.mrf.mxu0
        %v1599 = vadd.f32 %v1359, %v1598
        %1600 = vmatmul.f32.gmra.mxu0 %v1393
        %v1601 = vpop.f32.mrf.mxu0
        %v1602 = vadd.f32 %v1359, %v1601
        %1603 = vmatmul.f32.gmra.mxu0 %v1396
        %v1604 = vpop.f32.mrf.mxu0
        %v1605 = vadd.f32 %v1359, %v1604
        %1606 = vmatmul.f32.gmra.mxu0 %v1399
        %v1607 = vpop.f32.mrf.mxu0
        %v1608 = vadd.f32 %v1359, %v1607
        %1609 = vmatmul.f32.gmra.mxu0 %v1402
        %v1610 = vpop.f32.mrf.mxu0
        %v1611 = vadd.f32 %v1359, %v1610
        %1612 = vmatmul.f32.gmra.mxu0 %v1405
        %v1613 = vpop.f32.mrf.mxu0
        %v1614 = vadd.f32 %v1359, %v1613
        %1615 = vmatmul.f32.gmra.mxu0 %v1408
        %v1616 = vpop.f32.mrf.mxu0
        %v1617 = vadd.f32 %v1359, %v1616
        %1618 = vmatmul.f32.gmra.mxu0 %v1411
        %v1619 = vpop.f32.mrf.mxu0
        %v1620 = vadd.f32 %v1359, %v1619
        %1621 = vmatmul.f32.gmra.mxu0 %v1414
        %v1622 = vpop.f32.mrf.mxu0
        %v1623 = vadd.f32 %v1359, %v1622
        %1624 = vmatmul.f32.gmra.mxu0 %v1417
        %v1625 = vpop.f32.mrf.mxu0
        %v1626 = vadd.f32 %v1359, %v1625
        %1627 = vmatmul.f32.gmra.mxu0 %v1420
        %v1628 = vpop.f32.mrf.mxu0
        %v1629 = vadd.f32 %v1359, %v1628
        %1630 = vmatmul.f32.gmra.mxu0 %v1423
        %v1631 = vpop.f32.mrf.mxu0
        %v1632 = vadd.f32 %v1359, %v1631
        %1633 = vmatmul.f32.gmra.mxu0 %v1426
        %v1634 = vpop.f32.mrf.mxu0
        %v1635 = vadd.f32 %v1359, %v1634
        %1636 = vmatmul.f32.gmra.mxu0 %v1429
        %v1637 = vpop.f32.mrf.mxu0
        %v1638 = vadd.f32 %v1359, %v1637
        %1639 = vmatmul.f32.gmra.mxu0 %v1432
        %v1640 = vpop.f32.mrf.mxu0
        %v1641 = vadd.f32 %v1359, %v1640
        %1642 = vmatmul.f32.gmra.mxu0 %v1435
        %v1643 = vpop.f32.mrf.mxu0
        %v1644 = vadd.f32 %v1359, %v1643
        %1645 = vmatmul.f32.gmra.mxu0 %v1438
        %v1646 = vpop.f32.mrf.mxu0
        %v1647 = vadd.f32 %v1359, %v1646
        %1648 = vmatmul.f32.gmra.mxu0 %v1441
        %v1649 = vpop.f32.mrf.mxu0
        %v1650 = vadd.f32 %v1359, %v1649
        %1651 = vmatmul.f32.gmra.mxu0 %v1444
        %v1652 = vpop.f32.mrf.mxu0
        %v1653 = vadd.f32 %v1359, %v1652
        %1654 = vmatmul.f32.gmra.mxu0 %v1447
        %v1655 = vpop.f32.mrf.mxu0
        %v1656 = vadd.f32 %v1359, %v1655
        %1657 = vmatmul.f32.gmra.mxu0 %v1450
        %v1658 = vpop.f32.mrf.mxu0
        %v1659 = vadd.f32 %v1359, %v1658
        %1660 = vmatmul.f32.gmra.mxu0 %v1453
        %v1661 = vpop.f32.mrf.mxu0
        %v1662 = vadd.f32 %v1359, %v1661
        %1663 = vmatmul.f32.gmra.mxu0 %v1456
        %v1664 = vpop.f32.mrf.mxu0
        %v1665 = vadd.f32 %v1359, %v1664
        %1666 = vmatmul.f32.gmra.mxu0 %v1459
        %v1667 = vpop.f32.mrf.mxu0
        %v1668 = vadd.f32 %v1359, %v1667
        %1669 = vmatmul.f32.gmra.mxu0 %v1462
        %v1670 = vpop.f32.mrf.mxu0
        %v1671 = vadd.f32 %v1359, %v1670
        %1672 = vmatmul.f32.gmra.mxu0 %v1465
        %v1673 = vpop.f32.mrf.mxu0
        %v1674 = vadd.f32 %v1359, %v1673
        %1675 = vmatmul.f32.gmra.mxu0 %v1468
        %v1676 = vpop.f32.mrf.mxu0
        %v1677 = vadd.f32 %v1359, %v1676
        %1678 = vmatmul.f32.gmra.mxu0 %v1471
        %v1679 = vpop.f32.mrf.mxu0
        %v1680 = vadd.f32 %v1359, %v1679
        %1681 = vmatmul.f32.gmra.mxu0 %v1474
        %v1682 = vpop.f32.mrf.mxu0
        %v1683 = vadd.f32 %v1359, %v1682
        %1684 = vmatmul.f32.gmra.mxu0 %v1477
        %v1685 = vpop.f32.mrf.mxu0
        %v1686 = vadd.f32 %v1359, %v1685
        %1687 = vmatmul.f32.gmra.mxu0 %v1480
        %v1688 = vpop.f32.mrf.mxu0
        %v1689 = vadd.f32 %v1359, %v1688
        %1690 = vmatmul.f32.gmra.mxu0 %v1483
        %v1691 = vpop.f32.mrf.mxu0
        %v1692 = vadd.f32 %v1359, %v1691
        %1693 = vmatmul.f32.gmra.mxu0 %v1486
        %v1694 = vpop.f32.mrf.mxu0
        %v1695 = vadd.f32 %v1359, %v1694
        %1696 = vmatmul.f32.gmra.mxu0 %v1489
        %v1697 = vpop.f32.mrf.mxu0
        %v1698 = vadd.f32 %v1359, %v1697
        %1699 = vmatmul.f32.gmra.mxu0 %v1492
        %v1700 = vpop.f32.mrf.mxu0
        %v1701 = vadd.f32 %v1359, %v1700
        %1702 = vmatmul.f32.gmra.mxu0 %v1495
        %v1703 = vpop.f32.mrf.mxu0
        %v1704 = vadd.f32 %v1359, %v1703
        %1705 = vmatmul.f32.gmra.mxu0 %v1498
        %v1706 = vpop.f32.mrf.mxu0
        %v1707 = vadd.f32 %v1359, %v1706
        %1708 = vmatmul.f32.gmra.mxu0 %v1501
        %v1709 = vpop.f32.mrf.mxu0
        %v1710 = vadd.f32 %v1359, %v1709
        %1711 = vmatmul.f32.gmra.mxu0 %v1504
        %v1712 = vpop.f32.mrf.mxu0
        %v1713 = vadd.f32 %v1359, %v1712
        %1714 = vmatmul.f32.gmra.mxu0 %v1507
        %v1715 = vpop.f32.mrf.mxu0
        %v1716 = vadd.f32 %v1359, %v1715
        %1717 = vmatmul.f32.gmra.mxu0 %v1510
        %v1718 = vpop.f32.mrf.mxu0
        %v1719 = vadd.f32 %v1359, %v1718
        %1720 = vmatmul.f32.gmra.mxu0 %v1513
        %v1721 = vpop.f32.mrf.mxu0
        %v1722 = vadd.f32 %v1359, %v1721
        %1723 = vmatmul.f32.gmra.mxu0 %v1516
        %v1724 = vpop.f32.mrf.mxu0
        %v1725 = vadd.f32 %v1359, %v1724
        %1726 = vmatmul.f32.gmra.mxu0 %v1519
        %v1727 = vpop.f32.mrf.mxu0
        %v1728 = vadd.f32 %v1359, %v1727
        %1729 = vmatmul.f32.gmra.mxu0 %v1522
        %v1730 = vpop.f32.mrf.mxu0
        %v1731 = vadd.f32 %v1359, %v1730
        %1732 = vmatmul.f32.gmra.mxu0 %v1525
        %v1733 = vpop.f32.mrf.mxu0
        %v1734 = vadd.f32 %v1359, %v1733
        %1735 = vmatmul.f32.gmra.mxu0 %v1528
        %v1736 = vpop.f32.mrf.mxu0
        %v1737 = vadd.f32 %v1359, %v1736
        %1738 = vmatmul.f32.gmra.mxu0 %v1531
        %v1739 = vpop.f32.mrf.mxu0
        %v1740 = vadd.f32 %v1359, %v1739
        %1741 = vmatmul.f32.gmra.mxu0 %v1534
        %v1742 = vpop.f32.mrf.mxu0
        %v1743 = vadd.f32 %v1359, %v1742
        %1744 = vmatmul.f32.gmra.mxu0 %v1537
        %v1745 = vpop.f32.mrf.mxu0
        %v1746 = vadd.f32 %v1359, %v1745
        %1747 = vmatmul.f32.gmra.mxu0 %v1540
        %v1748 = vpop.f32.mrf.mxu0
        %v1749 = vadd.f32 %v1359, %v1748
        %1750 = vmatmul.f32.gmra.mxu0 %v1543
        %v1751 = vpop.f32.mrf.mxu0
        %v1752 = vadd.f32 %v1359, %v1751
        %1753 = vmatmul.f32.gmra.mxu0 %v1546
        %v1754 = vpop.f32.mrf.mxu0
        %v1755 = vadd.f32 %v1359, %v1754
        %1756 = vmatmul.f32.gmra.mxu0 %v1549
        %v1757 = vpop.f32.mrf.mxu0
        %v1758 = vadd.f32 %v1359, %v1757
        %1759 = vmatmul.f32.gmra.mxu0 %v1552
        %v1760 = vpop.f32.mrf.mxu0
        %v1761 = vadd.f32 %v1359, %v1760
        %1762 = vdwg.mxu0
        %1763 = vst.msk [vmem:[#allocation3] sm:$0xff] %vm1361, %v1572
        %1764 = vst.msk [vmem:[#allocation3 + $0x8] sm:$0xff] %vm1361, %v1575
        %1765 = vst.msk [vmem:[#allocation3 + $0x10] sm:$0xff] %vm1361, %v1578
        %1766 = vst.msk [vmem:[#allocation3 + $0x18] sm:$0xff] %vm1361, %v1581
        %1767 = vst.msk [vmem:[#allocation3 + $0x20] sm:$0xff] %vm1361, %v1584
        %1768 = vst.msk [vmem:[#allocation3 + $0x28] sm:$0xff] %vm1361, %v1587
        %1769 = vst.msk [vmem:[#allocation3 + $0x30] sm:$0xff] %vm1361, %v1590
        %1770 = vst.msk [vmem:[#allocation3 + $0x38] sm:$0xff] %vm1361, %v1593
        %1771 = vst.msk [vmem:[#allocation3 + $0x40] sm:$0xff] %vm1361, %v1596
        %1772 = vst.msk [vmem:[#allocation3 + $0x48] sm:$0xff] %vm1361, %v1599
        %1773 = vst.msk [vmem:[#allocation3 + $0x50] sm:$0xff] %vm1361, %v1602
        %1774 = vst.msk [vmem:[#allocation3 + $0x58] sm:$0xff] %vm1361, %v1605
        %1775 = vst.msk [vmem:[#allocation3 + $0x60] sm:$0xff] %vm1361, %v1608
        %1776 = vst.msk [vmem:[#allocation3 + $0x68] sm:$0xff] %vm1361, %v1611
        %1777 = vst.msk [vmem:[#allocation3 + $0x70] sm:$0xff] %vm1361, %v1614
        %1778 = vst.msk [vmem:[#allocation3 + $0x78] sm:$0xff] %vm1361, %v1617
        %1779 = vst.msk [vmem:[#allocation3 + $0x80] sm:$0xff] %vm1361, %v1620
        %1780 = vst.msk [vmem:[#allocation3 + $0x88] sm:$0xff] %vm1361, %v1623
        %1781 = vst.msk [vmem:[#allocation3 + $0x90] sm:$0xff] %vm1361, %v1626
        %1782 = vst.msk [vmem:[#allocation3 + $0x98] sm:$0xff] %vm1361, %v1629
        %1783 = vst.msk [vmem:[#allocation3 + $0xa0] sm:$0xff] %vm1361, %v1632
        %1784 = vst.msk [vmem:[#allocation3 + $0xa8] sm:$0xff] %vm1361, %v1635
        %1785 = vst.msk [vmem:[#allocation3 + $0xb0] sm:$0xff] %vm1361, %v1638
        %1786 = vst.msk [vmem:[#allocation3 + $0xb8] sm:$0xff] %vm1361, %v1641
        %1787 = vst.msk [vmem:[#allocation3 + $0xc0] sm:$0xff] %vm1361, %v1644
        %1788 = vst.msk [vmem:[#allocation3 + $0xc8] sm:$0xff] %vm1361, %v1647
        %1789 = vst.msk [vmem:[#allocation3 + $0xd0] sm:$0xff] %vm1361, %v1650
        %1790 = vst.msk [vmem:[#allocation3 + $0xd8] sm:$0xff] %vm1361, %v1653
        %1791 = vst.msk [vmem:[#allocation3 + $0xe0] sm:$0xff] %vm1361, %v1656
        %1792 = vst.msk [vmem:[#allocation3 + $0xe8] sm:$0xff] %vm1361, %v1659
        %1793 = vst.msk [vmem:[#allocation3 + $0xf0] sm:$0xff] %vm1361, %v1662
        %1794 = vst.msk [vmem:[#allocation3 + $0xf8] sm:$0xff] %vm1361, %v1665
        %1795 = vst.msk [vmem:[#allocation3 + $0x100] sm:$0xff] %vm1361, %v1668
        %1796 = vst.msk [vmem:[#allocation3 + $0x108] sm:$0xff] %vm1361, %v1671
        %1797 = vst.msk [vmem:[#allocation3 + $0x110] sm:$0xff] %vm1361, %v1674
        %1798 = vst.msk [vmem:[#allocation3 + $0x118] sm:$0xff] %vm1361, %v1677
        %1799 = vst.msk [vmem:[#allocation3 + $0x120] sm:$0xff] %vm1361, %v1680
        %1800 = vst.msk [vmem:[#allocation3 + $0x128] sm:$0xff] %vm1361, %v1683
        %1801 = vst.msk [vmem:[#allocation3 + $0x130] sm:$0xff] %vm1361, %v1686
        %1802 = vst.msk [vmem:[#allocation3 + $0x138] sm:$0xff] %vm1361, %v1689
        %1803 = vst.msk [vmem:[#allocation3 + $0x140] sm:$0xff] %vm1361, %v1692
        %1804 = vst.msk [vmem:[#allocation3 + $0x148] sm:$0xff] %vm1361, %v1695
        %1805 = vst.msk [vmem:[#allocation3 + $0x150] sm:$0xff] %vm1361, %v1698
        %1806 = vst.msk [vmem:[#allocation3 + $0x158] sm:$0xff] %vm1361, %v1701
        %1807 = vst.msk [vmem:[#allocation3 + $0x160] sm:$0xff] %vm1361, %v1704
        %1808 = vst.msk [vmem:[#allocation3 + $0x168] sm:$0xff] %vm1361, %v1707
        %1809 = vst.msk [vmem:[#allocation3 + $0x170] sm:$0xff] %vm1361, %v1710
        %1810 = vst.msk [vmem:[#allocation3 + $0x178] sm:$0xff] %vm1361, %v1713
        %1811 = vst.msk [vmem:[#allocation3 + $0x180] sm:$0xff] %vm1361, %v1716
        %1812 = vst.msk [vmem:[#allocation3 + $0x188] sm:$0xff] %vm1361, %v1719
        %1813 = vst.msk [vmem:[#allocation3 + $0x190] sm:$0xff] %vm1361, %v1722
        %1814 = vst.msk [vmem:[#allocation3 + $0x198] sm:$0xff] %vm1361, %v1725
        %1815 = vst.msk [vmem:[#allocation3 + $0x1a0] sm:$0xff] %vm1361, %v1728
        %1816 = vst.msk [vmem:[#allocation3 + $0x1a8] sm:$0xff] %vm1361, %v1731
        %1817 = vst.msk [vmem:[#allocation3 + $0x1b0] sm:$0xff] %vm1361, %v1734
        %1818 = vst.msk [vmem:[#allocation3 + $0x1b8] sm:$0xff] %vm1361, %v1737
        %1819 = vst.msk [vmem:[#allocation3 + $0x1c0] sm:$0xff] %vm1361, %v1740
        %1820 = vst.msk [vmem:[#allocation3 + $0x1c8] sm:$0xff] %vm1361, %v1743
        %1821 = vst.msk [vmem:[#allocation3 + $0x1d0] sm:$0xff] %vm1361, %v1746
        %1822 = vst.msk [vmem:[#allocation3 + $0x1d8] sm:$0xff] %vm1361, %v1749
        %1823 = vst.msk [vmem:[#allocation3 + $0x1e0] sm:$0xff] %vm1361, %v1752
        %1824 = vst.msk [vmem:[#allocation3 + $0x1e8] sm:$0xff] %vm1361, %v1755
        %1825 = vst.msk [vmem:[#allocation3 + $0x1f0] sm:$0xff] %vm1361, %v1758
        %1826 = vst.msk [vmem:[#allocation3 + $0x1f8] sm:$0xff] %vm1361, %v1761
        %s1827 = scalar_lea.vmem [#allocation2], 8
        %v1828 = vld [vmem:[%s1827] sm:$0xff]
        %v1829 = vld [vmem:[%s1827 + $0x8] sm:$0xff]
        %v1830 = vld [vmem:[%s1827 + $0x10] sm:$0xff]
        %v1831 = vld [vmem:[%s1827 + $0x18] sm:$0xff]
        %v1832 = vld [vmem:[%s1827 + $0x20] sm:$0xff]
        %v1833 = vld [vmem:[%s1827 + $0x28] sm:$0xff]
        %v1834 = vld [vmem:[%s1827 + $0x30] sm:$0xff]
        %v1835 = vld [vmem:[%s1827 + $0x38] sm:$0xff]
        %v1836 = vld [vmem:[%s1827 + $0x50] sm:$0xff]
        %v1837 = vld [vmem:[%s1827 + $0x58] sm:$0xff]
        %v1838 = vld [vmem:[%s1827 + $0x60] sm:$0xff]
        %v1839 = vld [vmem:[%s1827 + $0x68] sm:$0xff]
        %v1840 = vld [vmem:[%s1827 + $0x70] sm:$0xff]
        %v1841 = vld [vmem:[%s1827 + $0x78] sm:$0xff]
        %v1842 = vld [vmem:[%s1827 + $0x80] sm:$0xff]
        %v1843 = vld [vmem:[%s1827 + $0x88] sm:$0xff]
        %v1844 = vld [vmem:[%s1827 + $0xa0] sm:$0xff]
        %v1845 = vld [vmem:[%s1827 + $0xa8] sm:$0xff]
        %v1846 = vld [vmem:[%s1827 + $0xb0] sm:$0xff]
        %v1847 = vld [vmem:[%s1827 + $0xb8] sm:$0xff]
        %v1848 = vld [vmem:[%s1827 + $0xc0] sm:$0xff]
        %v1849 = vld [vmem:[%s1827 + $0xc8] sm:$0xff]
        %v1850 = vld [vmem:[%s1827 + $0xd0] sm:$0xff]
        %v1851 = vld [vmem:[%s1827 + $0xd8] sm:$0xff]
        %v1852 = vld [vmem:[%s1827 + $0xf0] sm:$0xff]
        %v1853 = vld [vmem:[%s1827 + $0xf8] sm:$0xff]
        %v1854 = vld [vmem:[%s1827 + $0x100] sm:$0xff]
        %v1855 = vld [vmem:[%s1827 + $0x108] sm:$0xff]
        %v1856 = vld [vmem:[%s1827 + $0x110] sm:$0xff]
        %v1857 = vld [vmem:[%s1827 + $0x118] sm:$0xff]
        %v1858 = vld [vmem:[%s1827 + $0x120] sm:$0xff]
        %v1859 = vld [vmem:[%s1827 + $0x128] sm:$0xff]
        %v1860 = vld [vmem:[%s1827 + $0x140] sm:$0xff]
        %v1861 = vld [vmem:[%s1827 + $0x148] sm:$0xff]
        %v1862 = vld [vmem:[%s1827 + $0x150] sm:$0xff]
        %v1863 = vld [vmem:[%s1827 + $0x158] sm:$0xff]
        %v1864 = vld [vmem:[%s1827 + $0x160] sm:$0xff]
        %v1865 = vld [vmem:[%s1827 + $0x168] sm:$0xff]
        %v1866 = vld [vmem:[%s1827 + $0x170] sm:$0xff]
        %v1867 = vld [vmem:[%s1827 + $0x178] sm:$0xff]
        %v1868 = vld [vmem:[%s1827 + $0x190] sm:$0xff]
        %v1869 = vld [vmem:[%s1827 + $0x198] sm:$0xff]
        %v1870 = vld [vmem:[%s1827 + $0x1a0] sm:$0xff]
        %v1871 = vld [vmem:[%s1827 + $0x1a8] sm:$0xff]
        %v1872 = vld [vmem:[%s1827 + $0x1b0] sm:$0xff]
        %v1873 = vld [vmem:[%s1827 + $0x1b8] sm:$0xff]
        %v1874 = vld [vmem:[%s1827 + $0x1c0] sm:$0xff]
        %v1875 = vld [vmem:[%s1827 + $0x1c8] sm:$0xff]
        %v1876 = vld [vmem:[%s1827 + $0x1e0] sm:$0xff]
        %v1877 = vld [vmem:[%s1827 + $0x1e8] sm:$0xff]
        %v1878 = vld [vmem:[%s1827 + $0x1f0] sm:$0xff]
        %v1879 = vld [vmem:[%s1827 + $0x1f8] sm:$0xff]
        %v1880 = vld [vmem:[%s1827 + $0x200] sm:$0xff]
        %v1881 = vld [vmem:[%s1827 + $0x208] sm:$0xff]
        %v1882 = vld [vmem:[%s1827 + $0x210] sm:$0xff]
        %v1883 = vld [vmem:[%s1827 + $0x218] sm:$0xff]
        %v1884 = vld [vmem:[%s1827 + $0x230] sm:$0xff]
        %v1885 = vld [vmem:[%s1827 + $0x238] sm:$0xff]
        %v1886 = vld [vmem:[%s1827 + $0x240] sm:$0xff]
        %v1887 = vld [vmem:[%s1827 + $0x248] sm:$0xff]
        %v1888 = vld [vmem:[%s1827 + $0x250] sm:$0xff]
        %v1889 = vld [vmem:[%s1827 + $0x258] sm:$0xff]
        %v1890 = vld [vmem:[%s1827 + $0x260] sm:$0xff]
        %v1891 = vld [vmem:[%s1827 + $0x268] sm:$0xff]
        %s1892 = scalar_lea.vmem %s627, 32
        %v1893 = vld [vmem:[%s1892] sm:$0xff]
        %v1894 = vld [vmem:[%s1892 + $0x8] sm:$0xff]
        %v1895 = vld [vmem:[%s1892 + $0x10] sm:$0xff]
        %v1896 = vld [vmem:[%s1892 + $0x18] sm:$0xff]
        %v1898 = vsel %vm1361, %v1828, 0
        %v1901 = vsel %vm1361, %v1829, 0
        %v1904 = vsel %vm1361, %v1830, 0
        %v1907 = vsel %vm1361, %v1831, 0
        %v1910 = vsel %vm1361, %v1832, 0
        %v1913 = vsel %vm1361, %v1833, 0
        %v1916 = vsel %vm1361, %v1834, 0
        %v1919 = vsel %vm1361, %v1835, 0
        %v1922 = vsel %vm1361, %v1836, 0
        %v1925 = vsel %vm1361, %v1837, 0
        %v1928 = vsel %vm1361, %v1838, 0
        %v1931 = vsel %vm1361, %v1839, 0
        %v1934 = vsel %vm1361, %v1840, 0
        %v1937 = vsel %vm1361, %v1841, 0
        %v1940 = vsel %vm1361, %v1842, 0
        %v1943 = vsel %vm1361, %v1843, 0
        %v1946 = vsel %vm1361, %v1844, 0
        %v1949 = vsel %vm1361, %v1845, 0
        %v1952 = vsel %vm1361, %v1846, 0
        %v1955 = vsel %vm1361, %v1847, 0
        %v1958 = vsel %vm1361, %v1848, 0
        %v1961 = vsel %vm1361, %v1849, 0
        %v1964 = vsel %vm1361, %v1850, 0
        %v1967 = vsel %vm1361, %v1851, 0
        %v1970 = vsel %vm1361, %v1852, 0
        %v1973 = vsel %vm1361, %v1853, 0
        %v1976 = vsel %vm1361, %v1854, 0
        %v1979 = vsel %vm1361, %v1855, 0
        %v1982 = vsel %vm1361, %v1856, 0
        %v1985 = vsel %vm1361, %v1857, 0
        %v1988 = vsel %vm1361, %v1858, 0
        %v1991 = vsel %vm1361, %v1859, 0
        %v1994 = vsel %vm1361, %v1860, 0
        %v1997 = vsel %vm1361, %v1861, 0
        %v2000 = vsel %vm1361, %v1862, 0
        %v2003 = vsel %vm1361, %v1863, 0
        %v2006 = vsel %vm1361, %v1864, 0
        %v2009 = vsel %vm1361, %v1865, 0
        %v2012 = vsel %vm1361, %v1866, 0
        %v2015 = vsel %vm1361, %v1867, 0
        %v2018 = vsel %vm1361, %v1868, 0
        %v2021 = vsel %vm1361, %v1869, 0
        %v2024 = vsel %vm1361, %v1870, 0
        %v2027 = vsel %vm1361, %v1871, 0
        %v2030 = vsel %vm1361, %v1872, 0
        %v2033 = vsel %vm1361, %v1873, 0
        %v2036 = vsel %vm1361, %v1874, 0
        %v2039 = vsel %vm1361, %v1875, 0
        %v2042 = vsel %vm1361, %v1876, 0
        %v2045 = vsel %vm1361, %v1877, 0
        %v2048 = vsel %vm1361, %v1878, 0
        %v2051 = vsel %vm1361, %v1879, 0
        %v2054 = vsel %vm1361, %v1880, 0
        %v2057 = vsel %vm1361, %v1881, 0
        %v2060 = vsel %vm1361, %v1882, 0
        %v2063 = vsel %vm1361, %v1883, 0
        %v2066 = vsel %vm1361, %v1884, 0
        %v2069 = vsel %vm1361, %v1885, 0
        %v2072 = vsel %vm1361, %v1886, 0
        %v2075 = vsel %vm1361, %v1887, 0
        %v2078 = vsel %vm1361, %v1888, 0
        %v2081 = vsel %vm1361, %v1889, 0
        %v2084 = vsel %vm1361, %v1890, 0
        %v2087 = vsel %vm1361, %v1891, 0
        %2089 = vmatpush.msra.mxu0 0.0
        %2090 = vmatpush.msra.mxu0 0.0
        %2091 = vmatpush.msra.mxu0 0.0
        %2092 = vmatpush.msra.mxu0 0.0
        %2093 = vmatpush.msra.mxu0 0.0
        %2094 = vmatpush.msra.mxu0 0.0
        %2095 = vmatpush.msra.mxu0 0.0
        %2096 = vmatpush.msra.mxu0 0.0
        %2097 = vmatpush.msra.mxu0 0.0
        %2098 = vmatpush.msra.mxu0 0.0
        %2099 = vmatpush.msra.mxu0 0.0
        %2100 = vmatpush.msra.mxu0 0.0
        %2101 = vmatpush.msra.mxu0 %v1896
        %2102 = vmatpush.msra.mxu0 %v1895
        %2103 = vmatpush.msra.mxu0 %v1894
        %2104 = vmatpush.msra.mxu0 %v1893
        %2105 = vmatmul.f32.gmra.mxu0 %v1898
        %v2106 = vpop.f32.mrf.mxu0
        %v2107 = vadd.f32 0.0, %v2106
        %2108 = vmatmul.f32.gmra.mxu0 %v1901
        %v2109 = vpop.f32.mrf.mxu0
        %v2110 = vadd.f32 0.0, %v2109
        %2111 = vmatmul.f32.gmra.mxu0 %v1904
        %v2112 = vpop.f32.mrf.mxu0
        %v2113 = vadd.f32 0.0, %v2112
        %2114 = vmatmul.f32.gmra.mxu0 %v1907
        %v2115 = vpop.f32.mrf.mxu0
        %v2116 = vadd.f32 0.0, %v2115
        %2117 = vmatmul.f32.gmra.mxu0 %v1910
        %v2118 = vpop.f32.mrf.mxu0
        %v2119 = vadd.f32 0.0, %v2118
        %2120 = vmatmul.f32.gmra.mxu0 %v1913
        %v2121 = vpop.f32.mrf.mxu0
        %v2122 = vadd.f32 0.0, %v2121
        %2123 = vmatmul.f32.gmra.mxu0 %v1916
        %v2124 = vpop.f32.mrf.mxu0
        %v2125 = vadd.f32 0.0, %v2124
        %2126 = vmatmul.f32.gmra.mxu0 %v1919
        %v2127 = vpop.f32.mrf.mxu0
        %v2128 = vadd.f32 0.0, %v2127
        %2129 = vmatmul.f32.gmra.mxu0 %v1922
        %v2130 = vpop.f32.mrf.mxu0
        %v2131 = vadd.f32 0.0, %v2130
        %2132 = vmatmul.f32.gmra.mxu0 %v1925
        %v2133 = vpop.f32.mrf.mxu0
        %v2134 = vadd.f32 0.0, %v2133
        %2135 = vmatmul.f32.gmra.mxu0 %v1928
        %v2136 = vpop.f32.mrf.mxu0
        %v2137 = vadd.f32 0.0, %v2136
        %2138 = vmatmul.f32.gmra.mxu0 %v1931
        %v2139 = vpop.f32.mrf.mxu0
        %v2140 = vadd.f32 0.0, %v2139
        %2141 = vmatmul.f32.gmra.mxu0 %v1934
        %v2142 = vpop.f32.mrf.mxu0
        %v2143 = vadd.f32 0.0, %v2142
        %2144 = vmatmul.f32.gmra.mxu0 %v1937
        %v2145 = vpop.f32.mrf.mxu0
        %v2146 = vadd.f32 0.0, %v2145
        %2147 = vmatmul.f32.gmra.mxu0 %v1940
        %v2148 = vpop.f32.mrf.mxu0
        %v2149 = vadd.f32 0.0, %v2148
        %2150 = vmatmul.f32.gmra.mxu0 %v1943
        %v2151 = vpop.f32.mrf.mxu0
        %v2152 = vadd.f32 0.0, %v2151
        %2153 = vmatmul.f32.gmra.mxu0 %v1946
        %v2154 = vpop.f32.mrf.mxu0
        %v2155 = vadd.f32 0.0, %v2154
        %2156 = vmatmul.f32.gmra.mxu0 %v1949
        %v2157 = vpop.f32.mrf.mxu0
        %v2158 = vadd.f32 0.0, %v2157
        %2159 = vmatmul.f32.gmra.mxu0 %v1952
        %v2160 = vpop.f32.mrf.mxu0
        %v2161 = vadd.f32 0.0, %v2160
        %2162 = vmatmul.f32.gmra.mxu0 %v1955
        %v2163 = vpop.f32.mrf.mxu0
        %v2164 = vadd.f32 0.0, %v2163
        %2165 = vmatmul.f32.gmra.mxu0 %v1958
        %v2166 = vpop.f32.mrf.mxu0
        %v2167 = vadd.f32 0.0, %v2166
        %2168 = vmatmul.f32.gmra.mxu0 %v1961
        %v2169 = vpop.f32.mrf.mxu0
        %v2170 = vadd.f32 0.0, %v2169
        %2171 = vmatmul.f32.gmra.mxu0 %v1964
        %v2172 = vpop.f32.mrf.mxu0
        %v2173 = vadd.f32 0.0, %v2172
        %2174 = vmatmul.f32.gmra.mxu0 %v1967
        %v2175 = vpop.f32.mrf.mxu0
        %v2176 = vadd.f32 0.0, %v2175
        %2177 = vmatmul.f32.gmra.mxu0 %v1970
        %v2178 = vpop.f32.mrf.mxu0
        %v2179 = vadd.f32 0.0, %v2178
        %2180 = vmatmul.f32.gmra.mxu0 %v1973
        %v2181 = vpop.f32.mrf.mxu0
        %v2182 = vadd.f32 0.0, %v2181
        %2183 = vmatmul.f32.gmra.mxu0 %v1976
        %v2184 = vpop.f32.mrf.mxu0
        %v2185 = vadd.f32 0.0, %v2184
        %2186 = vmatmul.f32.gmra.mxu0 %v1979
        %v2187 = vpop.f32.mrf.mxu0
        %v2188 = vadd.f32 0.0, %v2187
        %2189 = vmatmul.f32.gmra.mxu0 %v1982
        %v2190 = vpop.f32.mrf.mxu0
        %v2191 = vadd.f32 0.0, %v2190
        %2192 = vmatmul.f32.gmra.mxu0 %v1985
        %v2193 = vpop.f32.mrf.mxu0
        %v2194 = vadd.f32 0.0, %v2193
        %2195 = vmatmul.f32.gmra.mxu0 %v1988
        %v2196 = vpop.f32.mrf.mxu0
        %v2197 = vadd.f32 0.0, %v2196
        %2198 = vmatmul.f32.gmra.mxu0 %v1991
        %v2199 = vpop.f32.mrf.mxu0
        %v2200 = vadd.f32 0.0, %v2199
        %2201 = vmatmul.f32.gmra.mxu0 %v1994
        %v2202 = vpop.f32.mrf.mxu0
        %v2203 = vadd.f32 0.0, %v2202
        %2204 = vmatmul.f32.gmra.mxu0 %v1997
        %v2205 = vpop.f32.mrf.mxu0
        %v2206 = vadd.f32 0.0, %v2205
        %2207 = vmatmul.f32.gmra.mxu0 %v2000
        %v2208 = vpop.f32.mrf.mxu0
        %v2209 = vadd.f32 0.0, %v2208
        %2210 = vmatmul.f32.gmra.mxu0 %v2003
        %v2211 = vpop.f32.mrf.mxu0
        %v2212 = vadd.f32 0.0, %v2211
        %2213 = vmatmul.f32.gmra.mxu0 %v2006
        %v2214 = vpop.f32.mrf.mxu0
        %v2215 = vadd.f32 0.0, %v2214
        %2216 = vmatmul.f32.gmra.mxu0 %v2009
        %v2217 = vpop.f32.mrf.mxu0
        %v2218 = vadd.f32 0.0, %v2217
        %2219 = vmatmul.f32.gmra.mxu0 %v2012
        %v2220 = vpop.f32.mrf.mxu0
        %v2221 = vadd.f32 0.0, %v2220
        %2222 = vmatmul.f32.gmra.mxu0 %v2015
        %v2223 = vpop.f32.mrf.mxu0
        %v2224 = vadd.f32 0.0, %v2223
        %2225 = vmatmul.f32.gmra.mxu0 %v2018
        %v2226 = vpop.f32.mrf.mxu0
        %v2227 = vadd.f32 0.0, %v2226
        %2228 = vmatmul.f32.gmra.mxu0 %v2021
        %v2229 = vpop.f32.mrf.mxu0
        %v2230 = vadd.f32 0.0, %v2229
        %2231 = vmatmul.f32.gmra.mxu0 %v2024
        %v2232 = vpop.f32.mrf.mxu0
        %v2233 = vadd.f32 0.0, %v2232
        %2234 = vmatmul.f32.gmra.mxu0 %v2027
        %v2235 = vpop.f32.mrf.mxu0
        %v2236 = vadd.f32 0.0, %v2235
        %2237 = vmatmul.f32.gmra.mxu0 %v2030
        %v2238 = vpop.f32.mrf.mxu0
        %v2239 = vadd.f32 0.0, %v2238
        %2240 = vmatmul.f32.gmra.mxu0 %v2033
        %v2241 = vpop.f32.mrf.mxu0
        %v2242 = vadd.f32 0.0, %v2241
        %2243 = vmatmul.f32.gmra.mxu0 %v2036
        %v2244 = vpop.f32.mrf.mxu0
        %v2245 = vadd.f32 0.0, %v2244
        %2246 = vmatmul.f32.gmra.mxu0 %v2039
        %v2247 = vpop.f32.mrf.mxu0
        %v2248 = vadd.f32 0.0, %v2247
        %2249 = vmatmul.f32.gmra.mxu0 %v2042
        %v2250 = vpop.f32.mrf.mxu0
        %v2251 = vadd.f32 0.0, %v2250
        %2252 = vmatmul.f32.gmra.mxu0 %v2045
        %v2253 = vpop.f32.mrf.mxu0
        %v2254 = vadd.f32 0.0, %v2253
        %2255 = vmatmul.f32.gmra.mxu0 %v2048
        %v2256 = vpop.f32.mrf.mxu0
        %v2257 = vadd.f32 0.0, %v2256
        %2258 = vmatmul.f32.gmra.mxu0 %v2051
        %v2259 = vpop.f32.mrf.mxu0
        %v2260 = vadd.f32 0.0, %v2259
        %2261 = vmatmul.f32.gmra.mxu0 %v2054
        %v2262 = vpop.f32.mrf.mxu0
        %v2263 = vadd.f32 0.0, %v2262
        %2264 = vmatmul.f32.gmra.mxu0 %v2057
        %v2265 = vpop.f32.mrf.mxu0
        %v2266 = vadd.f32 0.0, %v2265
        %2267 = vmatmul.f32.gmra.mxu0 %v2060
        %v2268 = vpop.f32.mrf.mxu0
        %v2269 = vadd.f32 0.0, %v2268
        %2270 = vmatmul.f32.gmra.mxu0 %v2063
        %v2271 = vpop.f32.mrf.mxu0
        %v2272 = vadd.f32 0.0, %v2271
        %2273 = vmatmul.f32.gmra.mxu0 %v2066
        %v2274 = vpop.f32.mrf.mxu0
        %v2275 = vadd.f32 0.0, %v2274
        %2276 = vmatmul.f32.gmra.mxu0 %v2069
        %v2277 = vpop.f32.mrf.mxu0
        %v2278 = vadd.f32 0.0, %v2277
        %2279 = vmatmul.f32.gmra.mxu0 %v2072
        %v2280 = vpop.f32.mrf.mxu0
        %v2281 = vadd.f32 0.0, %v2280
        %2282 = vmatmul.f32.gmra.mxu0 %v2075
        %v2283 = vpop.f32.mrf.mxu0
        %v2284 = vadd.f32 0.0, %v2283
        %2285 = vmatmul.f32.gmra.mxu0 %v2078
        %v2286 = vpop.f32.mrf.mxu0
        %v2287 = vadd.f32 0.0, %v2286
        %2288 = vmatmul.f32.gmra.mxu0 %v2081
        %v2289 = vpop.f32.mrf.mxu0
        %v2290 = vadd.f32 0.0, %v2289
        %2291 = vmatmul.f32.gmra.mxu0 %v2084
        %v2292 = vpop.f32.mrf.mxu0
        %v2293 = vadd.f32 0.0, %v2292
        %2294 = vmatmul.f32.gmra.mxu0 %v2087
        %v2295 = vpop.f32.mrf.mxu0
        %v2296 = vadd.f32 0.0, %v2295
        %2297 = vdwg.mxu0
        %v2298 = vld [vmem:[#allocation3] sm:$0xff]
        %v2299 = vld [vmem:[#allocation3 + $0x8] sm:$0xff]
        %v2300 = vld [vmem:[#allocation3 + $0x10] sm:$0xff]
        %v2301 = vld [vmem:[#allocation3 + $0x18] sm:$0xff]
        %v2302 = vld [vmem:[#allocation3 + $0x20] sm:$0xff]
        %v2303 = vld [vmem:[#allocation3 + $0x28] sm:$0xff]
        %v2304 = vld [vmem:[#allocation3 + $0x30] sm:$0xff]
        %v2305 = vld [vmem:[#allocation3 + $0x38] sm:$0xff]
        %v2306 = vld [vmem:[#allocation3 + $0x40] sm:$0xff]
        %v2307 = vld [vmem:[#allocation3 + $0x48] sm:$0xff]
        %v2308 = vld [vmem:[#allocation3 + $0x50] sm:$0xff]
        %v2309 = vld [vmem:[#allocation3 + $0x58] sm:$0xff]
        %v2310 = vld [vmem:[#allocation3 + $0x60] sm:$0xff]
        %v2311 = vld [vmem:[#allocation3 + $0x68] sm:$0xff]
        %v2312 = vld [vmem:[#allocation3 + $0x70] sm:$0xff]
        %v2313 = vld [vmem:[#allocation3 + $0x78] sm:$0xff]
        %v2314 = vld [vmem:[#allocation3 + $0x80] sm:$0xff]
        %v2315 = vld [vmem:[#allocation3 + $0x88] sm:$0xff]
        %v2316 = vld [vmem:[#allocation3 + $0x90] sm:$0xff]
        %v2317 = vld [vmem:[#allocation3 + $0x98] sm:$0xff]
        %v2318 = vld [vmem:[#allocation3 + $0xa0] sm:$0xff]
        %v2319 = vld [vmem:[#allocation3 + $0xa8] sm:$0xff]
        %v2320 = vld [vmem:[#allocation3 + $0xb0] sm:$0xff]
        %v2321 = vld [vmem:[#allocation3 + $0xb8] sm:$0xff]
        %v2322 = vld [vmem:[#allocation3 + $0xc0] sm:$0xff]
        %v2323 = vld [vmem:[#allocation3 + $0xc8] sm:$0xff]
        %v2324 = vld [vmem:[#allocation3 + $0xd0] sm:$0xff]
        %v2325 = vld [vmem:[#allocation3 + $0xd8] sm:$0xff]
        %v2326 = vld [vmem:[#allocation3 + $0xe0] sm:$0xff]
        %v2327 = vld [vmem:[#allocation3 + $0xe8] sm:$0xff]
        %v2328 = vld [vmem:[#allocation3 + $0xf0] sm:$0xff]
        %v2329 = vld [vmem:[#allocation3 + $0xf8] sm:$0xff]
        %v2330 = vld [vmem:[#allocation3 + $0x100] sm:$0xff]
        %v2331 = vld [vmem:[#allocation3 + $0x108] sm:$0xff]
        %v2332 = vld [vmem:[#allocation3 + $0x110] sm:$0xff]
        %v2333 = vld [vmem:[#allocation3 + $0x118] sm:$0xff]
        %v2334 = vld [vmem:[#allocation3 + $0x120] sm:$0xff]
        %v2335 = vld [vmem:[#allocation3 + $0x128] sm:$0xff]
        %v2336 = vld [vmem:[#allocation3 + $0x130] sm:$0xff]
        %v2337 = vld [vmem:[#allocation3 + $0x138] sm:$0xff]
        %v2338 = vld [vmem:[#allocation3 + $0x140] sm:$0xff]
        %v2339 = vld [vmem:[#allocation3 + $0x148] sm:$0xff]
        %v2340 = vld [vmem:[#allocation3 + $0x150] sm:$0xff]
        %v2341 = vld [vmem:[#allocation3 + $0x158] sm:$0xff]
        %v2342 = vld [vmem:[#allocation3 + $0x160] sm:$0xff]
        %v2343 = vld [vmem:[#allocation3 + $0x168] sm:$0xff]
        %v2344 = vld [vmem:[#allocation3 + $0x170] sm:$0xff]
        %v2345 = vld [vmem:[#allocation3 + $0x178] sm:$0xff]
        %v2346 = vld [vmem:[#allocation3 + $0x180] sm:$0xff]
        %v2347 = vld [vmem:[#allocation3 + $0x188] sm:$0xff]
        %v2348 = vld [vmem:[#allocation3 + $0x190] sm:$0xff]
        %v2349 = vld [vmem:[#allocation3 + $0x198] sm:$0xff]
        %v2350 = vld [vmem:[#allocation3 + $0x1a0] sm:$0xff]
        %v2351 = vld [vmem:[#allocation3 + $0x1a8] sm:$0xff]
        %v2352 = vld [vmem:[#allocation3 + $0x1b0] sm:$0xff]
        %v2353 = vld [vmem:[#allocation3 + $0x1b8] sm:$0xff]
        %v2354 = vld [vmem:[#allocation3 + $0x1c0] sm:$0xff]
        %v2355 = vld [vmem:[#allocation3 + $0x1c8] sm:$0xff]
        %v2356 = vld [vmem:[#allocation3 + $0x1d0] sm:$0xff]
        %v2357 = vld [vmem:[#allocation3 + $0x1d8] sm:$0xff]
        %v2358 = vld [vmem:[#allocation3 + $0x1e0] sm:$0xff]
        %v2359 = vld [vmem:[#allocation3 + $0x1e8] sm:$0xff]
        %v2360 = vld [vmem:[#allocation3 + $0x1f0] sm:$0xff]
        %v2361 = vld [vmem:[#allocation3 + $0x1f8] sm:$0xff]
        %v2362 = vadd.f32 %v2298, %v2107
        %v2363 = vadd.f32 %v2299, %v2110
        %v2364 = vadd.f32 %v2300, %v2113
        %v2365 = vadd.f32 %v2301, %v2116
        %v2366 = vadd.f32 %v2302, %v2119
        %v2367 = vadd.f32 %v2303, %v2122
        %v2368 = vadd.f32 %v2304, %v2125
        %v2369 = vadd.f32 %v2305, %v2128
        %v2370 = vadd.f32 %v2306, %v2131
        %v2371 = vadd.f32 %v2307, %v2134
        %v2372 = vadd.f32 %v2308, %v2137
        %v2373 = vadd.f32 %v2309, %v2140
        %v2374 = vadd.f32 %v2310, %v2143
        %v2375 = vadd.f32 %v2311, %v2146
        %v2376 = vadd.f32 %v2312, %v2149
        %v2377 = vadd.f32 %v2313, %v2152
        %v2378 = vadd.f32 %v2314, %v2155
        %v2379 = vadd.f32 %v2315, %v2158
        %v2380 = vadd.f32 %v2316, %v2161
        %v2381 = vadd.f32 %v2317, %v2164
        %v2382 = vadd.f32 %v2318, %v2167
        %v2383 = vadd.f32 %v2319, %v2170
        %v2384 = vadd.f32 %v2320, %v2173
        %v2385 = vadd.f32 %v2321, %v2176
        %v2386 = vadd.f32 %v2322, %v2179
        %v2387 = vadd.f32 %v2323, %v2182
        %v2388 = vadd.f32 %v2324, %v2185
        %v2389 = vadd.f32 %v2325, %v2188
        %v2390 = vadd.f32 %v2326, %v2191
        %v2391 = vadd.f32 %v2327, %v2194
        %v2392 = vadd.f32 %v2328, %v2197
        %v2393 = vadd.f32 %v2329, %v2200
        %v2394 = vadd.f32 %v2330, %v2203
        %v2395 = vadd.f32 %v2331, %v2206
        %v2396 = vadd.f32 %v2332, %v2209
        %v2397 = vadd.f32 %v2333, %v2212
        %v2398 = vadd.f32 %v2334, %v2215
        %v2399 = vadd.f32 %v2335, %v2218
        %v2400 = vadd.f32 %v2336, %v2221
        %v2401 = vadd.f32 %v2337, %v2224
        %v2402 = vadd.f32 %v2338, %v2227
        %v2403 = vadd.f32 %v2339, %v2230
        %v2404 = vadd.f32 %v2340, %v2233
        %v2405 = vadd.f32 %v2341, %v2236
        %v2406 = vadd.f32 %v2342, %v2239
        %v2407 = vadd.f32 %v2343, %v2242
        %v2408 = vadd.f32 %v2344, %v2245
        %v2409 = vadd.f32 %v2345, %v2248
        %v2410 = vadd.f32 %v2346, %v2251
        %v2411 = vadd.f32 %v2347, %v2254
        %v2412 = vadd.f32 %v2348, %v2257
        %v2413 = vadd.f32 %v2349, %v2260
        %v2414 = vadd.f32 %v2350, %v2263
        %v2415 = vadd.f32 %v2351, %v2266
        %v2416 = vadd.f32 %v2352, %v2269
        %v2417 = vadd.f32 %v2353, %v2272
        %v2418 = vadd.f32 %v2354, %v2275
        %v2419 = vadd.f32 %v2355, %v2278
        %v2420 = vadd.f32 %v2356, %v2281
        %v2421 = vadd.f32 %v2357, %v2284
        %v2422 = vadd.f32 %v2358, %v2287
        %v2423 = vadd.f32 %v2359, %v2290
        %v2424 = vadd.f32 %v2360, %v2293
        %v2425 = vadd.f32 %v2361, %v2296
        %2426 = vst.msk [vmem:[#allocation3] sm:$0xff] %vm1361, %v2362
        %2427 = vst.msk [vmem:[#allocation3 + $0x8] sm:$0xff] %vm1361, %v2363
        %2428 = vst.msk [vmem:[#allocation3 + $0x10] sm:$0xff] %vm1361, %v2364
        %2429 = vst.msk [vmem:[#allocation3 + $0x18] sm:$0xff] %vm1361, %v2365
        %2430 = vst.msk [vmem:[#allocation3 + $0x20] sm:$0xff] %vm1361, %v2366
        %2431 = vst.msk [vmem:[#allocation3 + $0x28] sm:$0xff] %vm1361, %v2367
        %2432 = vst.msk [vmem:[#allocation3 + $0x30] sm:$0xff] %vm1361, %v2368
        %2433 = vst.msk [vmem:[#allocation3 + $0x38] sm:$0xff] %vm1361, %v2369
        %2434 = vst.msk [vmem:[#allocation3 + $0x40] sm:$0xff] %vm1361, %v2370
        %2435 = vst.msk [vmem:[#allocation3 + $0x48] sm:$0xff] %vm1361, %v2371
        %2436 = vst.msk [vmem:[#allocation3 + $0x50] sm:$0xff] %vm1361, %v2372
        %2437 = vst.msk [vmem:[#allocation3 + $0x58] sm:$0xff] %vm1361, %v2373
        %2438 = vst.msk [vmem:[#allocation3 + $0x60] sm:$0xff] %vm1361, %v2374
        %2439 = vst.msk [vmem:[#allocation3 + $0x68] sm:$0xff] %vm1361, %v2375
        %2440 = vst.msk [vmem:[#allocation3 + $0x70] sm:$0xff] %vm1361, %v2376
        %2441 = vst.msk [vmem:[#allocation3 + $0x78] sm:$0xff] %vm1361, %v2377
        %2442 = vst.msk [vmem:[#allocation3 + $0x80] sm:$0xff] %vm1361, %v2378
        %2443 = vst.msk [vmem:[#allocation3 + $0x88] sm:$0xff] %vm1361, %v2379
        %2444 = vst.msk [vmem:[#allocation3 + $0x90] sm:$0xff] %vm1361, %v2380
        %2445 = vst.msk [vmem:[#allocation3 + $0x98] sm:$0xff] %vm1361, %v2381
        %2446 = vst.msk [vmem:[#allocation3 + $0xa0] sm:$0xff] %vm1361, %v2382
        %2447 = vst.msk [vmem:[#allocation3 + $0xa8] sm:$0xff] %vm1361, %v2383
        %2448 = vst.msk [vmem:[#allocation3 + $0xb0] sm:$0xff] %vm1361, %v2384
        %2449 = vst.msk [vmem:[#allocation3 + $0xb8] sm:$0xff] %vm1361, %v2385
        %2450 = vst.msk [vmem:[#allocation3 + $0xc0] sm:$0xff] %vm1361, %v2386
        %2451 = vst.msk [vmem:[#allocation3 + $0xc8] sm:$0xff] %vm1361, %v2387
        %2452 = vst.msk [vmem:[#allocation3 + $0xd0] sm:$0xff] %vm1361, %v2388
        %2453 = vst.msk [vmem:[#allocation3 + $0xd8] sm:$0xff] %vm1361, %v2389
        %2454 = vst.msk [vmem:[#allocation3 + $0xe0] sm:$0xff] %vm1361, %v2390
        %2455 = vst.msk [vmem:[#allocation3 + $0xe8] sm:$0xff] %vm1361, %v2391
        %2456 = vst.msk [vmem:[#allocation3 + $0xf0] sm:$0xff] %vm1361, %v2392
        %2457 = vst.msk [vmem:[#allocation3 + $0xf8] sm:$0xff] %vm1361, %v2393
        %2458 = vst.msk [vmem:[#allocation3 + $0x100] sm:$0xff] %vm1361, %v2394
        %2459 = vst.msk [vmem:[#allocation3 + $0x108] sm:$0xff] %vm1361, %v2395
        %2460 = vst.msk [vmem:[#allocation3 + $0x110] sm:$0xff] %vm1361, %v2396
        %2461 = vst.msk [vmem:[#allocation3 + $0x118] sm:$0xff] %vm1361, %v2397
        %2462 = vst.msk [vmem:[#allocation3 + $0x120] sm:$0xff] %vm1361, %v2398
        %2463 = vst.msk [vmem:[#allocation3 + $0x128] sm:$0xff] %vm1361, %v2399
        %2464 = vst.msk [vmem:[#allocation3 + $0x130] sm:$0xff] %vm1361, %v2400
        %2465 = vst.msk [vmem:[#allocation3 + $0x138] sm:$0xff] %vm1361, %v2401
        %2466 = vst.msk [vmem:[#allocation3 + $0x140] sm:$0xff] %vm1361, %v2402
        %2467 = vst.msk [vmem:[#allocation3 + $0x148] sm:$0xff] %vm1361, %v2403
        %2468 = vst.msk [vmem:[#allocation3 + $0x150] sm:$0xff] %vm1361, %v2404
        %2469 = vst.msk [vmem:[#allocation3 + $0x158] sm:$0xff] %vm1361, %v2405
        %2470 = vst.msk [vmem:[#allocation3 + $0x160] sm:$0xff] %vm1361, %v2406
        %2471 = vst.msk [vmem:[#allocation3 + $0x168] sm:$0xff] %vm1361, %v2407
        %2472 = vst.msk [vmem:[#allocation3 + $0x170] sm:$0xff] %vm1361, %v2408
        %2473 = vst.msk [vmem:[#allocation3 + $0x178] sm:$0xff] %vm1361, %v2409
        %2474 = vst.msk [vmem:[#allocation3 + $0x180] sm:$0xff] %vm1361, %v2410
        %2475 = vst.msk [vmem:[#allocation3 + $0x188] sm:$0xff] %vm1361, %v2411
        %2476 = vst.msk [vmem:[#allocation3 + $0x190] sm:$0xff] %vm1361, %v2412
        %2477 = vst.msk [vmem:[#allocation3 + $0x198] sm:$0xff] %vm1361, %v2413
        %2478 = vst.msk [vmem:[#allocation3 + $0x1a0] sm:$0xff] %vm1361, %v2414
        %2479 = vst.msk [vmem:[#allocation3 + $0x1a8] sm:$0xff] %vm1361, %v2415
        %2480 = vst.msk [vmem:[#allocation3 + $0x1b0] sm:$0xff] %vm1361, %v2416
        %2481 = vst.msk [vmem:[#allocation3 + $0x1b8] sm:$0xff] %vm1361, %v2417
        %2482 = vst.msk [vmem:[#allocation3 + $0x1c0] sm:$0xff] %vm1361, %v2418
        %2483 = vst.msk [vmem:[#allocation3 + $0x1c8] sm:$0xff] %vm1361, %v2419
        %2484 = vst.msk [vmem:[#allocation3 + $0x1d0] sm:$0xff] %vm1361, %v2420
        %2485 = vst.msk [vmem:[#allocation3 + $0x1d8] sm:$0xff] %vm1361, %v2421
        %2486 = vst.msk [vmem:[#allocation3 + $0x1e0] sm:$0xff] %vm1361, %v2422
        %2487 = vst.msk [vmem:[#allocation3 + $0x1e8] sm:$0xff] %vm1361, %v2423
        %2488 = vst.msk [vmem:[#allocation3 + $0x1f0] sm:$0xff] %vm1361, %v2424
        %2489 = vst.msk [vmem:[#allocation3 + $0x1f8] sm:$0xff] %vm1361, %v2425
        %s2490 = scalar_lea.vmem [#allocation2], 16
        %v2491 = vld [vmem:[%s2490] sm:$0xff]
        %v2492 = vld [vmem:[%s2490 + $0x8] sm:$0xff]
        %v2493 = vld [vmem:[%s2490 + $0x10] sm:$0xff]
        %v2494 = vld [vmem:[%s2490 + $0x18] sm:$0xff]
        %v2495 = vld [vmem:[%s2490 + $0x20] sm:$0xff]
        %v2496 = vld [vmem:[%s2490 + $0x28] sm:$0xff]
        %v2497 = vld [vmem:[%s2490 + $0x30] sm:$0xff]
        %v2498 = vld [vmem:[%s2490 + $0x38] sm:$0xff]
        %v2499 = vld [vmem:[%s2490 + $0x50] sm:$0xff]
        %v2500 = vld [vmem:[%s2490 + $0x58] sm:$0xff]
        %v2501 = vld [vmem:[%s2490 + $0x60] sm:$0xff]
        %v2502 = vld [vmem:[%s2490 + $0x68] sm:$0xff]
        %v2503 = vld [vmem:[%s2490 + $0x70] sm:$0xff]
        %v2504 = vld [vmem:[%s2490 + $0x78] sm:$0xff]
        %v2505 = vld [vmem:[%s2490 + $0x80] sm:$0xff]
        %v2506 = vld [vmem:[%s2490 + $0x88] sm:$0xff]
        %v2507 = vld [vmem:[%s2490 + $0xa0] sm:$0xff]
        %v2508 = vld [vmem:[%s2490 + $0xa8] sm:$0xff]
        %v2509 = vld [vmem:[%s2490 + $0xb0] sm:$0xff]
        %v2510 = vld [vmem:[%s2490 + $0xb8] sm:$0xff]
        %v2511 = vld [vmem:[%s2490 + $0xc0] sm:$0xff]
        %v2512 = vld [vmem:[%s2490 + $0xc8] sm:$0xff]
        %v2513 = vld [vmem:[%s2490 + $0xd0] sm:$0xff]
        %v2514 = vld [vmem:[%s2490 + $0xd8] sm:$0xff]
        %v2515 = vld [vmem:[%s2490 + $0xf0] sm:$0xff]
        %v2516 = vld [vmem:[%s2490 + $0xf8] sm:$0xff]
        %v2517 = vld [vmem:[%s2490 + $0x100] sm:$0xff]
        %v2518 = vld [vmem:[%s2490 + $0x108] sm:$0xff]
        %v2519 = vld [vmem:[%s2490 + $0x110] sm:$0xff]
        %v2520 = vld [vmem:[%s2490 + $0x118] sm:$0xff]
        %v2521 = vld [vmem:[%s2490 + $0x120] sm:$0xff]
        %v2522 = vld [vmem:[%s2490 + $0x128] sm:$0xff]
        %v2523 = vld [vmem:[%s2490 + $0x140] sm:$0xff]
        %v2524 = vld [vmem:[%s2490 + $0x148] sm:$0xff]
        %v2525 = vld [vmem:[%s2490 + $0x150] sm:$0xff]
        %v2526 = vld [vmem:[%s2490 + $0x158] sm:$0xff]
        %v2527 = vld [vmem:[%s2490 + $0x160] sm:$0xff]
        %v2528 = vld [vmem:[%s2490 + $0x168] sm:$0xff]
        %v2529 = vld [vmem:[%s2490 + $0x170] sm:$0xff]
        %v2530 = vld [vmem:[%s2490 + $0x178] sm:$0xff]
        %v2531 = vld [vmem:[%s2490 + $0x190] sm:$0xff]
        %v2532 = vld [vmem:[%s2490 + $0x198] sm:$0xff]
        %v2533 = vld [vmem:[%s2490 + $0x1a0] sm:$0xff]
        %v2534 = vld [vmem:[%s2490 + $0x1a8] sm:$0xff]
        %v2535 = vld [vmem:[%s2490 + $0x1b0] sm:$0xff]
        %v2536 = vld [vmem:[%s2490 + $0x1b8] sm:$0xff]
        %v2537 = vld [vmem:[%s2490 + $0x1c0] sm:$0xff]
        %v2538 = vld [vmem:[%s2490 + $0x1c8] sm:$0xff]
        %v2539 = vld [vmem:[%s2490 + $0x1e0] sm:$0xff]
        %v2540 = vld [vmem:[%s2490 + $0x1e8] sm:$0xff]
        %v2541 = vld [vmem:[%s2490 + $0x1f0] sm:$0xff]
        %v2542 = vld [vmem:[%s2490 + $0x1f8] sm:$0xff]
        %v2543 = vld [vmem:[%s2490 + $0x200] sm:$0xff]
        %v2544 = vld [vmem:[%s2490 + $0x208] sm:$0xff]
        %v2545 = vld [vmem:[%s2490 + $0x210] sm:$0xff]
        %v2546 = vld [vmem:[%s2490 + $0x218] sm:$0xff]
        %v2547 = vld [vmem:[%s2490 + $0x230] sm:$0xff]
        %v2548 = vld [vmem:[%s2490 + $0x238] sm:$0xff]
        %v2549 = vld [vmem:[%s2490 + $0x240] sm:$0xff]
        %v2550 = vld [vmem:[%s2490 + $0x248] sm:$0xff]
        %v2551 = vld [vmem:[%s2490 + $0x250] sm:$0xff]
        %v2552 = vld [vmem:[%s2490 + $0x258] sm:$0xff]
        %v2553 = vld [vmem:[%s2490 + $0x260] sm:$0xff]
        %v2554 = vld [vmem:[%s2490 + $0x268] sm:$0xff]
        %s2555 = scalar_lea.vmem %s627, 64
        %v2556 = vld [vmem:[%s2555] sm:$0xff]
        %v2557 = vld [vmem:[%s2555 + $0x8] sm:$0xff]
        %v2558 = vld [vmem:[%s2555 + $0x10] sm:$0xff]
        %v2559 = vld [vmem:[%s2555 + $0x18] sm:$0xff]
        %v2561 = vsel %vm1361, %v2491, 0
        %v2564 = vsel %vm1361, %v2492, 0
        %v2567 = vsel %vm1361, %v2493, 0
        %v2570 = vsel %vm1361, %v2494, 0
        %v2573 = vsel %vm1361, %v2495, 0
        %v2576 = vsel %vm1361, %v2496, 0
        %v2579 = vsel %vm1361, %v2497, 0
        %v2582 = vsel %vm1361, %v2498, 0
        %v2585 = vsel %vm1361, %v2499, 0
        %v2588 = vsel %vm1361, %v2500, 0
        %v2591 = vsel %vm1361, %v2501, 0
        %v2594 = vsel %vm1361, %v2502, 0
        %v2597 = vsel %vm1361, %v2503, 0
        %v2600 = vsel %vm1361, %v2504, 0
        %v2603 = vsel %vm1361, %v2505, 0
        %v2606 = vsel %vm1361, %v2506, 0
        %v2609 = vsel %vm1361, %v2507, 0
        %v2612 = vsel %vm1361, %v2508, 0
        %v2615 = vsel %vm1361, %v2509, 0
        %v2618 = vsel %vm1361, %v2510, 0
        %v2621 = vsel %vm1361, %v2511, 0
        %v2624 = vsel %vm1361, %v2512, 0
        %v2627 = vsel %vm1361, %v2513, 0
        %v2630 = vsel %vm1361, %v2514, 0
        %v2633 = vsel %vm1361, %v2515, 0
        %v2636 = vsel %vm1361, %v2516, 0
        %v2639 = vsel %vm1361, %v2517, 0
        %v2642 = vsel %vm1361, %v2518, 0
        %v2645 = vsel %vm1361, %v2519, 0
        %v2648 = vsel %vm1361, %v2520, 0
        %v2651 = vsel %vm1361, %v2521, 0
        %v2654 = vsel %vm1361, %v2522, 0
        %v2657 = vsel %vm1361, %v2523, 0
        %v2660 = vsel %vm1361, %v2524, 0
        %v2663 = vsel %vm1361, %v2525, 0
        %v2666 = vsel %vm1361, %v2526, 0
        %v2669 = vsel %vm1361, %v2527, 0
        %v2672 = vsel %vm1361, %v2528, 0
        %v2675 = vsel %vm1361, %v2529, 0
        %v2678 = vsel %vm1361, %v2530, 0
        %v2681 = vsel %vm1361, %v2531, 0
        %v2684 = vsel %vm1361, %v2532, 0
        %v2687 = vsel %vm1361, %v2533, 0
        %v2690 = vsel %vm1361, %v2534, 0
        %v2693 = vsel %vm1361, %v2535, 0
        %v2696 = vsel %vm1361, %v2536, 0
        %v2699 = vsel %vm1361, %v2537, 0
        %v2702 = vsel %vm1361, %v2538, 0
        %v2705 = vsel %vm1361, %v2539, 0
        %v2708 = vsel %vm1361, %v2540, 0
        %v2711 = vsel %vm1361, %v2541, 0
        %v2714 = vsel %vm1361, %v2542, 0
        %v2717 = vsel %vm1361, %v2543, 0
        %v2720 = vsel %vm1361, %v2544, 0
        %v2723 = vsel %vm1361, %v2545, 0
        %v2726 = vsel %vm1361, %v2546, 0
        %v2729 = vsel %vm1361, %v2547, 0
        %v2732 = vsel %vm1361, %v2548, 0
        %v2735 = vsel %vm1361, %v2549, 0
        %v2738 = vsel %vm1361, %v2550, 0
        %v2741 = vsel %vm1361, %v2551, 0
        %v2744 = vsel %vm1361, %v2552, 0
        %v2747 = vsel %vm1361, %v2553, 0
        %v2750 = vsel %vm1361, %v2554, 0
        %2752 = vmatpush.msra.mxu0 0.0
        %2753 = vmatpush.msra.mxu0 0.0
        %2754 = vmatpush.msra.mxu0 0.0
        %2755 = vmatpush.msra.mxu0 0.0
        %2756 = vmatpush.msra.mxu0 0.0
        %2757 = vmatpush.msra.mxu0 0.0
        %2758 = vmatpush.msra.mxu0 0.0
        %2759 = vmatpush.msra.mxu0 0.0
        %2760 = vmatpush.msra.mxu0 0.0
        %2761 = vmatpush.msra.mxu0 0.0
        %2762 = vmatpush.msra.mxu0 0.0
        %2763 = vmatpush.msra.mxu0 0.0
        %2764 = vmatpush.msra.mxu0 %v2559
        %2765 = vmatpush.msra.mxu0 %v2558
        %2766 = vmatpush.msra.mxu0 %v2557
        %2767 = vmatpush.msra.mxu0 %v2556
        %2768 = vmatmul.f32.gmra.mxu0 %v2561
        %v2769 = vpop.f32.mrf.mxu0
        %v2770 = vadd.f32 0.0, %v2769
        %2771 = vmatmul.f32.gmra.mxu0 %v2564
        %v2772 = vpop.f32.mrf.mxu0
        %v2773 = vadd.f32 0.0, %v2772
        %2774 = vmatmul.f32.gmra.mxu0 %v2567
        %v2775 = vpop.f32.mrf.mxu0
        %v2776 = vadd.f32 0.0, %v2775
        %2777 = vmatmul.f32.gmra.mxu0 %v2570
        %v2778 = vpop.f32.mrf.mxu0
        %v2779 = vadd.f32 0.0, %v2778
        %2780 = vmatmul.f32.gmra.mxu0 %v2573
        %v2781 = vpop.f32.mrf.mxu0
        %v2782 = vadd.f32 0.0, %v2781
        %2783 = vmatmul.f32.gmra.mxu0 %v2576
        %v2784 = vpop.f32.mrf.mxu0
        %v2785 = vadd.f32 0.0, %v2784
        %2786 = vmatmul.f32.gmra.mxu0 %v2579
        %v2787 = vpop.f32.mrf.mxu0
        %v2788 = vadd.f32 0.0, %v2787
        %2789 = vmatmul.f32.gmra.mxu0 %v2582
        %v2790 = vpop.f32.mrf.mxu0
        %v2791 = vadd.f32 0.0, %v2790
        %2792 = vmatmul.f32.gmra.mxu0 %v2585
        %v2793 = vpop.f32.mrf.mxu0
        %v2794 = vadd.f32 0.0, %v2793
        %2795 = vmatmul.f32.gmra.mxu0 %v2588
        %v2796 = vpop.f32.mrf.mxu0
        %v2797 = vadd.f32 0.0, %v2796
        %2798 = vmatmul.f32.gmra.mxu0 %v2591
        %v2799 = vpop.f32.mrf.mxu0
        %v2800 = vadd.f32 0.0, %v2799
        %2801 = vmatmul.f32.gmra.mxu0 %v2594
        %v2802 = vpop.f32.mrf.mxu0
        %v2803 = vadd.f32 0.0, %v2802
        %2804 = vmatmul.f32.gmra.mxu0 %v2597
        %v2805 = vpop.f32.mrf.mxu0
        %v2806 = vadd.f32 0.0, %v2805
        %2807 = vmatmul.f32.gmra.mxu0 %v2600
        %v2808 = vpop.f32.mrf.mxu0
        %v2809 = vadd.f32 0.0, %v2808
        %2810 = vmatmul.f32.gmra.mxu0 %v2603
        %v2811 = vpop.f32.mrf.mxu0
        %v2812 = vadd.f32 0.0, %v2811
        %2813 = vmatmul.f32.gmra.mxu0 %v2606
        %v2814 = vpop.f32.mrf.mxu0
        %v2815 = vadd.f32 0.0, %v2814
        %2816 = vmatmul.f32.gmra.mxu0 %v2609
        %v2817 = vpop.f32.mrf.mxu0
        %v2818 = vadd.f32 0.0, %v2817
        %2819 = vmatmul.f32.gmra.mxu0 %v2612
        %v2820 = vpop.f32.mrf.mxu0
        %v2821 = vadd.f32 0.0, %v2820
        %2822 = vmatmul.f32.gmra.mxu0 %v2615
        %v2823 = vpop.f32.mrf.mxu0
        %v2824 = vadd.f32 0.0, %v2823
        %2825 = vmatmul.f32.gmra.mxu0 %v2618
        %v2826 = vpop.f32.mrf.mxu0
        %v2827 = vadd.f32 0.0, %v2826
        %2828 = vmatmul.f32.gmra.mxu0 %v2621
        %v2829 = vpop.f32.mrf.mxu0
        %v2830 = vadd.f32 0.0, %v2829
        %2831 = vmatmul.f32.gmra.mxu0 %v2624
        %v2832 = vpop.f32.mrf.mxu0
        %v2833 = vadd.f32 0.0, %v2832
        %2834 = vmatmul.f32.gmra.mxu0 %v2627
        %v2835 = vpop.f32.mrf.mxu0
        %v2836 = vadd.f32 0.0, %v2835
        %2837 = vmatmul.f32.gmra.mxu0 %v2630
        %v2838 = vpop.f32.mrf.mxu0
        %v2839 = vadd.f32 0.0, %v2838
        %2840 = vmatmul.f32.gmra.mxu0 %v2633
        %v2841 = vpop.f32.mrf.mxu0
        %v2842 = vadd.f32 0.0, %v2841
        %2843 = vmatmul.f32.gmra.mxu0 %v2636
        %v2844 = vpop.f32.mrf.mxu0
        %v2845 = vadd.f32 0.0, %v2844
        %2846 = vmatmul.f32.gmra.mxu0 %v2639
        %v2847 = vpop.f32.mrf.mxu0
        %v2848 = vadd.f32 0.0, %v2847
        %2849 = vmatmul.f32.gmra.mxu0 %v2642
        %v2850 = vpop.f32.mrf.mxu0
        %v2851 = vadd.f32 0.0, %v2850
        %2852 = vmatmul.f32.gmra.mxu0 %v2645
        %v2853 = vpop.f32.mrf.mxu0
        %v2854 = vadd.f32 0.0, %v2853
        %2855 = vmatmul.f32.gmra.mxu0 %v2648
        %v2856 = vpop.f32.mrf.mxu0
        %v2857 = vadd.f32 0.0, %v2856
        %2858 = vmatmul.f32.gmra.mxu0 %v2651
        %v2859 = vpop.f32.mrf.mxu0
        %v2860 = vadd.f32 0.0, %v2859
        %2861 = vmatmul.f32.gmra.mxu0 %v2654
        %v2862 = vpop.f32.mrf.mxu0
        %v2863 = vadd.f32 0.0, %v2862
        %2864 = vmatmul.f32.gmra.mxu0 %v2657
        %v2865 = vpop.f32.mrf.mxu0
        %v2866 = vadd.f32 0.0, %v2865
        %2867 = vmatmul.f32.gmra.mxu0 %v2660
        %v2868 = vpop.f32.mrf.mxu0
        %v2869 = vadd.f32 0.0, %v2868
        %2870 = vmatmul.f32.gmra.mxu0 %v2663
        %v2871 = vpop.f32.mrf.mxu0
        %v2872 = vadd.f32 0.0, %v2871
        %2873 = vmatmul.f32.gmra.mxu0 %v2666
        %v2874 = vpop.f32.mrf.mxu0
        %v2875 = vadd.f32 0.0, %v2874
        %2876 = vmatmul.f32.gmra.mxu0 %v2669
        %v2877 = vpop.f32.mrf.mxu0
        %v2878 = vadd.f32 0.0, %v2877
        %2879 = vmatmul.f32.gmra.mxu0 %v2672
        %v2880 = vpop.f32.mrf.mxu0
        %v2881 = vadd.f32 0.0, %v2880
        %2882 = vmatmul.f32.gmra.mxu0 %v2675
        %v2883 = vpop.f32.mrf.mxu0
        %v2884 = vadd.f32 0.0, %v2883
        %2885 = vmatmul.f32.gmra.mxu0 %v2678
        %v2886 = vpop.f32.mrf.mxu0
        %v2887 = vadd.f32 0.0, %v2886
        %2888 = vmatmul.f32.gmra.mxu0 %v2681
        %v2889 = vpop.f32.mrf.mxu0
        %v2890 = vadd.f32 0.0, %v2889
        %2891 = vmatmul.f32.gmra.mxu0 %v2684
        %v2892 = vpop.f32.mrf.mxu0
        %v2893 = vadd.f32 0.0, %v2892
        %2894 = vmatmul.f32.gmra.mxu0 %v2687
        %v2895 = vpop.f32.mrf.mxu0
        %v2896 = vadd.f32 0.0, %v2895
        %2897 = vmatmul.f32.gmra.mxu0 %v2690
        %v2898 = vpop.f32.mrf.mxu0
        %v2899 = vadd.f32 0.0, %v2898
        %2900 = vmatmul.f32.gmra.mxu0 %v2693
        %v2901 = vpop.f32.mrf.mxu0
        %v2902 = vadd.f32 0.0, %v2901
        %2903 = vmatmul.f32.gmra.mxu0 %v2696
        %v2904 = vpop.f32.mrf.mxu0
        %v2905 = vadd.f32 0.0, %v2904
        %2906 = vmatmul.f32.gmra.mxu0 %v2699
        %v2907 = vpop.f32.mrf.mxu0
        %v2908 = vadd.f32 0.0, %v2907
        %2909 = vmatmul.f32.gmra.mxu0 %v2702
        %v2910 = vpop.f32.mrf.mxu0
        %v2911 = vadd.f32 0.0, %v2910
        %2912 = vmatmul.f32.gmra.mxu0 %v2705
        %v2913 = vpop.f32.mrf.mxu0
        %v2914 = vadd.f32 0.0, %v2913
        %2915 = vmatmul.f32.gmra.mxu0 %v2708
        %v2916 = vpop.f32.mrf.mxu0
        %v2917 = vadd.f32 0.0, %v2916
        %2918 = vmatmul.f32.gmra.mxu0 %v2711
        %v2919 = vpop.f32.mrf.mxu0
        %v2920 = vadd.f32 0.0, %v2919
        %2921 = vmatmul.f32.gmra.mxu0 %v2714
        %v2922 = vpop.f32.mrf.mxu0
        %v2923 = vadd.f32 0.0, %v2922
        %2924 = vmatmul.f32.gmra.mxu0 %v2717
        %v2925 = vpop.f32.mrf.mxu0
        %v2926 = vadd.f32 0.0, %v2925
        %2927 = vmatmul.f32.gmra.mxu0 %v2720
        %v2928 = vpop.f32.mrf.mxu0
        %v2929 = vadd.f32 0.0, %v2928
        %2930 = vmatmul.f32.gmra.mxu0 %v2723
        %v2931 = vpop.f32.mrf.mxu0
        %v2932 = vadd.f32 0.0, %v2931
        %2933 = vmatmul.f32.gmra.mxu0 %v2726
        %v2934 = vpop.f32.mrf.mxu0
        %v2935 = vadd.f32 0.0, %v2934
        %2936 = vmatmul.f32.gmra.mxu0 %v2729
        %v2937 = vpop.f32.mrf.mxu0
        %v2938 = vadd.f32 0.0, %v2937
        %2939 = vmatmul.f32.gmra.mxu0 %v2732
        %v2940 = vpop.f32.mrf.mxu0
        %v2941 = vadd.f32 0.0, %v2940
        %2942 = vmatmul.f32.gmra.mxu0 %v2735
        %v2943 = vpop.f32.mrf.mxu0
        %v2944 = vadd.f32 0.0, %v2943
        %2945 = vmatmul.f32.gmra.mxu0 %v2738
        %v2946 = vpop.f32.mrf.mxu0
        %v2947 = vadd.f32 0.0, %v2946
        %2948 = vmatmul.f32.gmra.mxu0 %v2741
        %v2949 = vpop.f32.mrf.mxu0
        %v2950 = vadd.f32 0.0, %v2949
        %2951 = vmatmul.f32.gmra.mxu0 %v2744
        %v2952 = vpop.f32.mrf.mxu0
        %v2953 = vadd.f32 0.0, %v2952
        %2954 = vmatmul.f32.gmra.mxu0 %v2747
        %v2955 = vpop.f32.mrf.mxu0
        %v2956 = vadd.f32 0.0, %v2955
        %2957 = vmatmul.f32.gmra.mxu0 %v2750
        %v2958 = vpop.f32.mrf.mxu0
        %v2959 = vadd.f32 0.0, %v2958
        %2960 = vdwg.mxu0
        %v2961 = vld [vmem:[#allocation3] sm:$0xff]
        %v2962 = vld [vmem:[#allocation3 + $0x8] sm:$0xff]
        %v2963 = vld [vmem:[#allocation3 + $0x10] sm:$0xff]
        %v2964 = vld [vmem:[#allocation3 + $0x18] sm:$0xff]
        %v2965 = vld [vmem:[#allocation3 + $0x20] sm:$0xff]
        %v2966 = vld [vmem:[#allocation3 + $0x28] sm:$0xff]
        %v2967 = vld [vmem:[#allocation3 + $0x30] sm:$0xff]
        %v2968 = vld [vmem:[#allocation3 + $0x38] sm:$0xff]
        %v2969 = vld [vmem:[#allocation3 + $0x40] sm:$0xff]
        %v2970 = vld [vmem:[#allocation3 + $0x48] sm:$0xff]
        %v2971 = vld [vmem:[#allocation3 + $0x50] sm:$0xff]
        %v2972 = vld [vmem:[#allocation3 + $0x58] sm:$0xff]
        %v2973 = vld [vmem:[#allocation3 + $0x60] sm:$0xff]
        %v2974 = vld [vmem:[#allocation3 + $0x68] sm:$0xff]
        %v2975 = vld [vmem:[#allocation3 + $0x70] sm:$0xff]
        %v2976 = vld [vmem:[#allocation3 + $0x78] sm:$0xff]
        %v2977 = vld [vmem:[#allocation3 + $0x80] sm:$0xff]
        %v2978 = vld [vmem:[#allocation3 + $0x88] sm:$0xff]
        %v2979 = vld [vmem:[#allocation3 + $0x90] sm:$0xff]
        %v2980 = vld [vmem:[#allocation3 + $0x98] sm:$0xff]
        %v2981 = vld [vmem:[#allocation3 + $0xa0] sm:$0xff]
        %v2982 = vld [vmem:[#allocation3 + $0xa8] sm:$0xff]
        %v2983 = vld [vmem:[#allocation3 + $0xb0] sm:$0xff]
        %v2984 = vld [vmem:[#allocation3 + $0xb8] sm:$0xff]
        %v2985 = vld [vmem:[#allocation3 + $0xc0] sm:$0xff]
        %v2986 = vld [vmem:[#allocation3 + $0xc8] sm:$0xff]
        %v2987 = vld [vmem:[#allocation3 + $0xd0] sm:$0xff]
        %v2988 = vld [vmem:[#allocation3 + $0xd8] sm:$0xff]
        %v2989 = vld [vmem:[#allocation3 + $0xe0] sm:$0xff]
        %v2990 = vld [vmem:[#allocation3 + $0xe8] sm:$0xff]
        %v2991 = vld [vmem:[#allocation3 + $0xf0] sm:$0xff]
        %v2992 = vld [vmem:[#allocation3 + $0xf8] sm:$0xff]
        %v2993 = vld [vmem:[#allocation3 + $0x100] sm:$0xff]
        %v2994 = vld [vmem:[#allocation3 + $0x108] sm:$0xff]
        %v2995 = vld [vmem:[#allocation3 + $0x110] sm:$0xff]
        %v2996 = vld [vmem:[#allocation3 + $0x118] sm:$0xff]
        %v2997 = vld [vmem:[#allocation3 + $0x120] sm:$0xff]
        %v2998 = vld [vmem:[#allocation3 + $0x128] sm:$0xff]
        %v2999 = vld [vmem:[#allocation3 + $0x130] sm:$0xff]
        %v3000 = vld [vmem:[#allocation3 + $0x138] sm:$0xff]
        %v3001 = vld [vmem:[#allocation3 + $0x140] sm:$0xff]
        %v3002 = vld [vmem:[#allocation3 + $0x148] sm:$0xff]
        %v3003 = vld [vmem:[#allocation3 + $0x150] sm:$0xff]
        %v3004 = vld [vmem:[#allocation3 + $0x158] sm:$0xff]
        %v3005 = vld [vmem:[#allocation3 + $0x160] sm:$0xff]
        %v3006 = vld [vmem:[#allocation3 + $0x168] sm:$0xff]
        %v3007 = vld [vmem:[#allocation3 + $0x170] sm:$0xff]
        %v3008 = vld [vmem:[#allocation3 + $0x178] sm:$0xff]
        %v3009 = vld [vmem:[#allocation3 + $0x180] sm:$0xff]
        %v3010 = vld [vmem:[#allocation3 + $0x188] sm:$0xff]
        %v3011 = vld [vmem:[#allocation3 + $0x190] sm:$0xff]
        %v3012 = vld [vmem:[#allocation3 + $0x198] sm:$0xff]
        %v3013 = vld [vmem:[#allocation3 + $0x1a0] sm:$0xff]
        %v3014 = vld [vmem:[#allocation3 + $0x1a8] sm:$0xff]
        %v3015 = vld [vmem:[#allocation3 + $0x1b0] sm:$0xff]
        %v3016 = vld [vmem:[#allocation3 + $0x1b8] sm:$0xff]
        %v3017 = vld [vmem:[#allocation3 + $0x1c0] sm:$0xff]
        %v3018 = vld [vmem:[#allocation3 + $0x1c8] sm:$0xff]
        %v3019 = vld [vmem:[#allocation3 + $0x1d0] sm:$0xff]
        %v3020 = vld [vmem:[#allocation3 + $0x1d8] sm:$0xff]
        %v3021 = vld [vmem:[#allocation3 + $0x1e0] sm:$0xff]
        %v3022 = vld [vmem:[#allocation3 + $0x1e8] sm:$0xff]
        %v3023 = vld [vmem:[#allocation3 + $0x1f0] sm:$0xff]
        %v3024 = vld [vmem:[#allocation3 + $0x1f8] sm:$0xff]
        %v3025 = vadd.f32 %v2961, %v2770
        %v3026 = vadd.f32 %v2962, %v2773
        %v3027 = vadd.f32 %v2963, %v2776
        %v3028 = vadd.f32 %v2964, %v2779
        %v3029 = vadd.f32 %v2965, %v2782
        %v3030 = vadd.f32 %v2966, %v2785
        %v3031 = vadd.f32 %v2967, %v2788
        %v3032 = vadd.f32 %v2968, %v2791
        %v3033 = vadd.f32 %v2969, %v2794
        %v3034 = vadd.f32 %v2970, %v2797
        %v3035 = vadd.f32 %v2971, %v2800
        %v3036 = vadd.f32 %v2972, %v2803
        %v3037 = vadd.f32 %v2973, %v2806
        %v3038 = vadd.f32 %v2974, %v2809
        %v3039 = vadd.f32 %v2975, %v2812
        %v3040 = vadd.f32 %v2976, %v2815
        %v3041 = vadd.f32 %v2977, %v2818
        %v3042 = vadd.f32 %v2978, %v2821
        %v3043 = vadd.f32 %v2979, %v2824
        %v3044 = vadd.f32 %v2980, %v2827
        %v3045 = vadd.f32 %v2981, %v2830
        %v3046 = vadd.f32 %v2982, %v2833
        %v3047 = vadd.f32 %v2983, %v2836
        %v3048 = vadd.f32 %v2984, %v2839
        %v3049 = vadd.f32 %v2985, %v2842
        %v3050 = vadd.f32 %v2986, %v2845
        %v3051 = vadd.f32 %v2987, %v2848
        %v3052 = vadd.f32 %v2988, %v2851
        %v3053 = vadd.f32 %v2989, %v2854
        %v3054 = vadd.f32 %v2990, %v2857
        %v3055 = vadd.f32 %v2991, %v2860
        %v3056 = vadd.f32 %v2992, %v2863
        %v3057 = vadd.f32 %v2993, %v2866
        %v3058 = vadd.f32 %v2994, %v2869
        %v3059 = vadd.f32 %v2995, %v2872
        %v3060 = vadd.f32 %v2996, %v2875
        %v3061 = vadd.f32 %v2997, %v2878
        %v3062 = vadd.f32 %v2998, %v2881
        %v3063 = vadd.f32 %v2999, %v2884
        %v3064 = vadd.f32 %v3000, %v2887
        %v3065 = vadd.f32 %v3001, %v2890
        %v3066 = vadd.f32 %v3002, %v2893
        %v3067 = vadd.f32 %v3003, %v2896
        %v3068 = vadd.f32 %v3004, %v2899
        %v3069 = vadd.f32 %v3005, %v2902
        %v3070 = vadd.f32 %v3006, %v2905
        %v3071 = vadd.f32 %v3007, %v2908
        %v3072 = vadd.f32 %v3008, %v2911
        %v3073 = vadd.f32 %v3009, %v2914
        %v3074 = vadd.f32 %v3010, %v2917
        %v3075 = vadd.f32 %v3011, %v2920
        %v3076 = vadd.f32 %v3012, %v2923
        %v3077 = vadd.f32 %v3013, %v2926
        %v3078 = vadd.f32 %v3014, %v2929
        %v3079 = vadd.f32 %v3015, %v2932
        %v3080 = vadd.f32 %v3016, %v2935
        %v3081 = vadd.f32 %v3017, %v2938
        %v3082 = vadd.f32 %v3018, %v2941
        %v3083 = vadd.f32 %v3019, %v2944
        %v3084 = vadd.f32 %v3020, %v2947
        %v3085 = vadd.f32 %v3021, %v2950
        %v3086 = vadd.f32 %v3022, %v2953
        %v3087 = vadd.f32 %v3023, %v2956
        %v3088 = vadd.f32 %v3024, %v2959
        %3089 = vst.msk [vmem:[#allocation3] sm:$0xff] %vm1361, %v3025
        %3090 = vst.msk [vmem:[#allocation3 + $0x8] sm:$0xff] %vm1361, %v3026
        %3091 = vst.msk [vmem:[#allocation3 + $0x10] sm:$0xff] %vm1361, %v3027
        %3092 = vst.msk [vmem:[#allocation3 + $0x18] sm:$0xff] %vm1361, %v3028
        %3093 = vst.msk [vmem:[#allocation3 + $0x20] sm:$0xff] %vm1361, %v3029
        %3094 = vst.msk [vmem:[#allocation3 + $0x28] sm:$0xff] %vm1361, %v3030
        %3095 = vst.msk [vmem:[#allocation3 + $0x30] sm:$0xff] %vm1361, %v3031
        %3096 = vst.msk [vmem:[#allocation3 + $0x38] sm:$0xff] %vm1361, %v3032
        %3097 = vst.msk [vmem:[#allocation3 + $0x40] sm:$0xff] %vm1361, %v3033
        %3098 = vst.msk [vmem:[#allocation3 + $0x48] sm:$0xff] %vm1361, %v3034
        %3099 = vst.msk [vmem:[#allocation3 + $0x50] sm:$0xff] %vm1361, %v3035
        %3100 = vst.msk [vmem:[#allocation3 + $0x58] sm:$0xff] %vm1361, %v3036
        %3101 = vst.msk [vmem:[#allocation3 + $0x60] sm:$0xff] %vm1361, %v3037
        %3102 = vst.msk [vmem:[#allocation3 + $0x68] sm:$0xff] %vm1361, %v3038
        %3103 = vst.msk [vmem:[#allocation3 + $0x70] sm:$0xff] %vm1361, %v3039
        %3104 = vst.msk [vmem:[#allocation3 + $0x78] sm:$0xff] %vm1361, %v3040
        %3105 = vst.msk [vmem:[#allocation3 + $0x80] sm:$0xff] %vm1361, %v3041
        %3106 = vst.msk [vmem:[#allocation3 + $0x88] sm:$0xff] %vm1361, %v3042
        %3107 = vst.msk [vmem:[#allocation3 + $0x90] sm:$0xff] %vm1361, %v3043
        %3108 = vst.msk [vmem:[#allocation3 + $0x98] sm:$0xff] %vm1361, %v3044
        %3109 = vst.msk [vmem:[#allocation3 + $0xa0] sm:$0xff] %vm1361, %v3045
        %3110 = vst.msk [vmem:[#allocation3 + $0xa8] sm:$0xff] %vm1361, %v3046
        %3111 = vst.msk [vmem:[#allocation3 + $0xb0] sm:$0xff] %vm1361, %v3047
        %3112 = vst.msk [vmem:[#allocation3 + $0xb8] sm:$0xff] %vm1361, %v3048
        %3113 = vst.msk [vmem:[#allocation3 + $0xc0] sm:$0xff] %vm1361, %v3049
        %3114 = vst.msk [vmem:[#allocation3 + $0xc8] sm:$0xff] %vm1361, %v3050
        %3115 = vst.msk [vmem:[#allocation3 + $0xd0] sm:$0xff] %vm1361, %v3051
        %3116 = vst.msk [vmem:[#allocation3 + $0xd8] sm:$0xff] %vm1361, %v3052
        %3117 = vst.msk [vmem:[#allocation3 + $0xe0] sm:$0xff] %vm1361, %v3053
        %3118 = vst.msk [vmem:[#allocation3 + $0xe8] sm:$0xff] %vm1361, %v3054
        %3119 = vst.msk [vmem:[#allocation3 + $0xf0] sm:$0xff] %vm1361, %v3055
        %3120 = vst.msk [vmem:[#allocation3 + $0xf8] sm:$0xff] %vm1361, %v3056
        %3121 = vst.msk [vmem:[#allocation3 + $0x100] sm:$0xff] %vm1361, %v3057
        %3122 = vst.msk [vmem:[#allocation3 + $0x108] sm:$0xff] %vm1361, %v3058
        %3123 = vst.msk [vmem:[#allocation3 + $0x110] sm:$0xff] %vm1361, %v3059
        %3124 = vst.msk [vmem:[#allocation3 + $0x118] sm:$0xff] %vm1361, %v3060
        %3125 = vst.msk [vmem:[#allocation3 + $0x120] sm:$0xff] %vm1361, %v3061
        %3126 = vst.msk [vmem:[#allocation3 + $0x128] sm:$0xff] %vm1361, %v3062
        %3127 = vst.msk [vmem:[#allocation3 + $0x130] sm:$0xff] %vm1361, %v3063
        %3128 = vst.msk [vmem:[#allocation3 + $0x138] sm:$0xff] %vm1361, %v3064
        %3129 = vst.msk [vmem:[#allocation3 + $0x140] sm:$0xff] %vm1361, %v3065
        %3130 = vst.msk [vmem:[#allocation3 + $0x148] sm:$0xff] %vm1361, %v3066
        %3131 = vst.msk [vmem:[#allocation3 + $0x150] sm:$0xff] %vm1361, %v3067
        %3132 = vst.msk [vmem:[#allocation3 + $0x158] sm:$0xff] %vm1361, %v3068
        %3133 = vst.msk [vmem:[#allocation3 + $0x160] sm:$0xff] %vm1361, %v3069
        %3134 = vst.msk [vmem:[#allocation3 + $0x168] sm:$0xff] %vm1361, %v3070
        %3135 = vst.msk [vmem:[#allocation3 + $0x170] sm:$0xff] %vm1361, %v3071
        %3136 = vst.msk [vmem:[#allocation3 + $0x178] sm:$0xff] %vm1361, %v3072
        %3137 = vst.msk [vmem:[#allocation3 + $0x180] sm:$0xff] %vm1361, %v3073
        %3138 = vst.msk [vmem:[#allocation3 + $0x188] sm:$0xff] %vm1361, %v3074
        %3139 = vst.msk [vmem:[#allocation3 + $0x190] sm:$0xff] %vm1361, %v3075
        %3140 = vst.msk [vmem:[#allocation3 + $0x198] sm:$0xff] %vm1361, %v3076
        %3141 = vst.msk [vmem:[#allocation3 + $0x1a0] sm:$0xff] %vm1361, %v3077
        %3142 = vst.msk [vmem:[#allocation3 + $0x1a8] sm:$0xff] %vm1361, %v3078
        %3143 = vst.msk [vmem:[#allocation3 + $0x1b0] sm:$0xff] %vm1361, %v3079
        %3144 = vst.msk [vmem:[#allocation3 + $0x1b8] sm:$0xff] %vm1361, %v3080
        %3145 = vst.msk [vmem:[#allocation3 + $0x1c0] sm:$0xff] %vm1361, %v3081
        %3146 = vst.msk [vmem:[#allocation3 + $0x1c8] sm:$0xff] %vm1361, %v3082
        %3147 = vst.msk [vmem:[#allocation3 + $0x1d0] sm:$0xff] %vm1361, %v3083
        %3148 = vst.msk [vmem:[#allocation3 + $0x1d8] sm:$0xff] %vm1361, %v3084
        %3149 = vst.msk [vmem:[#allocation3 + $0x1e0] sm:$0xff] %vm1361, %v3085
        %3150 = vst.msk [vmem:[#allocation3 + $0x1e8] sm:$0xff] %vm1361, %v3086
        %3151 = vst.msk [vmem:[#allocation3 + $0x1f0] sm:$0xff] %vm1361, %v3087
        %3152 = vst.msk [vmem:[#allocation3 + $0x1f8] sm:$0xff] %vm1361, %v3088
        %s3153 = scalar_lea.vmem [#allocation2], 80
        %v3154 = vld [vmem:[%s3153] sm:$0xff]
        %v3155 = vld [vmem:[%s3153 + $0x8] sm:$0xff]
        %v3156 = vld [vmem:[%s3153 + $0x10] sm:$0xff]
        %v3157 = vld [vmem:[%s3153 + $0x18] sm:$0xff]
        %v3158 = vld [vmem:[%s3153 + $0x20] sm:$0xff]
        %v3159 = vld [vmem:[%s3153 + $0x28] sm:$0xff]
        %v3160 = vld [vmem:[%s3153 + $0x30] sm:$0xff]
        %v3161 = vld [vmem:[%s3153 + $0x38] sm:$0xff]
        %v3162 = vld [vmem:[%s3153 + $0x50] sm:$0xff]
        %v3163 = vld [vmem:[%s3153 + $0x58] sm:$0xff]
        %v3164 = vld [vmem:[%s3153 + $0x60] sm:$0xff]
        %v3165 = vld [vmem:[%s3153 + $0x68] sm:$0xff]
        %v3166 = vld [vmem:[%s3153 + $0x70] sm:$0xff]
        %v3167 = vld [vmem:[%s3153 + $0x78] sm:$0xff]
        %v3168 = vld [vmem:[%s3153 + $0x80] sm:$0xff]
        %v3169 = vld [vmem:[%s3153 + $0x88] sm:$0xff]
        %v3170 = vld [vmem:[%s3153 + $0xa0] sm:$0xff]
        %v3171 = vld [vmem:[%s3153 + $0xa8] sm:$0xff]
        %v3172 = vld [vmem:[%s3153 + $0xb0] sm:$0xff]
        %v3173 = vld [vmem:[%s3153 + $0xb8] sm:$0xff]
        %v3174 = vld [vmem:[%s3153 + $0xc0] sm:$0xff]
        %v3175 = vld [vmem:[%s3153 + $0xc8] sm:$0xff]
        %v3176 = vld [vmem:[%s3153 + $0xd0] sm:$0xff]
        %v3177 = vld [vmem:[%s3153 + $0xd8] sm:$0xff]
        %v3178 = vld [vmem:[%s3153 + $0xf0] sm:$0xff]
        %v3179 = vld [vmem:[%s3153 + $0xf8] sm:$0xff]
        %v3180 = vld [vmem:[%s3153 + $0x100] sm:$0xff]
        %v3181 = vld [vmem:[%s3153 + $0x108] sm:$0xff]
        %v3182 = vld [vmem:[%s3153 + $0x110] sm:$0xff]
        %v3183 = vld [vmem:[%s3153 + $0x118] sm:$0xff]
        %v3184 = vld [vmem:[%s3153 + $0x120] sm:$0xff]
        %v3185 = vld [vmem:[%s3153 + $0x128] sm:$0xff]
        %v3186 = vld [vmem:[%s3153 + $0x140] sm:$0xff]
        %v3187 = vld [vmem:[%s3153 + $0x148] sm:$0xff]
        %v3188 = vld [vmem:[%s3153 + $0x150] sm:$0xff]
        %v3189 = vld [vmem:[%s3153 + $0x158] sm:$0xff]
        %v3190 = vld [vmem:[%s3153 + $0x160] sm:$0xff]
        %v3191 = vld [vmem:[%s3153 + $0x168] sm:$0xff]
        %v3192 = vld [vmem:[%s3153 + $0x170] sm:$0xff]
        %v3193 = vld [vmem:[%s3153 + $0x178] sm:$0xff]
        %v3194 = vld [vmem:[%s3153 + $0x190] sm:$0xff]
        %v3195 = vld [vmem:[%s3153 + $0x198] sm:$0xff]
        %v3196 = vld [vmem:[%s3153 + $0x1a0] sm:$0xff]
        %v3197 = vld [vmem:[%s3153 + $0x1a8] sm:$0xff]
        %v3198 = vld [vmem:[%s3153 + $0x1b0] sm:$0xff]
        %v3199 = vld [vmem:[%s3153 + $0x1b8] sm:$0xff]
        %v3200 = vld [vmem:[%s3153 + $0x1c0] sm:$0xff]
        %v3201 = vld [vmem:[%s3153 + $0x1c8] sm:$0xff]
        %v3202 = vld [vmem:[%s3153 + $0x1e0] sm:$0xff]
        %v3203 = vld [vmem:[%s3153 + $0x1e8] sm:$0xff]
        %v3204 = vld [vmem:[%s3153 + $0x1f0] sm:$0xff]
        %v3205 = vld [vmem:[%s3153 + $0x1f8] sm:$0xff]
        %v3206 = vld [vmem:[%s3153 + $0x200] sm:$0xff]
        %v3207 = vld [vmem:[%s3153 + $0x208] sm:$0xff]
        %v3208 = vld [vmem:[%s3153 + $0x210] sm:$0xff]
        %v3209 = vld [vmem:[%s3153 + $0x218] sm:$0xff]
        %v3210 = vld [vmem:[%s3153 + $0x230] sm:$0xff]
        %v3211 = vld [vmem:[%s3153 + $0x238] sm:$0xff]
        %v3212 = vld [vmem:[%s3153 + $0x240] sm:$0xff]
        %v3213 = vld [vmem:[%s3153 + $0x248] sm:$0xff]
        %v3214 = vld [vmem:[%s3153 + $0x250] sm:$0xff]
        %v3215 = vld [vmem:[%s3153 + $0x258] sm:$0xff]
        %v3216 = vld [vmem:[%s3153 + $0x260] sm:$0xff]
        %v3217 = vld [vmem:[%s3153 + $0x268] sm:$0xff]
        %s3218 = scalar_lea.vmem %s627, 96
        %v3219 = vld [vmem:[%s3218] sm:$0xff]
        %v3220 = vld [vmem:[%s3218 + $0x8] sm:$0xff]
        %v3221 = vld [vmem:[%s3218 + $0x10] sm:$0xff]
        %v3222 = vld [vmem:[%s3218 + $0x18] sm:$0xff]
        %v3224 = vsel %vm1361, %v3154, 0
        %v3227 = vsel %vm1361, %v3155, 0
        %v3230 = vsel %vm1361, %v3156, 0
        %v3233 = vsel %vm1361, %v3157, 0
        %v3236 = vsel %vm1361, %v3158, 0
        %v3239 = vsel %vm1361, %v3159, 0
        %v3242 = vsel %vm1361, %v3160, 0
        %v3245 = vsel %vm1361, %v3161, 0
        %v3248 = vsel %vm1361, %v3162, 0
        %v3251 = vsel %vm1361, %v3163, 0
        %v3254 = vsel %vm1361, %v3164, 0
        %v3257 = vsel %vm1361, %v3165, 0
        %v3260 = vsel %vm1361, %v3166, 0
        %v3263 = vsel %vm1361, %v3167, 0
        %v3266 = vsel %vm1361, %v3168, 0
        %v3269 = vsel %vm1361, %v3169, 0
        %v3272 = vsel %vm1361, %v3170, 0
        %v3275 = vsel %vm1361, %v3171, 0
        %v3278 = vsel %vm1361, %v3172, 0
        %v3281 = vsel %vm1361, %v3173, 0
        %v3284 = vsel %vm1361, %v3174, 0
        %v3287 = vsel %vm1361, %v3175, 0
        %v3290 = vsel %vm1361, %v3176, 0
        %v3293 = vsel %vm1361, %v3177, 0
        %v3296 = vsel %vm1361, %v3178, 0
        %v3299 = vsel %vm1361, %v3179, 0
        %v3302 = vsel %vm1361, %v3180, 0
        %v3305 = vsel %vm1361, %v3181, 0
        %v3308 = vsel %vm1361, %v3182, 0
        %v3311 = vsel %vm1361, %v3183, 0
        %v3314 = vsel %vm1361, %v3184, 0
        %v3317 = vsel %vm1361, %v3185, 0
        %v3320 = vsel %vm1361, %v3186, 0
        %v3323 = vsel %vm1361, %v3187, 0
        %v3326 = vsel %vm1361, %v3188, 0
        %v3329 = vsel %vm1361, %v3189, 0
        %v3332 = vsel %vm1361, %v3190, 0
        %v3335 = vsel %vm1361, %v3191, 0
        %v3338 = vsel %vm1361, %v3192, 0
        %v3341 = vsel %vm1361, %v3193, 0
        %v3344 = vsel %vm1361, %v3194, 0
        %v3347 = vsel %vm1361, %v3195, 0
        %v3350 = vsel %vm1361, %v3196, 0
        %v3353 = vsel %vm1361, %v3197, 0
        %v3356 = vsel %vm1361, %v3198, 0
        %v3359 = vsel %vm1361, %v3199, 0
        %v3362 = vsel %vm1361, %v3200, 0
        %v3365 = vsel %vm1361, %v3201, 0
        %v3368 = vsel %vm1361, %v3202, 0
        %v3371 = vsel %vm1361, %v3203, 0
        %v3374 = vsel %vm1361, %v3204, 0
        %v3377 = vsel %vm1361, %v3205, 0
        %v3380 = vsel %vm1361, %v3206, 0
        %v3383 = vsel %vm1361, %v3207, 0
        %v3386 = vsel %vm1361, %v3208, 0
        %v3389 = vsel %vm1361, %v3209, 0
        %v3392 = vsel %vm1361, %v3210, 0
        %v3395 = vsel %vm1361, %v3211, 0
        %v3398 = vsel %vm1361, %v3212, 0
        %v3401 = vsel %vm1361, %v3213, 0
        %v3404 = vsel %vm1361, %v3214, 0
        %v3407 = vsel %vm1361, %v3215, 0
        %v3410 = vsel %vm1361, %v3216, 0
        %v3413 = vsel %vm1361, %v3217, 0
        %3415 = vmatpush.msra.mxu0 0.0
        %3416 = vmatpush.msra.mxu0 0.0
        %3417 = vmatpush.msra.mxu0 0.0
        %3418 = vmatpush.msra.mxu0 0.0
        %3419 = vmatpush.msra.mxu0 0.0
        %3420 = vmatpush.msra.mxu0 0.0
        %3421 = vmatpush.msra.mxu0 0.0
        %3422 = vmatpush.msra.mxu0 0.0
        %3423 = vmatpush.msra.mxu0 0.0
        %3424 = vmatpush.msra.mxu0 0.0
        %3425 = vmatpush.msra.mxu0 0.0
        %3426 = vmatpush.msra.mxu0 0.0
        %3427 = vmatpush.msra.mxu0 %v3222
        %3428 = vmatpush.msra.mxu0 %v3221
        %3429 = vmatpush.msra.mxu0 %v3220
        %3430 = vmatpush.msra.mxu0 %v3219
        %3431 = vmatmul.f32.gmra.mxu0 %v3224
        %v3432 = vpop.f32.mrf.mxu0
        %v3433 = vadd.f32 0.0, %v3432
        %3434 = vmatmul.f32.gmra.mxu0 %v3227
        %v3435 = vpop.f32.mrf.mxu0
        %v3436 = vadd.f32 0.0, %v3435
        %3437 = vmatmul.f32.gmra.mxu0 %v3230
        %v3438 = vpop.f32.mrf.mxu0
        %v3439 = vadd.f32 0.0, %v3438
        %3440 = vmatmul.f32.gmra.mxu0 %v3233
        %v3441 = vpop.f32.mrf.mxu0
        %v3442 = vadd.f32 0.0, %v3441
        %3443 = vmatmul.f32.gmra.mxu0 %v3236
        %v3444 = vpop.f32.mrf.mxu0
        %v3445 = vadd.f32 0.0, %v3444
        %3446 = vmatmul.f32.gmra.mxu0 %v3239
        %v3447 = vpop.f32.mrf.mxu0
        %v3448 = vadd.f32 0.0, %v3447
        %3449 = vmatmul.f32.gmra.mxu0 %v3242
        %v3450 = vpop.f32.mrf.mxu0
        %v3451 = vadd.f32 0.0, %v3450
        %3452 = vmatmul.f32.gmra.mxu0 %v3245
        %v3453 = vpop.f32.mrf.mxu0
        %v3454 = vadd.f32 0.0, %v3453
        %3455 = vmatmul.f32.gmra.mxu0 %v3248
        %v3456 = vpop.f32.mrf.mxu0
        %v3457 = vadd.f32 0.0, %v3456
        %3458 = vmatmul.f32.gmra.mxu0 %v3251
        %v3459 = vpop.f32.mrf.mxu0
        %v3460 = vadd.f32 0.0, %v3459
        %3461 = vmatmul.f32.gmra.mxu0 %v3254
        %v3462 = vpop.f32.mrf.mxu0
        %v3463 = vadd.f32 0.0, %v3462
        %3464 = vmatmul.f32.gmra.mxu0 %v3257
        %v3465 = vpop.f32.mrf.mxu0
        %v3466 = vadd.f32 0.0, %v3465
        %3467 = vmatmul.f32.gmra.mxu0 %v3260
        %v3468 = vpop.f32.mrf.mxu0
        %v3469 = vadd.f32 0.0, %v3468
        %3470 = vmatmul.f32.gmra.mxu0 %v3263
        %v3471 = vpop.f32.mrf.mxu0
        %v3472 = vadd.f32 0.0, %v3471
        %3473 = vmatmul.f32.gmra.mxu0 %v3266
        %v3474 = vpop.f32.mrf.mxu0
        %v3475 = vadd.f32 0.0, %v3474
        %3476 = vmatmul.f32.gmra.mxu0 %v3269
        %v3477 = vpop.f32.mrf.mxu0
        %v3478 = vadd.f32 0.0, %v3477
        %3479 = vmatmul.f32.gmra.mxu0 %v3272
        %v3480 = vpop.f32.mrf.mxu0
        %v3481 = vadd.f32 0.0, %v3480
        %3482 = vmatmul.f32.gmra.mxu0 %v3275
        %v3483 = vpop.f32.mrf.mxu0
        %v3484 = vadd.f32 0.0, %v3483
        %3485 = vmatmul.f32.gmra.mxu0 %v3278
        %v3486 = vpop.f32.mrf.mxu0
        %v3487 = vadd.f32 0.0, %v3486
        %3488 = vmatmul.f32.gmra.mxu0 %v3281
        %v3489 = vpop.f32.mrf.mxu0
        %v3490 = vadd.f32 0.0, %v3489
        %3491 = vmatmul.f32.gmra.mxu0 %v3284
        %v3492 = vpop.f32.mrf.mxu0
        %v3493 = vadd.f32 0.0, %v3492
        %3494 = vmatmul.f32.gmra.mxu0 %v3287
        %v3495 = vpop.f32.mrf.mxu0
        %v3496 = vadd.f32 0.0, %v3495
        %3497 = vmatmul.f32.gmra.mxu0 %v3290
        %v3498 = vpop.f32.mrf.mxu0
        %v3499 = vadd.f32 0.0, %v3498
        %3500 = vmatmul.f32.gmra.mxu0 %v3293
        %v3501 = vpop.f32.mrf.mxu0
        %v3502 = vadd.f32 0.0, %v3501
        %3503 = vmatmul.f32.gmra.mxu0 %v3296
        %v3504 = vpop.f32.mrf.mxu0
        %v3505 = vadd.f32 0.0, %v3504
        %3506 = vmatmul.f32.gmra.mxu0 %v3299
        %v3507 = vpop.f32.mrf.mxu0
        %v3508 = vadd.f32 0.0, %v3507
        %3509 = vmatmul.f32.gmra.mxu0 %v3302
        %v3510 = vpop.f32.mrf.mxu0
        %v3511 = vadd.f32 0.0, %v3510
        %3512 = vmatmul.f32.gmra.mxu0 %v3305
        %v3513 = vpop.f32.mrf.mxu0
        %v3514 = vadd.f32 0.0, %v3513
        %3515 = vmatmul.f32.gmra.mxu0 %v3308
        %v3516 = vpop.f32.mrf.mxu0
        %v3517 = vadd.f32 0.0, %v3516
        %3518 = vmatmul.f32.gmra.mxu0 %v3311
        %v3519 = vpop.f32.mrf.mxu0
        %v3520 = vadd.f32 0.0, %v3519
        %3521 = vmatmul.f32.gmra.mxu0 %v3314
        %v3522 = vpop.f32.mrf.mxu0
        %v3523 = vadd.f32 0.0, %v3522
        %3524 = vmatmul.f32.gmra.mxu0 %v3317
        %v3525 = vpop.f32.mrf.mxu0
        %v3526 = vadd.f32 0.0, %v3525
        %3527 = vmatmul.f32.gmra.mxu0 %v3320
        %v3528 = vpop.f32.mrf.mxu0
        %v3529 = vadd.f32 0.0, %v3528
        %3530 = vmatmul.f32.gmra.mxu0 %v3323
        %v3531 = vpop.f32.mrf.mxu0
        %v3532 = vadd.f32 0.0, %v3531
        %3533 = vmatmul.f32.gmra.mxu0 %v3326
        %v3534 = vpop.f32.mrf.mxu0
        %v3535 = vadd.f32 0.0, %v3534
        %3536 = vmatmul.f32.gmra.mxu0 %v3329
        %v3537 = vpop.f32.mrf.mxu0
        %v3538 = vadd.f32 0.0, %v3537
        %3539 = vmatmul.f32.gmra.mxu0 %v3332
        %v3540 = vpop.f32.mrf.mxu0
        %v3541 = vadd.f32 0.0, %v3540
        %3542 = vmatmul.f32.gmra.mxu0 %v3335
        %v3543 = vpop.f32.mrf.mxu0
        %v3544 = vadd.f32 0.0, %v3543
        %3545 = vmatmul.f32.gmra.mxu0 %v3338
        %v3546 = vpop.f32.mrf.mxu0
        %v3547 = vadd.f32 0.0, %v3546
        %3548 = vmatmul.f32.gmra.mxu0 %v3341
        %v3549 = vpop.f32.mrf.mxu0
        %v3550 = vadd.f32 0.0, %v3549
        %3551 = vmatmul.f32.gmra.mxu0 %v3344
        %v3552 = vpop.f32.mrf.mxu0
        %v3553 = vadd.f32 0.0, %v3552
        %3554 = vmatmul.f32.gmra.mxu0 %v3347
        %v3555 = vpop.f32.mrf.mxu0
        %v3556 = vadd.f32 0.0, %v3555
        %3557 = vmatmul.f32.gmra.mxu0 %v3350
        %v3558 = vpop.f32.mrf.mxu0
        %v3559 = vadd.f32 0.0, %v3558
        %3560 = vmatmul.f32.gmra.mxu0 %v3353
        %v3561 = vpop.f32.mrf.mxu0
        %v3562 = vadd.f32 0.0, %v3561
        %3563 = vmatmul.f32.gmra.mxu0 %v3356
        %v3564 = vpop.f32.mrf.mxu0
        %v3565 = vadd.f32 0.0, %v3564
        %3566 = vmatmul.f32.gmra.mxu0 %v3359
        %v3567 = vpop.f32.mrf.mxu0
        %v3568 = vadd.f32 0.0, %v3567
        %3569 = vmatmul.f32.gmra.mxu0 %v3362
        %v3570 = vpop.f32.mrf.mxu0
        %v3571 = vadd.f32 0.0, %v3570
        %3572 = vmatmul.f32.gmra.mxu0 %v3365
        %v3573 = vpop.f32.mrf.mxu0
        %v3574 = vadd.f32 0.0, %v3573
        %3575 = vmatmul.f32.gmra.mxu0 %v3368
        %v3576 = vpop.f32.mrf.mxu0
        %v3577 = vadd.f32 0.0, %v3576
        %3578 = vmatmul.f32.gmra.mxu0 %v3371
        %v3579 = vpop.f32.mrf.mxu0
        %v3580 = vadd.f32 0.0, %v3579
        %3581 = vmatmul.f32.gmra.mxu0 %v3374
        %v3582 = vpop.f32.mrf.mxu0
        %v3583 = vadd.f32 0.0, %v3582
        %3584 = vmatmul.f32.gmra.mxu0 %v3377
        %v3585 = vpop.f32.mrf.mxu0
        %v3586 = vadd.f32 0.0, %v3585
        %3587 = vmatmul.f32.gmra.mxu0 %v3380
        %v3588 = vpop.f32.mrf.mxu0
        %v3589 = vadd.f32 0.0, %v3588
        %3590 = vmatmul.f32.gmra.mxu0 %v3383
        %v3591 = vpop.f32.mrf.mxu0
        %v3592 = vadd.f32 0.0, %v3591
        %3593 = vmatmul.f32.gmra.mxu0 %v3386
        %v3594 = vpop.f32.mrf.mxu0
        %v3595 = vadd.f32 0.0, %v3594
        %3596 = vmatmul.f32.gmra.mxu0 %v3389
        %v3597 = vpop.f32.mrf.mxu0
        %v3598 = vadd.f32 0.0, %v3597
        %3599 = vmatmul.f32.gmra.mxu0 %v3392
        %v3600 = vpop.f32.mrf.mxu0
        %v3601 = vadd.f32 0.0, %v3600
        %3602 = vmatmul.f32.gmra.mxu0 %v3395
        %v3603 = vpop.f32.mrf.mxu0
        %v3604 = vadd.f32 0.0, %v3603
        %3605 = vmatmul.f32.gmra.mxu0 %v3398
        %v3606 = vpop.f32.mrf.mxu0
        %v3607 = vadd.f32 0.0, %v3606
        %3608 = vmatmul.f32.gmra.mxu0 %v3401
        %v3609 = vpop.f32.mrf.mxu0
        %v3610 = vadd.f32 0.0, %v3609
        %3611 = vmatmul.f32.gmra.mxu0 %v3404
        %v3612 = vpop.f32.mrf.mxu0
        %v3613 = vadd.f32 0.0, %v3612
        %3614 = vmatmul.f32.gmra.mxu0 %v3407
        %v3615 = vpop.f32.mrf.mxu0
        %v3616 = vadd.f32 0.0, %v3615
        %3617 = vmatmul.f32.gmra.mxu0 %v3410
        %v3618 = vpop.f32.mrf.mxu0
        %v3619 = vadd.f32 0.0, %v3618
        %3620 = vmatmul.f32.gmra.mxu0 %v3413
        %v3621 = vpop.f32.mrf.mxu0
        %v3622 = vadd.f32 0.0, %v3621
        %3623 = vdwg.mxu0
        %v3624 = vld [vmem:[#allocation3] sm:$0xff]
        %v3625 = vld [vmem:[#allocation3 + $0x8] sm:$0xff]
        %v3626 = vld [vmem:[#allocation3 + $0x10] sm:$0xff]
        %v3627 = vld [vmem:[#allocation3 + $0x18] sm:$0xff]
        %v3628 = vld [vmem:[#allocation3 + $0x20] sm:$0xff]
        %v3629 = vld [vmem:[#allocation3 + $0x28] sm:$0xff]
        %v3630 = vld [vmem:[#allocation3 + $0x30] sm:$0xff]
        %v3631 = vld [vmem:[#allocation3 + $0x38] sm:$0xff]
        %v3632 = vld [vmem:[#allocation3 + $0x40] sm:$0xff]
        %v3633 = vld [vmem:[#allocation3 + $0x48] sm:$0xff]
        %v3634 = vld [vmem:[#allocation3 + $0x50] sm:$0xff]
        %v3635 = vld [vmem:[#allocation3 + $0x58] sm:$0xff]
        %v3636 = vld [vmem:[#allocation3 + $0x60] sm:$0xff]
        %v3637 = vld [vmem:[#allocation3 + $0x68] sm:$0xff]
        %v3638 = vld [vmem:[#allocation3 + $0x70] sm:$0xff]
        %v3639 = vld [vmem:[#allocation3 + $0x78] sm:$0xff]
        %v3640 = vld [vmem:[#allocation3 + $0x80] sm:$0xff]
        %v3641 = vld [vmem:[#allocation3 + $0x88] sm:$0xff]
        %v3642 = vld [vmem:[#allocation3 + $0x90] sm:$0xff]
        %v3643 = vld [vmem:[#allocation3 + $0x98] sm:$0xff]
        %v3644 = vld [vmem:[#allocation3 + $0xa0] sm:$0xff]
        %v3645 = vld [vmem:[#allocation3 + $0xa8] sm:$0xff]
        %v3646 = vld [vmem:[#allocation3 + $0xb0] sm:$0xff]
        %v3647 = vld [vmem:[#allocation3 + $0xb8] sm:$0xff]
        %v3648 = vld [vmem:[#allocation3 + $0xc0] sm:$0xff]
        %v3649 = vld [vmem:[#allocation3 + $0xc8] sm:$0xff]
        %v3650 = vld [vmem:[#allocation3 + $0xd0] sm:$0xff]
        %v3651 = vld [vmem:[#allocation3 + $0xd8] sm:$0xff]
        %v3652 = vld [vmem:[#allocation3 + $0xe0] sm:$0xff]
        %v3653 = vld [vmem:[#allocation3 + $0xe8] sm:$0xff]
        %v3654 = vld [vmem:[#allocation3 + $0xf0] sm:$0xff]
        %v3655 = vld [vmem:[#allocation3 + $0xf8] sm:$0xff]
        %v3656 = vld [vmem:[#allocation3 + $0x100] sm:$0xff]
        %v3657 = vld [vmem:[#allocation3 + $0x108] sm:$0xff]
        %v3658 = vld [vmem:[#allocation3 + $0x110] sm:$0xff]
        %v3659 = vld [vmem:[#allocation3 + $0x118] sm:$0xff]
        %v3660 = vld [vmem:[#allocation3 + $0x120] sm:$0xff]
        %v3661 = vld [vmem:[#allocation3 + $0x128] sm:$0xff]
        %v3662 = vld [vmem:[#allocation3 + $0x130] sm:$0xff]
        %v3663 = vld [vmem:[#allocation3 + $0x138] sm:$0xff]
        %v3664 = vld [vmem:[#allocation3 + $0x140] sm:$0xff]
        %v3665 = vld [vmem:[#allocation3 + $0x148] sm:$0xff]
        %v3666 = vld [vmem:[#allocation3 + $0x150] sm:$0xff]
        %v3667 = vld [vmem:[#allocation3 + $0x158] sm:$0xff]
        %v3668 = vld [vmem:[#allocation3 + $0x160] sm:$0xff]
        %v3669 = vld [vmem:[#allocation3 + $0x168] sm:$0xff]
        %v3670 = vld [vmem:[#allocation3 + $0x170] sm:$0xff]
        %v3671 = vld [vmem:[#allocation3 + $0x178] sm:$0xff]
        %v3672 = vld [vmem:[#allocation3 + $0x180] sm:$0xff]
        %v3673 = vld [vmem:[#allocation3 + $0x188] sm:$0xff]
        %v3674 = vld [vmem:[#allocation3 + $0x190] sm:$0xff]
        %v3675 = vld [vmem:[#allocation3 + $0x198] sm:$0xff]
        %v3676 = vld [vmem:[#allocation3 + $0x1a0] sm:$0xff]
        %v3677 = vld [vmem:[#allocation3 + $0x1a8] sm:$0xff]
        %v3678 = vld [vmem:[#allocation3 + $0x1b0] sm:$0xff]
        %v3679 = vld [vmem:[#allocation3 + $0x1b8] sm:$0xff]
        %v3680 = vld [vmem:[#allocation3 + $0x1c0] sm:$0xff]
        %v3681 = vld [vmem:[#allocation3 + $0x1c8] sm:$0xff]
        %v3682 = vld [vmem:[#allocation3 + $0x1d0] sm:$0xff]
        %v3683 = vld [vmem:[#allocation3 + $0x1d8] sm:$0xff]
        %v3684 = vld [vmem:[#allocation3 + $0x1e0] sm:$0xff]
        %v3685 = vld [vmem:[#allocation3 + $0x1e8] sm:$0xff]
        %v3686 = vld [vmem:[#allocation3 + $0x1f0] sm:$0xff]
        %v3687 = vld [vmem:[#allocation3 + $0x1f8] sm:$0xff]
        %v3688 = vadd.f32 %v3624, %v3433
        %v3689 = vadd.f32 %v3625, %v3436
        %v3690 = vadd.f32 %v3626, %v3439
        %v3691 = vadd.f32 %v3627, %v3442
        %v3692 = vadd.f32 %v3628, %v3445
        %v3693 = vadd.f32 %v3629, %v3448
        %v3694 = vadd.f32 %v3630, %v3451
        %v3695 = vadd.f32 %v3631, %v3454
        %v3696 = vadd.f32 %v3632, %v3457
        %v3697 = vadd.f32 %v3633, %v3460
        %v3698 = vadd.f32 %v3634, %v3463
        %v3699 = vadd.f32 %v3635, %v3466
        %v3700 = vadd.f32 %v3636, %v3469
        %v3701 = vadd.f32 %v3637, %v3472
        %v3702 = vadd.f32 %v3638, %v3475
        %v3703 = vadd.f32 %v3639, %v3478
        %v3704 = vadd.f32 %v3640, %v3481
        %v3705 = vadd.f32 %v3641, %v3484
        %v3706 = vadd.f32 %v3642, %v3487
        %v3707 = vadd.f32 %v3643, %v3490
        %v3708 = vadd.f32 %v3644, %v3493
        %v3709 = vadd.f32 %v3645, %v3496
        %v3710 = vadd.f32 %v3646, %v3499
        %v3711 = vadd.f32 %v3647, %v3502
        %v3712 = vadd.f32 %v3648, %v3505
        %v3713 = vadd.f32 %v3649, %v3508
        %v3714 = vadd.f32 %v3650, %v3511
        %v3715 = vadd.f32 %v3651, %v3514
        %v3716 = vadd.f32 %v3652, %v3517
        %v3717 = vadd.f32 %v3653, %v3520
        %v3718 = vadd.f32 %v3654, %v3523
        %v3719 = vadd.f32 %v3655, %v3526
        %v3720 = vadd.f32 %v3656, %v3529
        %v3721 = vadd.f32 %v3657, %v3532
        %v3722 = vadd.f32 %v3658, %v3535
        %v3723 = vadd.f32 %v3659, %v3538
        %v3724 = vadd.f32 %v3660, %v3541
        %v3725 = vadd.f32 %v3661, %v3544
        %v3726 = vadd.f32 %v3662, %v3547
        %v3727 = vadd.f32 %v3663, %v3550
        %v3728 = vadd.f32 %v3664, %v3553
        %v3729 = vadd.f32 %v3665, %v3556
        %v3730 = vadd.f32 %v3666, %v3559
        %v3731 = vadd.f32 %v3667, %v3562
        %v3732 = vadd.f32 %v3668, %v3565
        %v3733 = vadd.f32 %v3669, %v3568
        %v3734 = vadd.f32 %v3670, %v3571
        %v3735 = vadd.f32 %v3671, %v3574
        %v3736 = vadd.f32 %v3672, %v3577
        %v3737 = vadd.f32 %v3673, %v3580
        %v3738 = vadd.f32 %v3674, %v3583
        %v3739 = vadd.f32 %v3675, %v3586
        %v3740 = vadd.f32 %v3676, %v3589
        %v3741 = vadd.f32 %v3677, %v3592
        %v3742 = vadd.f32 %v3678, %v3595
        %v3743 = vadd.f32 %v3679, %v3598
        %v3744 = vadd.f32 %v3680, %v3601
        %v3745 = vadd.f32 %v3681, %v3604
        %v3746 = vadd.f32 %v3682, %v3607
        %v3747 = vadd.f32 %v3683, %v3610
        %v3748 = vadd.f32 %v3684, %v3613
        %v3749 = vadd.f32 %v3685, %v3616
        %v3750 = vadd.f32 %v3686, %v3619
        %v3751 = vadd.f32 %v3687, %v3622
        %3752 = vst.msk [vmem:[#allocation3] sm:$0xff] %vm1361, %v3688
        %3753 = vst.msk [vmem:[#allocation3 + $0x8] sm:$0xff] %vm1361, %v3689
        %3754 = vst.msk [vmem:[#allocation3 + $0x10] sm:$0xff] %vm1361, %v3690
        %3755 = vst.msk [vmem:[#allocation3 + $0x18] sm:$0xff] %vm1361, %v3691
        %3756 = vst.msk [vmem:[#allocation3 + $0x20] sm:$0xff] %vm1361, %v3692
        %3757 = vst.msk [vmem:[#allocation3 + $0x28] sm:$0xff] %vm1361, %v3693
        %3758 = vst.msk [vmem:[#allocation3 + $0x30] sm:$0xff] %vm1361, %v3694
        %3759 = vst.msk [vmem:[#allocation3 + $0x38] sm:$0xff] %vm1361, %v3695
        %3760 = vst.msk [vmem:[#allocation3 + $0x40] sm:$0xff] %vm1361, %v3696
        %3761 = vst.msk [vmem:[#allocation3 + $0x48] sm:$0xff] %vm1361, %v3697
        %3762 = vst.msk [vmem:[#allocation3 + $0x50] sm:$0xff] %vm1361, %v3698
        %3763 = vst.msk [vmem:[#allocation3 + $0x58] sm:$0xff] %vm1361, %v3699
        %3764 = vst.msk [vmem:[#allocation3 + $0x60] sm:$0xff] %vm1361, %v3700
        %3765 = vst.msk [vmem:[#allocation3 + $0x68] sm:$0xff] %vm1361, %v3701
        %3766 = vst.msk [vmem:[#allocation3 + $0x70] sm:$0xff] %vm1361, %v3702
        %3767 = vst.msk [vmem:[#allocation3 + $0x78] sm:$0xff] %vm1361, %v3703
        %3768 = vst.msk [vmem:[#allocation3 + $0x80] sm:$0xff] %vm1361, %v3704
        %3769 = vst.msk [vmem:[#allocation3 + $0x88] sm:$0xff] %vm1361, %v3705
        %3770 = vst.msk [vmem:[#allocation3 + $0x90] sm:$0xff] %vm1361, %v3706
        %3771 = vst.msk [vmem:[#allocation3 + $0x98] sm:$0xff] %vm1361, %v3707
        %3772 = vst.msk [vmem:[#allocation3 + $0xa0] sm:$0xff] %vm1361, %v3708
        %3773 = vst.msk [vmem:[#allocation3 + $0xa8] sm:$0xff] %vm1361, %v3709
        %3774 = vst.msk [vmem:[#allocation3 + $0xb0] sm:$0xff] %vm1361, %v3710
        %3775 = vst.msk [vmem:[#allocation3 + $0xb8] sm:$0xff] %vm1361, %v3711
        %3776 = vst.msk [vmem:[#allocation3 + $0xc0] sm:$0xff] %vm1361, %v3712
        %3777 = vst.msk [vmem:[#allocation3 + $0xc8] sm:$0xff] %vm1361, %v3713
        %3778 = vst.msk [vmem:[#allocation3 + $0xd0] sm:$0xff] %vm1361, %v3714
        %3779 = vst.msk [vmem:[#allocation3 + $0xd8] sm:$0xff] %vm1361, %v3715
        %3780 = vst.msk [vmem:[#allocation3 + $0xe0] sm:$0xff] %vm1361, %v3716
        %3781 = vst.msk [vmem:[#allocation3 + $0xe8] sm:$0xff] %vm1361, %v3717
        %3782 = vst.msk [vmem:[#allocation3 + $0xf0] sm:$0xff] %vm1361, %v3718
        %3783 = vst.msk [vmem:[#allocation3 + $0xf8] sm:$0xff] %vm1361, %v3719
        %3784 = vst.msk [vmem:[#allocation3 + $0x100] sm:$0xff] %vm1361, %v3720
        %3785 = vst.msk [vmem:[#allocation3 + $0x108] sm:$0xff] %vm1361, %v3721
        %3786 = vst.msk [vmem:[#allocation3 + $0x110] sm:$0xff] %vm1361, %v3722
        %3787 = vst.msk [vmem:[#allocation3 + $0x118] sm:$0xff] %vm1361, %v3723
        %3788 = vst.msk [vmem:[#allocation3 + $0x120] sm:$0xff] %vm1361, %v3724
        %3789 = vst.msk [vmem:[#allocation3 + $0x128] sm:$0xff] %vm1361, %v3725
        %3790 = vst.msk [vmem:[#allocation3 + $0x130] sm:$0xff] %vm1361, %v3726
        %3791 = vst.msk [vmem:[#allocation3 + $0x138] sm:$0xff] %vm1361, %v3727
        %3792 = vst.msk [vmem:[#allocation3 + $0x140] sm:$0xff] %vm1361, %v3728
        %3793 = vst.msk [vmem:[#allocation3 + $0x148] sm:$0xff] %vm1361, %v3729
        %3794 = vst.msk [vmem:[#allocation3 + $0x150] sm:$0xff] %vm1361, %v3730
        %3795 = vst.msk [vmem:[#allocation3 + $0x158] sm:$0xff] %vm1361, %v3731
        %3796 = vst.msk [vmem:[#allocation3 + $0x160] sm:$0xff] %vm1361, %v3732
        %3797 = vst.msk [vmem:[#allocation3 + $0x168] sm:$0xff] %vm1361, %v3733
        %3798 = vst.msk [vmem:[#allocation3 + $0x170] sm:$0xff] %vm1361, %v3734
        %3799 = vst.msk [vmem:[#allocation3 + $0x178] sm:$0xff] %vm1361, %v3735
        %3800 = vst.msk [vmem:[#allocation3 + $0x180] sm:$0xff] %vm1361, %v3736
        %3801 = vst.msk [vmem:[#allocation3 + $0x188] sm:$0xff] %vm1361, %v3737
        %3802 = vst.msk [vmem:[#allocation3 + $0x190] sm:$0xff] %vm1361, %v3738
        %3803 = vst.msk [vmem:[#allocation3 + $0x198] sm:$0xff] %vm1361, %v3739
        %3804 = vst.msk [vmem:[#allocation3 + $0x1a0] sm:$0xff] %vm1361, %v3740
        %3805 = vst.msk [vmem:[#allocation3 + $0x1a8] sm:$0xff] %vm1361, %v3741
        %3806 = vst.msk [vmem:[#allocation3 + $0x1b0] sm:$0xff] %vm1361, %v3742
        %3807 = vst.msk [vmem:[#allocation3 + $0x1b8] sm:$0xff] %vm1361, %v3743
        %3808 = vst.msk [vmem:[#allocation3 + $0x1c0] sm:$0xff] %vm1361, %v3744
        %3809 = vst.msk [vmem:[#allocation3 + $0x1c8] sm:$0xff] %vm1361, %v3745
        %3810 = vst.msk [vmem:[#allocation3 + $0x1d0] sm:$0xff] %vm1361, %v3746
        %3811 = vst.msk [vmem:[#allocation3 + $0x1d8] sm:$0xff] %vm1361, %v3747
        %3812 = vst.msk [vmem:[#allocation3 + $0x1e0] sm:$0xff] %vm1361, %v3748
        %3813 = vst.msk [vmem:[#allocation3 + $0x1e8] sm:$0xff] %vm1361, %v3749
        %3814 = vst.msk [vmem:[#allocation3 + $0x1f0] sm:$0xff] %vm1361, %v3750
        %3815 = vst.msk [vmem:[#allocation3 + $0x1f8] sm:$0xff] %vm1361, %v3751
        %s3816 = scalar_lea.vmem [#allocation2], 88
        %v3817 = vld [vmem:[%s3816] sm:$0xff]
        %v3818 = vld [vmem:[%s3816 + $0x8] sm:$0xff]
        %v3819 = vld [vmem:[%s3816 + $0x10] sm:$0xff]
        %v3820 = vld [vmem:[%s3816 + $0x18] sm:$0xff]
        %v3821 = vld [vmem:[%s3816 + $0x20] sm:$0xff]
        %v3822 = vld [vmem:[%s3816 + $0x28] sm:$0xff]
        %v3823 = vld [vmem:[%s3816 + $0x30] sm:$0xff]
        %v3824 = vld [vmem:[%s3816 + $0x38] sm:$0xff]
        %v3825 = vld [vmem:[%s3816 + $0x50] sm:$0xff]
        %v3826 = vld [vmem:[%s3816 + $0x58] sm:$0xff]
        %v3827 = vld [vmem:[%s3816 + $0x60] sm:$0xff]
        %v3828 = vld [vmem:[%s3816 + $0x68] sm:$0xff]
        %v3829 = vld [vmem:[%s3816 + $0x70] sm:$0xff]
        %v3830 = vld [vmem:[%s3816 + $0x78] sm:$0xff]
        %v3831 = vld [vmem:[%s3816 + $0x80] sm:$0xff]
        %v3832 = vld [vmem:[%s3816 + $0x88] sm:$0xff]
        %v3833 = vld [vmem:[%s3816 + $0xa0] sm:$0xff]
        %v3834 = vld [vmem:[%s3816 + $0xa8] sm:$0xff]
        %v3835 = vld [vmem:[%s3816 + $0xb0] sm:$0xff]
        %v3836 = vld [vmem:[%s3816 + $0xb8] sm:$0xff]
        %v3837 = vld [vmem:[%s3816 + $0xc0] sm:$0xff]
        %v3838 = vld [vmem:[%s3816 + $0xc8] sm:$0xff]
        %v3839 = vld [vmem:[%s3816 + $0xd0] sm:$0xff]
        %v3840 = vld [vmem:[%s3816 + $0xd8] sm:$0xff]
        %v3841 = vld [vmem:[%s3816 + $0xf0] sm:$0xff]
        %v3842 = vld [vmem:[%s3816 + $0xf8] sm:$0xff]
        %v3843 = vld [vmem:[%s3816 + $0x100] sm:$0xff]
        %v3844 = vld [vmem:[%s3816 + $0x108] sm:$0xff]
        %v3845 = vld [vmem:[%s3816 + $0x110] sm:$0xff]
        %v3846 = vld [vmem:[%s3816 + $0x118] sm:$0xff]
        %v3847 = vld [vmem:[%s3816 + $0x120] sm:$0xff]
        %v3848 = vld [vmem:[%s3816 + $0x128] sm:$0xff]
        %v3849 = vld [vmem:[%s3816 + $0x140] sm:$0xff]
        %v3850 = vld [vmem:[%s3816 + $0x148] sm:$0xff]
        %v3851 = vld [vmem:[%s3816 + $0x150] sm:$0xff]
        %v3852 = vld [vmem:[%s3816 + $0x158] sm:$0xff]
        %v3853 = vld [vmem:[%s3816 + $0x160] sm:$0xff]
        %v3854 = vld [vmem:[%s3816 + $0x168] sm:$0xff]
        %v3855 = vld [vmem:[%s3816 + $0x170] sm:$0xff]
        %v3856 = vld [vmem:[%s3816 + $0x178] sm:$0xff]
        %v3857 = vld [vmem:[%s3816 + $0x190] sm:$0xff]
        %v3858 = vld [vmem:[%s3816 + $0x198] sm:$0xff]
        %v3859 = vld [vmem:[%s3816 + $0x1a0] sm:$0xff]
        %v3860 = vld [vmem:[%s3816 + $0x1a8] sm:$0xff]
        %v3861 = vld [vmem:[%s3816 + $0x1b0] sm:$0xff]
        %v3862 = vld [vmem:[%s3816 + $0x1b8] sm:$0xff]
        %v3863 = vld [vmem:[%s3816 + $0x1c0] sm:$0xff]
        %v3864 = vld [vmem:[%s3816 + $0x1c8] sm:$0xff]
        %v3865 = vld [vmem:[%s3816 + $0x1e0] sm:$0xff]
        %v3866 = vld [vmem:[%s3816 + $0x1e8] sm:$0xff]
        %v3867 = vld [vmem:[%s3816 + $0x1f0] sm:$0xff]
        %v3868 = vld [vmem:[%s3816 + $0x1f8] sm:$0xff]
        %v3869 = vld [vmem:[%s3816 + $0x200] sm:$0xff]
        %v3870 = vld [vmem:[%s3816 + $0x208] sm:$0xff]
        %v3871 = vld [vmem:[%s3816 + $0x210] sm:$0xff]
        %v3872 = vld [vmem:[%s3816 + $0x218] sm:$0xff]
        %v3873 = vld [vmem:[%s3816 + $0x230] sm:$0xff]
        %v3874 = vld [vmem:[%s3816 + $0x238] sm:$0xff]
        %v3875 = vld [vmem:[%s3816 + $0x240] sm:$0xff]
        %v3876 = vld [vmem:[%s3816 + $0x248] sm:$0xff]
        %v3877 = vld [vmem:[%s3816 + $0x250] sm:$0xff]
        %v3878 = vld [vmem:[%s3816 + $0x258] sm:$0xff]
        %v3879 = vld [vmem:[%s3816 + $0x260] sm:$0xff]
        %v3880 = vld [vmem:[%s3816 + $0x268] sm:$0xff]
        %s3881 = scalar_lea.vmem %s627, 128
        %v3882 = vld [vmem:[%s3881] sm:$0xff]
        %v3883 = vld [vmem:[%s3881 + $0x8] sm:$0xff]
        %v3884 = vld [vmem:[%s3881 + $0x10] sm:$0xff]
        %v3885 = vld [vmem:[%s3881 + $0x18] sm:$0xff]
        %v3887 = vsel %vm1361, %v3817, 0
        %v3890 = vsel %vm1361, %v3818, 0
        %v3893 = vsel %vm1361, %v3819, 0
        %v3896 = vsel %vm1361, %v3820, 0
        %v3899 = vsel %vm1361, %v3821, 0
        %v3902 = vsel %vm1361, %v3822, 0
        %v3905 = vsel %vm1361, %v3823, 0
        %v3908 = vsel %vm1361, %v3824, 0
        %v3911 = vsel %vm1361, %v3825, 0
        %v3914 = vsel %vm1361, %v3826, 0
        %v3917 = vsel %vm1361, %v3827, 0
        %v3920 = vsel %vm1361, %v3828, 0
        %v3923 = vsel %vm1361, %v3829, 0
        %v3926 = vsel %vm1361, %v3830, 0
        %v3929 = vsel %vm1361, %v3831, 0
        %v3932 = vsel %vm1361, %v3832, 0
        %v3935 = vsel %vm1361, %v3833, 0
        %v3938 = vsel %vm1361, %v3834, 0
        %v3941 = vsel %vm1361, %v3835, 0
        %v3944 = vsel %vm1361, %v3836, 0
        %v3947 = vsel %vm1361, %v3837, 0
        %v3950 = vsel %vm1361, %v3838, 0
        %v3953 = vsel %vm1361, %v3839, 0
        %v3956 = vsel %vm1361, %v3840, 0
        %v3959 = vsel %vm1361, %v3841, 0
        %v3962 = vsel %vm1361, %v3842, 0
        %v3965 = vsel %vm1361, %v3843, 0
        %v3968 = vsel %vm1361, %v3844, 0
        %v3971 = vsel %vm1361, %v3845, 0
        %v3974 = vsel %vm1361, %v3846, 0
        %v3977 = vsel %vm1361, %v3847, 0
        %v3980 = vsel %vm1361, %v3848, 0
        %v3983 = vsel %vm1361, %v3849, 0
        %v3986 = vsel %vm1361, %v3850, 0
        %v3989 = vsel %vm1361, %v3851, 0
        %v3992 = vsel %vm1361, %v3852, 0
        %v3995 = vsel %vm1361, %v3853, 0
        %v3998 = vsel %vm1361, %v3854, 0
        %v4001 = vsel %vm1361, %v3855, 0
        %v4004 = vsel %vm1361, %v3856, 0
        %v4007 = vsel %vm1361, %v3857, 0
        %v4010 = vsel %vm1361, %v3858, 0
        %v4013 = vsel %vm1361, %v3859, 0
        %v4016 = vsel %vm1361, %v3860, 0
        %v4019 = vsel %vm1361, %v3861, 0
        %v4022 = vsel %vm1361, %v3862, 0
        %v4025 = vsel %vm1361, %v3863, 0
        %v4028 = vsel %vm1361, %v3864, 0
        %v4031 = vsel %vm1361, %v3865, 0
        %v4034 = vsel %vm1361, %v3866, 0
        %v4037 = vsel %vm1361, %v3867, 0
        %v4040 = vsel %vm1361, %v3868, 0
        %v4043 = vsel %vm1361, %v3869, 0
        %v4046 = vsel %vm1361, %v3870, 0
        %v4049 = vsel %vm1361, %v3871, 0
        %v4052 = vsel %vm1361, %v3872, 0
        %v4055 = vsel %vm1361, %v3873, 0
        %v4058 = vsel %vm1361, %v3874, 0
        %v4061 = vsel %vm1361, %v3875, 0
        %v4064 = vsel %vm1361, %v3876, 0
        %v4067 = vsel %vm1361, %v3877, 0
        %v4070 = vsel %vm1361, %v3878, 0
        %v4073 = vsel %vm1361, %v3879, 0
        %v4076 = vsel %vm1361, %v3880, 0
        %4078 = vmatpush.msra.mxu0 0.0
        %4079 = vmatpush.msra.mxu0 0.0
        %4080 = vmatpush.msra.mxu0 0.0
        %4081 = vmatpush.msra.mxu0 0.0
        %4082 = vmatpush.msra.mxu0 0.0
        %4083 = vmatpush.msra.mxu0 0.0
        %4084 = vmatpush.msra.mxu0 0.0
        %4085 = vmatpush.msra.mxu0 0.0
        %4086 = vmatpush.msra.mxu0 0.0
        %4087 = vmatpush.msra.mxu0 0.0
        %4088 = vmatpush.msra.mxu0 0.0
        %4089 = vmatpush.msra.mxu0 0.0
        %4090 = vmatpush.msra.mxu0 %v3885
        %4091 = vmatpush.msra.mxu0 %v3884
        %4092 = vmatpush.msra.mxu0 %v3883
        %4093 = vmatpush.msra.mxu0 %v3882
        %4094 = vmatmul.f32.gmra.mxu0 %v3887
        %v4095 = vpop.f32.mrf.mxu0
        %v4096 = vadd.f32 0.0, %v4095
        %4097 = vmatmul.f32.gmra.mxu0 %v3890
        %v4098 = vpop.f32.mrf.mxu0
        %v4099 = vadd.f32 0.0, %v4098
        %4100 = vmatmul.f32.gmra.mxu0 %v3893
        %v4101 = vpop.f32.mrf.mxu0
        %v4102 = vadd.f32 0.0, %v4101
        %4103 = vmatmul.f32.gmra.mxu0 %v3896
        %v4104 = vpop.f32.mrf.mxu0
        %v4105 = vadd.f32 0.0, %v4104
        %4106 = vmatmul.f32.gmra.mxu0 %v3899
        %v4107 = vpop.f32.mrf.mxu0
        %v4108 = vadd.f32 0.0, %v4107
        %4109 = vmatmul.f32.gmra.mxu0 %v3902
        %v4110 = vpop.f32.mrf.mxu0
        %v4111 = vadd.f32 0.0, %v4110
        %4112 = vmatmul.f32.gmra.mxu0 %v3905
        %v4113 = vpop.f32.mrf.mxu0
        %v4114 = vadd.f32 0.0, %v4113
        %4115 = vmatmul.f32.gmra.mxu0 %v3908
        %v4116 = vpop.f32.mrf.mxu0
        %v4117 = vadd.f32 0.0, %v4116
        %4118 = vmatmul.f32.gmra.mxu0 %v3911
        %v4119 = vpop.f32.mrf.mxu0
        %v4120 = vadd.f32 0.0, %v4119
        %4121 = vmatmul.f32.gmra.mxu0 %v3914
        %v4122 = vpop.f32.mrf.mxu0
        %v4123 = vadd.f32 0.0, %v4122
        %4124 = vmatmul.f32.gmra.mxu0 %v3917
        %v4125 = vpop.f32.mrf.mxu0
        %v4126 = vadd.f32 0.0, %v4125
        %4127 = vmatmul.f32.gmra.mxu0 %v3920
        %v4128 = vpop.f32.mrf.mxu0
        %v4129 = vadd.f32 0.0, %v4128
        %4130 = vmatmul.f32.gmra.mxu0 %v3923
        %v4131 = vpop.f32.mrf.mxu0
        %v4132 = vadd.f32 0.0, %v4131
        %4133 = vmatmul.f32.gmra.mxu0 %v3926
        %v4134 = vpop.f32.mrf.mxu0
        %v4135 = vadd.f32 0.0, %v4134
        %4136 = vmatmul.f32.gmra.mxu0 %v3929
        %v4137 = vpop.f32.mrf.mxu0
        %v4138 = vadd.f32 0.0, %v4137
        %4139 = vmatmul.f32.gmra.mxu0 %v3932
        %v4140 = vpop.f32.mrf.mxu0
        %v4141 = vadd.f32 0.0, %v4140
        %4142 = vmatmul.f32.gmra.mxu0 %v3935
        %v4143 = vpop.f32.mrf.mxu0
        %v4144 = vadd.f32 0.0, %v4143
        %4145 = vmatmul.f32.gmra.mxu0 %v3938
        %v4146 = vpop.f32.mrf.mxu0
        %v4147 = vadd.f32 0.0, %v4146
        %4148 = vmatmul.f32.gmra.mxu0 %v3941
        %v4149 = vpop.f32.mrf.mxu0
        %v4150 = vadd.f32 0.0, %v4149
        %4151 = vmatmul.f32.gmra.mxu0 %v3944
        %v4152 = vpop.f32.mrf.mxu0
        %v4153 = vadd.f32 0.0, %v4152
        %4154 = vmatmul.f32.gmra.mxu0 %v3947
        %v4155 = vpop.f32.mrf.mxu0
        %v4156 = vadd.f32 0.0, %v4155
        %4157 = vmatmul.f32.gmra.mxu0 %v3950
        %v4158 = vpop.f32.mrf.mxu0
        %v4159 = vadd.f32 0.0, %v4158
        %4160 = vmatmul.f32.gmra.mxu0 %v3953
        %v4161 = vpop.f32.mrf.mxu0
        %v4162 = vadd.f32 0.0, %v4161
        %4163 = vmatmul.f32.gmra.mxu0 %v3956
        %v4164 = vpop.f32.mrf.mxu0
        %v4165 = vadd.f32 0.0, %v4164
        %4166 = vmatmul.f32.gmra.mxu0 %v3959
        %v4167 = vpop.f32.mrf.mxu0
        %v4168 = vadd.f32 0.0, %v4167
        %4169 = vmatmul.f32.gmra.mxu0 %v3962
        %v4170 = vpop.f32.mrf.mxu0
        %v4171 = vadd.f32 0.0, %v4170
        %4172 = vmatmul.f32.gmra.mxu0 %v3965
        %v4173 = vpop.f32.mrf.mxu0
        %v4174 = vadd.f32 0.0, %v4173
        %4175 = vmatmul.f32.gmra.mxu0 %v3968
        %v4176 = vpop.f32.mrf.mxu0
        %v4177 = vadd.f32 0.0, %v4176
        %4178 = vmatmul.f32.gmra.mxu0 %v3971
        %v4179 = vpop.f32.mrf.mxu0
        %v4180 = vadd.f32 0.0, %v4179
        %4181 = vmatmul.f32.gmra.mxu0 %v3974
        %v4182 = vpop.f32.mrf.mxu0
        %v4183 = vadd.f32 0.0, %v4182
        %4184 = vmatmul.f32.gmra.mxu0 %v3977
        %v4185 = vpop.f32.mrf.mxu0
        %v4186 = vadd.f32 0.0, %v4185
        %4187 = vmatmul.f32.gmra.mxu0 %v3980
        %v4188 = vpop.f32.mrf.mxu0
        %v4189 = vadd.f32 0.0, %v4188
        %4190 = vmatmul.f32.gmra.mxu0 %v3983
        %v4191 = vpop.f32.mrf.mxu0
        %v4192 = vadd.f32 0.0, %v4191
        %4193 = vmatmul.f32.gmra.mxu0 %v3986
        %v4194 = vpop.f32.mrf.mxu0
        %v4195 = vadd.f32 0.0, %v4194
        %4196 = vmatmul.f32.gmra.mxu0 %v3989
        %v4197 = vpop.f32.mrf.mxu0
        %v4198 = vadd.f32 0.0, %v4197
        %4199 = vmatmul.f32.gmra.mxu0 %v3992
        %v4200 = vpop.f32.mrf.mxu0
        %v4201 = vadd.f32 0.0, %v4200
        %4202 = vmatmul.f32.gmra.mxu0 %v3995
        %v4203 = vpop.f32.mrf.mxu0
        %v4204 = vadd.f32 0.0, %v4203
        %4205 = vmatmul.f32.gmra.mxu0 %v3998
        %v4206 = vpop.f32.mrf.mxu0
        %v4207 = vadd.f32 0.0, %v4206
        %4208 = vmatmul.f32.gmra.mxu0 %v4001
        %v4209 = vpop.f32.mrf.mxu0
        %v4210 = vadd.f32 0.0, %v4209
        %4211 = vmatmul.f32.gmra.mxu0 %v4004
        %v4212 = vpop.f32.mrf.mxu0
        %v4213 = vadd.f32 0.0, %v4212
        %4214 = vmatmul.f32.gmra.mxu0 %v4007
        %v4215 = vpop.f32.mrf.mxu0
        %v4216 = vadd.f32 0.0, %v4215
        %4217 = vmatmul.f32.gmra.mxu0 %v4010
        %v4218 = vpop.f32.mrf.mxu0
        %v4219 = vadd.f32 0.0, %v4218
        %4220 = vmatmul.f32.gmra.mxu0 %v4013
        %v4221 = vpop.f32.mrf.mxu0
        %v4222 = vadd.f32 0.0, %v4221
        %4223 = vmatmul.f32.gmra.mxu0 %v4016
        %v4224 = vpop.f32.mrf.mxu0
        %v4225 = vadd.f32 0.0, %v4224
        %4226 = vmatmul.f32.gmra.mxu0 %v4019
        %v4227 = vpop.f32.mrf.mxu0
        %v4228 = vadd.f32 0.0, %v4227
        %4229 = vmatmul.f32.gmra.mxu0 %v4022
        %v4230 = vpop.f32.mrf.mxu0
        %v4231 = vadd.f32 0.0, %v4230
        %4232 = vmatmul.f32.gmra.mxu0 %v4025
        %v4233 = vpop.f32.mrf.mxu0
        %v4234 = vadd.f32 0.0, %v4233
        %4235 = vmatmul.f32.gmra.mxu0 %v4028
        %v4236 = vpop.f32.mrf.mxu0
        %v4237 = vadd.f32 0.0, %v4236
        %4238 = vmatmul.f32.gmra.mxu0 %v4031
        %v4239 = vpop.f32.mrf.mxu0
        %v4240 = vadd.f32 0.0, %v4239
        %4241 = vmatmul.f32.gmra.mxu0 %v4034
        %v4242 = vpop.f32.mrf.mxu0
        %v4243 = vadd.f32 0.0, %v4242
        %4244 = vmatmul.f32.gmra.mxu0 %v4037
        %v4245 = vpop.f32.mrf.mxu0
        %v4246 = vadd.f32 0.0, %v4245
        %4247 = vmatmul.f32.gmra.mxu0 %v4040
        %v4248 = vpop.f32.mrf.mxu0
        %v4249 = vadd.f32 0.0, %v4248
        %4250 = vmatmul.f32.gmra.mxu0 %v4043
        %v4251 = vpop.f32.mrf.mxu0
        %v4252 = vadd.f32 0.0, %v4251
        %4253 = vmatmul.f32.gmra.mxu0 %v4046
        %v4254 = vpop.f32.mrf.mxu0
        %v4255 = vadd.f32 0.0, %v4254
        %4256 = vmatmul.f32.gmra.mxu0 %v4049
        %v4257 = vpop.f32.mrf.mxu0
        %v4258 = vadd.f32 0.0, %v4257
        %4259 = vmatmul.f32.gmra.mxu0 %v4052
        %v4260 = vpop.f32.mrf.mxu0
        %v4261 = vadd.f32 0.0, %v4260
        %4262 = vmatmul.f32.gmra.mxu0 %v4055
        %v4263 = vpop.f32.mrf.mxu0
        %v4264 = vadd.f32 0.0, %v4263
        %4265 = vmatmul.f32.gmra.mxu0 %v4058
        %v4266 = vpop.f32.mrf.mxu0
        %v4267 = vadd.f32 0.0, %v4266
        %4268 = vmatmul.f32.gmra.mxu0 %v4061
        %v4269 = vpop.f32.mrf.mxu0
        %v4270 = vadd.f32 0.0, %v4269
        %4271 = vmatmul.f32.gmra.mxu0 %v4064
        %v4272 = vpop.f32.mrf.mxu0
        %v4273 = vadd.f32 0.0, %v4272
        %4274 = vmatmul.f32.gmra.mxu0 %v4067
        %v4275 = vpop.f32.mrf.mxu0
        %v4276 = vadd.f32 0.0, %v4275
        %4277 = vmatmul.f32.gmra.mxu0 %v4070
        %v4278 = vpop.f32.mrf.mxu0
        %v4279 = vadd.f32 0.0, %v4278
        %4280 = vmatmul.f32.gmra.mxu0 %v4073
        %v4281 = vpop.f32.mrf.mxu0
        %v4282 = vadd.f32 0.0, %v4281
        %4283 = vmatmul.f32.gmra.mxu0 %v4076
        %v4284 = vpop.f32.mrf.mxu0
        %v4285 = vadd.f32 0.0, %v4284
        %4286 = vdwg.mxu0
        %v4287 = vld [vmem:[#allocation3] sm:$0xff]
        %v4288 = vld [vmem:[#allocation3 + $0x8] sm:$0xff]
        %v4289 = vld [vmem:[#allocation3 + $0x10] sm:$0xff]
        %v4290 = vld [vmem:[#allocation3 + $0x18] sm:$0xff]
        %v4291 = vld [vmem:[#allocation3 + $0x20] sm:$0xff]
        %v4292 = vld [vmem:[#allocation3 + $0x28] sm:$0xff]
        %v4293 = vld [vmem:[#allocation3 + $0x30] sm:$0xff]
        %v4294 = vld [vmem:[#allocation3 + $0x38] sm:$0xff]
        %v4295 = vld [vmem:[#allocation3 + $0x40] sm:$0xff]
        %v4296 = vld [vmem:[#allocation3 + $0x48] sm:$0xff]
        %v4297 = vld [vmem:[#allocation3 + $0x50] sm:$0xff]
        %v4298 = vld [vmem:[#allocation3 + $0x58] sm:$0xff]
        %v4299 = vld [vmem:[#allocation3 + $0x60] sm:$0xff]
        %v4300 = vld [vmem:[#allocation3 + $0x68] sm:$0xff]
        %v4301 = vld [vmem:[#allocation3 + $0x70] sm:$0xff]
        %v4302 = vld [vmem:[#allocation3 + $0x78] sm:$0xff]
        %v4303 = vld [vmem:[#allocation3 + $0x80] sm:$0xff]
        %v4304 = vld [vmem:[#allocation3 + $0x88] sm:$0xff]
        %v4305 = vld [vmem:[#allocation3 + $0x90] sm:$0xff]
        %v4306 = vld [vmem:[#allocation3 + $0x98] sm:$0xff]
        %v4307 = vld [vmem:[#allocation3 + $0xa0] sm:$0xff]
        %v4308 = vld [vmem:[#allocation3 + $0xa8] sm:$0xff]
        %v4309 = vld [vmem:[#allocation3 + $0xb0] sm:$0xff]
        %v4310 = vld [vmem:[#allocation3 + $0xb8] sm:$0xff]
        %v4311 = vld [vmem:[#allocation3 + $0xc0] sm:$0xff]
        %v4312 = vld [vmem:[#allocation3 + $0xc8] sm:$0xff]
        %v4313 = vld [vmem:[#allocation3 + $0xd0] sm:$0xff]
        %v4314 = vld [vmem:[#allocation3 + $0xd8] sm:$0xff]
        %v4315 = vld [vmem:[#allocation3 + $0xe0] sm:$0xff]
        %v4316 = vld [vmem:[#allocation3 + $0xe8] sm:$0xff]
        %v4317 = vld [vmem:[#allocation3 + $0xf0] sm:$0xff]
        %v4318 = vld [vmem:[#allocation3 + $0xf8] sm:$0xff]
        %v4319 = vld [vmem:[#allocation3 + $0x100] sm:$0xff]
        %v4320 = vld [vmem:[#allocation3 + $0x108] sm:$0xff]
        %v4321 = vld [vmem:[#allocation3 + $0x110] sm:$0xff]
        %v4322 = vld [vmem:[#allocation3 + $0x118] sm:$0xff]
        %v4323 = vld [vmem:[#allocation3 + $0x120] sm:$0xff]
        %v4324 = vld [vmem:[#allocation3 + $0x128] sm:$0xff]
        %v4325 = vld [vmem:[#allocation3 + $0x130] sm:$0xff]
        %v4326 = vld [vmem:[#allocation3 + $0x138] sm:$0xff]
        %v4327 = vld [vmem:[#allocation3 + $0x140] sm:$0xff]
        %v4328 = vld [vmem:[#allocation3 + $0x148] sm:$0xff]
        %v4329 = vld [vmem:[#allocation3 + $0x150] sm:$0xff]
        %v4330 = vld [vmem:[#allocation3 + $0x158] sm:$0xff]
        %v4331 = vld [vmem:[#allocation3 + $0x160] sm:$0xff]
        %v4332 = vld [vmem:[#allocation3 + $0x168] sm:$0xff]
        %v4333 = vld [vmem:[#allocation3 + $0x170] sm:$0xff]
        %v4334 = vld [vmem:[#allocation3 + $0x178] sm:$0xff]
        %v4335 = vld [vmem:[#allocation3 + $0x180] sm:$0xff]
        %v4336 = vld [vmem:[#allocation3 + $0x188] sm:$0xff]
        %v4337 = vld [vmem:[#allocation3 + $0x190] sm:$0xff]
        %v4338 = vld [vmem:[#allocation3 + $0x198] sm:$0xff]
        %v4339 = vld [vmem:[#allocation3 + $0x1a0] sm:$0xff]
        %v4340 = vld [vmem:[#allocation3 + $0x1a8] sm:$0xff]
        %v4341 = vld [vmem:[#allocation3 + $0x1b0] sm:$0xff]
        %v4342 = vld [vmem:[#allocation3 + $0x1b8] sm:$0xff]
        %v4343 = vld [vmem:[#allocation3 + $0x1c0] sm:$0xff]
        %v4344 = vld [vmem:[#allocation3 + $0x1c8] sm:$0xff]
        %v4345 = vld [vmem:[#allocation3 + $0x1d0] sm:$0xff]
        %v4346 = vld [vmem:[#allocation3 + $0x1d8] sm:$0xff]
        %v4347 = vld [vmem:[#allocation3 + $0x1e0] sm:$0xff]
        %v4348 = vld [vmem:[#allocation3 + $0x1e8] sm:$0xff]
        %v4349 = vld [vmem:[#allocation3 + $0x1f0] sm:$0xff]
        %v4350 = vld [vmem:[#allocation3 + $0x1f8] sm:$0xff]
        %v4351 = vadd.f32 %v4287, %v4096
        %v4352 = vadd.f32 %v4288, %v4099
        %v4353 = vadd.f32 %v4289, %v4102
        %v4354 = vadd.f32 %v4290, %v4105
        %v4355 = vadd.f32 %v4291, %v4108
        %v4356 = vadd.f32 %v4292, %v4111
        %v4357 = vadd.f32 %v4293, %v4114
        %v4358 = vadd.f32 %v4294, %v4117
        %v4359 = vadd.f32 %v4295, %v4120
        %v4360 = vadd.f32 %v4296, %v4123
        %v4361 = vadd.f32 %v4297, %v4126
        %v4362 = vadd.f32 %v4298, %v4129
        %v4363 = vadd.f32 %v4299, %v4132
        %v4364 = vadd.f32 %v4300, %v4135
        %v4365 = vadd.f32 %v4301, %v4138
        %v4366 = vadd.f32 %v4302, %v4141
        %v4367 = vadd.f32 %v4303, %v4144
        %v4368 = vadd.f32 %v4304, %v4147
        %v4369 = vadd.f32 %v4305, %v4150
        %v4370 = vadd.f32 %v4306, %v4153
        %v4371 = vadd.f32 %v4307, %v4156
        %v4372 = vadd.f32 %v4308, %v4159
        %v4373 = vadd.f32 %v4309, %v4162
        %v4374 = vadd.f32 %v4310, %v4165
        %v4375 = vadd.f32 %v4311, %v4168
        %v4376 = vadd.f32 %v4312, %v4171
        %v4377 = vadd.f32 %v4313, %v4174
        %v4378 = vadd.f32 %v4314, %v4177
        %v4379 = vadd.f32 %v4315, %v4180
        %v4380 = vadd.f32 %v4316, %v4183
        %v4381 = vadd.f32 %v4317, %v4186
        %v4382 = vadd.f32 %v4318, %v4189
        %v4383 = vadd.f32 %v4319, %v4192
        %v4384 = vadd.f32 %v4320, %v4195
        %v4385 = vadd.f32 %v4321, %v4198
        %v4386 = vadd.f32 %v4322, %v4201
        %v4387 = vadd.f32 %v4323, %v4204
        %v4388 = vadd.f32 %v4324, %v4207
        %v4389 = vadd.f32 %v4325, %v4210
        %v4390 = vadd.f32 %v4326, %v4213
        %v4391 = vadd.f32 %v4327, %v4216
        %v4392 = vadd.f32 %v4328, %v4219
        %v4393 = vadd.f32 %v4329, %v4222
        %v4394 = vadd.f32 %v4330, %v4225
        %v4395 = vadd.f32 %v4331, %v4228
        %v4396 = vadd.f32 %v4332, %v4231
        %v4397 = vadd.f32 %v4333, %v4234
        %v4398 = vadd.f32 %v4334, %v4237
        %v4399 = vadd.f32 %v4335, %v4240
        %v4400 = vadd.f32 %v4336, %v4243
        %v4401 = vadd.f32 %v4337, %v4246
        %v4402 = vadd.f32 %v4338, %v4249
        %v4403 = vadd.f32 %v4339, %v4252
        %v4404 = vadd.f32 %v4340, %v4255
        %v4405 = vadd.f32 %v4341, %v4258
        %v4406 = vadd.f32 %v4342, %v4261
        %v4407 = vadd.f32 %v4343, %v4264
        %v4408 = vadd.f32 %v4344, %v4267
        %v4409 = vadd.f32 %v4345, %v4270
        %v4410 = vadd.f32 %v4346, %v4273
        %v4411 = vadd.f32 %v4347, %v4276
        %v4412 = vadd.f32 %v4348, %v4279
        %v4413 = vadd.f32 %v4349, %v4282
        %v4414 = vadd.f32 %v4350, %v4285
        %4415 = vst.msk [vmem:[#allocation3] sm:$0xff] %vm1361, %v4351
        %4416 = vst.msk [vmem:[#allocation3 + $0x8] sm:$0xff] %vm1361, %v4352
        %4417 = vst.msk [vmem:[#allocation3 + $0x10] sm:$0xff] %vm1361, %v4353
        %4418 = vst.msk [vmem:[#allocation3 + $0x18] sm:$0xff] %vm1361, %v4354
        %4419 = vst.msk [vmem:[#allocation3 + $0x20] sm:$0xff] %vm1361, %v4355
        %4420 = vst.msk [vmem:[#allocation3 + $0x28] sm:$0xff] %vm1361, %v4356
        %4421 = vst.msk [vmem:[#allocation3 + $0x30] sm:$0xff] %vm1361, %v4357
        %4422 = vst.msk [vmem:[#allocation3 + $0x38] sm:$0xff] %vm1361, %v4358
        %4423 = vst.msk [vmem:[#allocation3 + $0x40] sm:$0xff] %vm1361, %v4359
        %4424 = vst.msk [vmem:[#allocation3 + $0x48] sm:$0xff] %vm1361, %v4360
        %4425 = vst.msk [vmem:[#allocation3 + $0x50] sm:$0xff] %vm1361, %v4361
        %4426 = vst.msk [vmem:[#allocation3 + $0x58] sm:$0xff] %vm1361, %v4362
        %4427 = vst.msk [vmem:[#allocation3 + $0x60] sm:$0xff] %vm1361, %v4363
        %4428 = vst.msk [vmem:[#allocation3 + $0x68] sm:$0xff] %vm1361, %v4364
        %4429 = vst.msk [vmem:[#allocation3 + $0x70] sm:$0xff] %vm1361, %v4365
        %4430 = vst.msk [vmem:[#allocation3 + $0x78] sm:$0xff] %vm1361, %v4366
        %4431 = vst.msk [vmem:[#allocation3 + $0x80] sm:$0xff] %vm1361, %v4367
        %4432 = vst.msk [vmem:[#allocation3 + $0x88] sm:$0xff] %vm1361, %v4368
        %4433 = vst.msk [vmem:[#allocation3 + $0x90] sm:$0xff] %vm1361, %v4369
        %4434 = vst.msk [vmem:[#allocation3 + $0x98] sm:$0xff] %vm1361, %v4370
        %4435 = vst.msk [vmem:[#allocation3 + $0xa0] sm:$0xff] %vm1361, %v4371
        %4436 = vst.msk [vmem:[#allocation3 + $0xa8] sm:$0xff] %vm1361, %v4372
        %4437 = vst.msk [vmem:[#allocation3 + $0xb0] sm:$0xff] %vm1361, %v4373
        %4438 = vst.msk [vmem:[#allocation3 + $0xb8] sm:$0xff] %vm1361, %v4374
        %4439 = vst.msk [vmem:[#allocation3 + $0xc0] sm:$0xff] %vm1361, %v4375
        %4440 = vst.msk [vmem:[#allocation3 + $0xc8] sm:$0xff] %vm1361, %v4376
        %4441 = vst.msk [vmem:[#allocation3 + $0xd0] sm:$0xff] %vm1361, %v4377
        %4442 = vst.msk [vmem:[#allocation3 + $0xd8] sm:$0xff] %vm1361, %v4378
        %4443 = vst.msk [vmem:[#allocation3 + $0xe0] sm:$0xff] %vm1361, %v4379
        %4444 = vst.msk [vmem:[#allocation3 + $0xe8] sm:$0xff] %vm1361, %v4380
        %4445 = vst.msk [vmem:[#allocation3 + $0xf0] sm:$0xff] %vm1361, %v4381
        %4446 = vst.msk [vmem:[#allocation3 + $0xf8] sm:$0xff] %vm1361, %v4382
        %4447 = vst.msk [vmem:[#allocation3 + $0x100] sm:$0xff] %vm1361, %v4383
        %4448 = vst.msk [vmem:[#allocation3 + $0x108] sm:$0xff] %vm1361, %v4384
        %4449 = vst.msk [vmem:[#allocation3 + $0x110] sm:$0xff] %vm1361, %v4385
        %4450 = vst.msk [vmem:[#allocation3 + $0x118] sm:$0xff] %vm1361, %v4386
        %4451 = vst.msk [vmem:[#allocation3 + $0x120] sm:$0xff] %vm1361, %v4387
        %4452 = vst.msk [vmem:[#allocation3 + $0x128] sm:$0xff] %vm1361, %v4388
        %4453 = vst.msk [vmem:[#allocation3 + $0x130] sm:$0xff] %vm1361, %v4389
        %4454 = vst.msk [vmem:[#allocation3 + $0x138] sm:$0xff] %vm1361, %v4390
        %4455 = vst.msk [vmem:[#allocation3 + $0x140] sm:$0xff] %vm1361, %v4391
        %4456 = vst.msk [vmem:[#allocation3 + $0x148] sm:$0xff] %vm1361, %v4392
        %4457 = vst.msk [vmem:[#allocation3 + $0x150] sm:$0xff] %vm1361, %v4393
        %4458 = vst.msk [vmem:[#allocation3 + $0x158] sm:$0xff] %vm1361, %v4394
        %4459 = vst.msk [vmem:[#allocation3 + $0x160] sm:$0xff] %vm1361, %v4395
        %4460 = vst.msk [vmem:[#allocation3 + $0x168] sm:$0xff] %vm1361, %v4396
        %4461 = vst.msk [vmem:[#allocation3 + $0x170] sm:$0xff] %vm1361, %v4397
        %4462 = vst.msk [vmem:[#allocation3 + $0x178] sm:$0xff] %vm1361, %v4398
        %4463 = vst.msk [vmem:[#allocation3 + $0x180] sm:$0xff] %vm1361, %v4399
        %4464 = vst.msk [vmem:[#allocation3 + $0x188] sm:$0xff] %vm1361, %v4400
        %4465 = vst.msk [vmem:[#allocation3 + $0x190] sm:$0xff] %vm1361, %v4401
        %4466 = vst.msk [vmem:[#allocation3 + $0x198] sm:$0xff] %vm1361, %v4402
        %4467 = vst.msk [vmem:[#allocation3 + $0x1a0] sm:$0xff] %vm1361, %v4403
        %4468 = vst.msk [vmem:[#allocation3 + $0x1a8] sm:$0xff] %vm1361, %v4404
        %4469 = vst.msk [vmem:[#allocation3 + $0x1b0] sm:$0xff] %vm1361, %v4405
        %4470 = vst.msk [vmem:[#allocation3 + $0x1b8] sm:$0xff] %vm1361, %v4406
        %4471 = vst.msk [vmem:[#allocation3 + $0x1c0] sm:$0xff] %vm1361, %v4407
        %4472 = vst.msk [vmem:[#allocation3 + $0x1c8] sm:$0xff] %vm1361, %v4408
        %4473 = vst.msk [vmem:[#allocation3 + $0x1d0] sm:$0xff] %vm1361, %v4409
        %4474 = vst.msk [vmem:[#allocation3 + $0x1d8] sm:$0xff] %vm1361, %v4410
        %4475 = vst.msk [vmem:[#allocation3 + $0x1e0] sm:$0xff] %vm1361, %v4411
        %4476 = vst.msk [vmem:[#allocation3 + $0x1e8] sm:$0xff] %vm1361, %v4412
        %4477 = vst.msk [vmem:[#allocation3 + $0x1f0] sm:$0xff] %vm1361, %v4413
        %4478 = vst.msk [vmem:[#allocation3 + $0x1f8] sm:$0xff] %vm1361, %v4414
        %s4479 = scalar_lea.vmem [#allocation2], 96
        %v4480 = vld [vmem:[%s4479] sm:$0xff]
        %v4481 = vld [vmem:[%s4479 + $0x8] sm:$0xff]
        %v4482 = vld [vmem:[%s4479 + $0x10] sm:$0xff]
        %v4483 = vld [vmem:[%s4479 + $0x18] sm:$0xff]
        %v4484 = vld [vmem:[%s4479 + $0x20] sm:$0xff]
        %v4485 = vld [vmem:[%s4479 + $0x28] sm:$0xff]
        %v4486 = vld [vmem:[%s4479 + $0x30] sm:$0xff]
        %v4487 = vld [vmem:[%s4479 + $0x38] sm:$0xff]
        %v4488 = vld [vmem:[%s4479 + $0x50] sm:$0xff]
        %v4489 = vld [vmem:[%s4479 + $0x58] sm:$0xff]
        %v4490 = vld [vmem:[%s4479 + $0x60] sm:$0xff]
        %v4491 = vld [vmem:[%s4479 + $0x68] sm:$0xff]
        %v4492 = vld [vmem:[%s4479 + $0x70] sm:$0xff]
        %v4493 = vld [vmem:[%s4479 + $0x78] sm:$0xff]
        %v4494 = vld [vmem:[%s4479 + $0x80] sm:$0xff]
        %v4495 = vld [vmem:[%s4479 + $0x88] sm:$0xff]
        %v4496 = vld [vmem:[%s4479 + $0xa0] sm:$0xff]
        %v4497 = vld [vmem:[%s4479 + $0xa8] sm:$0xff]
        %v4498 = vld [vmem:[%s4479 + $0xb0] sm:$0xff]
        %v4499 = vld [vmem:[%s4479 + $0xb8] sm:$0xff]
        %v4500 = vld [vmem:[%s4479 + $0xc0] sm:$0xff]
        %v4501 = vld [vmem:[%s4479 + $0xc8] sm:$0xff]
        %v4502 = vld [vmem:[%s4479 + $0xd0] sm:$0xff]
        %v4503 = vld [vmem:[%s4479 + $0xd8] sm:$0xff]
        %v4504 = vld [vmem:[%s4479 + $0xf0] sm:$0xff]
        %v4505 = vld [vmem:[%s4479 + $0xf8] sm:$0xff]
        %v4506 = vld [vmem:[%s4479 + $0x100] sm:$0xff]
        %v4507 = vld [vmem:[%s4479 + $0x108] sm:$0xff]
        %v4508 = vld [vmem:[%s4479 + $0x110] sm:$0xff]
        %v4509 = vld [vmem:[%s4479 + $0x118] sm:$0xff]
        %v4510 = vld [vmem:[%s4479 + $0x120] sm:$0xff]
        %v4511 = vld [vmem:[%s4479 + $0x128] sm:$0xff]
        %v4512 = vld [vmem:[%s4479 + $0x140] sm:$0xff]
        %v4513 = vld [vmem:[%s4479 + $0x148] sm:$0xff]
        %v4514 = vld [vmem:[%s4479 + $0x150] sm:$0xff]
        %v4515 = vld [vmem:[%s4479 + $0x158] sm:$0xff]
        %v4516 = vld [vmem:[%s4479 + $0x160] sm:$0xff]
        %v4517 = vld [vmem:[%s4479 + $0x168] sm:$0xff]
        %v4518 = vld [vmem:[%s4479 + $0x170] sm:$0xff]
        %v4519 = vld [vmem:[%s4479 + $0x178] sm:$0xff]
        %v4520 = vld [vmem:[%s4479 + $0x190] sm:$0xff]
        %v4521 = vld [vmem:[%s4479 + $0x198] sm:$0xff]
        %v4522 = vld [vmem:[%s4479 + $0x1a0] sm:$0xff]
        %v4523 = vld [vmem:[%s4479 + $0x1a8] sm:$0xff]
        %v4524 = vld [vmem:[%s4479 + $0x1b0] sm:$0xff]
        %v4525 = vld [vmem:[%s4479 + $0x1b8] sm:$0xff]
        %v4526 = vld [vmem:[%s4479 + $0x1c0] sm:$0xff]
        %v4527 = vld [vmem:[%s4479 + $0x1c8] sm:$0xff]
        %v4528 = vld [vmem:[%s4479 + $0x1e0] sm:$0xff]
        %v4529 = vld [vmem:[%s4479 + $0x1e8] sm:$0xff]
        %v4530 = vld [vmem:[%s4479 + $0x1f0] sm:$0xff]
        %v4531 = vld [vmem:[%s4479 + $0x1f8] sm:$0xff]
        %v4532 = vld [vmem:[%s4479 + $0x200] sm:$0xff]
        %v4533 = vld [vmem:[%s4479 + $0x208] sm:$0xff]
        %v4534 = vld [vmem:[%s4479 + $0x210] sm:$0xff]
        %v4535 = vld [vmem:[%s4479 + $0x218] sm:$0xff]
        %v4536 = vld [vmem:[%s4479 + $0x230] sm:$0xff]
        %v4537 = vld [vmem:[%s4479 + $0x238] sm:$0xff]
        %v4538 = vld [vmem:[%s4479 + $0x240] sm:$0xff]
        %v4539 = vld [vmem:[%s4479 + $0x248] sm:$0xff]
        %v4540 = vld [vmem:[%s4479 + $0x250] sm:$0xff]
        %v4541 = vld [vmem:[%s4479 + $0x258] sm:$0xff]
        %v4542 = vld [vmem:[%s4479 + $0x260] sm:$0xff]
        %v4543 = vld [vmem:[%s4479 + $0x268] sm:$0xff]
        %s4544 = scalar_lea.vmem %s627, 160
        %v4545 = vld [vmem:[%s4544] sm:$0xff]
        %v4546 = vld [vmem:[%s4544 + $0x8] sm:$0xff]
        %v4547 = vld [vmem:[%s4544 + $0x10] sm:$0xff]
        %v4548 = vld [vmem:[%s4544 + $0x18] sm:$0xff]
        %v4550 = vsel %vm1361, %v4480, 0
        %v4553 = vsel %vm1361, %v4481, 0
        %v4556 = vsel %vm1361, %v4482, 0
        %v4559 = vsel %vm1361, %v4483, 0
        %v4562 = vsel %vm1361, %v4484, 0
        %v4565 = vsel %vm1361, %v4485, 0
        %v4568 = vsel %vm1361, %v4486, 0
        %v4571 = vsel %vm1361, %v4487, 0
        %v4574 = vsel %vm1361, %v4488, 0
        %v4577 = vsel %vm1361, %v4489, 0
        %v4580 = vsel %vm1361, %v4490, 0
        %v4583 = vsel %vm1361, %v4491, 0
        %v4586 = vsel %vm1361, %v4492, 0
        %v4589 = vsel %vm1361, %v4493, 0
        %v4592 = vsel %vm1361, %v4494, 0
        %v4595 = vsel %vm1361, %v4495, 0
        %v4598 = vsel %vm1361, %v4496, 0
        %v4601 = vsel %vm1361, %v4497, 0
        %v4604 = vsel %vm1361, %v4498, 0
        %v4607 = vsel %vm1361, %v4499, 0
        %v4610 = vsel %vm1361, %v4500, 0
        %v4613 = vsel %vm1361, %v4501, 0
        %v4616 = vsel %vm1361, %v4502, 0
        %v4619 = vsel %vm1361, %v4503, 0
        %v4622 = vsel %vm1361, %v4504, 0
        %v4625 = vsel %vm1361, %v4505, 0
        %v4628 = vsel %vm1361, %v4506, 0
        %v4631 = vsel %vm1361, %v4507, 0
        %v4634 = vsel %vm1361, %v4508, 0
        %v4637 = vsel %vm1361, %v4509, 0
        %v4640 = vsel %vm1361, %v4510, 0
        %v4643 = vsel %vm1361, %v4511, 0
        %v4646 = vsel %vm1361, %v4512, 0
        %v4649 = vsel %vm1361, %v4513, 0
        %v4652 = vsel %vm1361, %v4514, 0
        %v4655 = vsel %vm1361, %v4515, 0
        %v4658 = vsel %vm1361, %v4516, 0
        %v4661 = vsel %vm1361, %v4517, 0
        %v4664 = vsel %vm1361, %v4518, 0
        %v4667 = vsel %vm1361, %v4519, 0
        %v4670 = vsel %vm1361, %v4520, 0
        %v4673 = vsel %vm1361, %v4521, 0
        %v4676 = vsel %vm1361, %v4522, 0
        %v4679 = vsel %vm1361, %v4523, 0
        %v4682 = vsel %vm1361, %v4524, 0
        %v4685 = vsel %vm1361, %v4525, 0
        %v4688 = vsel %vm1361, %v4526, 0
        %v4691 = vsel %vm1361, %v4527, 0
        %v4694 = vsel %vm1361, %v4528, 0
        %v4697 = vsel %vm1361, %v4529, 0
        %v4700 = vsel %vm1361, %v4530, 0
        %v4703 = vsel %vm1361, %v4531, 0
        %v4706 = vsel %vm1361, %v4532, 0
        %v4709 = vsel %vm1361, %v4533, 0
        %v4712 = vsel %vm1361, %v4534, 0
        %v4715 = vsel %vm1361, %v4535, 0
        %v4718 = vsel %vm1361, %v4536, 0
        %v4721 = vsel %vm1361, %v4537, 0
        %v4724 = vsel %vm1361, %v4538, 0
        %v4727 = vsel %vm1361, %v4539, 0
        %v4730 = vsel %vm1361, %v4540, 0
        %v4733 = vsel %vm1361, %v4541, 0
        %v4736 = vsel %vm1361, %v4542, 0
        %v4739 = vsel %vm1361, %v4543, 0
        %4741 = vmatpush.msra.mxu0 0.0
        %4742 = vmatpush.msra.mxu0 0.0
        %4743 = vmatpush.msra.mxu0 0.0
        %4744 = vmatpush.msra.mxu0 0.0
        %4745 = vmatpush.msra.mxu0 0.0
        %4746 = vmatpush.msra.mxu0 0.0
        %4747 = vmatpush.msra.mxu0 0.0
        %4748 = vmatpush.msra.mxu0 0.0
        %4749 = vmatpush.msra.mxu0 0.0
        %4750 = vmatpush.msra.mxu0 0.0
        %4751 = vmatpush.msra.mxu0 0.0
        %4752 = vmatpush.msra.mxu0 0.0
        %4753 = vmatpush.msra.mxu0 %v4548
        %4754 = vmatpush.msra.mxu0 %v4547
        %4755 = vmatpush.msra.mxu0 %v4546
        %4756 = vmatpush.msra.mxu0 %v4545
        %4757 = vmatmul.f32.gmra.mxu0 %v4550
        %v4758 = vpop.f32.mrf.mxu0
        %v4759 = vadd.f32 0.0, %v4758
        %4760 = vmatmul.f32.gmra.mxu0 %v4553
        %v4761 = vpop.f32.mrf.mxu0
        %v4762 = vadd.f32 0.0, %v4761
        %4763 = vmatmul.f32.gmra.mxu0 %v4556
        %v4764 = vpop.f32.mrf.mxu0
        %v4765 = vadd.f32 0.0, %v4764
        %4766 = vmatmul.f32.gmra.mxu0 %v4559
        %v4767 = vpop.f32.mrf.mxu0
        %v4768 = vadd.f32 0.0, %v4767
        %4769 = vmatmul.f32.gmra.mxu0 %v4562
        %v4770 = vpop.f32.mrf.mxu0
        %v4771 = vadd.f32 0.0, %v4770
        %4772 = vmatmul.f32.gmra.mxu0 %v4565
        %v4773 = vpop.f32.mrf.mxu0
        %v4774 = vadd.f32 0.0, %v4773
        %4775 = vmatmul.f32.gmra.mxu0 %v4568
        %v4776 = vpop.f32.mrf.mxu0
        %v4777 = vadd.f32 0.0, %v4776
        %4778 = vmatmul.f32.gmra.mxu0 %v4571
        %v4779 = vpop.f32.mrf.mxu0
        %v4780 = vadd.f32 0.0, %v4779
        %4781 = vmatmul.f32.gmra.mxu0 %v4574
        %v4782 = vpop.f32.mrf.mxu0
        %v4783 = vadd.f32 0.0, %v4782
        %4784 = vmatmul.f32.gmra.mxu0 %v4577
        %v4785 = vpop.f32.mrf.mxu0
        %v4786 = vadd.f32 0.0, %v4785
        %4787 = vmatmul.f32.gmra.mxu0 %v4580
        %v4788 = vpop.f32.mrf.mxu0
        %v4789 = vadd.f32 0.0, %v4788
        %4790 = vmatmul.f32.gmra.mxu0 %v4583
        %v4791 = vpop.f32.mrf.mxu0
        %v4792 = vadd.f32 0.0, %v4791
        %4793 = vmatmul.f32.gmra.mxu0 %v4586
        %v4794 = vpop.f32.mrf.mxu0
        %v4795 = vadd.f32 0.0, %v4794
        %4796 = vmatmul.f32.gmra.mxu0 %v4589
        %v4797 = vpop.f32.mrf.mxu0
        %v4798 = vadd.f32 0.0, %v4797
        %4799 = vmatmul.f32.gmra.mxu0 %v4592
        %v4800 = vpop.f32.mrf.mxu0
        %v4801 = vadd.f32 0.0, %v4800
        %4802 = vmatmul.f32.gmra.mxu0 %v4595
        %v4803 = vpop.f32.mrf.mxu0
        %v4804 = vadd.f32 0.0, %v4803
        %4805 = vmatmul.f32.gmra.mxu0 %v4598
        %v4806 = vpop.f32.mrf.mxu0
        %v4807 = vadd.f32 0.0, %v4806
        %4808 = vmatmul.f32.gmra.mxu0 %v4601
        %v4809 = vpop.f32.mrf.mxu0
        %v4810 = vadd.f32 0.0, %v4809
        %4811 = vmatmul.f32.gmra.mxu0 %v4604
        %v4812 = vpop.f32.mrf.mxu0
        %v4813 = vadd.f32 0.0, %v4812
        %4814 = vmatmul.f32.gmra.mxu0 %v4607
        %v4815 = vpop.f32.mrf.mxu0
        %v4816 = vadd.f32 0.0, %v4815
        %4817 = vmatmul.f32.gmra.mxu0 %v4610
        %v4818 = vpop.f32.mrf.mxu0
        %v4819 = vadd.f32 0.0, %v4818
        %4820 = vmatmul.f32.gmra.mxu0 %v4613
        %v4821 = vpop.f32.mrf.mxu0
        %v4822 = vadd.f32 0.0, %v4821
        %4823 = vmatmul.f32.gmra.mxu0 %v4616
        %v4824 = vpop.f32.mrf.mxu0
        %v4825 = vadd.f32 0.0, %v4824
        %4826 = vmatmul.f32.gmra.mxu0 %v4619
        %v4827 = vpop.f32.mrf.mxu0
        %v4828 = vadd.f32 0.0, %v4827
        %4829 = vmatmul.f32.gmra.mxu0 %v4622
        %v4830 = vpop.f32.mrf.mxu0
        %v4831 = vadd.f32 0.0, %v4830
        %4832 = vmatmul.f32.gmra.mxu0 %v4625
        %v4833 = vpop.f32.mrf.mxu0
        %v4834 = vadd.f32 0.0, %v4833
        %4835 = vmatmul.f32.gmra.mxu0 %v4628
        %v4836 = vpop.f32.mrf.mxu0
        %v4837 = vadd.f32 0.0, %v4836
        %4838 = vmatmul.f32.gmra.mxu0 %v4631
        %v4839 = vpop.f32.mrf.mxu0
        %v4840 = vadd.f32 0.0, %v4839
        %4841 = vmatmul.f32.gmra.mxu0 %v4634
        %v4842 = vpop.f32.mrf.mxu0
        %v4843 = vadd.f32 0.0, %v4842
        %4844 = vmatmul.f32.gmra.mxu0 %v4637
        %v4845 = vpop.f32.mrf.mxu0
        %v4846 = vadd.f32 0.0, %v4845
        %4847 = vmatmul.f32.gmra.mxu0 %v4640
        %v4848 = vpop.f32.mrf.mxu0
        %v4849 = vadd.f32 0.0, %v4848
        %4850 = vmatmul.f32.gmra.mxu0 %v4643
        %v4851 = vpop.f32.mrf.mxu0
        %v4852 = vadd.f32 0.0, %v4851
        %4853 = vmatmul.f32.gmra.mxu0 %v4646
        %v4854 = vpop.f32.mrf.mxu0
        %v4855 = vadd.f32 0.0, %v4854
        %4856 = vmatmul.f32.gmra.mxu0 %v4649
        %v4857 = vpop.f32.mrf.mxu0
        %v4858 = vadd.f32 0.0, %v4857
        %4859 = vmatmul.f32.gmra.mxu0 %v4652
        %v4860 = vpop.f32.mrf.mxu0
        %v4861 = vadd.f32 0.0, %v4860
        %4862 = vmatmul.f32.gmra.mxu0 %v4655
        %v4863 = vpop.f32.mrf.mxu0
        %v4864 = vadd.f32 0.0, %v4863
        %4865 = vmatmul.f32.gmra.mxu0 %v4658
        %v4866 = vpop.f32.mrf.mxu0
        %v4867 = vadd.f32 0.0, %v4866
        %4868 = vmatmul.f32.gmra.mxu0 %v4661
        %v4869 = vpop.f32.mrf.mxu0
        %v4870 = vadd.f32 0.0, %v4869
        %4871 = vmatmul.f32.gmra.mxu0 %v4664
        %v4872 = vpop.f32.mrf.mxu0
        %v4873 = vadd.f32 0.0, %v4872
        %4874 = vmatmul.f32.gmra.mxu0 %v4667
        %v4875 = vpop.f32.mrf.mxu0
        %v4876 = vadd.f32 0.0, %v4875
        %4877 = vmatmul.f32.gmra.mxu0 %v4670
        %v4878 = vpop.f32.mrf.mxu0
        %v4879 = vadd.f32 0.0, %v4878
        %4880 = vmatmul.f32.gmra.mxu0 %v4673
        %v4881 = vpop.f32.mrf.mxu0
        %v4882 = vadd.f32 0.0, %v4881
        %4883 = vmatmul.f32.gmra.mxu0 %v4676
        %v4884 = vpop.f32.mrf.mxu0
        %v4885 = vadd.f32 0.0, %v4884
        %4886 = vmatmul.f32.gmra.mxu0 %v4679
        %v4887 = vpop.f32.mrf.mxu0
        %v4888 = vadd.f32 0.0, %v4887
        %4889 = vmatmul.f32.gmra.mxu0 %v4682
        %v4890 = vpop.f32.mrf.mxu0
        %v4891 = vadd.f32 0.0, %v4890
        %4892 = vmatmul.f32.gmra.mxu0 %v4685
        %v4893 = vpop.f32.mrf.mxu0
        %v4894 = vadd.f32 0.0, %v4893
        %4895 = vmatmul.f32.gmra.mxu0 %v4688
        %v4896 = vpop.f32.mrf.mxu0
        %v4897 = vadd.f32 0.0, %v4896
        %4898 = vmatmul.f32.gmra.mxu0 %v4691
        %v4899 = vpop.f32.mrf.mxu0
        %v4900 = vadd.f32 0.0, %v4899
        %4901 = vmatmul.f32.gmra.mxu0 %v4694
        %v4902 = vpop.f32.mrf.mxu0
        %v4903 = vadd.f32 0.0, %v4902
        %4904 = vmatmul.f32.gmra.mxu0 %v4697
        %v4905 = vpop.f32.mrf.mxu0
        %v4906 = vadd.f32 0.0, %v4905
        %4907 = vmatmul.f32.gmra.mxu0 %v4700
        %v4908 = vpop.f32.mrf.mxu0
        %v4909 = vadd.f32 0.0, %v4908
        %4910 = vmatmul.f32.gmra.mxu0 %v4703
        %v4911 = vpop.f32.mrf.mxu0
        %v4912 = vadd.f32 0.0, %v4911
        %4913 = vmatmul.f32.gmra.mxu0 %v4706
        %v4914 = vpop.f32.mrf.mxu0
        %v4915 = vadd.f32 0.0, %v4914
        %4916 = vmatmul.f32.gmra.mxu0 %v4709
        %v4917 = vpop.f32.mrf.mxu0
        %v4918 = vadd.f32 0.0, %v4917
        %4919 = vmatmul.f32.gmra.mxu0 %v4712
        %v4920 = vpop.f32.mrf.mxu0
        %v4921 = vadd.f32 0.0, %v4920
        %4922 = vmatmul.f32.gmra.mxu0 %v4715
        %v4923 = vpop.f32.mrf.mxu0
        %v4924 = vadd.f32 0.0, %v4923
        %4925 = vmatmul.f32.gmra.mxu0 %v4718
        %v4926 = vpop.f32.mrf.mxu0
        %v4927 = vadd.f32 0.0, %v4926
        %4928 = vmatmul.f32.gmra.mxu0 %v4721
        %v4929 = vpop.f32.mrf.mxu0
        %v4930 = vadd.f32 0.0, %v4929
        %4931 = vmatmul.f32.gmra.mxu0 %v4724
        %v4932 = vpop.f32.mrf.mxu0
        %v4933 = vadd.f32 0.0, %v4932
        %4934 = vmatmul.f32.gmra.mxu0 %v4727
        %v4935 = vpop.f32.mrf.mxu0
        %v4936 = vadd.f32 0.0, %v4935
        %4937 = vmatmul.f32.gmra.mxu0 %v4730
        %v4938 = vpop.f32.mrf.mxu0
        %v4939 = vadd.f32 0.0, %v4938
        %4940 = vmatmul.f32.gmra.mxu0 %v4733
        %v4941 = vpop.f32.mrf.mxu0
        %v4942 = vadd.f32 0.0, %v4941
        %4943 = vmatmul.f32.gmra.mxu0 %v4736
        %v4944 = vpop.f32.mrf.mxu0
        %v4945 = vadd.f32 0.0, %v4944
        %4946 = vmatmul.f32.gmra.mxu0 %v4739
        %v4947 = vpop.f32.mrf.mxu0
        %v4948 = vadd.f32 0.0, %v4947
        %4949 = vdwg.mxu0
        %v4950 = vld [vmem:[#allocation3] sm:$0xff]
        %v4951 = vld [vmem:[#allocation3 + $0x8] sm:$0xff]
        %v4952 = vld [vmem:[#allocation3 + $0x10] sm:$0xff]
        %v4953 = vld [vmem:[#allocation3 + $0x18] sm:$0xff]
        %v4954 = vld [vmem:[#allocation3 + $0x20] sm:$0xff]
        %v4955 = vld [vmem:[#allocation3 + $0x28] sm:$0xff]
        %v4956 = vld [vmem:[#allocation3 + $0x30] sm:$0xff]
        %v4957 = vld [vmem:[#allocation3 + $0x38] sm:$0xff]
        %v4958 = vld [vmem:[#allocation3 + $0x40] sm:$0xff]
        %v4959 = vld [vmem:[#allocation3 + $0x48] sm:$0xff]
        %v4960 = vld [vmem:[#allocation3 + $0x50] sm:$0xff]
        %v4961 = vld [vmem:[#allocation3 + $0x58] sm:$0xff]
        %v4962 = vld [vmem:[#allocation3 + $0x60] sm:$0xff]
        %v4963 = vld [vmem:[#allocation3 + $0x68] sm:$0xff]
        %v4964 = vld [vmem:[#allocation3 + $0x70] sm:$0xff]
        %v4965 = vld [vmem:[#allocation3 + $0x78] sm:$0xff]
        %v4966 = vld [vmem:[#allocation3 + $0x80] sm:$0xff]
        %v4967 = vld [vmem:[#allocation3 + $0x88] sm:$0xff]
        %v4968 = vld [vmem:[#allocation3 + $0x90] sm:$0xff]
        %v4969 = vld [vmem:[#allocation3 + $0x98] sm:$0xff]
        %v4970 = vld [vmem:[#allocation3 + $0xa0] sm:$0xff]
        %v4971 = vld [vmem:[#allocation3 + $0xa8] sm:$0xff]
        %v4972 = vld [vmem:[#allocation3 + $0xb0] sm:$0xff]
        %v4973 = vld [vmem:[#allocation3 + $0xb8] sm:$0xff]
        %v4974 = vld [vmem:[#allocation3 + $0xc0] sm:$0xff]
        %v4975 = vld [vmem:[#allocation3 + $0xc8] sm:$0xff]
        %v4976 = vld [vmem:[#allocation3 + $0xd0] sm:$0xff]
        %v4977 = vld [vmem:[#allocation3 + $0xd8] sm:$0xff]
        %v4978 = vld [vmem:[#allocation3 + $0xe0] sm:$0xff]
        %v4979 = vld [vmem:[#allocation3 + $0xe8] sm:$0xff]
        %v4980 = vld [vmem:[#allocation3 + $0xf0] sm:$0xff]
        %v4981 = vld [vmem:[#allocation3 + $0xf8] sm:$0xff]
        %v4982 = vld [vmem:[#allocation3 + $0x100] sm:$0xff]
        %v4983 = vld [vmem:[#allocation3 + $0x108] sm:$0xff]
        %v4984 = vld [vmem:[#allocation3 + $0x110] sm:$0xff]
        %v4985 = vld [vmem:[#allocation3 + $0x118] sm:$0xff]
        %v4986 = vld [vmem:[#allocation3 + $0x120] sm:$0xff]
        %v4987 = vld [vmem:[#allocation3 + $0x128] sm:$0xff]
        %v4988 = vld [vmem:[#allocation3 + $0x130] sm:$0xff]
        %v4989 = vld [vmem:[#allocation3 + $0x138] sm:$0xff]
        %v4990 = vld [vmem:[#allocation3 + $0x140] sm:$0xff]
        %v4991 = vld [vmem:[#allocation3 + $0x148] sm:$0xff]
        %v4992 = vld [vmem:[#allocation3 + $0x150] sm:$0xff]
        %v4993 = vld [vmem:[#allocation3 + $0x158] sm:$0xff]
        %v4994 = vld [vmem:[#allocation3 + $0x160] sm:$0xff]
        %v4995 = vld [vmem:[#allocation3 + $0x168] sm:$0xff]
        %v4996 = vld [vmem:[#allocation3 + $0x170] sm:$0xff]
        %v4997 = vld [vmem:[#allocation3 + $0x178] sm:$0xff]
        %v4998 = vld [vmem:[#allocation3 + $0x180] sm:$0xff]
        %v4999 = vld [vmem:[#allocation3 + $0x188] sm:$0xff]
        %v5000 = vld [vmem:[#allocation3 + $0x190] sm:$0xff]
        %v5001 = vld [vmem:[#allocation3 + $0x198] sm:$0xff]
        %v5002 = vld [vmem:[#allocation3 + $0x1a0] sm:$0xff]
        %v5003 = vld [vmem:[#allocation3 + $0x1a8] sm:$0xff]
        %v5004 = vld [vmem:[#allocation3 + $0x1b0] sm:$0xff]
        %v5005 = vld [vmem:[#allocation3 + $0x1b8] sm:$0xff]
        %v5006 = vld [vmem:[#allocation3 + $0x1c0] sm:$0xff]
        %v5007 = vld [vmem:[#allocation3 + $0x1c8] sm:$0xff]
        %v5008 = vld [vmem:[#allocation3 + $0x1d0] sm:$0xff]
        %v5009 = vld [vmem:[#allocation3 + $0x1d8] sm:$0xff]
        %v5010 = vld [vmem:[#allocation3 + $0x1e0] sm:$0xff]
        %v5011 = vld [vmem:[#allocation3 + $0x1e8] sm:$0xff]
        %v5012 = vld [vmem:[#allocation3 + $0x1f0] sm:$0xff]
        %v5013 = vld [vmem:[#allocation3 + $0x1f8] sm:$0xff]
        %v5014 = vadd.f32 %v4950, %v4759
        %v5015 = vadd.f32 %v4951, %v4762
        %v5016 = vadd.f32 %v4952, %v4765
        %v5017 = vadd.f32 %v4953, %v4768
        %v5018 = vadd.f32 %v4954, %v4771
        %v5019 = vadd.f32 %v4955, %v4774
        %v5020 = vadd.f32 %v4956, %v4777
        %v5021 = vadd.f32 %v4957, %v4780
        %v5022 = vadd.f32 %v4958, %v4783
        %v5023 = vadd.f32 %v4959, %v4786
        %v5024 = vadd.f32 %v4960, %v4789
        %v5025 = vadd.f32 %v4961, %v4792
        %v5026 = vadd.f32 %v4962, %v4795
        %v5027 = vadd.f32 %v4963, %v4798
        %v5028 = vadd.f32 %v4964, %v4801
        %v5029 = vadd.f32 %v4965, %v4804
        %v5030 = vadd.f32 %v4966, %v4807
        %v5031 = vadd.f32 %v4967, %v4810
        %v5032 = vadd.f32 %v4968, %v4813
        %v5033 = vadd.f32 %v4969, %v4816
        %v5034 = vadd.f32 %v4970, %v4819
        %v5035 = vadd.f32 %v4971, %v4822
        %v5036 = vadd.f32 %v4972, %v4825
        %v5037 = vadd.f32 %v4973, %v4828
        %v5038 = vadd.f32 %v4974, %v4831
        %v5039 = vadd.f32 %v4975, %v4834
        %v5040 = vadd.f32 %v4976, %v4837
        %v5041 = vadd.f32 %v4977, %v4840
        %v5042 = vadd.f32 %v4978, %v4843
        %v5043 = vadd.f32 %v4979, %v4846
        %v5044 = vadd.f32 %v4980, %v4849
        %v5045 = vadd.f32 %v4981, %v4852
        %v5046 = vadd.f32 %v4982, %v4855
        %v5047 = vadd.f32 %v4983, %v4858
        %v5048 = vadd.f32 %v4984, %v4861
        %v5049 = vadd.f32 %v4985, %v4864
        %v5050 = vadd.f32 %v4986, %v4867
        %v5051 = vadd.f32 %v4987, %v4870
        %v5052 = vadd.f32 %v4988, %v4873
        %v5053 = vadd.f32 %v4989, %v4876
        %v5054 = vadd.f32 %v4990, %v4879
        %v5055 = vadd.f32 %v4991, %v4882
        %v5056 = vadd.f32 %v4992, %v4885
        %v5057 = vadd.f32 %v4993, %v4888
        %v5058 = vadd.f32 %v4994, %v4891
        %v5059 = vadd.f32 %v4995, %v4894
        %v5060 = vadd.f32 %v4996, %v4897
        %v5061 = vadd.f32 %v4997, %v4900
        %v5062 = vadd.f32 %v4998, %v4903
        %v5063 = vadd.f32 %v4999, %v4906
        %v5064 = vadd.f32 %v5000, %v4909
        %v5065 = vadd.f32 %v5001, %v4912
        %v5066 = vadd.f32 %v5002, %v4915
        %v5067 = vadd.f32 %v5003, %v4918
        %v5068 = vadd.f32 %v5004, %v4921
        %v5069 = vadd.f32 %v5005, %v4924
        %v5070 = vadd.f32 %v5006, %v4927
        %v5071 = vadd.f32 %v5007, %v4930
        %v5072 = vadd.f32 %v5008, %v4933
        %v5073 = vadd.f32 %v5009, %v4936
        %v5074 = vadd.f32 %v5010, %v4939
        %v5075 = vadd.f32 %v5011, %v4942
        %v5076 = vadd.f32 %v5012, %v4945
        %v5077 = vadd.f32 %v5013, %v4948
        %5078 = vst.msk [vmem:[#allocation3] sm:$0xff] %vm1361, %v5014
        %5079 = vst.msk [vmem:[#allocation3 + $0x8] sm:$0xff] %vm1361, %v5015
        %5080 = vst.msk [vmem:[#allocation3 + $0x10] sm:$0xff] %vm1361, %v5016
        %5081 = vst.msk [vmem:[#allocation3 + $0x18] sm:$0xff] %vm1361, %v5017
        %5082 = vst.msk [vmem:[#allocation3 + $0x20] sm:$0xff] %vm1361, %v5018
        %5083 = vst.msk [vmem:[#allocation3 + $0x28] sm:$0xff] %vm1361, %v5019
        %5084 = vst.msk [vmem:[#allocation3 + $0x30] sm:$0xff] %vm1361, %v5020
        %5085 = vst.msk [vmem:[#allocation3 + $0x38] sm:$0xff] %vm1361, %v5021
        %5086 = vst.msk [vmem:[#allocation3 + $0x40] sm:$0xff] %vm1361, %v5022
        %5087 = vst.msk [vmem:[#allocation3 + $0x48] sm:$0xff] %vm1361, %v5023
        %5088 = vst.msk [vmem:[#allocation3 + $0x50] sm:$0xff] %vm1361, %v5024
        %5089 = vst.msk [vmem:[#allocation3 + $0x58] sm:$0xff] %vm1361, %v5025
        %5090 = vst.msk [vmem:[#allocation3 + $0x60] sm:$0xff] %vm1361, %v5026
        %5091 = vst.msk [vmem:[#allocation3 + $0x68] sm:$0xff] %vm1361, %v5027
        %5092 = vst.msk [vmem:[#allocation3 + $0x70] sm:$0xff] %vm1361, %v5028
        %5093 = vst.msk [vmem:[#allocation3 + $0x78] sm:$0xff] %vm1361, %v5029
        %5094 = vst.msk [vmem:[#allocation3 + $0x80] sm:$0xff] %vm1361, %v5030
        %5095 = vst.msk [vmem:[#allocation3 + $0x88] sm:$0xff] %vm1361, %v5031
        %5096 = vst.msk [vmem:[#allocation3 + $0x90] sm:$0xff] %vm1361, %v5032
        %5097 = vst.msk [vmem:[#allocation3 + $0x98] sm:$0xff] %vm1361, %v5033
        %5098 = vst.msk [vmem:[#allocation3 + $0xa0] sm:$0xff] %vm1361, %v5034
        %5099 = vst.msk [vmem:[#allocation3 + $0xa8] sm:$0xff] %vm1361, %v5035
        %5100 = vst.msk [vmem:[#allocation3 + $0xb0] sm:$0xff] %vm1361, %v5036
        %5101 = vst.msk [vmem:[#allocation3 + $0xb8] sm:$0xff] %vm1361, %v5037
        %5102 = vst.msk [vmem:[#allocation3 + $0xc0] sm:$0xff] %vm1361, %v5038
        %5103 = vst.msk [vmem:[#allocation3 + $0xc8] sm:$0xff] %vm1361, %v5039
        %5104 = vst.msk [vmem:[#allocation3 + $0xd0] sm:$0xff] %vm1361, %v5040
        %5105 = vst.msk [vmem:[#allocation3 + $0xd8] sm:$0xff] %vm1361, %v5041
        %5106 = vst.msk [vmem:[#allocation3 + $0xe0] sm:$0xff] %vm1361, %v5042
        %5107 = vst.msk [vmem:[#allocation3 + $0xe8] sm:$0xff] %vm1361, %v5043
        %5108 = vst.msk [vmem:[#allocation3 + $0xf0] sm:$0xff] %vm1361, %v5044
        %5109 = vst.msk [vmem:[#allocation3 + $0xf8] sm:$0xff] %vm1361, %v5045
        %5110 = vst.msk [vmem:[#allocation3 + $0x100] sm:$0xff] %vm1361, %v5046
        %5111 = vst.msk [vmem:[#allocation3 + $0x108] sm:$0xff] %vm1361, %v5047
        %5112 = vst.msk [vmem:[#allocation3 + $0x110] sm:$0xff] %vm1361, %v5048
        %5113 = vst.msk [vmem:[#allocation3 + $0x118] sm:$0xff] %vm1361, %v5049
        %5114 = vst.msk [vmem:[#allocation3 + $0x120] sm:$0xff] %vm1361, %v5050
        %5115 = vst.msk [vmem:[#allocation3 + $0x128] sm:$0xff] %vm1361, %v5051
        %5116 = vst.msk [vmem:[#allocation3 + $0x130] sm:$0xff] %vm1361, %v5052
        %5117 = vst.msk [vmem:[#allocation3 + $0x138] sm:$0xff] %vm1361, %v5053
        %5118 = vst.msk [vmem:[#allocation3 + $0x140] sm:$0xff] %vm1361, %v5054
        %5119 = vst.msk [vmem:[#allocation3 + $0x148] sm:$0xff] %vm1361, %v5055
        %5120 = vst.msk [vmem:[#allocation3 + $0x150] sm:$0xff] %vm1361, %v5056
        %5121 = vst.msk [vmem:[#allocation3 + $0x158] sm:$0xff] %vm1361, %v5057
        %5122 = vst.msk [vmem:[#allocation3 + $0x160] sm:$0xff] %vm1361, %v5058
        %5123 = vst.msk [vmem:[#allocation3 + $0x168] sm:$0xff] %vm1361, %v5059
        %5124 = vst.msk [vmem:[#allocation3 + $0x170] sm:$0xff] %vm1361, %v5060
        %5125 = vst.msk [vmem:[#allocation3 + $0x178] sm:$0xff] %vm1361, %v5061
        %5126 = vst.msk [vmem:[#allocation3 + $0x180] sm:$0xff] %vm1361, %v5062
        %5127 = vst.msk [vmem:[#allocation3 + $0x188] sm:$0xff] %vm1361, %v5063
        %5128 = vst.msk [vmem:[#allocation3 + $0x190] sm:$0xff] %vm1361, %v5064
        %5129 = vst.msk [vmem:[#allocation3 + $0x198] sm:$0xff] %vm1361, %v5065
        %5130 = vst.msk [vmem:[#allocation3 + $0x1a0] sm:$0xff] %vm1361, %v5066
        %5131 = vst.msk [vmem:[#allocation3 + $0x1a8] sm:$0xff] %vm1361, %v5067
        %5132 = vst.msk [vmem:[#allocation3 + $0x1b0] sm:$0xff] %vm1361, %v5068
        %5133 = vst.msk [vmem:[#allocation3 + $0x1b8] sm:$0xff] %vm1361, %v5069
        %5134 = vst.msk [vmem:[#allocation3 + $0x1c0] sm:$0xff] %vm1361, %v5070
        %5135 = vst.msk [vmem:[#allocation3 + $0x1c8] sm:$0xff] %vm1361, %v5071
        %5136 = vst.msk [vmem:[#allocation3 + $0x1d0] sm:$0xff] %vm1361, %v5072
        %5137 = vst.msk [vmem:[#allocation3 + $0x1d8] sm:$0xff] %vm1361, %v5073
        %5138 = vst.msk [vmem:[#allocation3 + $0x1e0] sm:$0xff] %vm1361, %v5074
        %5139 = vst.msk [vmem:[#allocation3 + $0x1e8] sm:$0xff] %vm1361, %v5075
        %5140 = vst.msk [vmem:[#allocation3 + $0x1f0] sm:$0xff] %vm1361, %v5076
        %5141 = vst.msk [vmem:[#allocation3 + $0x1f8] sm:$0xff] %vm1361, %v5077
        %s5142 = scalar_lea.vmem [#allocation2], 160
        %v5143 = vld [vmem:[%s5142] sm:$0xff]
        %v5144 = vld [vmem:[%s5142 + $0x8] sm:$0xff]
        %v5145 = vld [vmem:[%s5142 + $0x10] sm:$0xff]
        %v5146 = vld [vmem:[%s5142 + $0x18] sm:$0xff]
        %v5147 = vld [vmem:[%s5142 + $0x20] sm:$0xff]
        %v5148 = vld [vmem:[%s5142 + $0x28] sm:$0xff]
        %v5149 = vld [vmem:[%s5142 + $0x30] sm:$0xff]
        %v5150 = vld [vmem:[%s5142 + $0x38] sm:$0xff]
        %v5151 = vld [vmem:[%s5142 + $0x50] sm:$0xff]
        %v5152 = vld [vmem:[%s5142 + $0x58] sm:$0xff]
        %v5153 = vld [vmem:[%s5142 + $0x60] sm:$0xff]
        %v5154 = vld [vmem:[%s5142 + $0x68] sm:$0xff]
        %v5155 = vld [vmem:[%s5142 + $0x70] sm:$0xff]
        %v5156 = vld [vmem:[%s5142 + $0x78] sm:$0xff]
        %v5157 = vld [vmem:[%s5142 + $0x80] sm:$0xff]
        %v5158 = vld [vmem:[%s5142 + $0x88] sm:$0xff]
        %v5159 = vld [vmem:[%s5142 + $0xa0] sm:$0xff]
        %v5160 = vld [vmem:[%s5142 + $0xa8] sm:$0xff]
        %v5161 = vld [vmem:[%s5142 + $0xb0] sm:$0xff]
        %v5162 = vld [vmem:[%s5142 + $0xb8] sm:$0xff]
        %v5163 = vld [vmem:[%s5142 + $0xc0] sm:$0xff]
        %v5164 = vld [vmem:[%s5142 + $0xc8] sm:$0xff]
        %v5165 = vld [vmem:[%s5142 + $0xd0] sm:$0xff]
        %v5166 = vld [vmem:[%s5142 + $0xd8] sm:$0xff]
        %v5167 = vld [vmem:[%s5142 + $0xf0] sm:$0xff]
        %v5168 = vld [vmem:[%s5142 + $0xf8] sm:$0xff]
        %v5169 = vld [vmem:[%s5142 + $0x100] sm:$0xff]
        %v5170 = vld [vmem:[%s5142 + $0x108] sm:$0xff]
        %v5171 = vld [vmem:[%s5142 + $0x110] sm:$0xff]
        %v5172 = vld [vmem:[%s5142 + $0x118] sm:$0xff]
        %v5173 = vld [vmem:[%s5142 + $0x120] sm:$0xff]
        %v5174 = vld [vmem:[%s5142 + $0x128] sm:$0xff]
        %v5175 = vld [vmem:[%s5142 + $0x140] sm:$0xff]
        %v5176 = vld [vmem:[%s5142 + $0x148] sm:$0xff]
        %v5177 = vld [vmem:[%s5142 + $0x150] sm:$0xff]
        %v5178 = vld [vmem:[%s5142 + $0x158] sm:$0xff]
        %v5179 = vld [vmem:[%s5142 + $0x160] sm:$0xff]
        %v5180 = vld [vmem:[%s5142 + $0x168] sm:$0xff]
        %v5181 = vld [vmem:[%s5142 + $0x170] sm:$0xff]
        %v5182 = vld [vmem:[%s5142 + $0x178] sm:$0xff]
        %v5183 = vld [vmem:[%s5142 + $0x190] sm:$0xff]
        %v5184 = vld [vmem:[%s5142 + $0x198] sm:$0xff]
        %v5185 = vld [vmem:[%s5142 + $0x1a0] sm:$0xff]
        %v5186 = vld [vmem:[%s5142 + $0x1a8] sm:$0xff]
        %v5187 = vld [vmem:[%s5142 + $0x1b0] sm:$0xff]
        %v5188 = vld [vmem:[%s5142 + $0x1b8] sm:$0xff]
        %v5189 = vld [vmem:[%s5142 + $0x1c0] sm:$0xff]
        %v5190 = vld [vmem:[%s5142 + $0x1c8] sm:$0xff]
        %v5191 = vld [vmem:[%s5142 + $0x1e0] sm:$0xff]
        %v5192 = vld [vmem:[%s5142 + $0x1e8] sm:$0xff]
        %v5193 = vld [vmem:[%s5142 + $0x1f0] sm:$0xff]
        %v5194 = vld [vmem:[%s5142 + $0x1f8] sm:$0xff]
        %v5195 = vld [vmem:[%s5142 + $0x200] sm:$0xff]
        %v5196 = vld [vmem:[%s5142 + $0x208] sm:$0xff]
        %v5197 = vld [vmem:[%s5142 + $0x210] sm:$0xff]
        %v5198 = vld [vmem:[%s5142 + $0x218] sm:$0xff]
        %v5199 = vld [vmem:[%s5142 + $0x230] sm:$0xff]
        %v5200 = vld [vmem:[%s5142 + $0x238] sm:$0xff]
        %v5201 = vld [vmem:[%s5142 + $0x240] sm:$0xff]
        %v5202 = vld [vmem:[%s5142 + $0x248] sm:$0xff]
        %v5203 = vld [vmem:[%s5142 + $0x250] sm:$0xff]
        %v5204 = vld [vmem:[%s5142 + $0x258] sm:$0xff]
        %v5205 = vld [vmem:[%s5142 + $0x260] sm:$0xff]
        %v5206 = vld [vmem:[%s5142 + $0x268] sm:$0xff]
        %s5207 = scalar_lea.vmem %s627, 192
        %v5208 = vld [vmem:[%s5207] sm:$0xff]
        %v5209 = vld [vmem:[%s5207 + $0x8] sm:$0xff]
        %v5210 = vld [vmem:[%s5207 + $0x10] sm:$0xff]
        %v5211 = vld [vmem:[%s5207 + $0x18] sm:$0xff]
        %v5213 = vsel %vm1361, %v5143, 0
        %v5216 = vsel %vm1361, %v5144, 0
        %v5219 = vsel %vm1361, %v5145, 0
        %v5222 = vsel %vm1361, %v5146, 0
        %v5225 = vsel %vm1361, %v5147, 0
        %v5228 = vsel %vm1361, %v5148, 0
        %v5231 = vsel %vm1361, %v5149, 0
        %v5234 = vsel %vm1361, %v5150, 0
        %v5237 = vsel %vm1361, %v5151, 0
        %v5240 = vsel %vm1361, %v5152, 0
        %v5243 = vsel %vm1361, %v5153, 0
        %v5246 = vsel %vm1361, %v5154, 0
        %v5249 = vsel %vm1361, %v5155, 0
        %v5252 = vsel %vm1361, %v5156, 0
        %v5255 = vsel %vm1361, %v5157, 0
        %v5258 = vsel %vm1361, %v5158, 0
        %v5261 = vsel %vm1361, %v5159, 0
        %v5264 = vsel %vm1361, %v5160, 0
        %v5267 = vsel %vm1361, %v5161, 0
        %v5270 = vsel %vm1361, %v5162, 0
        %v5273 = vsel %vm1361, %v5163, 0
        %v5276 = vsel %vm1361, %v5164, 0
        %v5279 = vsel %vm1361, %v5165, 0
        %v5282 = vsel %vm1361, %v5166, 0
        %v5285 = vsel %vm1361, %v5167, 0
        %v5288 = vsel %vm1361, %v5168, 0
        %v5291 = vsel %vm1361, %v5169, 0
        %v5294 = vsel %vm1361, %v5170, 0
        %v5297 = vsel %vm1361, %v5171, 0
        %v5300 = vsel %vm1361, %v5172, 0
        %v5303 = vsel %vm1361, %v5173, 0
        %v5306 = vsel %vm1361, %v5174, 0
        %v5309 = vsel %vm1361, %v5175, 0
        %v5312 = vsel %vm1361, %v5176, 0
        %v5315 = vsel %vm1361, %v5177, 0
        %v5318 = vsel %vm1361, %v5178, 0
        %v5321 = vsel %vm1361, %v5179, 0
        %v5324 = vsel %vm1361, %v5180, 0
        %v5327 = vsel %vm1361, %v5181, 0
        %v5330 = vsel %vm1361, %v5182, 0
        %v5333 = vsel %vm1361, %v5183, 0
        %v5336 = vsel %vm1361, %v5184, 0
        %v5339 = vsel %vm1361, %v5185, 0
        %v5342 = vsel %vm1361, %v5186, 0
        %v5345 = vsel %vm1361, %v5187, 0
        %v5348 = vsel %vm1361, %v5188, 0
        %v5351 = vsel %vm1361, %v5189, 0
        %v5354 = vsel %vm1361, %v5190, 0
        %v5357 = vsel %vm1361, %v5191, 0
        %v5360 = vsel %vm1361, %v5192, 0
        %v5363 = vsel %vm1361, %v5193, 0
        %v5366 = vsel %vm1361, %v5194, 0
        %v5369 = vsel %vm1361, %v5195, 0
        %v5372 = vsel %vm1361, %v5196, 0
        %v5375 = vsel %vm1361, %v5197, 0
        %v5378 = vsel %vm1361, %v5198, 0
        %v5381 = vsel %vm1361, %v5199, 0
        %v5384 = vsel %vm1361, %v5200, 0
        %v5387 = vsel %vm1361, %v5201, 0
        %v5390 = vsel %vm1361, %v5202, 0
        %v5393 = vsel %vm1361, %v5203, 0
        %v5396 = vsel %vm1361, %v5204, 0
        %v5399 = vsel %vm1361, %v5205, 0
        %v5402 = vsel %vm1361, %v5206, 0
        %5404 = vmatpush.msra.mxu0 0.0
        %5405 = vmatpush.msra.mxu0 0.0
        %5406 = vmatpush.msra.mxu0 0.0
        %5407 = vmatpush.msra.mxu0 0.0
        %5408 = vmatpush.msra.mxu0 0.0
        %5409 = vmatpush.msra.mxu0 0.0
        %5410 = vmatpush.msra.mxu0 0.0
        %5411 = vmatpush.msra.mxu0 0.0
        %5412 = vmatpush.msra.mxu0 0.0
        %5413 = vmatpush.msra.mxu0 0.0
        %5414 = vmatpush.msra.mxu0 0.0
        %5415 = vmatpush.msra.mxu0 0.0
        %5416 = vmatpush.msra.mxu0 %v5211
        %5417 = vmatpush.msra.mxu0 %v5210
        %5418 = vmatpush.msra.mxu0 %v5209
        %5419 = vmatpush.msra.mxu0 %v5208
        %5420 = vmatmul.f32.gmra.mxu0 %v5213
        %v5421 = vpop.f32.mrf.mxu0
        %v5422 = vadd.f32 0.0, %v5421
        %5423 = vmatmul.f32.gmra.mxu0 %v5216
        %v5424 = vpop.f32.mrf.mxu0
        %v5425 = vadd.f32 0.0, %v5424
        %5426 = vmatmul.f32.gmra.mxu0 %v5219
        %v5427 = vpop.f32.mrf.mxu0
        %v5428 = vadd.f32 0.0, %v5427
        %5429 = vmatmul.f32.gmra.mxu0 %v5222
        %v5430 = vpop.f32.mrf.mxu0
        %v5431 = vadd.f32 0.0, %v5430
        %5432 = vmatmul.f32.gmra.mxu0 %v5225
        %v5433 = vpop.f32.mrf.mxu0
        %v5434 = vadd.f32 0.0, %v5433
        %5435 = vmatmul.f32.gmra.mxu0 %v5228
        %v5436 = vpop.f32.mrf.mxu0
        %v5437 = vadd.f32 0.0, %v5436
        %5438 = vmatmul.f32.gmra.mxu0 %v5231
        %v5439 = vpop.f32.mrf.mxu0
        %v5440 = vadd.f32 0.0, %v5439
        %5441 = vmatmul.f32.gmra.mxu0 %v5234
        %v5442 = vpop.f32.mrf.mxu0
        %v5443 = vadd.f32 0.0, %v5442
        %5444 = vmatmul.f32.gmra.mxu0 %v5237
        %v5445 = vpop.f32.mrf.mxu0
        %v5446 = vadd.f32 0.0, %v5445
        %5447 = vmatmul.f32.gmra.mxu0 %v5240
        %v5448 = vpop.f32.mrf.mxu0
        %v5449 = vadd.f32 0.0, %v5448
        %5450 = vmatmul.f32.gmra.mxu0 %v5243
        %v5451 = vpop.f32.mrf.mxu0
        %v5452 = vadd.f32 0.0, %v5451
        %5453 = vmatmul.f32.gmra.mxu0 %v5246
        %v5454 = vpop.f32.mrf.mxu0
        %v5455 = vadd.f32 0.0, %v5454
        %5456 = vmatmul.f32.gmra.mxu0 %v5249
        %v5457 = vpop.f32.mrf.mxu0
        %v5458 = vadd.f32 0.0, %v5457
        %5459 = vmatmul.f32.gmra.mxu0 %v5252
        %v5460 = vpop.f32.mrf.mxu0
        %v5461 = vadd.f32 0.0, %v5460
        %5462 = vmatmul.f32.gmra.mxu0 %v5255
        %v5463 = vpop.f32.mrf.mxu0
        %v5464 = vadd.f32 0.0, %v5463
        %5465 = vmatmul.f32.gmra.mxu0 %v5258
        %v5466 = vpop.f32.mrf.mxu0
        %v5467 = vadd.f32 0.0, %v5466
        %5468 = vmatmul.f32.gmra.mxu0 %v5261
        %v5469 = vpop.f32.mrf.mxu0
        %v5470 = vadd.f32 0.0, %v5469
        %5471 = vmatmul.f32.gmra.mxu0 %v5264
        %v5472 = vpop.f32.mrf.mxu0
        %v5473 = vadd.f32 0.0, %v5472
        %5474 = vmatmul.f32.gmra.mxu0 %v5267
        %v5475 = vpop.f32.mrf.mxu0
        %v5476 = vadd.f32 0.0, %v5475
        %5477 = vmatmul.f32.gmra.mxu0 %v5270
        %v5478 = vpop.f32.mrf.mxu0
        %v5479 = vadd.f32 0.0, %v5478
        %5480 = vmatmul.f32.gmra.mxu0 %v5273
        %v5481 = vpop.f32.mrf.mxu0
        %v5482 = vadd.f32 0.0, %v5481
        %5483 = vmatmul.f32.gmra.mxu0 %v5276
        %v5484 = vpop.f32.mrf.mxu0
        %v5485 = vadd.f32 0.0, %v5484
        %5486 = vmatmul.f32.gmra.mxu0 %v5279
        %v5487 = vpop.f32.mrf.mxu0
        %v5488 = vadd.f32 0.0, %v5487
        %5489 = vmatmul.f32.gmra.mxu0 %v5282
        %v5490 = vpop.f32.mrf.mxu0
        %v5491 = vadd.f32 0.0, %v5490
        %5492 = vmatmul.f32.gmra.mxu0 %v5285
        %v5493 = vpop.f32.mrf.mxu0
        %v5494 = vadd.f32 0.0, %v5493
        %5495 = vmatmul.f32.gmra.mxu0 %v5288
        %v5496 = vpop.f32.mrf.mxu0
        %v5497 = vadd.f32 0.0, %v5496
        %5498 = vmatmul.f32.gmra.mxu0 %v5291
        %v5499 = vpop.f32.mrf.mxu0
        %v5500 = vadd.f32 0.0, %v5499
        %5501 = vmatmul.f32.gmra.mxu0 %v5294
        %v5502 = vpop.f32.mrf.mxu0
        %v5503 = vadd.f32 0.0, %v5502
        %5504 = vmatmul.f32.gmra.mxu0 %v5297
        %v5505 = vpop.f32.mrf.mxu0
        %v5506 = vadd.f32 0.0, %v5505
        %5507 = vmatmul.f32.gmra.mxu0 %v5300
        %v5508 = vpop.f32.mrf.mxu0
        %v5509 = vadd.f32 0.0, %v5508
        %5510 = vmatmul.f32.gmra.mxu0 %v5303
        %v5511 = vpop.f32.mrf.mxu0
        %v5512 = vadd.f32 0.0, %v5511
        %5513 = vmatmul.f32.gmra.mxu0 %v5306
        %v5514 = vpop.f32.mrf.mxu0
        %v5515 = vadd.f32 0.0, %v5514
        %5516 = vmatmul.f32.gmra.mxu0 %v5309
        %v5517 = vpop.f32.mrf.mxu0
        %v5518 = vadd.f32 0.0, %v5517
        %5519 = vmatmul.f32.gmra.mxu0 %v5312
        %v5520 = vpop.f32.mrf.mxu0
        %v5521 = vadd.f32 0.0, %v5520
        %5522 = vmatmul.f32.gmra.mxu0 %v5315
        %v5523 = vpop.f32.mrf.mxu0
        %v5524 = vadd.f32 0.0, %v5523
        %5525 = vmatmul.f32.gmra.mxu0 %v5318
        %v5526 = vpop.f32.mrf.mxu0
        %v5527 = vadd.f32 0.0, %v5526
        %5528 = vmatmul.f32.gmra.mxu0 %v5321
        %v5529 = vpop.f32.mrf.mxu0
        %v5530 = vadd.f32 0.0, %v5529
        %5531 = vmatmul.f32.gmra.mxu0 %v5324
        %v5532 = vpop.f32.mrf.mxu0
        %v5533 = vadd.f32 0.0, %v5532
        %5534 = vmatmul.f32.gmra.mxu0 %v5327
        %v5535 = vpop.f32.mrf.mxu0
        %v5536 = vadd.f32 0.0, %v5535
        %5537 = vmatmul.f32.gmra.mxu0 %v5330
        %v5538 = vpop.f32.mrf.mxu0
        %v5539 = vadd.f32 0.0, %v5538
        %5540 = vmatmul.f32.gmra.mxu0 %v5333
        %v5541 = vpop.f32.mrf.mxu0
        %v5542 = vadd.f32 0.0, %v5541
        %5543 = vmatmul.f32.gmra.mxu0 %v5336
        %v5544 = vpop.f32.mrf.mxu0
        %v5545 = vadd.f32 0.0, %v5544
        %5546 = vmatmul.f32.gmra.mxu0 %v5339
        %v5547 = vpop.f32.mrf.mxu0
        %v5548 = vadd.f32 0.0, %v5547
        %5549 = vmatmul.f32.gmra.mxu0 %v5342
        %v5550 = vpop.f32.mrf.mxu0
        %v5551 = vadd.f32 0.0, %v5550
        %5552 = vmatmul.f32.gmra.mxu0 %v5345
        %v5553 = vpop.f32.mrf.mxu0
        %v5554 = vadd.f32 0.0, %v5553
        %5555 = vmatmul.f32.gmra.mxu0 %v5348
        %v5556 = vpop.f32.mrf.mxu0
        %v5557 = vadd.f32 0.0, %v5556
        %5558 = vmatmul.f32.gmra.mxu0 %v5351
        %v5559 = vpop.f32.mrf.mxu0
        %v5560 = vadd.f32 0.0, %v5559
        %5561 = vmatmul.f32.gmra.mxu0 %v5354
        %v5562 = vpop.f32.mrf.mxu0
        %v5563 = vadd.f32 0.0, %v5562
        %5564 = vmatmul.f32.gmra.mxu0 %v5357
        %v5565 = vpop.f32.mrf.mxu0
        %v5566 = vadd.f32 0.0, %v5565
        %5567 = vmatmul.f32.gmra.mxu0 %v5360
        %v5568 = vpop.f32.mrf.mxu0
        %v5569 = vadd.f32 0.0, %v5568
        %5570 = vmatmul.f32.gmra.mxu0 %v5363
        %v5571 = vpop.f32.mrf.mxu0
        %v5572 = vadd.f32 0.0, %v5571
        %5573 = vmatmul.f32.gmra.mxu0 %v5366
        %v5574 = vpop.f32.mrf.mxu0
        %v5575 = vadd.f32 0.0, %v5574
        %5576 = vmatmul.f32.gmra.mxu0 %v5369
        %v5577 = vpop.f32.mrf.mxu0
        %v5578 = vadd.f32 0.0, %v5577
        %5579 = vmatmul.f32.gmra.mxu0 %v5372
        %v5580 = vpop.f32.mrf.mxu0
        %v5581 = vadd.f32 0.0, %v5580
        %5582 = vmatmul.f32.gmra.mxu0 %v5375
        %v5583 = vpop.f32.mrf.mxu0
        %v5584 = vadd.f32 0.0, %v5583
        %5585 = vmatmul.f32.gmra.mxu0 %v5378
        %v5586 = vpop.f32.mrf.mxu0
        %v5587 = vadd.f32 0.0, %v5586
        %5588 = vmatmul.f32.gmra.mxu0 %v5381
        %v5589 = vpop.f32.mrf.mxu0
        %v5590 = vadd.f32 0.0, %v5589
        %5591 = vmatmul.f32.gmra.mxu0 %v5384
        %v5592 = vpop.f32.mrf.mxu0
        %v5593 = vadd.f32 0.0, %v5592
        %5594 = vmatmul.f32.gmra.mxu0 %v5387
        %v5595 = vpop.f32.mrf.mxu0
        %v5596 = vadd.f32 0.0, %v5595
        %5597 = vmatmul.f32.gmra.mxu0 %v5390
        %v5598 = vpop.f32.mrf.mxu0
        %v5599 = vadd.f32 0.0, %v5598
        %5600 = vmatmul.f32.gmra.mxu0 %v5393
        %v5601 = vpop.f32.mrf.mxu0
        %v5602 = vadd.f32 0.0, %v5601
        %5603 = vmatmul.f32.gmra.mxu0 %v5396
        %v5604 = vpop.f32.mrf.mxu0
        %v5605 = vadd.f32 0.0, %v5604
        %5606 = vmatmul.f32.gmra.mxu0 %v5399
        %v5607 = vpop.f32.mrf.mxu0
        %v5608 = vadd.f32 0.0, %v5607
        %5609 = vmatmul.f32.gmra.mxu0 %v5402
        %v5610 = vpop.f32.mrf.mxu0
        %v5611 = vadd.f32 0.0, %v5610
        %5612 = vdwg.mxu0
        %v5613 = vld [vmem:[#allocation3] sm:$0xff]
        %v5614 = vld [vmem:[#allocation3 + $0x8] sm:$0xff]
        %v5615 = vld [vmem:[#allocation3 + $0x10] sm:$0xff]
        %v5616 = vld [vmem:[#allocation3 + $0x18] sm:$0xff]
        %v5617 = vld [vmem:[#allocation3 + $0x20] sm:$0xff]
        %v5618 = vld [vmem:[#allocation3 + $0x28] sm:$0xff]
        %v5619 = vld [vmem:[#allocation3 + $0x30] sm:$0xff]
        %v5620 = vld [vmem:[#allocation3 + $0x38] sm:$0xff]
        %v5621 = vld [vmem:[#allocation3 + $0x40] sm:$0xff]
        %v5622 = vld [vmem:[#allocation3 + $0x48] sm:$0xff]
        %v5623 = vld [vmem:[#allocation3 + $0x50] sm:$0xff]
        %v5624 = vld [vmem:[#allocation3 + $0x58] sm:$0xff]
        %v5625 = vld [vmem:[#allocation3 + $0x60] sm:$0xff]
        %v5626 = vld [vmem:[#allocation3 + $0x68] sm:$0xff]
        %v5627 = vld [vmem:[#allocation3 + $0x70] sm:$0xff]
        %v5628 = vld [vmem:[#allocation3 + $0x78] sm:$0xff]
        %v5629 = vld [vmem:[#allocation3 + $0x80] sm:$0xff]
        %v5630 = vld [vmem:[#allocation3 + $0x88] sm:$0xff]
        %v5631 = vld [vmem:[#allocation3 + $0x90] sm:$0xff]
        %v5632 = vld [vmem:[#allocation3 + $0x98] sm:$0xff]
        %v5633 = vld [vmem:[#allocation3 + $0xa0] sm:$0xff]
        %v5634 = vld [vmem:[#allocation3 + $0xa8] sm:$0xff]
        %v5635 = vld [vmem:[#allocation3 + $0xb0] sm:$0xff]
        %v5636 = vld [vmem:[#allocation3 + $0xb8] sm:$0xff]
        %v5637 = vld [vmem:[#allocation3 + $0xc0] sm:$0xff]
        %v5638 = vld [vmem:[#allocation3 + $0xc8] sm:$0xff]
        %v5639 = vld [vmem:[#allocation3 + $0xd0] sm:$0xff]
        %v5640 = vld [vmem:[#allocation3 + $0xd8] sm:$0xff]
        %v5641 = vld [vmem:[#allocation3 + $0xe0] sm:$0xff]
        %v5642 = vld [vmem:[#allocation3 + $0xe8] sm:$0xff]
        %v5643 = vld [vmem:[#allocation3 + $0xf0] sm:$0xff]
        %v5644 = vld [vmem:[#allocation3 + $0xf8] sm:$0xff]
        %v5645 = vld [vmem:[#allocation3 + $0x100] sm:$0xff]
        %v5646 = vld [vmem:[#allocation3 + $0x108] sm:$0xff]
        %v5647 = vld [vmem:[#allocation3 + $0x110] sm:$0xff]
        %v5648 = vld [vmem:[#allocation3 + $0x118] sm:$0xff]
        %v5649 = vld [vmem:[#allocation3 + $0x120] sm:$0xff]
        %v5650 = vld [vmem:[#allocation3 + $0x128] sm:$0xff]
        %v5651 = vld [vmem:[#allocation3 + $0x130] sm:$0xff]
        %v5652 = vld [vmem:[#allocation3 + $0x138] sm:$0xff]
        %v5653 = vld [vmem:[#allocation3 + $0x140] sm:$0xff]
        %v5654 = vld [vmem:[#allocation3 + $0x148] sm:$0xff]
        %v5655 = vld [vmem:[#allocation3 + $0x150] sm:$0xff]
        %v5656 = vld [vmem:[#allocation3 + $0x158] sm:$0xff]
        %v5657 = vld [vmem:[#allocation3 + $0x160] sm:$0xff]
        %v5658 = vld [vmem:[#allocation3 + $0x168] sm:$0xff]
        %v5659 = vld [vmem:[#allocation3 + $0x170] sm:$0xff]
        %v5660 = vld [vmem:[#allocation3 + $0x178] sm:$0xff]
        %v5661 = vld [vmem:[#allocation3 + $0x180] sm:$0xff]
        %v5662 = vld [vmem:[#allocation3 + $0x188] sm:$0xff]
        %v5663 = vld [vmem:[#allocation3 + $0x190] sm:$0xff]
        %v5664 = vld [vmem:[#allocation3 + $0x198] sm:$0xff]
        %v5665 = vld [vmem:[#allocation3 + $0x1a0] sm:$0xff]
        %v5666 = vld [vmem:[#allocation3 + $0x1a8] sm:$0xff]
        %v5667 = vld [vmem:[#allocation3 + $0x1b0] sm:$0xff]
        %v5668 = vld [vmem:[#allocation3 + $0x1b8] sm:$0xff]
        %v5669 = vld [vmem:[#allocation3 + $0x1c0] sm:$0xff]
        %v5670 = vld [vmem:[#allocation3 + $0x1c8] sm:$0xff]
        %v5671 = vld [vmem:[#allocation3 + $0x1d0] sm:$0xff]
        %v5672 = vld [vmem:[#allocation3 + $0x1d8] sm:$0xff]
        %v5673 = vld [vmem:[#allocation3 + $0x1e0] sm:$0xff]
        %v5674 = vld [vmem:[#allocation3 + $0x1e8] sm:$0xff]
        %v5675 = vld [vmem:[#allocation3 + $0x1f0] sm:$0xff]
        %v5676 = vld [vmem:[#allocation3 + $0x1f8] sm:$0xff]
        %v5677 = vadd.f32 %v5613, %v5422
        %v5678 = vadd.f32 %v5614, %v5425
        %v5679 = vadd.f32 %v5615, %v5428
        %v5680 = vadd.f32 %v5616, %v5431
        %v5681 = vadd.f32 %v5617, %v5434
        %v5682 = vadd.f32 %v5618, %v5437
        %v5683 = vadd.f32 %v5619, %v5440
        %v5684 = vadd.f32 %v5620, %v5443
        %v5685 = vadd.f32 %v5621, %v5446
        %v5686 = vadd.f32 %v5622, %v5449
        %v5687 = vadd.f32 %v5623, %v5452
        %v5688 = vadd.f32 %v5624, %v5455
        %v5689 = vadd.f32 %v5625, %v5458
        %v5690 = vadd.f32 %v5626, %v5461
        %v5691 = vadd.f32 %v5627, %v5464
        %v5692 = vadd.f32 %v5628, %v5467
        %v5693 = vadd.f32 %v5629, %v5470
        %v5694 = vadd.f32 %v5630, %v5473
        %v5695 = vadd.f32 %v5631, %v5476
        %v5696 = vadd.f32 %v5632, %v5479
        %v5697 = vadd.f32 %v5633, %v5482
        %v5698 = vadd.f32 %v5634, %v5485
        %v5699 = vadd.f32 %v5635, %v5488
        %v5700 = vadd.f32 %v5636, %v5491
        %v5701 = vadd.f32 %v5637, %v5494
        %v5702 = vadd.f32 %v5638, %v5497
        %v5703 = vadd.f32 %v5639, %v5500
        %v5704 = vadd.f32 %v5640, %v5503
        %v5705 = vadd.f32 %v5641, %v5506
        %v5706 = vadd.f32 %v5642, %v5509
        %v5707 = vadd.f32 %v5643, %v5512
        %v5708 = vadd.f32 %v5644, %v5515
        %v5709 = vadd.f32 %v5645, %v5518
        %v5710 = vadd.f32 %v5646, %v5521
        %v5711 = vadd.f32 %v5647, %v5524
        %v5712 = vadd.f32 %v5648, %v5527
        %v5713 = vadd.f32 %v5649, %v5530
        %v5714 = vadd.f32 %v5650, %v5533
        %v5715 = vadd.f32 %v5651, %v5536
        %v5716 = vadd.f32 %v5652, %v5539
        %v5717 = vadd.f32 %v5653, %v5542
        %v5718 = vadd.f32 %v5654, %v5545
        %v5719 = vadd.f32 %v5655, %v5548
        %v5720 = vadd.f32 %v5656, %v5551
        %v5721 = vadd.f32 %v5657, %v5554
        %v5722 = vadd.f32 %v5658, %v5557
        %v5723 = vadd.f32 %v5659, %v5560
        %v5724 = vadd.f32 %v5660, %v5563
        %v5725 = vadd.f32 %v5661, %v5566
        %v5726 = vadd.f32 %v5662, %v5569
        %v5727 = vadd.f32 %v5663, %v5572
        %v5728 = vadd.f32 %v5664, %v5575
        %v5729 = vadd.f32 %v5665, %v5578
        %v5730 = vadd.f32 %v5666, %v5581
        %v5731 = vadd.f32 %v5667, %v5584
        %v5732 = vadd.f32 %v5668, %v5587
        %v5733 = vadd.f32 %v5669, %v5590
        %v5734 = vadd.f32 %v5670, %v5593
        %v5735 = vadd.f32 %v5671, %v5596
        %v5736 = vadd.f32 %v5672, %v5599
        %v5737 = vadd.f32 %v5673, %v5602
        %v5738 = vadd.f32 %v5674, %v5605
        %v5739 = vadd.f32 %v5675, %v5608
        %v5740 = vadd.f32 %v5676, %v5611
        %5741 = vst.msk [vmem:[#allocation3] sm:$0xff] %vm1361, %v5677
        %5742 = vst.msk [vmem:[#allocation3 + $0x8] sm:$0xff] %vm1361, %v5678
        %5743 = vst.msk [vmem:[#allocation3 + $0x10] sm:$0xff] %vm1361, %v5679
        %5744 = vst.msk [vmem:[#allocation3 + $0x18] sm:$0xff] %vm1361, %v5680
        %5745 = vst.msk [vmem:[#allocation3 + $0x20] sm:$0xff] %vm1361, %v5681
        %5746 = vst.msk [vmem:[#allocation3 + $0x28] sm:$0xff] %vm1361, %v5682
        %5747 = vst.msk [vmem:[#allocation3 + $0x30] sm:$0xff] %vm1361, %v5683
        %5748 = vst.msk [vmem:[#allocation3 + $0x38] sm:$0xff] %vm1361, %v5684
        %5749 = vst.msk [vmem:[#allocation3 + $0x40] sm:$0xff] %vm1361, %v5685
        %5750 = vst.msk [vmem:[#allocation3 + $0x48] sm:$0xff] %vm1361, %v5686
        %5751 = vst.msk [vmem:[#allocation3 + $0x50] sm:$0xff] %vm1361, %v5687
        %5752 = vst.msk [vmem:[#allocation3 + $0x58] sm:$0xff] %vm1361, %v5688
        %5753 = vst.msk [vmem:[#allocation3 + $0x60] sm:$0xff] %vm1361, %v5689
        %5754 = vst.msk [vmem:[#allocation3 + $0x68] sm:$0xff] %vm1361, %v5690
        %5755 = vst.msk [vmem:[#allocation3 + $0x70] sm:$0xff] %vm1361, %v5691
        %5756 = vst.msk [vmem:[#allocation3 + $0x78] sm:$0xff] %vm1361, %v5692
        %5757 = vst.msk [vmem:[#allocation3 + $0x80] sm:$0xff] %vm1361, %v5693
        %5758 = vst.msk [vmem:[#allocation3 + $0x88] sm:$0xff] %vm1361, %v5694
        %5759 = vst.msk [vmem:[#allocation3 + $0x90] sm:$0xff] %vm1361, %v5695
        %5760 = vst.msk [vmem:[#allocation3 + $0x98] sm:$0xff] %vm1361, %v5696
        %5761 = vst.msk [vmem:[#allocation3 + $0xa0] sm:$0xff] %vm1361, %v5697
        %5762 = vst.msk [vmem:[#allocation3 + $0xa8] sm:$0xff] %vm1361, %v5698
        %5763 = vst.msk [vmem:[#allocation3 + $0xb0] sm:$0xff] %vm1361, %v5699
        %5764 = vst.msk [vmem:[#allocation3 + $0xb8] sm:$0xff] %vm1361, %v5700
        %5765 = vst.msk [vmem:[#allocation3 + $0xc0] sm:$0xff] %vm1361, %v5701
        %5766 = vst.msk [vmem:[#allocation3 + $0xc8] sm:$0xff] %vm1361, %v5702
        %5767 = vst.msk [vmem:[#allocation3 + $0xd0] sm:$0xff] %vm1361, %v5703
        %5768 = vst.msk [vmem:[#allocation3 + $0xd8] sm:$0xff] %vm1361, %v5704
        %5769 = vst.msk [vmem:[#allocation3 + $0xe0] sm:$0xff] %vm1361, %v5705
        %5770 = vst.msk [vmem:[#allocation3 + $0xe8] sm:$0xff] %vm1361, %v5706
        %5771 = vst.msk [vmem:[#allocation3 + $0xf0] sm:$0xff] %vm1361, %v5707
        %5772 = vst.msk [vmem:[#allocation3 + $0xf8] sm:$0xff] %vm1361, %v5708
        %5773 = vst.msk [vmem:[#allocation3 + $0x100] sm:$0xff] %vm1361, %v5709
        %5774 = vst.msk [vmem:[#allocation3 + $0x108] sm:$0xff] %vm1361, %v5710
        %5775 = vst.msk [vmem:[#allocation3 + $0x110] sm:$0xff] %vm1361, %v5711
        %5776 = vst.msk [vmem:[#allocation3 + $0x118] sm:$0xff] %vm1361, %v5712
        %5777 = vst.msk [vmem:[#allocation3 + $0x120] sm:$0xff] %vm1361, %v5713
        %5778 = vst.msk [vmem:[#allocation3 + $0x128] sm:$0xff] %vm1361, %v5714
        %5779 = vst.msk [vmem:[#allocation3 + $0x130] sm:$0xff] %vm1361, %v5715
        %5780 = vst.msk [vmem:[#allocation3 + $0x138] sm:$0xff] %vm1361, %v5716
        %5781 = vst.msk [vmem:[#allocation3 + $0x140] sm:$0xff] %vm1361, %v5717
        %5782 = vst.msk [vmem:[#allocation3 + $0x148] sm:$0xff] %vm1361, %v5718
        %5783 = vst.msk [vmem:[#allocation3 + $0x150] sm:$0xff] %vm1361, %v5719
        %5784 = vst.msk [vmem:[#allocation3 + $0x158] sm:$0xff] %vm1361, %v5720
        %5785 = vst.msk [vmem:[#allocation3 + $0x160] sm:$0xff] %vm1361, %v5721
        %5786 = vst.msk [vmem:[#allocation3 + $0x168] sm:$0xff] %vm1361, %v5722
        %5787 = vst.msk [vmem:[#allocation3 + $0x170] sm:$0xff] %vm1361, %v5723
        %5788 = vst.msk [vmem:[#allocation3 + $0x178] sm:$0xff] %vm1361, %v5724
        %5789 = vst.msk [vmem:[#allocation3 + $0x180] sm:$0xff] %vm1361, %v5725
        %5790 = vst.msk [vmem:[#allocation3 + $0x188] sm:$0xff] %vm1361, %v5726
        %5791 = vst.msk [vmem:[#allocation3 + $0x190] sm:$0xff] %vm1361, %v5727
        %5792 = vst.msk [vmem:[#allocation3 + $0x198] sm:$0xff] %vm1361, %v5728
        %5793 = vst.msk [vmem:[#allocation3 + $0x1a0] sm:$0xff] %vm1361, %v5729
        %5794 = vst.msk [vmem:[#allocation3 + $0x1a8] sm:$0xff] %vm1361, %v5730
        %5795 = vst.msk [vmem:[#allocation3 + $0x1b0] sm:$0xff] %vm1361, %v5731
        %5796 = vst.msk [vmem:[#allocation3 + $0x1b8] sm:$0xff] %vm1361, %v5732
        %5797 = vst.msk [vmem:[#allocation3 + $0x1c0] sm:$0xff] %vm1361, %v5733
        %5798 = vst.msk [vmem:[#allocation3 + $0x1c8] sm:$0xff] %vm1361, %v5734
        %5799 = vst.msk [vmem:[#allocation3 + $0x1d0] sm:$0xff] %vm1361, %v5735
        %5800 = vst.msk [vmem:[#allocation3 + $0x1d8] sm:$0xff] %vm1361, %v5736
        %5801 = vst.msk [vmem:[#allocation3 + $0x1e0] sm:$0xff] %vm1361, %v5737
        %5802 = vst.msk [vmem:[#allocation3 + $0x1e8] sm:$0xff] %vm1361, %v5738
        %5803 = vst.msk [vmem:[#allocation3 + $0x1f0] sm:$0xff] %vm1361, %v5739
        %5804 = vst.msk [vmem:[#allocation3 + $0x1f8] sm:$0xff] %vm1361, %v5740
        %s5805 = scalar_lea.vmem [#allocation2], 168
        %v5806 = vld [vmem:[%s5805] sm:$0xff]
        %v5807 = vld [vmem:[%s5805 + $0x8] sm:$0xff]
        %v5808 = vld [vmem:[%s5805 + $0x10] sm:$0xff]
        %v5809 = vld [vmem:[%s5805 + $0x18] sm:$0xff]
        %v5810 = vld [vmem:[%s5805 + $0x20] sm:$0xff]
        %v5811 = vld [vmem:[%s5805 + $0x28] sm:$0xff]
        %v5812 = vld [vmem:[%s5805 + $0x30] sm:$0xff]
        %v5813 = vld [vmem:[%s5805 + $0x38] sm:$0xff]
        %v5814 = vld [vmem:[%s5805 + $0x50] sm:$0xff]
        %v5815 = vld [vmem:[%s5805 + $0x58] sm:$0xff]
        %v5816 = vld [vmem:[%s5805 + $0x60] sm:$0xff]
        %v5817 = vld [vmem:[%s5805 + $0x68] sm:$0xff]
        %v5818 = vld [vmem:[%s5805 + $0x70] sm:$0xff]
        %v5819 = vld [vmem:[%s5805 + $0x78] sm:$0xff]
        %v5820 = vld [vmem:[%s5805 + $0x80] sm:$0xff]
        %v5821 = vld [vmem:[%s5805 + $0x88] sm:$0xff]
        %v5822 = vld [vmem:[%s5805 + $0xa0] sm:$0xff]
        %v5823 = vld [vmem:[%s5805 + $0xa8] sm:$0xff]
        %v5824 = vld [vmem:[%s5805 + $0xb0] sm:$0xff]
        %v5825 = vld [vmem:[%s5805 + $0xb8] sm:$0xff]
        %v5826 = vld [vmem:[%s5805 + $0xc0] sm:$0xff]
        %v5827 = vld [vmem:[%s5805 + $0xc8] sm:$0xff]
        %v5828 = vld [vmem:[%s5805 + $0xd0] sm:$0xff]
        %v5829 = vld [vmem:[%s5805 + $0xd8] sm:$0xff]
        %v5830 = vld [vmem:[%s5805 + $0xf0] sm:$0xff]
        %v5831 = vld [vmem:[%s5805 + $0xf8] sm:$0xff]
        %v5832 = vld [vmem:[%s5805 + $0x100] sm:$0xff]
        %v5833 = vld [vmem:[%s5805 + $0x108] sm:$0xff]
        %v5834 = vld [vmem:[%s5805 + $0x110] sm:$0xff]
        %v5835 = vld [vmem:[%s5805 + $0x118] sm:$0xff]
        %v5836 = vld [vmem:[%s5805 + $0x120] sm:$0xff]
        %v5837 = vld [vmem:[%s5805 + $0x128] sm:$0xff]
        %v5838 = vld [vmem:[%s5805 + $0x140] sm:$0xff]
        %v5839 = vld [vmem:[%s5805 + $0x148] sm:$0xff]
        %v5840 = vld [vmem:[%s5805 + $0x150] sm:$0xff]
        %v5841 = vld [vmem:[%s5805 + $0x158] sm:$0xff]
        %v5842 = vld [vmem:[%s5805 + $0x160] sm:$0xff]
        %v5843 = vld [vmem:[%s5805 + $0x168] sm:$0xff]
        %v5844 = vld [vmem:[%s5805 + $0x170] sm:$0xff]
        %v5845 = vld [vmem:[%s5805 + $0x178] sm:$0xff]
        %v5846 = vld [vmem:[%s5805 + $0x190] sm:$0xff]
        %v5847 = vld [vmem:[%s5805 + $0x198] sm:$0xff]
        %v5848 = vld [vmem:[%s5805 + $0x1a0] sm:$0xff]
        %v5849 = vld [vmem:[%s5805 + $0x1a8] sm:$0xff]
        %v5850 = vld [vmem:[%s5805 + $0x1b0] sm:$0xff]
        %v5851 = vld [vmem:[%s5805 + $0x1b8] sm:$0xff]
        %v5852 = vld [vmem:[%s5805 + $0x1c0] sm:$0xff]
        %v5853 = vld [vmem:[%s5805 + $0x1c8] sm:$0xff]
        %v5854 = vld [vmem:[%s5805 + $0x1e0] sm:$0xff]
        %v5855 = vld [vmem:[%s5805 + $0x1e8] sm:$0xff]
        %v5856 = vld [vmem:[%s5805 + $0x1f0] sm:$0xff]
        %v5857 = vld [vmem:[%s5805 + $0x1f8] sm:$0xff]
        %v5858 = vld [vmem:[%s5805 + $0x200] sm:$0xff]
        %v5859 = vld [vmem:[%s5805 + $0x208] sm:$0xff]
        %v5860 = vld [vmem:[%s5805 + $0x210] sm:$0xff]
        %v5861 = vld [vmem:[%s5805 + $0x218] sm:$0xff]
        %v5862 = vld [vmem:[%s5805 + $0x230] sm:$0xff]
        %v5863 = vld [vmem:[%s5805 + $0x238] sm:$0xff]
        %v5864 = vld [vmem:[%s5805 + $0x240] sm:$0xff]
        %v5865 = vld [vmem:[%s5805 + $0x248] sm:$0xff]
        %v5866 = vld [vmem:[%s5805 + $0x250] sm:$0xff]
        %v5867 = vld [vmem:[%s5805 + $0x258] sm:$0xff]
        %v5868 = vld [vmem:[%s5805 + $0x260] sm:$0xff]
        %v5869 = vld [vmem:[%s5805 + $0x268] sm:$0xff]
        %s5870 = scalar_lea.vmem %s627, 224
        %v5871 = vld [vmem:[%s5870] sm:$0xff]
        %v5872 = vld [vmem:[%s5870 + $0x8] sm:$0xff]
        %v5873 = vld [vmem:[%s5870 + $0x10] sm:$0xff]
        %v5874 = vld [vmem:[%s5870 + $0x18] sm:$0xff]
        %v5876 = vsel %vm1361, %v5806, 0
        %v5879 = vsel %vm1361, %v5807, 0
        %v5882 = vsel %vm1361, %v5808, 0
        %v5885 = vsel %vm1361, %v5809, 0
        %v5888 = vsel %vm1361, %v5810, 0
        %v5891 = vsel %vm1361, %v5811, 0
        %v5894 = vsel %vm1361, %v5812, 0
        %v5897 = vsel %vm1361, %v5813, 0
        %v5900 = vsel %vm1361, %v5814, 0
        %v5903 = vsel %vm1361, %v5815, 0
        %v5906 = vsel %vm1361, %v5816, 0
        %v5909 = vsel %vm1361, %v5817, 0
        %v5912 = vsel %vm1361, %v5818, 0
        %v5915 = vsel %vm1361, %v5819, 0
        %v5918 = vsel %vm1361, %v5820, 0
        %v5921 = vsel %vm1361, %v5821, 0
        %v5924 = vsel %vm1361, %v5822, 0
        %v5927 = vsel %vm1361, %v5823, 0
        %v5930 = vsel %vm1361, %v5824, 0
        %v5933 = vsel %vm1361, %v5825, 0
        %v5936 = vsel %vm1361, %v5826, 0
        %v5939 = vsel %vm1361, %v5827, 0
        %v5942 = vsel %vm1361, %v5828, 0
        %v5945 = vsel %vm1361, %v5829, 0
        %v5948 = vsel %vm1361, %v5830, 0
        %v5951 = vsel %vm1361, %v5831, 0
        %v5954 = vsel %vm1361, %v5832, 0
        %v5957 = vsel %vm1361, %v5833, 0
        %v5960 = vsel %vm1361, %v5834, 0
        %v5963 = vsel %vm1361, %v5835, 0
        %v5966 = vsel %vm1361, %v5836, 0
        %v5969 = vsel %vm1361, %v5837, 0
        %v5972 = vsel %vm1361, %v5838, 0
        %v5975 = vsel %vm1361, %v5839, 0
        %v5978 = vsel %vm1361, %v5840, 0
        %v5981 = vsel %vm1361, %v5841, 0
        %v5984 = vsel %vm1361, %v5842, 0
        %v5987 = vsel %vm1361, %v5843, 0
        %v5990 = vsel %vm1361, %v5844, 0
        %v5993 = vsel %vm1361, %v5845, 0
        %v5996 = vsel %vm1361, %v5846, 0
        %v5999 = vsel %vm1361, %v5847, 0
        %v6002 = vsel %vm1361, %v5848, 0
        %v6005 = vsel %vm1361, %v5849, 0
        %v6008 = vsel %vm1361, %v5850, 0
        %v6011 = vsel %vm1361, %v5851, 0
        %v6014 = vsel %vm1361, %v5852, 0
        %v6017 = vsel %vm1361, %v5853, 0
        %v6020 = vsel %vm1361, %v5854, 0
        %v6023 = vsel %vm1361, %v5855, 0
        %v6026 = vsel %vm1361, %v5856, 0
        %v6029 = vsel %vm1361, %v5857, 0
        %v6032 = vsel %vm1361, %v5858, 0
        %v6035 = vsel %vm1361, %v5859, 0
        %v6038 = vsel %vm1361, %v5860, 0
        %v6041 = vsel %vm1361, %v5861, 0
        %v6044 = vsel %vm1361, %v5862, 0
        %v6047 = vsel %vm1361, %v5863, 0
        %v6050 = vsel %vm1361, %v5864, 0
        %v6053 = vsel %vm1361, %v5865, 0
        %v6056 = vsel %vm1361, %v5866, 0
        %v6059 = vsel %vm1361, %v5867, 0
        %v6062 = vsel %vm1361, %v5868, 0
        %v6065 = vsel %vm1361, %v5869, 0
        %6067 = vmatpush.msra.mxu0 0.0
        %6068 = vmatpush.msra.mxu0 0.0
        %6069 = vmatpush.msra.mxu0 0.0
        %6070 = vmatpush.msra.mxu0 0.0
        %6071 = vmatpush.msra.mxu0 0.0
        %6072 = vmatpush.msra.mxu0 0.0
        %6073 = vmatpush.msra.mxu0 0.0
        %6074 = vmatpush.msra.mxu0 0.0
        %6075 = vmatpush.msra.mxu0 0.0
        %6076 = vmatpush.msra.mxu0 0.0
        %6077 = vmatpush.msra.mxu0 0.0
        %6078 = vmatpush.msra.mxu0 0.0
        %6079 = vmatpush.msra.mxu0 %v5874
        %6080 = vmatpush.msra.mxu0 %v5873
        %6081 = vmatpush.msra.mxu0 %v5872
        %6082 = vmatpush.msra.mxu0 %v5871
        %6083 = vmatmul.f32.gmra.mxu0 %v5876
        %v6084 = vpop.f32.mrf.mxu0
        %v6085 = vadd.f32 0.0, %v6084
        %6086 = vmatmul.f32.gmra.mxu0 %v5879
        %v6087 = vpop.f32.mrf.mxu0
        %v6088 = vadd.f32 0.0, %v6087
        %6089 = vmatmul.f32.gmra.mxu0 %v5882
        %v6090 = vpop.f32.mrf.mxu0
        %v6091 = vadd.f32 0.0, %v6090
        %6092 = vmatmul.f32.gmra.mxu0 %v5885
        %v6093 = vpop.f32.mrf.mxu0
        %v6094 = vadd.f32 0.0, %v6093
        %6095 = vmatmul.f32.gmra.mxu0 %v5888
        %v6096 = vpop.f32.mrf.mxu0
        %v6097 = vadd.f32 0.0, %v6096
        %6098 = vmatmul.f32.gmra.mxu0 %v5891
        %v6099 = vpop.f32.mrf.mxu0
        %v6100 = vadd.f32 0.0, %v6099
        %6101 = vmatmul.f32.gmra.mxu0 %v5894
        %v6102 = vpop.f32.mrf.mxu0
        %v6103 = vadd.f32 0.0, %v6102
        %6104 = vmatmul.f32.gmra.mxu0 %v5897
        %v6105 = vpop.f32.mrf.mxu0
        %v6106 = vadd.f32 0.0, %v6105
        %6107 = vmatmul.f32.gmra.mxu0 %v5900
        %v6108 = vpop.f32.mrf.mxu0
        %v6109 = vadd.f32 0.0, %v6108
        %6110 = vmatmul.f32.gmra.mxu0 %v5903
        %v6111 = vpop.f32.mrf.mxu0
        %v6112 = vadd.f32 0.0, %v6111
        %6113 = vmatmul.f32.gmra.mxu0 %v5906
        %v6114 = vpop.f32.mrf.mxu0
        %v6115 = vadd.f32 0.0, %v6114
        %6116 = vmatmul.f32.gmra.mxu0 %v5909
        %v6117 = vpop.f32.mrf.mxu0
        %v6118 = vadd.f32 0.0, %v6117
        %6119 = vmatmul.f32.gmra.mxu0 %v5912
        %v6120 = vpop.f32.mrf.mxu0
        %v6121 = vadd.f32 0.0, %v6120
        %6122 = vmatmul.f32.gmra.mxu0 %v5915
        %v6123 = vpop.f32.mrf.mxu0
        %v6124 = vadd.f32 0.0, %v6123
        %6125 = vmatmul.f32.gmra.mxu0 %v5918
        %v6126 = vpop.f32.mrf.mxu0
        %v6127 = vadd.f32 0.0, %v6126
        %6128 = vmatmul.f32.gmra.mxu0 %v5921
        %v6129 = vpop.f32.mrf.mxu0
        %v6130 = vadd.f32 0.0, %v6129
        %6131 = vmatmul.f32.gmra.mxu0 %v5924
        %v6132 = vpop.f32.mrf.mxu0
        %v6133 = vadd.f32 0.0, %v6132
        %6134 = vmatmul.f32.gmra.mxu0 %v5927
        %v6135 = vpop.f32.mrf.mxu0
        %v6136 = vadd.f32 0.0, %v6135
        %6137 = vmatmul.f32.gmra.mxu0 %v5930
        %v6138 = vpop.f32.mrf.mxu0
        %v6139 = vadd.f32 0.0, %v6138
        %6140 = vmatmul.f32.gmra.mxu0 %v5933
        %v6141 = vpop.f32.mrf.mxu0
        %v6142 = vadd.f32 0.0, %v6141
        %6143 = vmatmul.f32.gmra.mxu0 %v5936
        %v6144 = vpop.f32.mrf.mxu0
        %v6145 = vadd.f32 0.0, %v6144
        %6146 = vmatmul.f32.gmra.mxu0 %v5939
        %v6147 = vpop.f32.mrf.mxu0
        %v6148 = vadd.f32 0.0, %v6147
        %6149 = vmatmul.f32.gmra.mxu0 %v5942
        %v6150 = vpop.f32.mrf.mxu0
        %v6151 = vadd.f32 0.0, %v6150
        %6152 = vmatmul.f32.gmra.mxu0 %v5945
        %v6153 = vpop.f32.mrf.mxu0
        %v6154 = vadd.f32 0.0, %v6153
        %6155 = vmatmul.f32.gmra.mxu0 %v5948
        %v6156 = vpop.f32.mrf.mxu0
        %v6157 = vadd.f32 0.0, %v6156
        %6158 = vmatmul.f32.gmra.mxu0 %v5951
        %v6159 = vpop.f32.mrf.mxu0
        %v6160 = vadd.f32 0.0, %v6159
        %6161 = vmatmul.f32.gmra.mxu0 %v5954
        %v6162 = vpop.f32.mrf.mxu0
        %v6163 = vadd.f32 0.0, %v6162
        %6164 = vmatmul.f32.gmra.mxu0 %v5957
        %v6165 = vpop.f32.mrf.mxu0
        %v6166 = vadd.f32 0.0, %v6165
        %6167 = vmatmul.f32.gmra.mxu0 %v5960
        %v6168 = vpop.f32.mrf.mxu0
        %v6169 = vadd.f32 0.0, %v6168
        %6170 = vmatmul.f32.gmra.mxu0 %v5963
        %v6171 = vpop.f32.mrf.mxu0
        %v6172 = vadd.f32 0.0, %v6171
        %6173 = vmatmul.f32.gmra.mxu0 %v5966
        %v6174 = vpop.f32.mrf.mxu0
        %v6175 = vadd.f32 0.0, %v6174
        %6176 = vmatmul.f32.gmra.mxu0 %v5969
        %v6177 = vpop.f32.mrf.mxu0
        %v6178 = vadd.f32 0.0, %v6177
        %6179 = vmatmul.f32.gmra.mxu0 %v5972
        %v6180 = vpop.f32.mrf.mxu0
        %v6181 = vadd.f32 0.0, %v6180
        %6182 = vmatmul.f32.gmra.mxu0 %v5975
        %v6183 = vpop.f32.mrf.mxu0
        %v6184 = vadd.f32 0.0, %v6183
        %6185 = vmatmul.f32.gmra.mxu0 %v5978
        %v6186 = vpop.f32.mrf.mxu0
        %v6187 = vadd.f32 0.0, %v6186
        %6188 = vmatmul.f32.gmra.mxu0 %v5981
        %v6189 = vpop.f32.mrf.mxu0
        %v6190 = vadd.f32 0.0, %v6189
        %6191 = vmatmul.f32.gmra.mxu0 %v5984
        %v6192 = vpop.f32.mrf.mxu0
        %v6193 = vadd.f32 0.0, %v6192
        %6194 = vmatmul.f32.gmra.mxu0 %v5987
        %v6195 = vpop.f32.mrf.mxu0
        %v6196 = vadd.f32 0.0, %v6195
        %6197 = vmatmul.f32.gmra.mxu0 %v5990
        %v6198 = vpop.f32.mrf.mxu0
        %v6199 = vadd.f32 0.0, %v6198
        %6200 = vmatmul.f32.gmra.mxu0 %v5993
        %v6201 = vpop.f32.mrf.mxu0
        %v6202 = vadd.f32 0.0, %v6201
        %6203 = vmatmul.f32.gmra.mxu0 %v5996
        %v6204 = vpop.f32.mrf.mxu0
        %v6205 = vadd.f32 0.0, %v6204
        %6206 = vmatmul.f32.gmra.mxu0 %v5999
        %v6207 = vpop.f32.mrf.mxu0
        %v6208 = vadd.f32 0.0, %v6207
        %6209 = vmatmul.f32.gmra.mxu0 %v6002
        %v6210 = vpop.f32.mrf.mxu0
        %v6211 = vadd.f32 0.0, %v6210
        %6212 = vmatmul.f32.gmra.mxu0 %v6005
        %v6213 = vpop.f32.mrf.mxu0
        %v6214 = vadd.f32 0.0, %v6213
        %6215 = vmatmul.f32.gmra.mxu0 %v6008
        %v6216 = vpop.f32.mrf.mxu0
        %v6217 = vadd.f32 0.0, %v6216
        %6218 = vmatmul.f32.gmra.mxu0 %v6011
        %v6219 = vpop.f32.mrf.mxu0
        %v6220 = vadd.f32 0.0, %v6219
        %6221 = vmatmul.f32.gmra.mxu0 %v6014
        %v6222 = vpop.f32.mrf.mxu0
        %v6223 = vadd.f32 0.0, %v6222
        %6224 = vmatmul.f32.gmra.mxu0 %v6017
        %v6225 = vpop.f32.mrf.mxu0
        %v6226 = vadd.f32 0.0, %v6225
        %6227 = vmatmul.f32.gmra.mxu0 %v6020
        %v6228 = vpop.f32.mrf.mxu0
        %v6229 = vadd.f32 0.0, %v6228
        %6230 = vmatmul.f32.gmra.mxu0 %v6023
        %v6231 = vpop.f32.mrf.mxu0
        %v6232 = vadd.f32 0.0, %v6231
        %6233 = vmatmul.f32.gmra.mxu0 %v6026
        %v6234 = vpop.f32.mrf.mxu0
        %v6235 = vadd.f32 0.0, %v6234
        %6236 = vmatmul.f32.gmra.mxu0 %v6029
        %v6237 = vpop.f32.mrf.mxu0
        %v6238 = vadd.f32 0.0, %v6237
        %6239 = vmatmul.f32.gmra.mxu0 %v6032
        %v6240 = vpop.f32.mrf.mxu0
        %v6241 = vadd.f32 0.0, %v6240
        %6242 = vmatmul.f32.gmra.mxu0 %v6035
        %v6243 = vpop.f32.mrf.mxu0
        %v6244 = vadd.f32 0.0, %v6243
        %6245 = vmatmul.f32.gmra.mxu0 %v6038
        %v6246 = vpop.f32.mrf.mxu0
        %v6247 = vadd.f32 0.0, %v6246
        %6248 = vmatmul.f32.gmra.mxu0 %v6041
        %v6249 = vpop.f32.mrf.mxu0
        %v6250 = vadd.f32 0.0, %v6249
        %6251 = vmatmul.f32.gmra.mxu0 %v6044
        %v6252 = vpop.f32.mrf.mxu0
        %v6253 = vadd.f32 0.0, %v6252
        %6254 = vmatmul.f32.gmra.mxu0 %v6047
        %v6255 = vpop.f32.mrf.mxu0
        %v6256 = vadd.f32 0.0, %v6255
        %6257 = vmatmul.f32.gmra.mxu0 %v6050
        %v6258 = vpop.f32.mrf.mxu0
        %v6259 = vadd.f32 0.0, %v6258
        %6260 = vmatmul.f32.gmra.mxu0 %v6053
        %v6261 = vpop.f32.mrf.mxu0
        %v6262 = vadd.f32 0.0, %v6261
        %6263 = vmatmul.f32.gmra.mxu0 %v6056
        %v6264 = vpop.f32.mrf.mxu0
        %v6265 = vadd.f32 0.0, %v6264
        %6266 = vmatmul.f32.gmra.mxu0 %v6059
        %v6267 = vpop.f32.mrf.mxu0
        %v6268 = vadd.f32 0.0, %v6267
        %6269 = vmatmul.f32.gmra.mxu0 %v6062
        %v6270 = vpop.f32.mrf.mxu0
        %v6271 = vadd.f32 0.0, %v6270
        %6272 = vmatmul.f32.gmra.mxu0 %v6065
        %v6273 = vpop.f32.mrf.mxu0
        %v6274 = vadd.f32 0.0, %v6273
        %6275 = vdwg.mxu0
        %v6276 = vld [vmem:[#allocation3] sm:$0xff]
        %v6277 = vld [vmem:[#allocation3 + $0x8] sm:$0xff]
        %v6278 = vld [vmem:[#allocation3 + $0x10] sm:$0xff]
        %v6279 = vld [vmem:[#allocation3 + $0x18] sm:$0xff]
        %v6280 = vld [vmem:[#allocation3 + $0x20] sm:$0xff]
        %v6281 = vld [vmem:[#allocation3 + $0x28] sm:$0xff]
        %v6282 = vld [vmem:[#allocation3 + $0x30] sm:$0xff]
        %v6283 = vld [vmem:[#allocation3 + $0x38] sm:$0xff]
        %v6284 = vld [vmem:[#allocation3 + $0x40] sm:$0xff]
        %v6285 = vld [vmem:[#allocation3 + $0x48] sm:$0xff]
        %v6286 = vld [vmem:[#allocation3 + $0x50] sm:$0xff]
        %v6287 = vld [vmem:[#allocation3 + $0x58] sm:$0xff]
        %v6288 = vld [vmem:[#allocation3 + $0x60] sm:$0xff]
        %v6289 = vld [vmem:[#allocation3 + $0x68] sm:$0xff]
        %v6290 = vld [vmem:[#allocation3 + $0x70] sm:$0xff]
        %v6291 = vld [vmem:[#allocation3 + $0x78] sm:$0xff]
        %v6292 = vld [vmem:[#allocation3 + $0x80] sm:$0xff]
        %v6293 = vld [vmem:[#allocation3 + $0x88] sm:$0xff]
        %v6294 = vld [vmem:[#allocation3 + $0x90] sm:$0xff]
        %v6295 = vld [vmem:[#allocation3 + $0x98] sm:$0xff]
        %v6296 = vld [vmem:[#allocation3 + $0xa0] sm:$0xff]
        %v6297 = vld [vmem:[#allocation3 + $0xa8] sm:$0xff]
        %v6298 = vld [vmem:[#allocation3 + $0xb0] sm:$0xff]
        %v6299 = vld [vmem:[#allocation3 + $0xb8] sm:$0xff]
        %v6300 = vld [vmem:[#allocation3 + $0xc0] sm:$0xff]
        %v6301 = vld [vmem:[#allocation3 + $0xc8] sm:$0xff]
        %v6302 = vld [vmem:[#allocation3 + $0xd0] sm:$0xff]
        %v6303 = vld [vmem:[#allocation3 + $0xd8] sm:$0xff]
        %v6304 = vld [vmem:[#allocation3 + $0xe0] sm:$0xff]
        %v6305 = vld [vmem:[#allocation3 + $0xe8] sm:$0xff]
        %v6306 = vld [vmem:[#allocation3 + $0xf0] sm:$0xff]
        %v6307 = vld [vmem:[#allocation3 + $0xf8] sm:$0xff]
        %v6308 = vld [vmem:[#allocation3 + $0x100] sm:$0xff]
        %v6309 = vld [vmem:[#allocation3 + $0x108] sm:$0xff]
        %v6310 = vld [vmem:[#allocation3 + $0x110] sm:$0xff]
        %v6311 = vld [vmem:[#allocation3 + $0x118] sm:$0xff]
        %v6312 = vld [vmem:[#allocation3 + $0x120] sm:$0xff]
        %v6313 = vld [vmem:[#allocation3 + $0x128] sm:$0xff]
        %v6314 = vld [vmem:[#allocation3 + $0x130] sm:$0xff]
        %v6315 = vld [vmem:[#allocation3 + $0x138] sm:$0xff]
        %v6316 = vld [vmem:[#allocation3 + $0x140] sm:$0xff]
        %v6317 = vld [vmem:[#allocation3 + $0x148] sm:$0xff]
        %v6318 = vld [vmem:[#allocation3 + $0x150] sm:$0xff]
        %v6319 = vld [vmem:[#allocation3 + $0x158] sm:$0xff]
        %v6320 = vld [vmem:[#allocation3 + $0x160] sm:$0xff]
        %v6321 = vld [vmem:[#allocation3 + $0x168] sm:$0xff]
        %v6322 = vld [vmem:[#allocation3 + $0x170] sm:$0xff]
        %v6323 = vld [vmem:[#allocation3 + $0x178] sm:$0xff]
        %v6324 = vld [vmem:[#allocation3 + $0x180] sm:$0xff]
        %v6325 = vld [vmem:[#allocation3 + $0x188] sm:$0xff]
        %v6326 = vld [vmem:[#allocation3 + $0x190] sm:$0xff]
        %v6327 = vld [vmem:[#allocation3 + $0x198] sm:$0xff]
        %v6328 = vld [vmem:[#allocation3 + $0x1a0] sm:$0xff]
        %v6329 = vld [vmem:[#allocation3 + $0x1a8] sm:$0xff]
        %v6330 = vld [vmem:[#allocation3 + $0x1b0] sm:$0xff]
        %v6331 = vld [vmem:[#allocation3 + $0x1b8] sm:$0xff]
        %v6332 = vld [vmem:[#allocation3 + $0x1c0] sm:$0xff]
        %v6333 = vld [vmem:[#allocation3 + $0x1c8] sm:$0xff]
        %v6334 = vld [vmem:[#allocation3 + $0x1d0] sm:$0xff]
        %v6335 = vld [vmem:[#allocation3 + $0x1d8] sm:$0xff]
        %v6336 = vld [vmem:[#allocation3 + $0x1e0] sm:$0xff]
        %v6337 = vld [vmem:[#allocation3 + $0x1e8] sm:$0xff]
        %v6338 = vld [vmem:[#allocation3 + $0x1f0] sm:$0xff]
        %v6339 = vld [vmem:[#allocation3 + $0x1f8] sm:$0xff]
        %v6340 = vadd.f32 %v6276, %v6085
        %v6341 = vadd.f32 %v6277, %v6088
        %v6342 = vadd.f32 %v6278, %v6091
        %v6343 = vadd.f32 %v6279, %v6094
        %v6344 = vadd.f32 %v6280, %v6097
        %v6345 = vadd.f32 %v6281, %v6100
        %v6346 = vadd.f32 %v6282, %v6103
        %v6347 = vadd.f32 %v6283, %v6106
        %v6348 = vadd.f32 %v6284, %v6109
        %v6349 = vadd.f32 %v6285, %v6112
        %v6350 = vadd.f32 %v6286, %v6115
        %v6351 = vadd.f32 %v6287, %v6118
        %v6352 = vadd.f32 %v6288, %v6121
        %v6353 = vadd.f32 %v6289, %v6124
        %v6354 = vadd.f32 %v6290, %v6127
        %v6355 = vadd.f32 %v6291, %v6130
        %v6356 = vadd.f32 %v6292, %v6133
        %v6357 = vadd.f32 %v6293, %v6136
        %v6358 = vadd.f32 %v6294, %v6139
        %v6359 = vadd.f32 %v6295, %v6142
        %v6360 = vadd.f32 %v6296, %v6145
        %v6361 = vadd.f32 %v6297, %v6148
        %v6362 = vadd.f32 %v6298, %v6151
        %v6363 = vadd.f32 %v6299, %v6154
        %v6364 = vadd.f32 %v6300, %v6157
        %v6365 = vadd.f32 %v6301, %v6160
        %v6366 = vadd.f32 %v6302, %v6163
        %v6367 = vadd.f32 %v6303, %v6166
        %v6368 = vadd.f32 %v6304, %v6169
        %v6369 = vadd.f32 %v6305, %v6172
        %v6370 = vadd.f32 %v6306, %v6175
        %v6371 = vadd.f32 %v6307, %v6178
        %v6372 = vadd.f32 %v6308, %v6181
        %v6373 = vadd.f32 %v6309, %v6184
        %v6374 = vadd.f32 %v6310, %v6187
        %v6375 = vadd.f32 %v6311, %v6190
        %v6376 = vadd.f32 %v6312, %v6193
        %v6377 = vadd.f32 %v6313, %v6196
        %v6378 = vadd.f32 %v6314, %v6199
        %v6379 = vadd.f32 %v6315, %v6202
        %v6380 = vadd.f32 %v6316, %v6205
        %v6381 = vadd.f32 %v6317, %v6208
        %v6382 = vadd.f32 %v6318, %v6211
        %v6383 = vadd.f32 %v6319, %v6214
        %v6384 = vadd.f32 %v6320, %v6217
        %v6385 = vadd.f32 %v6321, %v6220
        %v6386 = vadd.f32 %v6322, %v6223
        %v6387 = vadd.f32 %v6323, %v6226
        %v6388 = vadd.f32 %v6324, %v6229
        %v6389 = vadd.f32 %v6325, %v6232
        %v6390 = vadd.f32 %v6326, %v6235
        %v6391 = vadd.f32 %v6327, %v6238
        %v6392 = vadd.f32 %v6328, %v6241
        %v6393 = vadd.f32 %v6329, %v6244
        %v6394 = vadd.f32 %v6330, %v6247
        %v6395 = vadd.f32 %v6331, %v6250
        %v6396 = vadd.f32 %v6332, %v6253
        %v6397 = vadd.f32 %v6333, %v6256
        %v6398 = vadd.f32 %v6334, %v6259
        %v6399 = vadd.f32 %v6335, %v6262
        %v6400 = vadd.f32 %v6336, %v6265
        %v6401 = vadd.f32 %v6337, %v6268
        %v6402 = vadd.f32 %v6338, %v6271
        %v6403 = vadd.f32 %v6339, %v6274
        %6404 = vst.msk [vmem:[#allocation3] sm:$0xff] %vm1361, %v6340
        %6405 = vst.msk [vmem:[#allocation3 + $0x8] sm:$0xff] %vm1361, %v6341
        %6406 = vst.msk [vmem:[#allocation3 + $0x10] sm:$0xff] %vm1361, %v6342
        %6407 = vst.msk [vmem:[#allocation3 + $0x18] sm:$0xff] %vm1361, %v6343
        %6408 = vst.msk [vmem:[#allocation3 + $0x20] sm:$0xff] %vm1361, %v6344
        %6409 = vst.msk [vmem:[#allocation3 + $0x28] sm:$0xff] %vm1361, %v6345
        %6410 = vst.msk [vmem:[#allocation3 + $0x30] sm:$0xff] %vm1361, %v6346
        %6411 = vst.msk [vmem:[#allocation3 + $0x38] sm:$0xff] %vm1361, %v6347
        %6412 = vst.msk [vmem:[#allocation3 + $0x40] sm:$0xff] %vm1361, %v6348
        %6413 = vst.msk [vmem:[#allocation3 + $0x48] sm:$0xff] %vm1361, %v6349
        %6414 = vst.msk [vmem:[#allocation3 + $0x50] sm:$0xff] %vm1361, %v6350
        %6415 = vst.msk [vmem:[#allocation3 + $0x58] sm:$0xff] %vm1361, %v6351
        %6416 = vst.msk [vmem:[#allocation3 + $0x60] sm:$0xff] %vm1361, %v6352
        %6417 = vst.msk [vmem:[#allocation3 + $0x68] sm:$0xff] %vm1361, %v6353
        %6418 = vst.msk [vmem:[#allocation3 + $0x70] sm:$0xff] %vm1361, %v6354
        %6419 = vst.msk [vmem:[#allocation3 + $0x78] sm:$0xff] %vm1361, %v6355
        %6420 = vst.msk [vmem:[#allocation3 + $0x80] sm:$0xff] %vm1361, %v6356
        %6421 = vst.msk [vmem:[#allocation3 + $0x88] sm:$0xff] %vm1361, %v6357
        %6422 = vst.msk [vmem:[#allocation3 + $0x90] sm:$0xff] %vm1361, %v6358
        %6423 = vst.msk [vmem:[#allocation3 + $0x98] sm:$0xff] %vm1361, %v6359
        %6424 = vst.msk [vmem:[#allocation3 + $0xa0] sm:$0xff] %vm1361, %v6360
        %6425 = vst.msk [vmem:[#allocation3 + $0xa8] sm:$0xff] %vm1361, %v6361
        %6426 = vst.msk [vmem:[#allocation3 + $0xb0] sm:$0xff] %vm1361, %v6362
        %6427 = vst.msk [vmem:[#allocation3 + $0xb8] sm:$0xff] %vm1361, %v6363
        %6428 = vst.msk [vmem:[#allocation3 + $0xc0] sm:$0xff] %vm1361, %v6364
        %6429 = vst.msk [vmem:[#allocation3 + $0xc8] sm:$0xff] %vm1361, %v6365
        %6430 = vst.msk [vmem:[#allocation3 + $0xd0] sm:$0xff] %vm1361, %v6366
        %6431 = vst.msk [vmem:[#allocation3 + $0xd8] sm:$0xff] %vm1361, %v6367
        %6432 = vst.msk [vmem:[#allocation3 + $0xe0] sm:$0xff] %vm1361, %v6368
        %6433 = vst.msk [vmem:[#allocation3 + $0xe8] sm:$0xff] %vm1361, %v6369
        %6434 = vst.msk [vmem:[#allocation3 + $0xf0] sm:$0xff] %vm1361, %v6370
        %6435 = vst.msk [vmem:[#allocation3 + $0xf8] sm:$0xff] %vm1361, %v6371
        %6436 = vst.msk [vmem:[#allocation3 + $0x100] sm:$0xff] %vm1361, %v6372
        %6437 = vst.msk [vmem:[#allocation3 + $0x108] sm:$0xff] %vm1361, %v6373
        %6438 = vst.msk [vmem:[#allocation3 + $0x110] sm:$0xff] %vm1361, %v6374
        %6439 = vst.msk [vmem:[#allocation3 + $0x118] sm:$0xff] %vm1361, %v6375
        %6440 = vst.msk [vmem:[#allocation3 + $0x120] sm:$0xff] %vm1361, %v6376
        %6441 = vst.msk [vmem:[#allocation3 + $0x128] sm:$0xff] %vm1361, %v6377
        %6442 = vst.msk [vmem:[#allocation3 + $0x130] sm:$0xff] %vm1361, %v6378
        %6443 = vst.msk [vmem:[#allocation3 + $0x138] sm:$0xff] %vm1361, %v6379
        %6444 = vst.msk [vmem:[#allocation3 + $0x140] sm:$0xff] %vm1361, %v6380
        %6445 = vst.msk [vmem:[#allocation3 + $0x148] sm:$0xff] %vm1361, %v6381
        %6446 = vst.msk [vmem:[#allocation3 + $0x150] sm:$0xff] %vm1361, %v6382
        %6447 = vst.msk [vmem:[#allocation3 + $0x158] sm:$0xff] %vm1361, %v6383
        %6448 = vst.msk [vmem:[#allocation3 + $0x160] sm:$0xff] %vm1361, %v6384
        %6449 = vst.msk [vmem:[#allocation3 + $0x168] sm:$0xff] %vm1361, %v6385
        %6450 = vst.msk [vmem:[#allocation3 + $0x170] sm:$0xff] %vm1361, %v6386
        %6451 = vst.msk [vmem:[#allocation3 + $0x178] sm:$0xff] %vm1361, %v6387
        %6452 = vst.msk [vmem:[#allocation3 + $0x180] sm:$0xff] %vm1361, %v6388
        %6453 = vst.msk [vmem:[#allocation3 + $0x188] sm:$0xff] %vm1361, %v6389
        %6454 = vst.msk [vmem:[#allocation3 + $0x190] sm:$0xff] %vm1361, %v6390
        %6455 = vst.msk [vmem:[#allocation3 + $0x198] sm:$0xff] %vm1361, %v6391
        %6456 = vst.msk [vmem:[#allocation3 + $0x1a0] sm:$0xff] %vm1361, %v6392
        %6457 = vst.msk [vmem:[#allocation3 + $0x1a8] sm:$0xff] %vm1361, %v6393
        %6458 = vst.msk [vmem:[#allocation3 + $0x1b0] sm:$0xff] %vm1361, %v6394
        %6459 = vst.msk [vmem:[#allocation3 + $0x1b8] sm:$0xff] %vm1361, %v6395
        %6460 = vst.msk [vmem:[#allocation3 + $0x1c0] sm:$0xff] %vm1361, %v6396
        %6461 = vst.msk [vmem:[#allocation3 + $0x1c8] sm:$0xff] %vm1361, %v6397
        %6462 = vst.msk [vmem:[#allocation3 + $0x1d0] sm:$0xff] %vm1361, %v6398
        %6463 = vst.msk [vmem:[#allocation3 + $0x1d8] sm:$0xff] %vm1361, %v6399
        %6464 = vst.msk [vmem:[#allocation3 + $0x1e0] sm:$0xff] %vm1361, %v6400
        %6465 = vst.msk [vmem:[#allocation3 + $0x1e8] sm:$0xff] %vm1361, %v6401
        %6466 = vst.msk [vmem:[#allocation3 + $0x1f0] sm:$0xff] %vm1361, %v6402
        %6467 = vst.msk [vmem:[#allocation3 + $0x1f8] sm:$0xff] %vm1361, %v6403
        %s6468 = scalar_lea.vmem [#allocation2], 176
        %v6469 = vld [vmem:[%s6468] sm:$0xff]
        %v6470 = vld [vmem:[%s6468 + $0x8] sm:$0xff]
        %v6471 = vld [vmem:[%s6468 + $0x10] sm:$0xff]
        %v6472 = vld [vmem:[%s6468 + $0x18] sm:$0xff]
        %v6473 = vld [vmem:[%s6468 + $0x20] sm:$0xff]
        %v6474 = vld [vmem:[%s6468 + $0x28] sm:$0xff]
        %v6475 = vld [vmem:[%s6468 + $0x30] sm:$0xff]
        %v6476 = vld [vmem:[%s6468 + $0x38] sm:$0xff]
        %v6477 = vld [vmem:[%s6468 + $0x50] sm:$0xff]
        %v6478 = vld [vmem:[%s6468 + $0x58] sm:$0xff]
        %v6479 = vld [vmem:[%s6468 + $0x60] sm:$0xff]
        %v6480 = vld [vmem:[%s6468 + $0x68] sm:$0xff]
        %v6481 = vld [vmem:[%s6468 + $0x70] sm:$0xff]
        %v6482 = vld [vmem:[%s6468 + $0x78] sm:$0xff]
        %v6483 = vld [vmem:[%s6468 + $0x80] sm:$0xff]
        %v6484 = vld [vmem:[%s6468 + $0x88] sm:$0xff]
        %v6485 = vld [vmem:[%s6468 + $0xa0] sm:$0xff]
        %v6486 = vld [vmem:[%s6468 + $0xa8] sm:$0xff]
        %v6487 = vld [vmem:[%s6468 + $0xb0] sm:$0xff]
        %v6488 = vld [vmem:[%s6468 + $0xb8] sm:$0xff]
        %v6489 = vld [vmem:[%s6468 + $0xc0] sm:$0xff]
        %v6490 = vld [vmem:[%s6468 + $0xc8] sm:$0xff]
        %v6491 = vld [vmem:[%s6468 + $0xd0] sm:$0xff]
        %v6492 = vld [vmem:[%s6468 + $0xd8] sm:$0xff]
        %v6493 = vld [vmem:[%s6468 + $0xf0] sm:$0xff]
        %v6494 = vld [vmem:[%s6468 + $0xf8] sm:$0xff]
        %v6495 = vld [vmem:[%s6468 + $0x100] sm:$0xff]
        %v6496 = vld [vmem:[%s6468 + $0x108] sm:$0xff]
        %v6497 = vld [vmem:[%s6468 + $0x110] sm:$0xff]
        %v6498 = vld [vmem:[%s6468 + $0x118] sm:$0xff]
        %v6499 = vld [vmem:[%s6468 + $0x120] sm:$0xff]
        %v6500 = vld [vmem:[%s6468 + $0x128] sm:$0xff]
        %v6501 = vld [vmem:[%s6468 + $0x140] sm:$0xff]
        %v6502 = vld [vmem:[%s6468 + $0x148] sm:$0xff]
        %v6503 = vld [vmem:[%s6468 + $0x150] sm:$0xff]
        %v6504 = vld [vmem:[%s6468 + $0x158] sm:$0xff]
        %v6505 = vld [vmem:[%s6468 + $0x160] sm:$0xff]
        %v6506 = vld [vmem:[%s6468 + $0x168] sm:$0xff]
        %v6507 = vld [vmem:[%s6468 + $0x170] sm:$0xff]
        %v6508 = vld [vmem:[%s6468 + $0x178] sm:$0xff]
        %v6509 = vld [vmem:[%s6468 + $0x190] sm:$0xff]
        %v6510 = vld [vmem:[%s6468 + $0x198] sm:$0xff]
        %v6511 = vld [vmem:[%s6468 + $0x1a0] sm:$0xff]
        %v6512 = vld [vmem:[%s6468 + $0x1a8] sm:$0xff]
        %v6513 = vld [vmem:[%s6468 + $0x1b0] sm:$0xff]
        %v6514 = vld [vmem:[%s6468 + $0x1b8] sm:$0xff]
        %v6515 = vld [vmem:[%s6468 + $0x1c0] sm:$0xff]
        %v6516 = vld [vmem:[%s6468 + $0x1c8] sm:$0xff]
        %v6517 = vld [vmem:[%s6468 + $0x1e0] sm:$0xff]
        %v6518 = vld [vmem:[%s6468 + $0x1e8] sm:$0xff]
        %v6519 = vld [vmem:[%s6468 + $0x1f0] sm:$0xff]
        %v6520 = vld [vmem:[%s6468 + $0x1f8] sm:$0xff]
        %v6521 = vld [vmem:[%s6468 + $0x200] sm:$0xff]
        %v6522 = vld [vmem:[%s6468 + $0x208] sm:$0xff]
        %v6523 = vld [vmem:[%s6468 + $0x210] sm:$0xff]
        %v6524 = vld [vmem:[%s6468 + $0x218] sm:$0xff]
        %v6525 = vld [vmem:[%s6468 + $0x230] sm:$0xff]
        %v6526 = vld [vmem:[%s6468 + $0x238] sm:$0xff]
        %v6527 = vld [vmem:[%s6468 + $0x240] sm:$0xff]
        %v6528 = vld [vmem:[%s6468 + $0x248] sm:$0xff]
        %v6529 = vld [vmem:[%s6468 + $0x250] sm:$0xff]
        %v6530 = vld [vmem:[%s6468 + $0x258] sm:$0xff]
        %v6531 = vld [vmem:[%s6468 + $0x260] sm:$0xff]
        %v6532 = vld [vmem:[%s6468 + $0x268] sm:$0xff]
        %s6533 = scalar_lea.vmem %s627, 256
        %v6534 = vld [vmem:[%s6533] sm:$0xff]
        %v6535 = vld [vmem:[%s6533 + $0x8] sm:$0xff]
        %v6536 = vld [vmem:[%s6533 + $0x10] sm:$0xff]
        %v6537 = vld [vmem:[%s6533 + $0x18] sm:$0xff]
        %v6539 = vsel %vm1361, %v6469, 0
        %v6542 = vsel %vm1361, %v6470, 0
        %v6545 = vsel %vm1361, %v6471, 0
        %v6548 = vsel %vm1361, %v6472, 0
        %v6551 = vsel %vm1361, %v6473, 0
        %v6554 = vsel %vm1361, %v6474, 0
        %v6557 = vsel %vm1361, %v6475, 0
        %v6560 = vsel %vm1361, %v6476, 0
        %v6563 = vsel %vm1361, %v6477, 0
        %v6566 = vsel %vm1361, %v6478, 0
        %v6569 = vsel %vm1361, %v6479, 0
        %v6572 = vsel %vm1361, %v6480, 0
        %v6575 = vsel %vm1361, %v6481, 0
        %v6578 = vsel %vm1361, %v6482, 0
        %v6581 = vsel %vm1361, %v6483, 0
        %v6584 = vsel %vm1361, %v6484, 0
        %v6587 = vsel %vm1361, %v6485, 0
        %v6590 = vsel %vm1361, %v6486, 0
        %v6593 = vsel %vm1361, %v6487, 0
        %v6596 = vsel %vm1361, %v6488, 0
        %v6599 = vsel %vm1361, %v6489, 0
        %v6602 = vsel %vm1361, %v6490, 0
        %v6605 = vsel %vm1361, %v6491, 0
        %v6608 = vsel %vm1361, %v6492, 0
        %v6611 = vsel %vm1361, %v6493, 0
        %v6614 = vsel %vm1361, %v6494, 0
        %v6617 = vsel %vm1361, %v6495, 0
        %v6620 = vsel %vm1361, %v6496, 0
        %v6623 = vsel %vm1361, %v6497, 0
        %v6626 = vsel %vm1361, %v6498, 0
        %v6629 = vsel %vm1361, %v6499, 0
        %v6632 = vsel %vm1361, %v6500, 0
        %v6635 = vsel %vm1361, %v6501, 0
        %v6638 = vsel %vm1361, %v6502, 0
        %v6641 = vsel %vm1361, %v6503, 0
        %v6644 = vsel %vm1361, %v6504, 0
        %v6647 = vsel %vm1361, %v6505, 0
        %v6650 = vsel %vm1361, %v6506, 0
        %v6653 = vsel %vm1361, %v6507, 0
        %v6656 = vsel %vm1361, %v6508, 0
        %v6659 = vsel %vm1361, %v6509, 0
        %v6662 = vsel %vm1361, %v6510, 0
        %v6665 = vsel %vm1361, %v6511, 0
        %v6668 = vsel %vm1361, %v6512, 0
        %v6671 = vsel %vm1361, %v6513, 0
        %v6674 = vsel %vm1361, %v6514, 0
        %v6677 = vsel %vm1361, %v6515, 0
        %v6680 = vsel %vm1361, %v6516, 0
        %v6683 = vsel %vm1361, %v6517, 0
        %v6686 = vsel %vm1361, %v6518, 0
        %v6689 = vsel %vm1361, %v6519, 0
        %v6692 = vsel %vm1361, %v6520, 0
        %v6695 = vsel %vm1361, %v6521, 0
        %v6698 = vsel %vm1361, %v6522, 0
        %v6701 = vsel %vm1361, %v6523, 0
        %v6704 = vsel %vm1361, %v6524, 0
        %v6707 = vsel %vm1361, %v6525, 0
        %v6710 = vsel %vm1361, %v6526, 0
        %v6713 = vsel %vm1361, %v6527, 0
        %v6716 = vsel %vm1361, %v6528, 0
        %v6719 = vsel %vm1361, %v6529, 0
        %v6722 = vsel %vm1361, %v6530, 0
        %v6725 = vsel %vm1361, %v6531, 0
        %v6728 = vsel %vm1361, %v6532, 0
        %6730 = vmatpush.msra.mxu0 0.0
        %6731 = vmatpush.msra.mxu0 0.0
        %6732 = vmatpush.msra.mxu0 0.0
        %6733 = vmatpush.msra.mxu0 0.0
        %6734 = vmatpush.msra.mxu0 0.0
        %6735 = vmatpush.msra.mxu0 0.0
        %6736 = vmatpush.msra.mxu0 0.0
        %6737 = vmatpush.msra.mxu0 0.0
        %6738 = vmatpush.msra.mxu0 0.0
        %6739 = vmatpush.msra.mxu0 0.0
        %6740 = vmatpush.msra.mxu0 0.0
        %6741 = vmatpush.msra.mxu0 0.0
        %6742 = vmatpush.msra.mxu0 %v6537
        %6743 = vmatpush.msra.mxu0 %v6536
        %6744 = vmatpush.msra.mxu0 %v6535
        %6745 = vmatpush.msra.mxu0 %v6534
        %6746 = vmatmul.f32.gmra.mxu0 %v6539
        %v6747 = vpop.f32.mrf.mxu0
        %v6748 = vadd.f32 0.0, %v6747
        %6749 = vmatmul.f32.gmra.mxu0 %v6542
        %v6750 = vpop.f32.mrf.mxu0
        %v6751 = vadd.f32 0.0, %v6750
        %6752 = vmatmul.f32.gmra.mxu0 %v6545
        %v6753 = vpop.f32.mrf.mxu0
        %v6754 = vadd.f32 0.0, %v6753
        %6755 = vmatmul.f32.gmra.mxu0 %v6548
        %v6756 = vpop.f32.mrf.mxu0
        %v6757 = vadd.f32 0.0, %v6756
        %6758 = vmatmul.f32.gmra.mxu0 %v6551
        %v6759 = vpop.f32.mrf.mxu0
        %v6760 = vadd.f32 0.0, %v6759
        %6761 = vmatmul.f32.gmra.mxu0 %v6554
        %v6762 = vpop.f32.mrf.mxu0
        %v6763 = vadd.f32 0.0, %v6762
        %6764 = vmatmul.f32.gmra.mxu0 %v6557
        %v6765 = vpop.f32.mrf.mxu0
        %v6766 = vadd.f32 0.0, %v6765
        %6767 = vmatmul.f32.gmra.mxu0 %v6560
        %v6768 = vpop.f32.mrf.mxu0
        %v6769 = vadd.f32 0.0, %v6768
        %6770 = vmatmul.f32.gmra.mxu0 %v6563
        %v6771 = vpop.f32.mrf.mxu0
        %v6772 = vadd.f32 0.0, %v6771
        %6773 = vmatmul.f32.gmra.mxu0 %v6566
        %v6774 = vpop.f32.mrf.mxu0
        %v6775 = vadd.f32 0.0, %v6774
        %6776 = vmatmul.f32.gmra.mxu0 %v6569
        %v6777 = vpop.f32.mrf.mxu0
        %v6778 = vadd.f32 0.0, %v6777
        %6779 = vmatmul.f32.gmra.mxu0 %v6572
        %v6780 = vpop.f32.mrf.mxu0
        %v6781 = vadd.f32 0.0, %v6780
        %6782 = vmatmul.f32.gmra.mxu0 %v6575
        %v6783 = vpop.f32.mrf.mxu0
        %v6784 = vadd.f32 0.0, %v6783
        %6785 = vmatmul.f32.gmra.mxu0 %v6578
        %v6786 = vpop.f32.mrf.mxu0
        %v6787 = vadd.f32 0.0, %v6786
        %6788 = vmatmul.f32.gmra.mxu0 %v6581
        %v6789 = vpop.f32.mrf.mxu0
        %v6790 = vadd.f32 0.0, %v6789
        %6791 = vmatmul.f32.gmra.mxu0 %v6584
        %v6792 = vpop.f32.mrf.mxu0
        %v6793 = vadd.f32 0.0, %v6792
        %6794 = vmatmul.f32.gmra.mxu0 %v6587
        %v6795 = vpop.f32.mrf.mxu0
        %v6796 = vadd.f32 0.0, %v6795
        %6797 = vmatmul.f32.gmra.mxu0 %v6590
        %v6798 = vpop.f32.mrf.mxu0
        %v6799 = vadd.f32 0.0, %v6798
        %6800 = vmatmul.f32.gmra.mxu0 %v6593
        %v6801 = vpop.f32.mrf.mxu0
        %v6802 = vadd.f32 0.0, %v6801
        %6803 = vmatmul.f32.gmra.mxu0 %v6596
        %v6804 = vpop.f32.mrf.mxu0
        %v6805 = vadd.f32 0.0, %v6804
        %6806 = vmatmul.f32.gmra.mxu0 %v6599
        %v6807 = vpop.f32.mrf.mxu0
        %v6808 = vadd.f32 0.0, %v6807
        %6809 = vmatmul.f32.gmra.mxu0 %v6602
        %v6810 = vpop.f32.mrf.mxu0
        %v6811 = vadd.f32 0.0, %v6810
        %6812 = vmatmul.f32.gmra.mxu0 %v6605
        %v6813 = vpop.f32.mrf.mxu0
        %v6814 = vadd.f32 0.0, %v6813
        %6815 = vmatmul.f32.gmra.mxu0 %v6608
        %v6816 = vpop.f32.mrf.mxu0
        %v6817 = vadd.f32 0.0, %v6816
        %6818 = vmatmul.f32.gmra.mxu0 %v6611
        %v6819 = vpop.f32.mrf.mxu0
        %v6820 = vadd.f32 0.0, %v6819
        %6821 = vmatmul.f32.gmra.mxu0 %v6614
        %v6822 = vpop.f32.mrf.mxu0
        %v6823 = vadd.f32 0.0, %v6822
        %6824 = vmatmul.f32.gmra.mxu0 %v6617
        %v6825 = vpop.f32.mrf.mxu0
        %v6826 = vadd.f32 0.0, %v6825
        %6827 = vmatmul.f32.gmra.mxu0 %v6620
        %v6828 = vpop.f32.mrf.mxu0
        %v6829 = vadd.f32 0.0, %v6828
        %6830 = vmatmul.f32.gmra.mxu0 %v6623
        %v6831 = vpop.f32.mrf.mxu0
        %v6832 = vadd.f32 0.0, %v6831
        %6833 = vmatmul.f32.gmra.mxu0 %v6626
        %v6834 = vpop.f32.mrf.mxu0
        %v6835 = vadd.f32 0.0, %v6834
        %6836 = vmatmul.f32.gmra.mxu0 %v6629
        %v6837 = vpop.f32.mrf.mxu0
        %v6838 = vadd.f32 0.0, %v6837
        %6839 = vmatmul.f32.gmra.mxu0 %v6632
        %v6840 = vpop.f32.mrf.mxu0
        %v6841 = vadd.f32 0.0, %v6840
        %6842 = vmatmul.f32.gmra.mxu0 %v6635
        %v6843 = vpop.f32.mrf.mxu0
        %v6844 = vadd.f32 0.0, %v6843
        %6845 = vmatmul.f32.gmra.mxu0 %v6638
        %v6846 = vpop.f32.mrf.mxu0
        %v6847 = vadd.f32 0.0, %v6846
        %6848 = vmatmul.f32.gmra.mxu0 %v6641
        %v6849 = vpop.f32.mrf.mxu0
        %v6850 = vadd.f32 0.0, %v6849
        %6851 = vmatmul.f32.gmra.mxu0 %v6644
        %v6852 = vpop.f32.mrf.mxu0
        %v6853 = vadd.f32 0.0, %v6852
        %6854 = vmatmul.f32.gmra.mxu0 %v6647
        %v6855 = vpop.f32.mrf.mxu0
        %v6856 = vadd.f32 0.0, %v6855
        %6857 = vmatmul.f32.gmra.mxu0 %v6650
        %v6858 = vpop.f32.mrf.mxu0
        %v6859 = vadd.f32 0.0, %v6858
        %6860 = vmatmul.f32.gmra.mxu0 %v6653
        %v6861 = vpop.f32.mrf.mxu0
        %v6862 = vadd.f32 0.0, %v6861
        %6863 = vmatmul.f32.gmra.mxu0 %v6656
        %v6864 = vpop.f32.mrf.mxu0
        %v6865 = vadd.f32 0.0, %v6864
        %6866 = vmatmul.f32.gmra.mxu0 %v6659
        %v6867 = vpop.f32.mrf.mxu0
        %v6868 = vadd.f32 0.0, %v6867
        %6869 = vmatmul.f32.gmra.mxu0 %v6662
        %v6870 = vpop.f32.mrf.mxu0
        %v6871 = vadd.f32 0.0, %v6870
        %6872 = vmatmul.f32.gmra.mxu0 %v6665
        %v6873 = vpop.f32.mrf.mxu0
        %v6874 = vadd.f32 0.0, %v6873
        %6875 = vmatmul.f32.gmra.mxu0 %v6668
        %v6876 = vpop.f32.mrf.mxu0
        %v6877 = vadd.f32 0.0, %v6876
        %6878 = vmatmul.f32.gmra.mxu0 %v6671
        %v6879 = vpop.f32.mrf.mxu0
        %v6880 = vadd.f32 0.0, %v6879
        %6881 = vmatmul.f32.gmra.mxu0 %v6674
        %v6882 = vpop.f32.mrf.mxu0
        %v6883 = vadd.f32 0.0, %v6882
        %6884 = vmatmul.f32.gmra.mxu0 %v6677
        %v6885 = vpop.f32.mrf.mxu0
        %v6886 = vadd.f32 0.0, %v6885
        %6887 = vmatmul.f32.gmra.mxu0 %v6680
        %v6888 = vpop.f32.mrf.mxu0
        %v6889 = vadd.f32 0.0, %v6888
        %6890 = vmatmul.f32.gmra.mxu0 %v6683
        %v6891 = vpop.f32.mrf.mxu0
        %v6892 = vadd.f32 0.0, %v6891
        %6893 = vmatmul.f32.gmra.mxu0 %v6686
        %v6894 = vpop.f32.mrf.mxu0
        %v6895 = vadd.f32 0.0, %v6894
        %6896 = vmatmul.f32.gmra.mxu0 %v6689
        %v6897 = vpop.f32.mrf.mxu0
        %v6898 = vadd.f32 0.0, %v6897
        %6899 = vmatmul.f32.gmra.mxu0 %v6692
        %v6900 = vpop.f32.mrf.mxu0
        %v6901 = vadd.f32 0.0, %v6900
        %6902 = vmatmul.f32.gmra.mxu0 %v6695
        %v6903 = vpop.f32.mrf.mxu0
        %v6904 = vadd.f32 0.0, %v6903
        %6905 = vmatmul.f32.gmra.mxu0 %v6698
        %v6906 = vpop.f32.mrf.mxu0
        %v6907 = vadd.f32 0.0, %v6906
        %6908 = vmatmul.f32.gmra.mxu0 %v6701
        %v6909 = vpop.f32.mrf.mxu0
        %v6910 = vadd.f32 0.0, %v6909
        %6911 = vmatmul.f32.gmra.mxu0 %v6704
        %v6912 = vpop.f32.mrf.mxu0
        %v6913 = vadd.f32 0.0, %v6912
        %6914 = vmatmul.f32.gmra.mxu0 %v6707
        %v6915 = vpop.f32.mrf.mxu0
        %v6916 = vadd.f32 0.0, %v6915
        %6917 = vmatmul.f32.gmra.mxu0 %v6710
        %v6918 = vpop.f32.mrf.mxu0
        %v6919 = vadd.f32 0.0, %v6918
        %6920 = vmatmul.f32.gmra.mxu0 %v6713
        %v6921 = vpop.f32.mrf.mxu0
        %v6922 = vadd.f32 0.0, %v6921
        %6923 = vmatmul.f32.gmra.mxu0 %v6716
        %v6924 = vpop.f32.mrf.mxu0
        %v6925 = vadd.f32 0.0, %v6924
        %6926 = vmatmul.f32.gmra.mxu0 %v6719
        %v6927 = vpop.f32.mrf.mxu0
        %v6928 = vadd.f32 0.0, %v6927
        %6929 = vmatmul.f32.gmra.mxu0 %v6722
        %v6930 = vpop.f32.mrf.mxu0
        %v6931 = vadd.f32 0.0, %v6930
        %6932 = vmatmul.f32.gmra.mxu0 %v6725
        %v6933 = vpop.f32.mrf.mxu0
        %v6934 = vadd.f32 0.0, %v6933
        %6935 = vmatmul.f32.gmra.mxu0 %v6728
        %v6936 = vpop.f32.mrf.mxu0
        %v6937 = vadd.f32 0.0, %v6936
        %6938 = vdwg.mxu0
        %v6939 = vld [vmem:[#allocation3] sm:$0xff]
        %v6940 = vld [vmem:[#allocation3 + $0x8] sm:$0xff]
        %v6941 = vld [vmem:[#allocation3 + $0x10] sm:$0xff]
        %v6942 = vld [vmem:[#allocation3 + $0x18] sm:$0xff]
        %v6943 = vld [vmem:[#allocation3 + $0x20] sm:$0xff]
        %v6944 = vld [vmem:[#allocation3 + $0x28] sm:$0xff]
        %v6945 = vld [vmem:[#allocation3 + $0x30] sm:$0xff]
        %v6946 = vld [vmem:[#allocation3 + $0x38] sm:$0xff]
        %v6947 = vld [vmem:[#allocation3 + $0x40] sm:$0xff]
        %v6948 = vld [vmem:[#allocation3 + $0x48] sm:$0xff]
        %v6949 = vld [vmem:[#allocation3 + $0x50] sm:$0xff]
        %v6950 = vld [vmem:[#allocation3 + $0x58] sm:$0xff]
        %v6951 = vld [vmem:[#allocation3 + $0x60] sm:$0xff]
        %v6952 = vld [vmem:[#allocation3 + $0x68] sm:$0xff]
        %v6953 = vld [vmem:[#allocation3 + $0x70] sm:$0xff]
        %v6954 = vld [vmem:[#allocation3 + $0x78] sm:$0xff]
        %v6955 = vld [vmem:[#allocation3 + $0x80] sm:$0xff]
        %v6956 = vld [vmem:[#allocation3 + $0x88] sm:$0xff]
        %v6957 = vld [vmem:[#allocation3 + $0x90] sm:$0xff]
        %v6958 = vld [vmem:[#allocation3 + $0x98] sm:$0xff]
        %v6959 = vld [vmem:[#allocation3 + $0xa0] sm:$0xff]
        %v6960 = vld [vmem:[#allocation3 + $0xa8] sm:$0xff]
        %v6961 = vld [vmem:[#allocation3 + $0xb0] sm:$0xff]
        %v6962 = vld [vmem:[#allocation3 + $0xb8] sm:$0xff]
        %v6963 = vld [vmem:[#allocation3 + $0xc0] sm:$0xff]
        %v6964 = vld [vmem:[#allocation3 + $0xc8] sm:$0xff]
        %v6965 = vld [vmem:[#allocation3 + $0xd0] sm:$0xff]
        %v6966 = vld [vmem:[#allocation3 + $0xd8] sm:$0xff]
        %v6967 = vld [vmem:[#allocation3 + $0xe0] sm:$0xff]
        %v6968 = vld [vmem:[#allocation3 + $0xe8] sm:$0xff]
        %v6969 = vld [vmem:[#allocation3 + $0xf0] sm:$0xff]
        %v6970 = vld [vmem:[#allocation3 + $0xf8] sm:$0xff]
        %v6971 = vld [vmem:[#allocation3 + $0x100] sm:$0xff]
        %v6972 = vld [vmem:[#allocation3 + $0x108] sm:$0xff]
        %v6973 = vld [vmem:[#allocation3 + $0x110] sm:$0xff]
        %v6974 = vld [vmem:[#allocation3 + $0x118] sm:$0xff]
        %v6975 = vld [vmem:[#allocation3 + $0x120] sm:$0xff]
        %v6976 = vld [vmem:[#allocation3 + $0x128] sm:$0xff]
        %v6977 = vld [vmem:[#allocation3 + $0x130] sm:$0xff]
        %v6978 = vld [vmem:[#allocation3 + $0x138] sm:$0xff]
        %v6979 = vld [vmem:[#allocation3 + $0x140] sm:$0xff]
        %v6980 = vld [vmem:[#allocation3 + $0x148] sm:$0xff]
        %v6981 = vld [vmem:[#allocation3 + $0x150] sm:$0xff]
        %v6982 = vld [vmem:[#allocation3 + $0x158] sm:$0xff]
        %v6983 = vld [vmem:[#allocation3 + $0x160] sm:$0xff]
        %v6984 = vld [vmem:[#allocation3 + $0x168] sm:$0xff]
        %v6985 = vld [vmem:[#allocation3 + $0x170] sm:$0xff]
        %v6986 = vld [vmem:[#allocation3 + $0x178] sm:$0xff]
        %v6987 = vld [vmem:[#allocation3 + $0x180] sm:$0xff]
        %v6988 = vld [vmem:[#allocation3 + $0x188] sm:$0xff]
        %v6989 = vld [vmem:[#allocation3 + $0x190] sm:$0xff]
        %v6990 = vld [vmem:[#allocation3 + $0x198] sm:$0xff]
        %v6991 = vld [vmem:[#allocation3 + $0x1a0] sm:$0xff]
        %v6992 = vld [vmem:[#allocation3 + $0x1a8] sm:$0xff]
        %v6993 = vld [vmem:[#allocation3 + $0x1b0] sm:$0xff]
        %v6994 = vld [vmem:[#allocation3 + $0x1b8] sm:$0xff]
        %v6995 = vld [vmem:[#allocation3 + $0x1c0] sm:$0xff]
        %v6996 = vld [vmem:[#allocation3 + $0x1c8] sm:$0xff]
        %v6997 = vld [vmem:[#allocation3 + $0x1d0] sm:$0xff]
        %v6998 = vld [vmem:[#allocation3 + $0x1d8] sm:$0xff]
        %v6999 = vld [vmem:[#allocation3 + $0x1e0] sm:$0xff]
        %v7000 = vld [vmem:[#allocation3 + $0x1e8] sm:$0xff]
        %v7001 = vld [vmem:[#allocation3 + $0x1f0] sm:$0xff]
        %v7002 = vld [vmem:[#allocation3 + $0x1f8] sm:$0xff]
        %v7003 = vadd.f32 %v6939, %v6748
        %v7004 = vadd.f32 %v6940, %v6751
        %v7005 = vadd.f32 %v6941, %v6754
        %v7006 = vadd.f32 %v6942, %v6757
        %v7007 = vadd.f32 %v6943, %v6760
        %v7008 = vadd.f32 %v6944, %v6763
        %v7009 = vadd.f32 %v6945, %v6766
        %v7010 = vadd.f32 %v6946, %v6769
        %v7011 = vadd.f32 %v6947, %v6772
        %v7012 = vadd.f32 %v6948, %v6775
        %v7013 = vadd.f32 %v6949, %v6778
        %v7014 = vadd.f32 %v6950, %v6781
        %v7015 = vadd.f32 %v6951, %v6784
        %v7016 = vadd.f32 %v6952, %v6787
        %v7017 = vadd.f32 %v6953, %v6790
        %v7018 = vadd.f32 %v6954, %v6793
        %v7019 = vadd.f32 %v6955, %v6796
        %v7020 = vadd.f32 %v6956, %v6799
        %v7021 = vadd.f32 %v6957, %v6802
        %v7022 = vadd.f32 %v6958, %v6805
        %v7023 = vadd.f32 %v6959, %v6808
        %v7024 = vadd.f32 %v6960, %v6811
        %v7025 = vadd.f32 %v6961, %v6814
        %v7026 = vadd.f32 %v6962, %v6817
        %v7027 = vadd.f32 %v6963, %v6820
        %v7028 = vadd.f32 %v6964, %v6823
        %v7029 = vadd.f32 %v6965, %v6826
        %v7030 = vadd.f32 %v6966, %v6829
        %v7031 = vadd.f32 %v6967, %v6832
        %v7032 = vadd.f32 %v6968, %v6835
        %v7033 = vadd.f32 %v6969, %v6838
        %v7034 = vadd.f32 %v6970, %v6841
        %v7035 = vadd.f32 %v6971, %v6844
        %v7036 = vadd.f32 %v6972, %v6847
        %v7037 = vadd.f32 %v6973, %v6850
        %v7038 = vadd.f32 %v6974, %v6853
        %v7039 = vadd.f32 %v6975, %v6856
        %v7040 = vadd.f32 %v6976, %v6859
        %v7041 = vadd.f32 %v6977, %v6862
        %v7042 = vadd.f32 %v6978, %v6865
        %v7043 = vadd.f32 %v6979, %v6868
        %v7044 = vadd.f32 %v6980, %v6871
        %v7045 = vadd.f32 %v6981, %v6874
        %v7046 = vadd.f32 %v6982, %v6877
        %v7047 = vadd.f32 %v6983, %v6880
        %v7048 = vadd.f32 %v6984, %v6883
        %v7049 = vadd.f32 %v6985, %v6886
        %v7050 = vadd.f32 %v6986, %v6889
        %v7051 = vadd.f32 %v6987, %v6892
        %v7052 = vadd.f32 %v6988, %v6895
        %v7053 = vadd.f32 %v6989, %v6898
        %v7054 = vadd.f32 %v6990, %v6901
        %v7055 = vadd.f32 %v6991, %v6904
        %v7056 = vadd.f32 %v6992, %v6907
        %v7057 = vadd.f32 %v6993, %v6910
        %v7058 = vadd.f32 %v6994, %v6913
        %v7059 = vadd.f32 %v6995, %v6916
        %v7060 = vadd.f32 %v6996, %v6919
        %v7061 = vadd.f32 %v6997, %v6922
        %v7062 = vadd.f32 %v6998, %v6925
        %v7063 = vadd.f32 %v6999, %v6928
        %v7064 = vadd.f32 %v7000, %v6931
        %v7065 = vadd.f32 %v7001, %v6934
        %v7066 = vadd.f32 %v7002, %v6937
        %7067 = vst.msk [vmem:[#allocation3] sm:$0xff] %vm1361, %v7003
        %7068 = vst.msk [vmem:[#allocation3 + $0x8] sm:$0xff] %vm1361, %v7004
        %7069 = vst.msk [vmem:[#allocation3 + $0x10] sm:$0xff] %vm1361, %v7005
        %7070 = vst.msk [vmem:[#allocation3 + $0x18] sm:$0xff] %vm1361, %v7006
        %7071 = vst.msk [vmem:[#allocation3 + $0x20] sm:$0xff] %vm1361, %v7007
        %7072 = vst.msk [vmem:[#allocation3 + $0x28] sm:$0xff] %vm1361, %v7008
        %7073 = vst.msk [vmem:[#allocation3 + $0x30] sm:$0xff] %vm1361, %v7009
        %7074 = vst.msk [vmem:[#allocation3 + $0x38] sm:$0xff] %vm1361, %v7010
        %7075 = vst.msk [vmem:[#allocation3 + $0x40] sm:$0xff] %vm1361, %v7011
        %7076 = vst.msk [vmem:[#allocation3 + $0x48] sm:$0xff] %vm1361, %v7012
        %7077 = vst.msk [vmem:[#allocation3 + $0x50] sm:$0xff] %vm1361, %v7013
        %7078 = vst.msk [vmem:[#allocation3 + $0x58] sm:$0xff] %vm1361, %v7014
        %7079 = vst.msk [vmem:[#allocation3 + $0x60] sm:$0xff] %vm1361, %v7015
        %7080 = vst.msk [vmem:[#allocation3 + $0x68] sm:$0xff] %vm1361, %v7016
        %7081 = vst.msk [vmem:[#allocation3 + $0x70] sm:$0xff] %vm1361, %v7017
        %7082 = vst.msk [vmem:[#allocation3 + $0x78] sm:$0xff] %vm1361, %v7018
        %7083 = vst.msk [vmem:[#allocation3 + $0x80] sm:$0xff] %vm1361, %v7019
        %7084 = vst.msk [vmem:[#allocation3 + $0x88] sm:$0xff] %vm1361, %v7020
        %7085 = vst.msk [vmem:[#allocation3 + $0x90] sm:$0xff] %vm1361, %v7021
        %7086 = vst.msk [vmem:[#allocation3 + $0x98] sm:$0xff] %vm1361, %v7022
        %7087 = vst.msk [vmem:[#allocation3 + $0xa0] sm:$0xff] %vm1361, %v7023
        %7088 = vst.msk [vmem:[#allocation3 + $0xa8] sm:$0xff] %vm1361, %v7024
        %7089 = vst.msk [vmem:[#allocation3 + $0xb0] sm:$0xff] %vm1361, %v7025
        %7090 = vst.msk [vmem:[#allocation3 + $0xb8] sm:$0xff] %vm1361, %v7026
        %7091 = vst.msk [vmem:[#allocation3 + $0xc0] sm:$0xff] %vm1361, %v7027
        %7092 = vst.msk [vmem:[#allocation3 + $0xc8] sm:$0xff] %vm1361, %v7028
        %7093 = vst.msk [vmem:[#allocation3 + $0xd0] sm:$0xff] %vm1361, %v7029
        %7094 = vst.msk [vmem:[#allocation3 + $0xd8] sm:$0xff] %vm1361, %v7030
        %7095 = vst.msk [vmem:[#allocation3 + $0xe0] sm:$0xff] %vm1361, %v7031
        %7096 = vst.msk [vmem:[#allocation3 + $0xe8] sm:$0xff] %vm1361, %v7032
        %7097 = vst.msk [vmem:[#allocation3 + $0xf0] sm:$0xff] %vm1361, %v7033
        %7098 = vst.msk [vmem:[#allocation3 + $0xf8] sm:$0xff] %vm1361, %v7034
        %7099 = vst.msk [vmem:[#allocation3 + $0x100] sm:$0xff] %vm1361, %v7035
        %7100 = vst.msk [vmem:[#allocation3 + $0x108] sm:$0xff] %vm1361, %v7036
        %7101 = vst.msk [vmem:[#allocation3 + $0x110] sm:$0xff] %vm1361, %v7037
        %7102 = vst.msk [vmem:[#allocation3 + $0x118] sm:$0xff] %vm1361, %v7038
        %7103 = vst.msk [vmem:[#allocation3 + $0x120] sm:$0xff] %vm1361, %v7039
        %7104 = vst.msk [vmem:[#allocation3 + $0x128] sm:$0xff] %vm1361, %v7040
        %7105 = vst.msk [vmem:[#allocation3 + $0x130] sm:$0xff] %vm1361, %v7041
        %7106 = vst.msk [vmem:[#allocation3 + $0x138] sm:$0xff] %vm1361, %v7042
        %7107 = vst.msk [vmem:[#allocation3 + $0x140] sm:$0xff] %vm1361, %v7043
        %7108 = vst.msk [vmem:[#allocation3 + $0x148] sm:$0xff] %vm1361, %v7044
        %7109 = vst.msk [vmem:[#allocation3 + $0x150] sm:$0xff] %vm1361, %v7045
        %7110 = vst.msk [vmem:[#allocation3 + $0x158] sm:$0xff] %vm1361, %v7046
        %7111 = vst.msk [vmem:[#allocation3 + $0x160] sm:$0xff] %vm1361, %v7047
        %7112 = vst.msk [vmem:[#allocation3 + $0x168] sm:$0xff] %vm1361, %v7048
        %7113 = vst.msk [vmem:[#allocation3 + $0x170] sm:$0xff] %vm1361, %v7049
        %7114 = vst.msk [vmem:[#allocation3 + $0x178] sm:$0xff] %vm1361, %v7050
        %7115 = vst.msk [vmem:[#allocation3 + $0x180] sm:$0xff] %vm1361, %v7051
        %7116 = vst.msk [vmem:[#allocation3 + $0x188] sm:$0xff] %vm1361, %v7052
        %7117 = vst.msk [vmem:[#allocation3 + $0x190] sm:$0xff] %vm1361, %v7053
        %7118 = vst.msk [vmem:[#allocation3 + $0x198] sm:$0xff] %vm1361, %v7054
        %7119 = vst.msk [vmem:[#allocation3 + $0x1a0] sm:$0xff] %vm1361, %v7055
        %7120 = vst.msk [vmem:[#allocation3 + $0x1a8] sm:$0xff] %vm1361, %v7056
        %7121 = vst.msk [vmem:[#allocation3 + $0x1b0] sm:$0xff] %vm1361, %v7057
        %7122 = vst.msk [vmem:[#allocation3 + $0x1b8] sm:$0xff] %vm1361, %v7058
        %7123 = vst.msk [vmem:[#allocation3 + $0x1c0] sm:$0xff] %vm1361, %v7059
        %7124 = vst.msk [vmem:[#allocation3 + $0x1c8] sm:$0xff] %vm1361, %v7060
        %7125 = vst.msk [vmem:[#allocation3 + $0x1d0] sm:$0xff] %vm1361, %v7061
        %7126 = vst.msk [vmem:[#allocation3 + $0x1d8] sm:$0xff] %vm1361, %v7062
        %7127 = vst.msk [vmem:[#allocation3 + $0x1e0] sm:$0xff] %vm1361, %v7063
        %7128 = vst.msk [vmem:[#allocation3 + $0x1e8] sm:$0xff] %vm1361, %v7064
        %7129 = vst.msk [vmem:[#allocation3 + $0x1f0] sm:$0xff] %vm1361, %v7065
        %7130 = vst.msk [vmem:[#allocation3 + $0x1f8] sm:$0xff] %vm1361, %v7066
        %v7131 = vld [vmem:[#allocation3] sm:$0xff]
        %v7132 = vld [vmem:[#allocation3 + $0x8] sm:$0xff]
        %v7133 = vld [vmem:[#allocation3 + $0x10] sm:$0xff]
        %v7134 = vld [vmem:[#allocation3 + $0x18] sm:$0xff]
        %v7135 = vld [vmem:[#allocation3 + $0x20] sm:$0xff]
        %v7136 = vld [vmem:[#allocation3 + $0x28] sm:$0xff]
        %v7137 = vld [vmem:[#allocation3 + $0x30] sm:$0xff]
        %v7138 = vld [vmem:[#allocation3 + $0x38] sm:$0xff]
        %v7139 = vld [vmem:[#allocation3 + $0x40] sm:$0xff]
        %v7140 = vld [vmem:[#allocation3 + $0x48] sm:$0xff]
        %v7141 = vld [vmem:[#allocation3 + $0x50] sm:$0xff]
        %v7142 = vld [vmem:[#allocation3 + $0x58] sm:$0xff]
        %v7143 = vld [vmem:[#allocation3 + $0x60] sm:$0xff]
        %v7144 = vld [vmem:[#allocation3 + $0x68] sm:$0xff]
        %v7145 = vld [vmem:[#allocation3 + $0x70] sm:$0xff]
        %v7146 = vld [vmem:[#allocation3 + $0x78] sm:$0xff]
        %v7147 = vld [vmem:[#allocation3 + $0x80] sm:$0xff]
        %v7148 = vld [vmem:[#allocation3 + $0x88] sm:$0xff]
        %v7149 = vld [vmem:[#allocation3 + $0x90] sm:$0xff]
        %v7150 = vld [vmem:[#allocation3 + $0x98] sm:$0xff]
        %v7151 = vld [vmem:[#allocation3 + $0xa0] sm:$0xff]
        %v7152 = vld [vmem:[#allocation3 + $0xa8] sm:$0xff]
        %v7153 = vld [vmem:[#allocation3 + $0xb0] sm:$0xff]
        %v7154 = vld [vmem:[#allocation3 + $0xb8] sm:$0xff]
        %v7155 = vld [vmem:[#allocation3 + $0xc0] sm:$0xff]
        %v7156 = vld [vmem:[#allocation3 + $0xc8] sm:$0xff]
        %v7157 = vld [vmem:[#allocation3 + $0xd0] sm:$0xff]
        %v7158 = vld [vmem:[#allocation3 + $0xd8] sm:$0xff]
        %v7159 = vld [vmem:[#allocation3 + $0xe0] sm:$0xff]
        %v7160 = vld [vmem:[#allocation3 + $0xe8] sm:$0xff]
        %v7161 = vld [vmem:[#allocation3 + $0xf0] sm:$0xff]
        %v7162 = vld [vmem:[#allocation3 + $0xf8] sm:$0xff]
        %v7163 = vld [vmem:[#allocation3 + $0x100] sm:$0xff]
        %v7164 = vld [vmem:[#allocation3 + $0x108] sm:$0xff]
        %v7165 = vld [vmem:[#allocation3 + $0x110] sm:$0xff]
        %v7166 = vld [vmem:[#allocation3 + $0x118] sm:$0xff]
        %v7167 = vld [vmem:[#allocation3 + $0x120] sm:$0xff]
        %v7168 = vld [vmem:[#allocation3 + $0x128] sm:$0xff]
        %v7169 = vld [vmem:[#allocation3 + $0x130] sm:$0xff]
        %v7170 = vld [vmem:[#allocation3 + $0x138] sm:$0xff]
        %v7171 = vld [vmem:[#allocation3 + $0x140] sm:$0xff]
        %v7172 = vld [vmem:[#allocation3 + $0x148] sm:$0xff]
        %v7173 = vld [vmem:[#allocation3 + $0x150] sm:$0xff]
        %v7174 = vld [vmem:[#allocation3 + $0x158] sm:$0xff]
        %v7175 = vld [vmem:[#allocation3 + $0x160] sm:$0xff]
        %v7176 = vld [vmem:[#allocation3 + $0x168] sm:$0xff]
        %v7177 = vld [vmem:[#allocation3 + $0x170] sm:$0xff]
        %v7178 = vld [vmem:[#allocation3 + $0x178] sm:$0xff]
        %v7179 = vld [vmem:[#allocation3 + $0x180] sm:$0xff]
        %v7180 = vld [vmem:[#allocation3 + $0x188] sm:$0xff]
        %v7181 = vld [vmem:[#allocation3 + $0x190] sm:$0xff]
        %v7182 = vld [vmem:[#allocation3 + $0x198] sm:$0xff]
        %v7183 = vld [vmem:[#allocation3 + $0x1a0] sm:$0xff]
        %v7184 = vld [vmem:[#allocation3 + $0x1a8] sm:$0xff]
        %v7185 = vld [vmem:[#allocation3 + $0x1b0] sm:$0xff]
        %v7186 = vld [vmem:[#allocation3 + $0x1b8] sm:$0xff]
        %v7187 = vld [vmem:[#allocation3 + $0x1c0] sm:$0xff]
        %v7188 = vld [vmem:[#allocation3 + $0x1c8] sm:$0xff]
        %v7189 = vld [vmem:[#allocation3 + $0x1d0] sm:$0xff]
        %v7190 = vld [vmem:[#allocation3 + $0x1d8] sm:$0xff]
        %v7191 = vld [vmem:[#allocation3 + $0x1e0] sm:$0xff]
        %v7192 = vld [vmem:[#allocation3 + $0x1e8] sm:$0xff]
        %v7193 = vld [vmem:[#allocation3 + $0x1f0] sm:$0xff]
        %v7194 = vld [vmem:[#allocation3 + $0x1f8] sm:$0xff]
        %v7195 = vmax.f32 %v7131, 0.0
        %v7196 = vmax.f32 %v7132, 0.0
        %v7197 = vmax.f32 %v7133, 0.0
        %v7198 = vmax.f32 %v7134, 0.0
        %v7199 = vmax.f32 %v7135, 0.0
        %v7200 = vmax.f32 %v7136, 0.0
        %v7201 = vmax.f32 %v7137, 0.0
        %v7202 = vmax.f32 %v7138, 0.0
        %v7203 = vmax.f32 %v7139, 0.0
        %v7204 = vmax.f32 %v7140, 0.0
        %v7205 = vmax.f32 %v7141, 0.0
        %v7206 = vmax.f32 %v7142, 0.0
        %v7207 = vmax.f32 %v7143, 0.0
        %v7208 = vmax.f32 %v7144, 0.0
        %v7209 = vmax.f32 %v7145, 0.0
        %v7210 = vmax.f32 %v7146, 0.0
        %v7211 = vmax.f32 %v7147, 0.0
        %v7212 = vmax.f32 %v7148, 0.0
        %v7213 = vmax.f32 %v7149, 0.0
        %v7214 = vmax.f32 %v7150, 0.0
        %v7215 = vmax.f32 %v7151, 0.0
        %v7216 = vmax.f32 %v7152, 0.0
        %v7217 = vmax.f32 %v7153, 0.0
        %v7218 = vmax.f32 %v7154, 0.0
        %v7219 = vmax.f32 %v7155, 0.0
        %v7220 = vmax.f32 %v7156, 0.0
        %v7221 = vmax.f32 %v7157, 0.0
        %v7222 = vmax.f32 %v7158, 0.0
        %v7223 = vmax.f32 %v7159, 0.0
        %v7224 = vmax.f32 %v7160, 0.0
        %v7225 = vmax.f32 %v7161, 0.0
        %v7226 = vmax.f32 %v7162, 0.0
        %v7227 = vmax.f32 %v7163, 0.0
        %v7228 = vmax.f32 %v7164, 0.0
        %v7229 = vmax.f32 %v7165, 0.0
        %v7230 = vmax.f32 %v7166, 0.0
        %v7231 = vmax.f32 %v7167, 0.0
        %v7232 = vmax.f32 %v7168, 0.0
        %v7233 = vmax.f32 %v7169, 0.0
        %v7234 = vmax.f32 %v7170, 0.0
        %v7235 = vmax.f32 %v7171, 0.0
        %v7236 = vmax.f32 %v7172, 0.0
        %v7237 = vmax.f32 %v7173, 0.0
        %v7238 = vmax.f32 %v7174, 0.0
        %v7239 = vmax.f32 %v7175, 0.0
        %v7240 = vmax.f32 %v7176, 0.0
        %v7241 = vmax.f32 %v7177, 0.0
        %v7242 = vmax.f32 %v7178, 0.0
        %v7243 = vmax.f32 %v7179, 0.0
        %v7244 = vmax.f32 %v7180, 0.0
        %v7245 = vmax.f32 %v7181, 0.0
        %v7246 = vmax.f32 %v7182, 0.0
        %v7247 = vmax.f32 %v7183, 0.0
        %v7248 = vmax.f32 %v7184, 0.0
        %v7249 = vmax.f32 %v7185, 0.0
        %v7250 = vmax.f32 %v7186, 0.0
        %v7251 = vmax.f32 %v7187, 0.0
        %v7252 = vmax.f32 %v7188, 0.0
        %v7253 = vmax.f32 %v7189, 0.0
        %v7254 = vmax.f32 %v7190, 0.0
        %v7255 = vmax.f32 %v7191, 0.0
        %v7256 = vmax.f32 %v7192, 0.0
        %v7257 = vmax.f32 %v7193, 0.0
        %v7258 = vmax.f32 %v7194, 0.0
        %7259 = vst.msk [vmem:[#allocation3] sm:$0xff] %vm1361, %v7195
        %7260 = vst.msk [vmem:[#allocation3 + $0x8] sm:$0xff] %vm1361, %v7196
        %7261 = vst.msk [vmem:[#allocation3 + $0x10] sm:$0xff] %vm1361, %v7197
        %7262 = vst.msk [vmem:[#allocation3 + $0x18] sm:$0xff] %vm1361, %v7198
        %7263 = vst.msk [vmem:[#allocation3 + $0x20] sm:$0xff] %vm1361, %v7199
        %7264 = vst.msk [vmem:[#allocation3 + $0x28] sm:$0xff] %vm1361, %v7200
        %7265 = vst.msk [vmem:[#allocation3 + $0x30] sm:$0xff] %vm1361, %v7201
        %7266 = vst.msk [vmem:[#allocation3 + $0x38] sm:$0xff] %vm1361, %v7202
        %7267 = vst.msk [vmem:[#allocation3 + $0x40] sm:$0xff] %vm1361, %v7203
        %7268 = vst.msk [vmem:[#allocation3 + $0x48] sm:$0xff] %vm1361, %v7204
        %7269 = vst.msk [vmem:[#allocation3 + $0x50] sm:$0xff] %vm1361, %v7205
        %7270 = vst.msk [vmem:[#allocation3 + $0x58] sm:$0xff] %vm1361, %v7206
        %7271 = vst.msk [vmem:[#allocation3 + $0x60] sm:$0xff] %vm1361, %v7207
        %7272 = vst.msk [vmem:[#allocation3 + $0x68] sm:$0xff] %vm1361, %v7208
        %7273 = vst.msk [vmem:[#allocation3 + $0x70] sm:$0xff] %vm1361, %v7209
        %7274 = vst.msk [vmem:[#allocation3 + $0x78] sm:$0xff] %vm1361, %v7210
        %7275 = vst.msk [vmem:[#allocation3 + $0x80] sm:$0xff] %vm1361, %v7211
        %7276 = vst.msk [vmem:[#allocation3 + $0x88] sm:$0xff] %vm1361, %v7212
        %7277 = vst.msk [vmem:[#allocation3 + $0x90] sm:$0xff] %vm1361, %v7213
        %7278 = vst.msk [vmem:[#allocation3 + $0x98] sm:$0xff] %vm1361, %v7214
        %7279 = vst.msk [vmem:[#allocation3 + $0xa0] sm:$0xff] %vm1361, %v7215
        %7280 = vst.msk [vmem:[#allocation3 + $0xa8] sm:$0xff] %vm1361, %v7216
        %7281 = vst.msk [vmem:[#allocation3 + $0xb0] sm:$0xff] %vm1361, %v7217
        %7282 = vst.msk [vmem:[#allocation3 + $0xb8] sm:$0xff] %vm1361, %v7218
        %7283 = vst.msk [vmem:[#allocation3 + $0xc0] sm:$0xff] %vm1361, %v7219
        %7284 = vst.msk [vmem:[#allocation3 + $0xc8] sm:$0xff] %vm1361, %v7220
        %7285 = vst.msk [vmem:[#allocation3 + $0xd0] sm:$0xff] %vm1361, %v7221
        %7286 = vst.msk [vmem:[#allocation3 + $0xd8] sm:$0xff] %vm1361, %v7222
        %7287 = vst.msk [vmem:[#allocation3 + $0xe0] sm:$0xff] %vm1361, %v7223
        %7288 = vst.msk [vmem:[#allocation3 + $0xe8] sm:$0xff] %vm1361, %v7224
        %7289 = vst.msk [vmem:[#allocation3 + $0xf0] sm:$0xff] %vm1361, %v7225
        %7290 = vst.msk [vmem:[#allocation3 + $0xf8] sm:$0xff] %vm1361, %v7226
        %7291 = vst.msk [vmem:[#allocation3 + $0x100] sm:$0xff] %vm1361, %v7227
        %7292 = vst.msk [vmem:[#allocation3 + $0x108] sm:$0xff] %vm1361, %v7228
        %7293 = vst.msk [vmem:[#allocation3 + $0x110] sm:$0xff] %vm1361, %v7229
        %7294 = vst.msk [vmem:[#allocation3 + $0x118] sm:$0xff] %vm1361, %v7230
        %7295 = vst.msk [vmem:[#allocation3 + $0x120] sm:$0xff] %vm1361, %v7231
        %7296 = vst.msk [vmem:[#allocation3 + $0x128] sm:$0xff] %vm1361, %v7232
        %7297 = vst.msk [vmem:[#allocation3 + $0x130] sm:$0xff] %vm1361, %v7233
        %7298 = vst.msk [vmem:[#allocation3 + $0x138] sm:$0xff] %vm1361, %v7234
        %7299 = vst.msk [vmem:[#allocation3 + $0x140] sm:$0xff] %vm1361, %v7235
        %7300 = vst.msk [vmem:[#allocation3 + $0x148] sm:$0xff] %vm1361, %v7236
        %7301 = vst.msk [vmem:[#allocation3 + $0x150] sm:$0xff] %vm1361, %v7237
        %7302 = vst.msk [vmem:[#allocation3 + $0x158] sm:$0xff] %vm1361, %v7238
        %7303 = vst.msk [vmem:[#allocation3 + $0x160] sm:$0xff] %vm1361, %v7239
        %7304 = vst.msk [vmem:[#allocation3 + $0x168] sm:$0xff] %vm1361, %v7240
        %7305 = vst.msk [vmem:[#allocation3 + $0x170] sm:$0xff] %vm1361, %v7241
        %7306 = vst.msk [vmem:[#allocation3 + $0x178] sm:$0xff] %vm1361, %v7242
        %7307 = vst.msk [vmem:[#allocation3 + $0x180] sm:$0xff] %vm1361, %v7243
        %7308 = vst.msk [vmem:[#allocation3 + $0x188] sm:$0xff] %vm1361, %v7244
        %7309 = vst.msk [vmem:[#allocation3 + $0x190] sm:$0xff] %vm1361, %v7245
        %7310 = vst.msk [vmem:[#allocation3 + $0x198] sm:$0xff] %vm1361, %v7246
        %7311 = vst.msk [vmem:[#allocation3 + $0x1a0] sm:$0xff] %vm1361, %v7247
        %7312 = vst.msk [vmem:[#allocation3 + $0x1a8] sm:$0xff] %vm1361, %v7248
        %7313 = vst.msk [vmem:[#allocation3 + $0x1b0] sm:$0xff] %vm1361, %v7249
        %7314 = vst.msk [vmem:[#allocation3 + $0x1b8] sm:$0xff] %vm1361, %v7250
        %7315 = vst.msk [vmem:[#allocation3 + $0x1c0] sm:$0xff] %vm1361, %v7251
        %7316 = vst.msk [vmem:[#allocation3 + $0x1c8] sm:$0xff] %vm1361, %v7252
        %7317 = vst.msk [vmem:[#allocation3 + $0x1d0] sm:$0xff] %vm1361, %v7253
        %7318 = vst.msk [vmem:[#allocation3 + $0x1d8] sm:$0xff] %vm1361, %v7254
        %7319 = vst.msk [vmem:[#allocation3 + $0x1e0] sm:$0xff] %vm1361, %v7255
        %7320 = vst.msk [vmem:[#allocation3 + $0x1e8] sm:$0xff] %vm1361, %v7256
        %7321 = vst.msk [vmem:[#allocation3 + $0x1f0] sm:$0xff] %vm1361, %v7257
        %7322 = vst.msk [vmem:[#allocation3 + $0x1f8] sm:$0xff] %vm1361, %v7258
        %v7323 = vld [vmem:[#allocation3] sm:$0xff]
        %v7324 = vld [vmem:[#allocation3 + $0x8] sm:$0xff]
        %v7325 = vld [vmem:[#allocation3 + $0x10] sm:$0xff]
        %v7326 = vld [vmem:[#allocation3 + $0x18] sm:$0xff]
        %v7327 = vld [vmem:[#allocation3 + $0x20] sm:$0xff]
        %v7328 = vld [vmem:[#allocation3 + $0x28] sm:$0xff]
        %v7329 = vld [vmem:[#allocation3 + $0x30] sm:$0xff]
        %v7330 = vld [vmem:[#allocation3 + $0x38] sm:$0xff]
        %v7331 = vld [vmem:[#allocation3 + $0x40] sm:$0xff]
        %v7332 = vld [vmem:[#allocation3 + $0x48] sm:$0xff]
        %v7333 = vld [vmem:[#allocation3 + $0x50] sm:$0xff]
        %v7334 = vld [vmem:[#allocation3 + $0x58] sm:$0xff]
        %v7335 = vld [vmem:[#allocation3 + $0x60] sm:$0xff]
        %v7336 = vld [vmem:[#allocation3 + $0x68] sm:$0xff]
        %v7337 = vld [vmem:[#allocation3 + $0x70] sm:$0xff]
        %v7338 = vld [vmem:[#allocation3 + $0x78] sm:$0xff]
        %v7339 = vld [vmem:[#allocation3 + $0x80] sm:$0xff]
        %v7340 = vld [vmem:[#allocation3 + $0x88] sm:$0xff]
        %v7341 = vld [vmem:[#allocation3 + $0x90] sm:$0xff]
        %v7342 = vld [vmem:[#allocation3 + $0x98] sm:$0xff]
        %v7343 = vld [vmem:[#allocation3 + $0xa0] sm:$0xff]
        %v7344 = vld [vmem:[#allocation3 + $0xa8] sm:$0xff]
        %v7345 = vld [vmem:[#allocation3 + $0xb0] sm:$0xff]
        %v7346 = vld [vmem:[#allocation3 + $0xb8] sm:$0xff]
        %v7347 = vld [vmem:[#allocation3 + $0xc0] sm:$0xff]
        %v7348 = vld [vmem:[#allocation3 + $0xc8] sm:$0xff]
        %v7349 = vld [vmem:[#allocation3 + $0xd0] sm:$0xff]
        %v7350 = vld [vmem:[#allocation3 + $0xd8] sm:$0xff]
        %v7351 = vld [vmem:[#allocation3 + $0xe0] sm:$0xff]
        %v7352 = vld [vmem:[#allocation3 + $0xe8] sm:$0xff]
        %v7353 = vld [vmem:[#allocation3 + $0xf0] sm:$0xff]
        %v7354 = vld [vmem:[#allocation3 + $0xf8] sm:$0xff]
        %v7355 = vld [vmem:[#allocation3 + $0x100] sm:$0xff]
        %v7356 = vld [vmem:[#allocation3 + $0x108] sm:$0xff]
        %v7357 = vld [vmem:[#allocation3 + $0x110] sm:$0xff]
        %v7358 = vld [vmem:[#allocation3 + $0x118] sm:$0xff]
        %v7359 = vld [vmem:[#allocation3 + $0x120] sm:$0xff]
        %v7360 = vld [vmem:[#allocation3 + $0x128] sm:$0xff]
        %v7361 = vld [vmem:[#allocation3 + $0x130] sm:$0xff]
        %v7362 = vld [vmem:[#allocation3 + $0x138] sm:$0xff]
        %v7363 = vld [vmem:[#allocation3 + $0x140] sm:$0xff]
        %v7364 = vld [vmem:[#allocation3 + $0x148] sm:$0xff]
        %v7365 = vld [vmem:[#allocation3 + $0x150] sm:$0xff]
        %v7366 = vld [vmem:[#allocation3 + $0x158] sm:$0xff]
        %v7367 = vld [vmem:[#allocation3 + $0x160] sm:$0xff]
        %v7368 = vld [vmem:[#allocation3 + $0x168] sm:$0xff]
        %v7369 = vld [vmem:[#allocation3 + $0x170] sm:$0xff]
        %v7370 = vld [vmem:[#allocation3 + $0x178] sm:$0xff]
        %v7371 = vld [vmem:[#allocation3 + $0x180] sm:$0xff]
        %v7372 = vld [vmem:[#allocation3 + $0x188] sm:$0xff]
        %v7373 = vld [vmem:[#allocation3 + $0x190] sm:$0xff]
        %v7374 = vld [vmem:[#allocation3 + $0x198] sm:$0xff]
        %v7375 = vld [vmem:[#allocation3 + $0x1a0] sm:$0xff]
        %v7376 = vld [vmem:[#allocation3 + $0x1a8] sm:$0xff]
        %v7377 = vld [vmem:[#allocation3 + $0x1b0] sm:$0xff]
        %v7378 = vld [vmem:[#allocation3 + $0x1b8] sm:$0xff]
        %v7379 = vld [vmem:[#allocation3 + $0x1c0] sm:$0xff]
        %v7380 = vld [vmem:[#allocation3 + $0x1c8] sm:$0xff]
        %v7381 = vld [vmem:[#allocation3 + $0x1d0] sm:$0xff]
        %v7382 = vld [vmem:[#allocation3 + $0x1d8] sm:$0xff]
        %v7383 = vld [vmem:[#allocation3 + $0x1e0] sm:$0xff]
        %v7384 = vld [vmem:[#allocation3 + $0x1e8] sm:$0xff]
        %v7385 = vld [vmem:[#allocation3 + $0x1f0] sm:$0xff]
        %v7386 = vld [vmem:[#allocation3 + $0x1f8] sm:$0xff]
        %v7387 = vsel %vm1361, %v7323, 0.0
        %v7388 = vsel %vm1361, %v7324, 0.0
        %v7389 = vadd.f32 %v7387, %v7388
        %v7390 = vsel %vm1361, %v7325, 0.0
        %v7391 = vadd.f32 %v7389, %v7390
        %v7392 = vsel %vm1361, %v7326, 0.0
        %v7393 = vadd.f32 %v7391, %v7392
        %v7394 = vsel %vm1361, %v7327, 0.0
        %v7395 = vadd.f32 %v7393, %v7394
        %v7396 = vsel %vm1361, %v7328, 0.0
        %v7397 = vadd.f32 %v7395, %v7396
        %v7398 = vsel %vm1361, %v7329, 0.0
        %v7399 = vadd.f32 %v7397, %v7398
        %v7400 = vsel %vm1361, %v7330, 0.0
        %v7401 = vadd.f32 %v7399, %v7400
        %v7402 = vsel %vm1361, %v7331, 0.0
        %v7403 = vadd.f32 %v7401, %v7402
        %v7404 = vsel %vm1361, %v7332, 0.0
        %v7405 = vadd.f32 %v7403, %v7404
        %v7406 = vsel %vm1361, %v7333, 0.0
        %v7407 = vadd.f32 %v7405, %v7406
        %v7408 = vsel %vm1361, %v7334, 0.0
        %v7409 = vadd.f32 %v7407, %v7408
        %v7410 = vsel %vm1361, %v7335, 0.0
        %v7411 = vadd.f32 %v7409, %v7410
        %v7412 = vsel %vm1361, %v7336, 0.0
        %v7413 = vadd.f32 %v7411, %v7412
        %v7414 = vsel %vm1361, %v7337, 0.0
        %v7415 = vadd.f32 %v7413, %v7414
        %v7416 = vsel %vm1361, %v7338, 0.0
        %v7417 = vadd.f32 %v7415, %v7416
        %v7418 = vsel %vm1361, %v7339, 0.0
        %v7419 = vadd.f32 %v7417, %v7418
        %v7420 = vsel %vm1361, %v7340, 0.0
        %v7421 = vadd.f32 %v7419, %v7420
        %v7422 = vsel %vm1361, %v7341, 0.0
        %v7423 = vadd.f32 %v7421, %v7422
        %v7424 = vsel %vm1361, %v7342, 0.0
        %v7425 = vadd.f32 %v7423, %v7424
        %v7426 = vsel %vm1361, %v7343, 0.0
        %v7427 = vadd.f32 %v7425, %v7426
        %v7428 = vsel %vm1361, %v7344, 0.0
        %v7429 = vadd.f32 %v7427, %v7428
        %v7430 = vsel %vm1361, %v7345, 0.0
        %v7431 = vadd.f32 %v7429, %v7430
        %v7432 = vsel %vm1361, %v7346, 0.0
        %v7433 = vadd.f32 %v7431, %v7432
        %v7434 = vsel %vm1361, %v7347, 0.0
        %v7435 = vadd.f32 %v7433, %v7434
        %v7436 = vsel %vm1361, %v7348, 0.0
        %v7437 = vadd.f32 %v7435, %v7436
        %v7438 = vsel %vm1361, %v7349, 0.0
        %v7439 = vadd.f32 %v7437, %v7438
        %v7440 = vsel %vm1361, %v7350, 0.0
        %v7441 = vadd.f32 %v7439, %v7440
        %v7442 = vsel %vm1361, %v7351, 0.0
        %v7443 = vadd.f32 %v7441, %v7442
        %v7444 = vsel %vm1361, %v7352, 0.0
        %v7445 = vadd.f32 %v7443, %v7444
        %v7446 = vsel %vm1361, %v7353, 0.0
        %v7447 = vadd.f32 %v7445, %v7446
        %v7448 = vsel %vm1361, %v7354, 0.0
        %v7449 = vadd.f32 %v7447, %v7448
        %v7450 = vsel %vm1361, %v7355, 0.0
        %v7451 = vadd.f32 %v7449, %v7450
        %v7452 = vsel %vm1361, %v7356, 0.0
        %v7453 = vadd.f32 %v7451, %v7452
        %v7454 = vsel %vm1361, %v7357, 0.0
        %v7455 = vadd.f32 %v7453, %v7454
        %v7456 = vsel %vm1361, %v7358, 0.0
        %v7457 = vadd.f32 %v7455, %v7456
        %v7458 = vsel %vm1361, %v7359, 0.0
        %v7459 = vadd.f32 %v7457, %v7458
        %v7460 = vsel %vm1361, %v7360, 0.0
        %v7461 = vadd.f32 %v7459, %v7460
        %v7462 = vsel %vm1361, %v7361, 0.0
        %v7463 = vadd.f32 %v7461, %v7462
        %v7464 = vsel %vm1361, %v7362, 0.0
        %v7465 = vadd.f32 %v7463, %v7464
        %v7466 = vsel %vm1361, %v7363, 0.0
        %v7467 = vadd.f32 %v7465, %v7466
        %v7468 = vsel %vm1361, %v7364, 0.0
        %v7469 = vadd.f32 %v7467, %v7468
        %v7470 = vsel %vm1361, %v7365, 0.0
        %v7471 = vadd.f32 %v7469, %v7470
        %v7472 = vsel %vm1361, %v7366, 0.0
        %v7473 = vadd.f32 %v7471, %v7472
        %v7474 = vsel %vm1361, %v7367, 0.0
        %v7475 = vadd.f32 %v7473, %v7474
        %v7476 = vsel %vm1361, %v7368, 0.0
        %v7477 = vadd.f32 %v7475, %v7476
        %v7478 = vsel %vm1361, %v7369, 0.0
        %v7479 = vadd.f32 %v7477, %v7478
        %v7480 = vsel %vm1361, %v7370, 0.0
        %v7481 = vadd.f32 %v7479, %v7480
        %v7482 = vsel %vm1361, %v7371, 0.0
        %v7483 = vadd.f32 %v7481, %v7482
        %v7484 = vsel %vm1361, %v7372, 0.0
        %v7485 = vadd.f32 %v7483, %v7484
        %v7486 = vsel %vm1361, %v7373, 0.0
        %v7487 = vadd.f32 %v7485, %v7486
        %v7488 = vsel %vm1361, %v7374, 0.0
        %v7489 = vadd.f32 %v7487, %v7488
        %v7490 = vsel %vm1361, %v7375, 0.0
        %v7491 = vadd.f32 %v7489, %v7490
        %v7492 = vsel %vm1361, %v7376, 0.0
        %v7493 = vadd.f32 %v7491, %v7492
        %v7494 = vsel %vm1361, %v7377, 0.0
        %v7495 = vadd.f32 %v7493, %v7494
        %v7496 = vsel %vm1361, %v7378, 0.0
        %v7497 = vadd.f32 %v7495, %v7496
        %v7498 = vsel %vm1361, %v7379, 0.0
        %v7499 = vadd.f32 %v7497, %v7498
        %v7500 = vsel %vm1361, %v7380, 0.0
        %v7501 = vadd.f32 %v7499, %v7500
        %v7502 = vsel %vm1361, %v7381, 0.0
        %v7503 = vadd.f32 %v7501, %v7502
        %v7504 = vsel %vm1361, %v7382, 0.0
        %v7505 = vadd.f32 %v7503, %v7504
        %v7506 = vsel %vm1361, %v7383, 0.0
        %v7507 = vadd.f32 %v7505, %v7506
        %v7508 = vsel %vm1361, %v7384, 0.0
        %v7509 = vadd.f32 %v7507, %v7508
        %v7510 = vsel %vm1361, %v7385, 0.0
        %v7511 = vadd.f32 %v7509, %v7510
        %v7512 = vsel %vm1361, %v7386, 0.0
        %v7513 = vadd.f32 %v7511, %v7512
        %v7514 = vrcp.pop 64.0
        %v7515 = vmul.f32 64.0, %v7514
        %v7516 = vsub.f32 1.0, %v7515
        %v7517 = vmul.f32 %v7514, %v7516
        %v7518 = vadd.f32 %v7514, %v7517
        %vm7519 = vweird.f32 %v7514
        %v7520 = vsel %vm7519, %v7514, %v7518
        %v7521 = vmul.f32 %v7513, %v7520
        %v7522 = vsel %vm1361, %v7323, -inf
        %v7523 = vsel %vm1361, %v7324, -inf
        %v7524 = vsel %vm1361, %v7325, -inf
        %v7525 = vsel %vm1361, %v7326, -inf
        %v7526 = vsel %vm1361, %v7327, -inf
        %v7527 = vmax.f32 %v7522, %v7526
        %v7528 = vsel %vm1361, %v7328, -inf
        %v7529 = vmax.f32 %v7523, %v7528
        %v7530 = vsel %vm1361, %v7329, -inf
        %v7531 = vmax.f32 %v7524, %v7530
        %v7532 = vsel %vm1361, %v7330, -inf
        %v7533 = vmax.f32 %v7525, %v7532
        %v7534 = vsel %vm1361, %v7331, -inf
        %v7535 = vmax.f32 %v7527, %v7534
        %v7536 = vsel %vm1361, %v7332, -inf
        %v7537 = vmax.f32 %v7529, %v7536
        %v7538 = vsel %vm1361, %v7333, -inf
        %v7539 = vmax.f32 %v7531, %v7538
        %v7540 = vsel %vm1361, %v7334, -inf
        %v7541 = vmax.f32 %v7533, %v7540
        %v7542 = vsel %vm1361, %v7335, -inf
        %v7543 = vmax.f32 %v7535, %v7542
        %v7544 = vsel %vm1361, %v7336, -inf
        %v7545 = vmax.f32 %v7537, %v7544
        %v7546 = vsel %vm1361, %v7337, -inf
        %v7547 = vmax.f32 %v7539, %v7546
        %v7548 = vsel %vm1361, %v7338, -inf
        %v7549 = vmax.f32 %v7541, %v7548
        %v7550 = vsel %vm1361, %v7339, -inf
        %v7551 = vmax.f32 %v7543, %v7550
        %v7552 = vsel %vm1361, %v7340, -inf
        %v7553 = vmax.f32 %v7545, %v7552
        %v7554 = vsel %vm1361, %v7341, -inf
        %v7555 = vmax.f32 %v7547, %v7554
        %v7556 = vsel %vm1361, %v7342, -inf
        %v7557 = vmax.f32 %v7549, %v7556
        %v7558 = vsel %vm1361, %v7343, -inf
        %v7559 = vmax.f32 %v7551, %v7558
        %v7560 = vsel %vm1361, %v7344, -inf
        %v7561 = vmax.f32 %v7553, %v7560
        %v7562 = vsel %vm1361, %v7345, -inf
        %v7563 = vmax.f32 %v7555, %v7562
        %v7564 = vsel %vm1361, %v7346, -inf
        %v7565 = vmax.f32 %v7557, %v7564
        %v7566 = vsel %vm1361, %v7347, -inf
        %v7567 = vmax.f32 %v7559, %v7566
        %v7568 = vsel %vm1361, %v7348, -inf
        %v7569 = vmax.f32 %v7561, %v7568
        %v7570 = vsel %vm1361, %v7349, -inf
        %v7571 = vmax.f32 %v7563, %v7570
        %v7572 = vsel %vm1361, %v7350, -inf
        %v7573 = vmax.f32 %v7565, %v7572
        %v7574 = vsel %vm1361, %v7351, -inf
        %v7575 = vmax.f32 %v7567, %v7574
        %v7576 = vsel %vm1361, %v7352, -inf
        %v7577 = vmax.f32 %v7569, %v7576
        %v7578 = vsel %vm1361, %v7353, -inf
        %v7579 = vmax.f32 %v7571, %v7578
        %v7580 = vsel %vm1361, %v7354, -inf
        %v7581 = vmax.f32 %v7573, %v7580
        %v7582 = vsel %vm1361, %v7355, -inf
        %v7583 = vmax.f32 %v7575, %v7582
        %v7584 = vsel %vm1361, %v7356, -inf
        %v7585 = vmax.f32 %v7577, %v7584
        %v7586 = vsel %vm1361, %v7357, -inf
        %v7587 = vmax.f32 %v7579, %v7586
        %v7588 = vsel %vm1361, %v7358, -inf
        %v7589 = vmax.f32 %v7581, %v7588
        %v7590 = vsel %vm1361, %v7359, -inf
        %v7591 = vmax.f32 %v7583, %v7590
        %v7592 = vsel %vm1361, %v7360, -inf
        %v7593 = vmax.f32 %v7585, %v7592
        %v7594 = vsel %vm1361, %v7361, -inf
        %v7595 = vmax.f32 %v7587, %v7594
        %v7596 = vsel %vm1361, %v7362, -inf
        %v7597 = vmax.f32 %v7589, %v7596
        %v7598 = vsel %vm1361, %v7363, -inf
        %v7599 = vmax.f32 %v7591, %v7598
        %v7600 = vsel %vm1361, %v7364, -inf
        %v7601 = vmax.f32 %v7593, %v7600
        %v7602 = vsel %vm1361, %v7365, -inf
        %v7603 = vmax.f32 %v7595, %v7602
        %v7604 = vsel %vm1361, %v7366, -inf
        %v7605 = vmax.f32 %v7597, %v7604
        %v7606 = vsel %vm1361, %v7367, -inf
        %v7607 = vmax.f32 %v7599, %v7606
        %v7608 = vsel %vm1361, %v7368, -inf
        %v7609 = vmax.f32 %v7601, %v7608
        %v7610 = vsel %vm1361, %v7369, -inf
        %v7611 = vmax.f32 %v7603, %v7610
        %v7612 = vsel %vm1361, %v7370, -inf
        %v7613 = vmax.f32 %v7605, %v7612
        %v7614 = vsel %vm1361, %v7371, -inf
        %v7615 = vmax.f32 %v7607, %v7614
        %v7616 = vsel %vm1361, %v7372, -inf
        %v7617 = vmax.f32 %v7609, %v7616
        %v7618 = vsel %vm1361, %v7373, -inf
        %v7619 = vmax.f32 %v7611, %v7618
        %v7620 = vsel %vm1361, %v7374, -inf
        %v7621 = vmax.f32 %v7613, %v7620
        %v7622 = vsel %vm1361, %v7375, -inf
        %v7623 = vmax.f32 %v7615, %v7622
        %v7624 = vsel %vm1361, %v7376, -inf
        %v7625 = vmax.f32 %v7617, %v7624
        %v7626 = vsel %vm1361, %v7377, -inf
        %v7627 = vmax.f32 %v7619, %v7626
        %v7628 = vsel %vm1361, %v7378, -inf
        %v7629 = vmax.f32 %v7621, %v7628
        %v7630 = vsel %vm1361, %v7379, -inf
        %v7631 = vmax.f32 %v7623, %v7630
        %v7632 = vsel %vm1361, %v7380, -inf
        %v7633 = vmax.f32 %v7625, %v7632
        %v7634 = vsel %vm1361, %v7381, -inf
        %v7635 = vmax.f32 %v7627, %v7634
        %v7636 = vsel %vm1361, %v7382, -inf
        %v7637 = vmax.f32 %v7629, %v7636
        %v7638 = vsel %vm1361, %v7383, -inf
        %v7639 = vmax.f32 %v7631, %v7638
        %v7640 = vsel %vm1361, %v7384, -inf
        %v7641 = vmax.f32 %v7633, %v7640
        %v7642 = vsel %vm1361, %v7385, -inf
        %v7643 = vmax.f32 %v7635, %v7642
        %v7644 = vsel %vm1361, %v7386, -inf
        %v7645 = vmax.f32 %v7637, %v7644
        %v7646 = vmax.f32 %v7639, %v7641
        %v7647 = vmax.f32 %v7643, %v7645
        %v7648 = vmax.f32 %v7646, %v7647
        %v7649 = vld [vmem:[%s635] sm:$0xff]
        %v7650 = vld [vmem:[%s635 + $0x8] sm:$0xff]
        %v7651 = vld [vmem:[%s635 + $0x10] sm:$0xff]
        %v7652 = vld [vmem:[%s635 + $0x18] sm:$0xff]
        %v7654 = vsel %vm1361, %v7521, 0
        %v7657 = vsel %vm1361, %v7648, 0
        %7659 = vmatpush.msra.mxu0 0.0
        %7660 = vmatpush.msra.mxu0 0.0
        %7661 = vmatpush.msra.mxu0 0.0
        %7662 = vmatpush.msra.mxu0 0.0
        %7663 = vmatpush.msra.mxu0 0.0
        %7664 = vmatpush.msra.mxu0 0.0
        %7665 = vmatpush.msra.mxu0 0.0
        %7666 = vmatpush.msra.mxu0 0.0
        %7667 = vmatpush.msra.mxu0 0.0
        %7668 = vmatpush.msra.mxu0 0.0
        %7669 = vmatpush.msra.mxu0 0.0
        %7670 = vmatpush.msra.mxu0 0.0
        %7671 = vmatpush.msra.mxu0 %v7652
        %7672 = vmatpush.msra.mxu0 %v7651
        %7673 = vmatpush.msra.mxu0 %v7650
        %7674 = vmatpush.msra.mxu0 %v7649
        %7675 = vmatmul.f32.gmra.mxu0 %v7654
        %v7676 = vpop.f32.mrf.mxu0
        %v7677 = vadd.f32 0.0, %v7676
        %7678 = vmatmul.f32.gmra.mxu0 %v7657
        %v7679 = vpop.f32.mrf.mxu0
        %v7680 = vadd.f32 0.0, %v7679
        %7681 = vdwg.mxu0
        %v7682 = vmax.f32 %v7677, 0.0
        %v7683 = vmax.f32 %v7680, 0.0
        %v7684 = vld [vmem:[%s639] sm:$0x1]
        %7686 = vset.pattern.permute.xlu0 0
        %7687 = vperm.xlu0 %7686, %v7682
        %v7688 = vpop.permute.xlu0 %7687
        %7691 = vset.pattern.permute.xlu0 0
        %7692 = vperm.xlu0 %7691, %v7683
        %v7693 = vpop.permute.xlu0 %7692
        %v7695 = vperm.slane %v7684, 0
        %v7696 = vmul.f32 %v7688, %v7695
        %v7697 = vmul.f32 %v7693, %v7695
        %v7698 = vld [vmem:[%s639 + $0x1] sm:$0x1]
        %7699 = vset.pattern.permute.xlu0 1
        %7700 = vperm.xlu0 %7699, %v7682
        %v7701 = vpop.permute.xlu0 %7700
        %7703 = vset.pattern.permute.xlu0 1
        %7704 = vperm.xlu0 %7703, %v7683
        %v7705 = vpop.permute.xlu0 %7704
        %v7707 = vperm.slane %v7698, 0
        %v7708 = vmul.f32 %v7701, %v7707
        %v7709 = vmul.f32 %v7705, %v7707
        %v7710 = vadd.f32 %v7696, %v7708
        %v7711 = vadd.f32 %v7697, %v7709
        %v7712 = vadd.f32 %v7710, %v7711
        %v7713 = vxor.u32 %v7712, 2147483648
        %v7714 = vmul.f32 %v7713, 1.442695
        %v7715 = vpow.pop %v7714
        %v7716 = vadd.f32 %v7715, 1.0
        %v7717 = vrcp.pop %v7716
        %v7718 = vmul.f32 %v7716, %v7717
        %v7719 = vsub.f32 1.0, %v7718
        %v7720 = vmul.f32 %v7717, %v7719
        %v7721 = vadd.f32 %v7717, %v7720
        %vm7722 = vweird.f32 %v7716
        %vm7723 = vweird.f32 %v7717
        %vm7724 = vmor %vm7722, %vm7723
        %v7725 = vsel %vm7724, %v7717, %v7721
        %v7726 = vand.u32 2147483647, %v7716
        %vm7727 = vcmp.eq.f32.partialorder %v7726, 8.507059e+37
        %v7728 = vand.u32 %v7716, 2147483648
        %v7729 = vor.u32 1.1754944e-38, %v7728
        %v7730 = vsel %vm7727, %v7729, %v7725
        %v7731 = vmul.f32 1.0, %v7730
        %p7732 = scmp.lt.s32.totalorder %s31, 6
        // Predicated region
        $region101: #{acnn_bilstm_forward.1} parent=95 // pred_check
          %p7733 = pneg %p7732
        $region102: #{acnn_bilstm_forward.1} parent=95 // pred_check_branch
          %7735 = sbr.rel (%p7733) target = $region104
        $region103: #{acnn_bilstm_forward.1} parent=95 // pred_region
          %v7736 = vld [vmem:[#allocation3] sm:$0xff]
          %v7737 = vld [vmem:[#allocation3 + $0x8] sm:$0xff]
          %v7738 = vld [vmem:[#allocation3 + $0x10] sm:$0xff]
          %v7739 = vld [vmem:[#allocation3 + $0x18] sm:$0xff]
          %v7740 = vld [vmem:[#allocation3 + $0x20] sm:$0xff]
          %v7741 = vld [vmem:[#allocation3 + $0x28] sm:$0xff]
          %v7742 = vld [vmem:[#allocation3 + $0x30] sm:$0xff]
          %v7743 = vld [vmem:[#allocation3 + $0x38] sm:$0xff]
          %v7744 = vld [vmem:[#allocation3 + $0x40] sm:$0xff]
          %v7745 = vld [vmem:[#allocation3 + $0x48] sm:$0xff]
          %v7746 = vld [vmem:[#allocation3 + $0x50] sm:$0xff]
          %v7747 = vld [vmem:[#allocation3 + $0x58] sm:$0xff]
          %v7748 = vld [vmem:[#allocation3 + $0x60] sm:$0xff]
          %v7749 = vld [vmem:[#allocation3 + $0x68] sm:$0xff]
          %v7750 = vld [vmem:[#allocation3 + $0x70] sm:$0xff]
          %v7751 = vld [vmem:[#allocation3 + $0x78] sm:$0xff]
          %v7752 = vld [vmem:[#allocation3 + $0x80] sm:$0xff]
          %v7753 = vld [vmem:[#allocation3 + $0x88] sm:$0xff]
          %v7754 = vld [vmem:[#allocation3 + $0x90] sm:$0xff]
          %v7755 = vld [vmem:[#allocation3 + $0x98] sm:$0xff]
          %v7756 = vld [vmem:[#allocation3 + $0xa0] sm:$0xff]
          %v7757 = vld [vmem:[#allocation3 + $0xa8] sm:$0xff]
          %v7758 = vld [vmem:[#allocation3 + $0xb0] sm:$0xff]
          %v7759 = vld [vmem:[#allocation3 + $0xb8] sm:$0xff]
          %v7760 = vld [vmem:[#allocation3 + $0xc0] sm:$0xff]
          %v7761 = vld [vmem:[#allocation3 + $0xc8] sm:$0xff]
          %v7762 = vld [vmem:[#allocation3 + $0xd0] sm:$0xff]
          %v7763 = vld [vmem:[#allocation3 + $0xd8] sm:$0xff]
          %v7764 = vld [vmem:[#allocation3 + $0xe0] sm:$0xff]
          %v7765 = vld [vmem:[#allocation3 + $0xe8] sm:$0xff]
          %v7766 = vld [vmem:[#allocation3 + $0xf0] sm:$0xff]
          %v7767 = vld [vmem:[#allocation3 + $0xf8] sm:$0xff]
          %v7768 = vld [vmem:[#allocation3 + $0x100] sm:$0xff]
          %v7769 = vld [vmem:[#allocation3 + $0x108] sm:$0xff]
          %v7770 = vld [vmem:[#allocation3 + $0x110] sm:$0xff]
          %v7771 = vld [vmem:[#allocation3 + $0x118] sm:$0xff]
          %v7772 = vld [vmem:[#allocation3 + $0x120] sm:$0xff]
          %v7773 = vld [vmem:[#allocation3 + $0x128] sm:$0xff]
          %v7774 = vld [vmem:[#allocation3 + $0x130] sm:$0xff]
          %v7775 = vld [vmem:[#allocation3 + $0x138] sm:$0xff]
          %v7776 = vld [vmem:[#allocation3 + $0x140] sm:$0xff]
          %v7777 = vld [vmem:[#allocation3 + $0x148] sm:$0xff]
          %v7778 = vld [vmem:[#allocation3 + $0x150] sm:$0xff]
          %v7779 = vld [vmem:[#allocation3 + $0x158] sm:$0xff]
          %v7780 = vld [vmem:[#allocation3 + $0x160] sm:$0xff]
          %v7781 = vld [vmem:[#allocation3 + $0x168] sm:$0xff]
          %v7782 = vld [vmem:[#allocation3 + $0x170] sm:$0xff]
          %v7783 = vld [vmem:[#allocation3 + $0x178] sm:$0xff]
          %v7784 = vld [vmem:[#allocation3 + $0x180] sm:$0xff]
          %v7785 = vld [vmem:[#allocation3 + $0x188] sm:$0xff]
          %v7786 = vld [vmem:[#allocation3 + $0x190] sm:$0xff]
          %v7787 = vld [vmem:[#allocation3 + $0x198] sm:$0xff]
          %v7788 = vld [vmem:[#allocation3 + $0x1a0] sm:$0xff]
          %v7789 = vld [vmem:[#allocation3 + $0x1a8] sm:$0xff]
          %v7790 = vld [vmem:[#allocation3 + $0x1b0] sm:$0xff]
          %v7791 = vld [vmem:[#allocation3 + $0x1b8] sm:$0xff]
          %v7792 = vld [vmem:[#allocation3 + $0x1c0] sm:$0xff]
          %v7793 = vld [vmem:[#allocation3 + $0x1c8] sm:$0xff]
          %v7794 = vld [vmem:[#allocation3 + $0x1d0] sm:$0xff]
          %v7795 = vld [vmem:[#allocation3 + $0x1d8] sm:$0xff]
          %v7796 = vld [vmem:[#allocation3 + $0x1e0] sm:$0xff]
          %v7797 = vld [vmem:[#allocation3 + $0x1e8] sm:$0xff]
          %v7798 = vld [vmem:[#allocation3 + $0x1f0] sm:$0xff]
          %v7799 = vld [vmem:[#allocation3 + $0x1f8] sm:$0xff]
          %v7800 = vmul.f32 %v7736, %v7731
          %v7801 = vmul.f32 %v7737, %v7731
          %v7802 = vmul.f32 %v7738, %v7731
          %v7803 = vmul.f32 %v7739, %v7731
          %v7804 = vmul.f32 %v7740, %v7731
          %v7805 = vmul.f32 %v7741, %v7731
          %v7806 = vmul.f32 %v7742, %v7731
          %v7807 = vmul.f32 %v7743, %v7731
          %v7808 = vmul.f32 %v7744, %v7731
          %v7809 = vmul.f32 %v7745, %v7731
          %v7810 = vmul.f32 %v7746, %v7731
          %v7811 = vmul.f32 %v7747, %v7731
          %v7812 = vmul.f32 %v7748, %v7731
          %v7813 = vmul.f32 %v7749, %v7731
          %v7814 = vmul.f32 %v7750, %v7731
          %v7815 = vmul.f32 %v7751, %v7731
          %v7816 = vmul.f32 %v7752, %v7731
          %v7817 = vmul.f32 %v7753, %v7731
          %v7818 = vmul.f32 %v7754, %v7731
          %v7819 = vmul.f32 %v7755, %v7731
          %v7820 = vmul.f32 %v7756, %v7731
          %v7821 = vmul.f32 %v7757, %v7731
          %v7822 = vmul.f32 %v7758, %v7731
          %v7823 = vmul.f32 %v7759, %v7731
          %v7824 = vmul.f32 %v7760, %v7731
          %v7825 = vmul.f32 %v7761, %v7731
          %v7826 = vmul.f32 %v7762, %v7731
          %v7827 = vmul.f32 %v7763, %v7731
          %v7828 = vmul.f32 %v7764, %v7731
          %v7829 = vmul.f32 %v7765, %v7731
          %v7830 = vmul.f32 %v7766, %v7731
          %v7831 = vmul.f32 %v7767, %v7731
          %v7832 = vmul.f32 %v7768, %v7731
          %v7833 = vmul.f32 %v7769, %v7731
          %v7834 = vmul.f32 %v7770, %v7731
          %v7835 = vmul.f32 %v7771, %v7731
          %v7836 = vmul.f32 %v7772, %v7731
          %v7837 = vmul.f32 %v7773, %v7731
          %v7838 = vmul.f32 %v7774, %v7731
          %v7839 = vmul.f32 %v7775, %v7731
          %v7840 = vmul.f32 %v7776, %v7731
          %v7841 = vmul.f32 %v7777, %v7731
          %v7842 = vmul.f32 %v7778, %v7731
          %v7843 = vmul.f32 %v7779, %v7731
          %v7844 = vmul.f32 %v7780, %v7731
          %v7845 = vmul.f32 %v7781, %v7731
          %v7846 = vmul.f32 %v7782, %v7731
          %v7847 = vmul.f32 %v7783, %v7731
          %v7848 = vmul.f32 %v7784, %v7731
          %v7849 = vmul.f32 %v7785, %v7731
          %v7850 = vmul.f32 %v7786, %v7731
          %v7851 = vmul.f32 %v7787, %v7731
          %v7852 = vmul.f32 %v7788, %v7731
          %v7853 = vmul.f32 %v7789, %v7731
          %v7854 = vmul.f32 %v7790, %v7731
          %v7855 = vmul.f32 %v7791, %v7731
          %v7856 = vmul.f32 %v7792, %v7731
          %v7857 = vmul.f32 %v7793, %v7731
          %v7858 = vmul.f32 %v7794, %v7731
          %v7859 = vmul.f32 %v7795, %v7731
          %v7860 = vmul.f32 %v7796, %v7731
          %v7861 = vmul.f32 %v7797, %v7731
          %v7862 = vmul.f32 %v7798, %v7731
          %v7863 = vmul.f32 %v7799, %v7731
          %7864 = vst.msk [vmem:[%s3816] sm:$0xff] %vm1361, %v7800
          %7865 = vst.msk [vmem:[%s3816 + $0x8] sm:$0xff] %vm1361, %v7801
          %7866 = vst.msk [vmem:[%s3816 + $0x10] sm:$0xff] %vm1361, %v7802
          %7867 = vst.msk [vmem:[%s3816 + $0x18] sm:$0xff] %vm1361, %v7803
          %7868 = vst.msk [vmem:[%s3816 + $0x20] sm:$0xff] %vm1361, %v7804
          %7869 = vst.msk [vmem:[%s3816 + $0x28] sm:$0xff] %vm1361, %v7805
          %7870 = vst.msk [vmem:[%s3816 + $0x30] sm:$0xff] %vm1361, %v7806
          %7871 = vst.msk [vmem:[%s3816 + $0x38] sm:$0xff] %vm1361, %v7807
          %7872 = vst.msk [vmem:[%s3816 + $0x50] sm:$0xff] %vm1361, %v7808
          %7873 = vst.msk [vmem:[%s3816 + $0x58] sm:$0xff] %vm1361, %v7809
          %7874 = vst.msk [vmem:[%s3816 + $0x60] sm:$0xff] %vm1361, %v7810
          %7875 = vst.msk [vmem:[%s3816 + $0x68] sm:$0xff] %vm1361, %v7811
          %7876 = vst.msk [vmem:[%s3816 + $0x70] sm:$0xff] %vm1361, %v7812
          %7877 = vst.msk [vmem:[%s3816 + $0x78] sm:$0xff] %vm1361, %v7813
          %7878 = vst.msk [vmem:[%s3816 + $0x80] sm:$0xff] %vm1361, %v7814
          %7879 = vst.msk [vmem:[%s3816 + $0x88] sm:$0xff] %vm1361, %v7815
          %7880 = vst.msk [vmem:[%s3816 + $0xa0] sm:$0xff] %vm1361, %v7816
          %7881 = vst.msk [vmem:[%s3816 + $0xa8] sm:$0xff] %vm1361, %v7817
          %7882 = vst.msk [vmem:[%s3816 + $0xb0] sm:$0xff] %vm1361, %v7818
          %7883 = vst.msk [vmem:[%s3816 + $0xb8] sm:$0xff] %vm1361, %v7819
          %7884 = vst.msk [vmem:[%s3816 + $0xc0] sm:$0xff] %vm1361, %v7820
          %7885 = vst.msk [vmem:[%s3816 + $0xc8] sm:$0xff] %vm1361, %v7821
          %7886 = vst.msk [vmem:[%s3816 + $0xd0] sm:$0xff] %vm1361, %v7822
          %7887 = vst.msk [vmem:[%s3816 + $0xd8] sm:$0xff] %vm1361, %v7823
          %7888 = vst.msk [vmem:[%s3816 + $0xf0] sm:$0xff] %vm1361, %v7824
          %7889 = vst.msk [vmem:[%s3816 + $0xf8] sm:$0xff] %vm1361, %v7825
          %7890 = vst.msk [vmem:[%s3816 + $0x100] sm:$0xff] %vm1361, %v7826
          %7891 = vst.msk [vmem:[%s3816 + $0x108] sm:$0xff] %vm1361, %v7827
          %7892 = vst.msk [vmem:[%s3816 + $0x110] sm:$0xff] %vm1361, %v7828
          %7893 = vst.msk [vmem:[%s3816 + $0x118] sm:$0xff] %vm1361, %v7829
          %7894 = vst.msk [vmem:[%s3816 + $0x120] sm:$0xff] %vm1361, %v7830
          %7895 = vst.msk [vmem:[%s3816 + $0x128] sm:$0xff] %vm1361, %v7831
          %7896 = vst.msk [vmem:[%s3816 + $0x140] sm:$0xff] %vm1361, %v7832
          %7897 = vst.msk [vmem:[%s3816 + $0x148] sm:$0xff] %vm1361, %v7833
          %7898 = vst.msk [vmem:[%s3816 + $0x150] sm:$0xff] %vm1361, %v7834
          %7899 = vst.msk [vmem:[%s3816 + $0x158] sm:$0xff] %vm1361, %v7835
          %7900 = vst.msk [vmem:[%s3816 + $0x160] sm:$0xff] %vm1361, %v7836
          %7901 = vst.msk [vmem:[%s3816 + $0x168] sm:$0xff] %vm1361, %v7837
          %7902 = vst.msk [vmem:[%s3816 + $0x170] sm:$0xff] %vm1361, %v7838
          %7903 = vst.msk [vmem:[%s3816 + $0x178] sm:$0xff] %vm1361, %v7839
          %7904 = vst.msk [vmem:[%s3816 + $0x190] sm:$0xff] %vm1361, %v7840
          %7905 = vst.msk [vmem:[%s3816 + $0x198] sm:$0xff] %vm1361, %v7841
          %7906 = vst.msk [vmem:[%s3816 + $0x1a0] sm:$0xff] %vm1361, %v7842
          %7907 = vst.msk [vmem:[%s3816 + $0x1a8] sm:$0xff] %vm1361, %v7843
          %7908 = vst.msk [vmem:[%s3816 + $0x1b0] sm:$0xff] %vm1361, %v7844
          %7909 = vst.msk [vmem:[%s3816 + $0x1b8] sm:$0xff] %vm1361, %v7845
          %7910 = vst.msk [vmem:[%s3816 + $0x1c0] sm:$0xff] %vm1361, %v7846
          %7911 = vst.msk [vmem:[%s3816 + $0x1c8] sm:$0xff] %vm1361, %v7847
          %7912 = vst.msk [vmem:[%s3816 + $0x1e0] sm:$0xff] %vm1361, %v7848
          %7913 = vst.msk [vmem:[%s3816 + $0x1e8] sm:$0xff] %vm1361, %v7849
          %7914 = vst.msk [vmem:[%s3816 + $0x1f0] sm:$0xff] %vm1361, %v7850
          %7915 = vst.msk [vmem:[%s3816 + $0x1f8] sm:$0xff] %vm1361, %v7851
          %7916 = vst.msk [vmem:[%s3816 + $0x200] sm:$0xff] %vm1361, %v7852
          %7917 = vst.msk [vmem:[%s3816 + $0x208] sm:$0xff] %vm1361, %v7853
          %7918 = vst.msk [vmem:[%s3816 + $0x210] sm:$0xff] %vm1361, %v7854
          %7919 = vst.msk [vmem:[%s3816 + $0x218] sm:$0xff] %vm1361, %v7855
          %7920 = vst.msk [vmem:[%s3816 + $0x230] sm:$0xff] %vm1361, %v7856
          %7921 = vst.msk [vmem:[%s3816 + $0x238] sm:$0xff] %vm1361, %v7857
          %7922 = vst.msk [vmem:[%s3816 + $0x240] sm:$0xff] %vm1361, %v7858
          %7923 = vst.msk [vmem:[%s3816 + $0x248] sm:$0xff] %vm1361, %v7859
          %7924 = vst.msk [vmem:[%s3816 + $0x250] sm:$0xff] %vm1361, %v7860
          %7925 = vst.msk [vmem:[%s3816 + $0x258] sm:$0xff] %vm1361, %v7861
          %7926 = vst.msk [vmem:[%s3816 + $0x260] sm:$0xff] %vm1361, %v7862
          %7927 = vst.msk [vmem:[%s3816 + $0x268] sm:$0xff] %vm1361, %v7863
        $region104: #{acnn_bilstm_forward.1} parent=95 // pred_fallthru
          _
        %p7928 = scmp.eq.s32.totalorder %s31, 6
        // Predicated region
        $region105: #{acnn_bilstm_forward.1} parent=95 // pred_check
          %p7929 = pneg %p7928
        $region106: #{acnn_bilstm_forward.1} parent=95 // pred_check_branch
          %7931 = sbr.rel (%p7929) target = $region108
        $region107: #{acnn_bilstm_forward.1} parent=95 // pred_region
          %v7932 = vmul.f32 %v7521, %v7731
          %v7934 = vrot.slane %v7932, 3
          %v7936 = vrot.slane %v7932, 7
          %v7938 = vrot.slane %v7932, 2
          %v7940 = vrot.slane %v7932, 6
          %v7942 = vrot.slane %v7932, 1
          %v7944 = vrot.slane %v7932, 5
          %vm7946 = vcmask 1040384
          %v7947 = vsel %vm7946, %v7932, %v7934
          %vm7948 = vcmask 1041408
          %v7949 = vsel %vm7948, %v7947, %v7936
          %vm7950 = vcmask 1042432
          %v7951 = vsel %vm7950, %v7949, %v7938
          %vm7952 = vcmask 1043456
          %v7953 = vsel %vm7952, %v7951, %v7940
          %vm7954 = vcmask 1044480
          %v7955 = vsel %vm7954, %v7953, %v7942
          %vm7956 = vcmask 1045504
          %v7957 = vsel %vm7956, %v7955, %v7944
          %vm7958 = vcmask 1046528
          %v7959 = vsel %vm7958, %v7957, %v7932
          %v7960 = vld [vmem:[%s7] sm:$0xff]
          %v7961 = vld [vmem:[%s7 + $0x8] sm:$0xff]
          %v7962 = vld [vmem:[%s7 + $0x10] sm:$0xff]
          %v7963 = vld [vmem:[%s7 + $0x18] sm:$0xff]
          %v7964 = vld [vmem:[%s9] sm:$0x1]
          %v7966 = vperm.slane %v7964, 0
          %v7969 = vsel %vm1361, %v7959, 0
          %7971 = vmatpush.msra.mxu0 0.0
          %7972 = vmatpush.msra.mxu0 0.0
          %7973 = vmatpush.msra.mxu0 0.0
          %7974 = vmatpush.msra.mxu0 0.0
          %7975 = vmatpush.msra.mxu0 0.0
          %7976 = vmatpush.msra.mxu0 0.0
          %7977 = vmatpush.msra.mxu0 0.0
          %7978 = vmatpush.msra.mxu0 0.0
          %7979 = vmatpush.msra.mxu0 0.0
          %7980 = vmatpush.msra.mxu0 0.0
          %7981 = vmatpush.msra.mxu0 0.0
          %7982 = vmatpush.msra.mxu0 0.0
          %7983 = vmatpush.msra.mxu0 %v7963
          %7984 = vmatpush.msra.mxu0 %v7962
          %7985 = vmatpush.msra.mxu0 %v7961
          %7986 = vmatpush.msra.mxu0 %v7960
          %7987 = vmatmul.f32.gmra.mxu0 %v7969
          %v7988 = vpop.f32.mrf.mxu0
          %v7989 = vadd.f32 %v7966, %v7988
          %7990 = vdwg.mxu0
          %s7991 = scalar_lea.vmem %s7, 32
          %v7992 = vld [vmem:[%s7991] sm:$0xff]
          %v7993 = vld [vmem:[%s7991 + $0x8] sm:$0xff]
          %v7994 = vld [vmem:[%s7991 + $0x10] sm:$0xff]
          %v7995 = vld [vmem:[%s7991 + $0x18] sm:$0xff]
          %s7996 = scalar_lea.vmem %s9, 1
          %v7997 = vld [vmem:[%s7996] sm:$0x1]
          %v7999 = vperm.slane %v7997, 0
          %8001 = vmatpush.msra.mxu0 0.0
          %8002 = vmatpush.msra.mxu0 0.0
          %8003 = vmatpush.msra.mxu0 0.0
          %8004 = vmatpush.msra.mxu0 0.0
          %8005 = vmatpush.msra.mxu0 0.0
          %8006 = vmatpush.msra.mxu0 0.0
          %8007 = vmatpush.msra.mxu0 0.0
          %8008 = vmatpush.msra.mxu0 0.0
          %8009 = vmatpush.msra.mxu0 0.0
          %8010 = vmatpush.msra.mxu0 0.0
          %8011 = vmatpush.msra.mxu0 0.0
          %8012 = vmatpush.msra.mxu0 0.0
          %8013 = vmatpush.msra.mxu0 %v7995
          %8014 = vmatpush.msra.mxu0 %v7994
          %8015 = vmatpush.msra.mxu0 %v7993
          %8016 = vmatpush.msra.mxu0 %v7992
          %8017 = vmatmul.f32.gmra.mxu0 %v7969
          %v8018 = vpop.f32.mrf.mxu0
          %v8019 = vadd.f32 %v7999, %v8018
          %8020 = vdwg.mxu0
          %v8021 = vld [vmem:[%s8] sm:$0xff]
          %v8022 = vld [vmem:[%s8 + $0x8] sm:$0xff]
          %v8023 = vld [vmem:[%s8 + $0x10] sm:$0xff]
          %v8024 = vld [vmem:[%s8 + $0x18] sm:$0xff]
          %s8025 = scalar_lea.vmem %s8, 32
          %v8026 = vld [vmem:[%s8025] sm:$0xff]
          %v8027 = vld [vmem:[%s8025 + $0x8] sm:$0xff]
          %v8028 = vld [vmem:[%s8025 + $0x10] sm:$0xff]
          %v8029 = vld [vmem:[%s8025 + $0x18] sm:$0xff]
          %v8031 = vsel %vm1361, 0.0, 0
          %8033 = vmatpush.msra.mxu0 0.0
          %8034 = vmatpush.msra.mxu0 0.0
          %8035 = vmatpush.msra.mxu0 0.0
          %8036 = vmatpush.msra.mxu0 0.0
          %8037 = vmatpush.msra.mxu0 0.0
          %8038 = vmatpush.msra.mxu0 0.0
          %8039 = vmatpush.msra.mxu0 0.0
          %8040 = vmatpush.msra.mxu0 0.0
          %8041 = vmatpush.msra.mxu0 0.0
          %8042 = vmatpush.msra.mxu0 0.0
          %8043 = vmatpush.msra.mxu0 0.0
          %8044 = vmatpush.msra.mxu0 0.0
          %8045 = vmatpush.msra.mxu0 %v8024
          %8046 = vmatpush.msra.mxu0 %v8023
          %8047 = vmatpush.msra.mxu0 %v8022
          %8048 = vmatpush.msra.mxu0 %v8021
          %8049 = vmatmul.f32.gmra.mxu0 %v8031
          %v8050 = vpop.f32.mrf.mxu0
          %v8051 = vadd.f32 0.0, %v8050
          %8052 = vdwg.mxu0
          %v8053 = vadd.f32 %v7989, %v8051
          %8054 = vmatpush.msra.mxu0 0.0
          %8055 = vmatpush.msra.mxu0 0.0
          %8056 = vmatpush.msra.mxu0 0.0
          %8057 = vmatpush.msra.mxu0 0.0
          %8058 = vmatpush.msra.mxu0 0.0
          %8059 = vmatpush.msra.mxu0 0.0
          %8060 = vmatpush.msra.mxu0 0.0
          %8061 = vmatpush.msra.mxu0 0.0
          %8062 = vmatpush.msra.mxu0 0.0
          %8063 = vmatpush.msra.mxu0 0.0
          %8064 = vmatpush.msra.mxu0 0.0
          %8065 = vmatpush.msra.mxu0 0.0
          %8066 = vmatpush.msra.mxu0 %v8029
          %8067 = vmatpush.msra.mxu0 %v8028
          %8068 = vmatpush.msra.mxu0 %v8027
          %8069 = vmatpush.msra.mxu0 %v8026
          %8070 = vmatmul.f32.gmra.mxu0 %v8031
          %v8071 = vpop.f32.mrf.mxu0
          %v8072 = vadd.f32 0.0, %v8071
          %8073 = vdwg.mxu0
          %v8075 = vrot.slane %v8072, 2
          %v8077 = vadd.f32 %v8019, %v8075
          %v8078 = vxor.u32 %v8053, 2147483648
          %v8079 = vmul.f32 %v8078, 1.442695
          %v8080 = vpow.pop %v8079
          %v8081 = vadd.f32 %v8080, 1.0
          %v8082 = vrcp.pop %v8081
          %v8083 = vmul.f32 %v8081, %v8082
          %v8084 = vsub.f32 1.0, %v8083
          %v8085 = vmul.f32 %v8082, %v8084
          %v8086 = vadd.f32 %v8082, %v8085
          %vm8087 = vweird.f32 %v8081
          %vm8088 = vweird.f32 %v8082
          %vm8089 = vmor %vm8087, %vm8088
          %v8090 = vsel %vm8089, %v8082, %v8086
          %v8091 = vand.u32 2147483647, %v8081
          %vm8092 = vcmp.eq.f32.partialorder %v8091, 8.507059e+37
          %v8093 = vand.u32 %v8081, 2147483648
          %v8094 = vor.u32 1.1754944e-38, %v8093
          %v8095 = vsel %vm8092, %v8094, %v8090
          %v8096 = vmul.f32 1.0, %v8095
          %v8097 = vtanh.pop %v8053
          %v8098 = vmul.f32 %v8096, 0.0
          %8100 = vrot.lane.b32.xlu0 %v8097, 64
          %v8101 = vpop.permute.xlu0 %8100
          %v8103 = vmul.f32 %v8096, %v8101
          %8105 = vrot.lane.b32.xlu0 %v8103, 32
          %v8106 = vpop.permute.xlu0 %8105
          %v8108 = vadd.f32 %v8098, %v8106
          %v8109 = vtanh.pop %v8108
          %8111 = vrot.lane.b32.xlu0 %v8109, 64
          %v8112 = vpop.permute.xlu0 %8111
          %v8114 = vmul.f32 %v8096, %v8112
          %v8115 = vxor.u32 %v8077, 2147483648
          %v8116 = vmul.f32 %v8115, 1.442695
          %v8117 = vpow.pop %v8116
          %v8118 = vadd.f32 %v8117, 1.0
          %v8119 = vrcp.pop %v8118
          %v8120 = vmul.f32 %v8118, %v8119
          %v8121 = vsub.f32 1.0, %v8120
          %v8122 = vmul.f32 %v8119, %v8121
          %v8123 = vadd.f32 %v8119, %v8122
          %vm8124 = vweird.f32 %v8118
          %vm8125 = vweird.f32 %v8119
          %vm8126 = vmor %vm8124, %vm8125
          %v8127 = vsel %vm8126, %v8119, %v8123
          %v8128 = vand.u32 2147483647, %v8118
          %vm8129 = vcmp.eq.f32.partialorder %v8128, 8.507059e+37
          %v8130 = vand.u32 %v8118, 2147483648
          %v8131 = vor.u32 1.1754944e-38, %v8130
          %v8132 = vsel %vm8129, %v8131, %v8127
          %v8133 = vmul.f32 1.0, %v8132
          %v8134 = vtanh.pop %v8077
          %v8135 = vmul.f32 %v8133, 0.0
          %8137 = vrot.lane.b32.xlu0 %v8134, 64
          %v8138 = vpop.permute.xlu0 %8137
          %v8140 = vmul.f32 %v8133, %v8138
          %8142 = vrot.lane.b32.xlu0 %v8140, 32
          %v8143 = vpop.permute.xlu0 %8142
          %v8145 = vadd.f32 %v8135, %v8143
          %v8146 = vtanh.pop %v8145
          %8148 = vrot.lane.b32.xlu0 %v8146, 64
          %v8149 = vpop.permute.xlu0 %8148
          %v8151 = vmul.f32 %v8133, %v8149
          %8153 = vrot.lane.b32.xlu0 %v8114, 32
          %v8154 = vpop.permute.xlu0 %8153
          %v8155 = vsel %vm1361, %v8154, 0
          %8157 = vmatpush.msra.mxu0 0.0
          %8158 = vmatpush.msra.mxu0 0.0
          %8159 = vmatpush.msra.mxu0 0.0
          %8160 = vmatpush.msra.mxu0 0.0
          %8161 = vmatpush.msra.mxu0 0.0
          %8162 = vmatpush.msra.mxu0 0.0
          %8163 = vmatpush.msra.mxu0 0.0
          %8164 = vmatpush.msra.mxu0 0.0
          %8165 = vmatpush.msra.mxu0 0.0
          %8166 = vmatpush.msra.mxu0 0.0
          %8167 = vmatpush.msra.mxu0 0.0
          %8168 = vmatpush.msra.mxu0 0.0
          %8169 = vmatpush.msra.mxu0 %v8024
          %8170 = vmatpush.msra.mxu0 %v8023
          %8171 = vmatpush.msra.mxu0 %v8022
          %8172 = vmatpush.msra.mxu0 %v8021
          %8173 = vmatmul.f32.gmra.mxu0 %v8155
          %v8174 = vpop.f32.mrf.mxu0
          %v8175 = vadd.f32 0.0, %v8174
          %8176 = vdwg.mxu0
          %v8178 = vrot.slane %v8175, 6
          %v8180 = vadd.f32 %v7989, %v8178
          %v8182 = vrot.slane %v8151, 6
          %8183 = vrot.lane.b32.xlu0 %v8182, 32
          %v8184 = vpop.permute.xlu0 %8183
          %v8185 = vsel %vm1361, %v8184, 0
          %8187 = vmatpush.msra.mxu0 0.0
          %8188 = vmatpush.msra.mxu0 0.0
          %8189 = vmatpush.msra.mxu0 0.0
          %8190 = vmatpush.msra.mxu0 0.0
          %8191 = vmatpush.msra.mxu0 0.0
          %8192 = vmatpush.msra.mxu0 0.0
          %8193 = vmatpush.msra.mxu0 0.0
          %8194 = vmatpush.msra.mxu0 0.0
          %8195 = vmatpush.msra.mxu0 0.0
          %8196 = vmatpush.msra.mxu0 0.0
          %8197 = vmatpush.msra.mxu0 0.0
          %8198 = vmatpush.msra.mxu0 0.0
          %8199 = vmatpush.msra.mxu0 %v8029
          %8200 = vmatpush.msra.mxu0 %v8028
          %8201 = vmatpush.msra.mxu0 %v8027
          %8202 = vmatpush.msra.mxu0 %v8026
          %8203 = vmatmul.f32.gmra.mxu0 %v8185
          %v8204 = vpop.f32.mrf.mxu0
          %v8205 = vadd.f32 0.0, %v8204
          %8206 = vdwg.mxu0
          %v8208 = vrot.slane %v8205, 4
          %v8210 = vadd.f32 %v8019, %v8208
          %v8211 = vxor.u32 %v8180, 2147483648
          %v8212 = vmul.f32 %v8211, 1.442695
          %v8213 = vpow.pop %v8212
          %v8214 = vadd.f32 %v8213, 1.0
          %v8215 = vrcp.pop %v8214
          %v8216 = vmul.f32 %v8214, %v8215
          %v8217 = vsub.f32 1.0, %v8216
          %v8218 = vmul.f32 %v8215, %v8217
          %v8219 = vadd.f32 %v8215, %v8218
          %vm8220 = vweird.f32 %v8214
          %vm8221 = vweird.f32 %v8215
          %vm8222 = vmor %vm8220, %vm8221
          %v8223 = vsel %vm8222, %v8215, %v8219
          %v8224 = vand.u32 2147483647, %v8214
          %vm8225 = vcmp.eq.f32.partialorder %v8224, 8.507059e+37
          %v8226 = vand.u32 %v8214, 2147483648
          %v8227 = vor.u32 1.1754944e-38, %v8226
          %v8228 = vsel %vm8225, %v8227, %v8223
          %v8229 = vmul.f32 1.0, %v8228
          %v8230 = vtanh.pop %v8180
          %v8232 = vrot.slane %v8108, 6
          %v8234 = vmul.f32 %v8229, %v8232
          %8236 = vrot.lane.b32.xlu0 %v8230, 64
          %v8237 = vpop.permute.xlu0 %8236
          %v8239 = vmul.f32 %v8229, %v8237
          %8241 = vrot.lane.b32.xlu0 %v8239, 32
          %v8242 = vpop.permute.xlu0 %8241
          %v8244 = vadd.f32 %v8234, %v8242
          %v8245 = vtanh.pop %v8244
          %8247 = vrot.lane.b32.xlu0 %v8245, 64
          %v8248 = vpop.permute.xlu0 %8247
          %v8250 = vmul.f32 %v8229, %v8248
          %v8251 = vxor.u32 %v8210, 2147483648
          %v8252 = vmul.f32 %v8251, 1.442695
          %v8253 = vpow.pop %v8252
          %v8254 = vadd.f32 %v8253, 1.0
          %v8255 = vrcp.pop %v8254
          %v8256 = vmul.f32 %v8254, %v8255
          %v8257 = vsub.f32 1.0, %v8256
          %v8258 = vmul.f32 %v8255, %v8257
          %v8259 = vadd.f32 %v8255, %v8258
          %vm8260 = vweird.f32 %v8254
          %vm8261 = vweird.f32 %v8255
          %vm8262 = vmor %vm8260, %vm8261
          %v8263 = vsel %vm8262, %v8255, %v8259
          %v8264 = vand.u32 2147483647, %v8254
          %vm8265 = vcmp.eq.f32.partialorder %v8264, 8.507059e+37
          %v8266 = vand.u32 %v8254, 2147483648
          %v8267 = vor.u32 1.1754944e-38, %v8266
          %v8268 = vsel %vm8265, %v8267, %v8263
          %v8269 = vmul.f32 1.0, %v8268
          %v8270 = vtanh.pop %v8210
          %v8272 = vrot.slane %v8145, 2
          %v8274 = vmul.f32 %v8269, %v8272
          %8276 = vrot.lane.b32.xlu0 %v8270, 64
          %v8277 = vpop.permute.xlu0 %8276
          %v8279 = vmul.f32 %v8269, %v8277
          %8281 = vrot.lane.b32.xlu0 %v8279, 32
          %v8282 = vpop.permute.xlu0 %8281
          %v8284 = vadd.f32 %v8274, %v8282
          %v8285 = vtanh.pop %v8284
          %8287 = vrot.lane.b32.xlu0 %v8285, 64
          %v8288 = vpop.permute.xlu0 %8287
          %v8290 = vmul.f32 %v8269, %v8288
          %v8292 = vrot.slane %v8250, 2
          %8293 = vrot.lane.b32.xlu0 %v8292, 32
          %v8294 = vpop.permute.xlu0 %8293
          %v8295 = vsel %vm1361, %v8294, 0
          %8297 = vmatpush.msra.mxu0 0.0
          %8298 = vmatpush.msra.mxu0 0.0
          %8299 = vmatpush.msra.mxu0 0.0
          %8300 = vmatpush.msra.mxu0 0.0
          %8301 = vmatpush.msra.mxu0 0.0
          %8302 = vmatpush.msra.mxu0 0.0
          %8303 = vmatpush.msra.mxu0 0.0
          %8304 = vmatpush.msra.mxu0 0.0
          %8305 = vmatpush.msra.mxu0 0.0
          %8306 = vmatpush.msra.mxu0 0.0
          %8307 = vmatpush.msra.mxu0 0.0
          %8308 = vmatpush.msra.mxu0 0.0
          %8309 = vmatpush.msra.mxu0 %v8024
          %8310 = vmatpush.msra.mxu0 %v8023
          %8311 = vmatpush.msra.mxu0 %v8022
          %8312 = vmatpush.msra.mxu0 %v8021
          %8313 = vmatmul.f32.gmra.mxu0 %v8295
          %v8314 = vpop.f32.mrf.mxu0
          %v8315 = vadd.f32 0.0, %v8314
          %8316 = vdwg.mxu0
          %v8318 = vrot.slane %v8315, 4
          %v8320 = vadd.f32 %v7989, %v8318
          %v8322 = vrot.slane %v8290, 4
          %8323 = vrot.lane.b32.xlu0 %v8322, 32
          %v8324 = vpop.permute.xlu0 %8323
          %v8325 = vsel %vm1361, %v8324, 0
          %8327 = vmatpush.msra.mxu0 0.0
          %8328 = vmatpush.msra.mxu0 0.0
          %8329 = vmatpush.msra.mxu0 0.0
          %8330 = vmatpush.msra.mxu0 0.0
          %8331 = vmatpush.msra.mxu0 0.0
          %8332 = vmatpush.msra.mxu0 0.0
          %8333 = vmatpush.msra.mxu0 0.0
          %8334 = vmatpush.msra.mxu0 0.0
          %8335 = vmatpush.msra.mxu0 0.0
          %8336 = vmatpush.msra.mxu0 0.0
          %8337 = vmatpush.msra.mxu0 0.0
          %8338 = vmatpush.msra.mxu0 0.0
          %8339 = vmatpush.msra.mxu0 %v8029
          %8340 = vmatpush.msra.mxu0 %v8028
          %8341 = vmatpush.msra.mxu0 %v8027
          %8342 = vmatpush.msra.mxu0 %v8026
          %8343 = vmatmul.f32.gmra.mxu0 %v8325
          %v8344 = vpop.f32.mrf.mxu0
          %v8345 = vadd.f32 0.0, %v8344
          %8346 = vdwg.mxu0
          %v8348 = vrot.slane %v8345, 6
          %v8350 = vadd.f32 %v8019, %v8348
          %v8351 = vxor.u32 %v8320, 2147483648
          %v8352 = vmul.f32 %v8351, 1.442695
          %v8353 = vpow.pop %v8352
          %v8354 = vadd.f32 %v8353, 1.0
          %v8355 = vrcp.pop %v8354
          %v8356 = vmul.f32 %v8354, %v8355
          %v8357 = vsub.f32 1.0, %v8356
          %v8358 = vmul.f32 %v8355, %v8357
          %v8359 = vadd.f32 %v8355, %v8358
          %vm8360 = vweird.f32 %v8354
          %vm8361 = vweird.f32 %v8355
          %vm8362 = vmor %vm8360, %vm8361
          %v8363 = vsel %vm8362, %v8355, %v8359
          %v8364 = vand.u32 2147483647, %v8354
          %vm8365 = vcmp.eq.f32.partialorder %v8364, 8.507059e+37
          %v8366 = vand.u32 %v8354, 2147483648
          %v8367 = vor.u32 1.1754944e-38, %v8366
          %v8368 = vsel %vm8365, %v8367, %v8363
          %v8369 = vmul.f32 1.0, %v8368
          %v8370 = vtanh.pop %v8320
          %v8372 = vrot.slane %v8244, 6
          %v8374 = vmul.f32 %v8369, %v8372
          %8376 = vrot.lane.b32.xlu0 %v8370, 64
          %v8377 = vpop.permute.xlu0 %8376
          %v8379 = vmul.f32 %v8369, %v8377
          %8381 = vrot.lane.b32.xlu0 %v8379, 32
          %v8382 = vpop.permute.xlu0 %8381
          %v8384 = vadd.f32 %v8374, %v8382
          %v8385 = vtanh.pop %v8384
          %8387 = vrot.lane.b32.xlu0 %v8385, 64
          %v8388 = vpop.permute.xlu0 %8387
          %v8390 = vmul.f32 %v8369, %v8388
          %v8391 = vxor.u32 %v8350, 2147483648
          %v8392 = vmul.f32 %v8391, 1.442695
          %v8393 = vpow.pop %v8392
          %v8394 = vadd.f32 %v8393, 1.0
          %v8395 = vrcp.pop %v8394
          %v8396 = vmul.f32 %v8394, %v8395
          %v8397 = vsub.f32 1.0, %v8396
          %v8398 = vmul.f32 %v8395, %v8397
          %v8399 = vadd.f32 %v8395, %v8398
          %vm8400 = vweird.f32 %v8394
          %vm8401 = vweird.f32 %v8395
          %vm8402 = vmor %vm8400, %vm8401
          %v8403 = vsel %vm8402, %v8395, %v8399
          %v8404 = vand.u32 2147483647, %v8394
          %vm8405 = vcmp.eq.f32.partialorder %v8404, 8.507059e+37
          %v8406 = vand.u32 %v8394, 2147483648
          %v8407 = vor.u32 1.1754944e-38, %v8406
          %v8408 = vsel %vm8405, %v8407, %v8403
          %v8409 = vmul.f32 1.0, %v8408
          %v8410 = vtanh.pop %v8350
          %v8412 = vrot.slane %v8284, 2
          %v8414 = vmul.f32 %v8409, %v8412
          %8416 = vrot.lane.b32.xlu0 %v8410, 64
          %v8417 = vpop.permute.xlu0 %8416
          %v8419 = vmul.f32 %v8409, %v8417
          %8421 = vrot.lane.b32.xlu0 %v8419, 32
          %v8422 = vpop.permute.xlu0 %8421
          %v8424 = vadd.f32 %v8414, %v8422
          %v8425 = vtanh.pop %v8424
          %8427 = vrot.lane.b32.xlu0 %v8425, 64
          %v8428 = vpop.permute.xlu0 %8427
          %v8430 = vmul.f32 %v8409, %v8428
          %v8432 = vrot.slane %v8390, 4
          %8433 = vrot.lane.b32.xlu0 %v8432, 32
          %v8434 = vpop.permute.xlu0 %8433
          %v8435 = vsel %vm1361, %v8434, 0
          %8437 = vmatpush.msra.mxu0 0.0
          %8438 = vmatpush.msra.mxu0 0.0
          %8439 = vmatpush.msra.mxu0 0.0
          %8440 = vmatpush.msra.mxu0 0.0
          %8441 = vmatpush.msra.mxu0 0.0
          %8442 = vmatpush.msra.mxu0 0.0
          %8443 = vmatpush.msra.mxu0 0.0
          %8444 = vmatpush.msra.mxu0 0.0
          %8445 = vmatpush.msra.mxu0 0.0
          %8446 = vmatpush.msra.mxu0 0.0
          %8447 = vmatpush.msra.mxu0 0.0
          %8448 = vmatpush.msra.mxu0 0.0
          %8449 = vmatpush.msra.mxu0 %v8024
          %8450 = vmatpush.msra.mxu0 %v8023
          %8451 = vmatpush.msra.mxu0 %v8022
          %8452 = vmatpush.msra.mxu0 %v8021
          %8453 = vmatmul.f32.gmra.mxu0 %v8435
          %v8454 = vpop.f32.mrf.mxu0
          %v8455 = vadd.f32 0.0, %v8454
          %8456 = vdwg.mxu0
          %v8458 = vrot.slane %v8455, 2
          %v8460 = vadd.f32 %v7989, %v8458
          %v8462 = vrot.slane %v8430, 2
          %8463 = vrot.lane.b32.xlu0 %v8462, 32
          %v8464 = vpop.permute.xlu0 %8463
          %v8465 = vsel %vm1361, %v8464, 0
          %8467 = vmatpush.msra.mxu0 0.0
          %8468 = vmatpush.msra.mxu0 0.0
          %8469 = vmatpush.msra.mxu0 0.0
          %8470 = vmatpush.msra.mxu0 0.0
          %8471 = vmatpush.msra.mxu0 0.0
          %8472 = vmatpush.msra.mxu0 0.0
          %8473 = vmatpush.msra.mxu0 0.0
          %8474 = vmatpush.msra.mxu0 0.0
          %8475 = vmatpush.msra.mxu0 0.0
          %8476 = vmatpush.msra.mxu0 0.0
          %8477 = vmatpush.msra.mxu0 0.0
          %8478 = vmatpush.msra.mxu0 0.0
          %8479 = vmatpush.msra.mxu0 %v8029
          %8480 = vmatpush.msra.mxu0 %v8028
          %8481 = vmatpush.msra.mxu0 %v8027
          %8482 = vmatpush.msra.mxu0 %v8026
          %8483 = vmatmul.f32.gmra.mxu0 %v8465
          %v8484 = vpop.f32.mrf.mxu0
          %v8485 = vadd.f32 0.0, %v8484
          %8486 = vdwg.mxu0
          %v8487 = vadd.f32 %v8019, %v8485
          %v8488 = vxor.u32 %v8460, 2147483648
          %v8489 = vmul.f32 %v8488, 1.442695
          %v8490 = vpow.pop %v8489
          %v8491 = vadd.f32 %v8490, 1.0
          %v8492 = vrcp.pop %v8491
          %v8493 = vmul.f32 %v8491, %v8492
          %v8494 = vsub.f32 1.0, %v8493
          %v8495 = vmul.f32 %v8492, %v8494
          %v8496 = vadd.f32 %v8492, %v8495
          %vm8497 = vweird.f32 %v8491
          %vm8498 = vweird.f32 %v8492
          %vm8499 = vmor %vm8497, %vm8498
          %v8500 = vsel %vm8499, %v8492, %v8496
          %v8501 = vand.u32 2147483647, %v8491
          %vm8502 = vcmp.eq.f32.partialorder %v8501, 8.507059e+37
          %v8503 = vand.u32 %v8491, 2147483648
          %v8504 = vor.u32 1.1754944e-38, %v8503
          %v8505 = vsel %vm8502, %v8504, %v8500
          %v8506 = vmul.f32 1.0, %v8505
          %v8507 = vtanh.pop %v8460
          %v8509 = vrot.slane %v8384, 6
          %v8511 = vmul.f32 %v8506, %v8509
          %8513 = vrot.lane.b32.xlu0 %v8507, 64
          %v8514 = vpop.permute.xlu0 %8513
          %v8516 = vmul.f32 %v8506, %v8514
          %8518 = vrot.lane.b32.xlu0 %v8516, 32
          %v8519 = vpop.permute.xlu0 %8518
          %v8521 = vadd.f32 %v8511, %v8519
          %v8522 = vtanh.pop %v8521
          %8524 = vrot.lane.b32.xlu0 %v8522, 64
          %v8525 = vpop.permute.xlu0 %8524
          %v8527 = vmul.f32 %v8506, %v8525
          %v8528 = vxor.u32 %v8487, 2147483648
          %v8529 = vmul.f32 %v8528, 1.442695
          %v8530 = vpow.pop %v8529
          %v8531 = vadd.f32 %v8530, 1.0
          %v8532 = vrcp.pop %v8531
          %v8533 = vmul.f32 %v8531, %v8532
          %v8534 = vsub.f32 1.0, %v8533
          %v8535 = vmul.f32 %v8532, %v8534
          %v8536 = vadd.f32 %v8532, %v8535
          %vm8537 = vweird.f32 %v8531
          %vm8538 = vweird.f32 %v8532
          %vm8539 = vmor %vm8537, %vm8538
          %v8540 = vsel %vm8539, %v8532, %v8536
          %v8541 = vand.u32 2147483647, %v8531
          %vm8542 = vcmp.eq.f32.partialorder %v8541, 8.507059e+37
          %v8543 = vand.u32 %v8531, 2147483648
          %v8544 = vor.u32 1.1754944e-38, %v8543
          %v8545 = vsel %vm8542, %v8544, %v8540
          %v8546 = vmul.f32 1.0, %v8545
          %v8547 = vtanh.pop %v8487
          %v8549 = vrot.slane %v8424, 2
          %v8551 = vmul.f32 %v8546, %v8549
          %8553 = vrot.lane.b32.xlu0 %v8547, 64
          %v8554 = vpop.permute.xlu0 %8553
          %v8556 = vmul.f32 %v8546, %v8554
          %8558 = vrot.lane.b32.xlu0 %v8556, 32
          %v8559 = vpop.permute.xlu0 %8558
          %v8561 = vadd.f32 %v8551, %v8559
          %v8562 = vtanh.pop %v8561
          %8564 = vrot.lane.b32.xlu0 %v8562, 64
          %v8565 = vpop.permute.xlu0 %8564
          %v8567 = vmul.f32 %v8546, %v8565
          %8570 = vrot.lane.b32.xlu0 %v8567, 64
          %v8571 = vpop.permute.xlu0 %8570
          %v8573 = vsel %vm1361, %v8154, %v8571
          %8574 = vrot.lane.b32.xlu0 %v8250, 32
          %v8575 = vpop.permute.xlu0 %8574
          %8577 = vrot.lane.b32.xlu0 %v8430, 64
          %v8578 = vpop.permute.xlu0 %8577
          %v8580 = vsel %vm1361, %v8575, %v8578
          %8581 = vrot.lane.b32.xlu0 %v8390, 32
          %v8582 = vpop.permute.xlu0 %8581
          %8584 = vrot.lane.b32.xlu0 %v8290, 64
          %v8585 = vpop.permute.xlu0 %8584
          %v8587 = vsel %vm1361, %v8582, %v8585
          %8589 = vrot.lane.b32.xlu0 %v8527, 32
          %v8590 = vpop.permute.xlu0 %8589
          %8592 = vrot.lane.b32.xlu0 %v8151, 64
          %v8593 = vpop.permute.xlu0 %8592
          %v8595 = vsel %vm1361, %v8590, %v8593
          %v8596 = vsel %vm7948, %v8573, %v8580
          %v8597 = vsel %vm7952, %v8596, %v8587
          %v8598 = vsel %vm7956, %v8597, %v8595
          %v8599 = vld [vmem:[%s10] sm:$0xff]
          %v8600 = vld [vmem:[%s10 + $0x8] sm:$0xff]
          %v8601 = vld [vmem:[%s10 + $0x10] sm:$0xff]
          %v8602 = vld [vmem:[%s10 + $0x18] sm:$0xff]
          %v8603 = vld [vmem:[%s10 + $0x20] sm:$0xff]
          %v8604 = vld [vmem:[%s10 + $0x28] sm:$0xff]
          %v8605 = vld [vmem:[%s10 + $0x30] sm:$0xff]
          %v8606 = vld [vmem:[%s10 + $0x38] sm:$0xff]
          %v8607 = vld [vmem:[%s12] sm:$0x1]
          %v8609 = vperm.slane %v8607, 0
          %vm8611 = vcmask 523264
          %v8613 = vsel %vm8611, %v8598, 0
          %8615 = vmatpush.msra.mxu0 0.0
          %8616 = vmatpush.msra.mxu0 0.0
          %8617 = vmatpush.msra.mxu0 0.0
          %8618 = vmatpush.msra.mxu0 0.0
          %8619 = vmatpush.msra.mxu0 0.0
          %8620 = vmatpush.msra.mxu0 0.0
          %8621 = vmatpush.msra.mxu0 0.0
          %8622 = vmatpush.msra.mxu0 0.0
          %8623 = vmatpush.msra.mxu0 %v8606
          %8624 = vmatpush.msra.mxu0 %v8605
          %8625 = vmatpush.msra.mxu0 %v8604
          %8626 = vmatpush.msra.mxu0 %v8603
          %8627 = vmatpush.msra.mxu0 %v8602
          %8628 = vmatpush.msra.mxu0 %v8601
          %8629 = vmatpush.msra.mxu0 %v8600
          %8630 = vmatpush.msra.mxu0 %v8599
          %8631 = vmatmul.f32.gmra.mxu0 %v8613
          %v8632 = vpop.f32.mrf.mxu0
          %v8633 = vadd.f32 %v8609, %v8632
          %8634 = vdwg.mxu0
          %v8635 = vld [vmem:[%s11] sm:$0xff]
          %v8636 = vld [vmem:[%s11 + $0x8] sm:$0xff]
          %v8637 = vld [vmem:[%s11 + $0x10] sm:$0xff]
          %v8638 = vld [vmem:[%s11 + $0x18] sm:$0xff]
          %8639 = vmatpush.msra.mxu0 0.0
          %8640 = vmatpush.msra.mxu0 0.0
          %8641 = vmatpush.msra.mxu0 0.0
          %8642 = vmatpush.msra.mxu0 0.0
          %8643 = vmatpush.msra.mxu0 0.0
          %8644 = vmatpush.msra.mxu0 0.0
          %8645 = vmatpush.msra.mxu0 0.0
          %8646 = vmatpush.msra.mxu0 0.0
          %8647 = vmatpush.msra.mxu0 0.0
          %8648 = vmatpush.msra.mxu0 0.0
          %8649 = vmatpush.msra.mxu0 0.0
          %8650 = vmatpush.msra.mxu0 0.0
          %8651 = vmatpush.msra.mxu0 %v8638
          %8652 = vmatpush.msra.mxu0 %v8637
          %8653 = vmatpush.msra.mxu0 %v8636
          %8654 = vmatpush.msra.mxu0 %v8635
          %8655 = vmatmul.f32.gmra.mxu0 %v8031
          %v8656 = vpop.f32.mrf.mxu0
          %v8657 = vadd.f32 0.0, %v8656
          %8658 = vdwg.mxu0
          %v8659 = vadd.f32 %v8633, %v8657
          %v8660 = vxor.u32 %v8659, 2147483648
          %v8661 = vmul.f32 %v8660, 1.442695
          %v8662 = vpow.pop %v8661
          %v8663 = vadd.f32 %v8662, 1.0
          %v8664 = vrcp.pop %v8663
          %v8665 = vmul.f32 %v8663, %v8664
          %v8666 = vsub.f32 1.0, %v8665
          %v8667 = vmul.f32 %v8664, %v8666
          %v8668 = vadd.f32 %v8664, %v8667
          %vm8669 = vweird.f32 %v8663
          %vm8670 = vweird.f32 %v8664
          %vm8671 = vmor %vm8669, %vm8670
          %v8672 = vsel %vm8671, %v8664, %v8668
          %v8673 = vand.u32 2147483647, %v8663
          %vm8674 = vcmp.eq.f32.partialorder %v8673, 8.507059e+37
          %v8675 = vand.u32 %v8663, 2147483648
          %v8676 = vor.u32 1.1754944e-38, %v8675
          %v8677 = vsel %vm8674, %v8676, %v8672
          %v8678 = vmul.f32 1.0, %v8677
          %v8679 = vtanh.pop %v8659
          %v8680 = vmul.f32 %v8678, 0.0
          %8682 = vrot.lane.b32.xlu0 %v8679, 64
          %v8683 = vpop.permute.xlu0 %8682
          %v8685 = vmul.f32 %v8678, %v8683
          %8687 = vrot.lane.b32.xlu0 %v8685, 32
          %v8688 = vpop.permute.xlu0 %8687
          %v8690 = vadd.f32 %v8680, %v8688
          %v8691 = vtanh.pop %v8690
          %8693 = vrot.lane.b32.xlu0 %v8691, 64
          %v8694 = vpop.permute.xlu0 %8693
          %v8696 = vmul.f32 %v8678, %v8694
          %8698 = vrot.lane.b32.xlu0 %v8696, 32
          %v8699 = vpop.permute.xlu0 %8698
          %v8700 = vsel %vm1361, %v8699, 0
          %8702 = vmatpush.msra.mxu0 0.0
          %8703 = vmatpush.msra.mxu0 0.0
          %8704 = vmatpush.msra.mxu0 0.0
          %8705 = vmatpush.msra.mxu0 0.0
          %8706 = vmatpush.msra.mxu0 0.0
          %8707 = vmatpush.msra.mxu0 0.0
          %8708 = vmatpush.msra.mxu0 0.0
          %8709 = vmatpush.msra.mxu0 0.0
          %8710 = vmatpush.msra.mxu0 0.0
          %8711 = vmatpush.msra.mxu0 0.0
          %8712 = vmatpush.msra.mxu0 0.0
          %8713 = vmatpush.msra.mxu0 0.0
          %8714 = vmatpush.msra.mxu0 %v8638
          %8715 = vmatpush.msra.mxu0 %v8637
          %8716 = vmatpush.msra.mxu0 %v8636
          %8717 = vmatpush.msra.mxu0 %v8635
          %8718 = vmatmul.f32.gmra.mxu0 %v8700
          %v8719 = vpop.f32.mrf.mxu0
          %v8720 = vadd.f32 0.0, %v8719
          %8721 = vdwg.mxu0
          %v8723 = vrot.slane %v8720, 6
          %v8725 = vadd.f32 %v8633, %v8723
          %v8726 = vxor.u32 %v8725, 2147483648
          %v8727 = vmul.f32 %v8726, 1.442695
          %v8728 = vpow.pop %v8727
          %v8729 = vadd.f32 %v8728, 1.0
          %v8730 = vrcp.pop %v8729
          %v8731 = vmul.f32 %v8729, %v8730
          %v8732 = vsub.f32 1.0, %v8731
          %v8733 = vmul.f32 %v8730, %v8732
          %v8734 = vadd.f32 %v8730, %v8733
          %vm8735 = vweird.f32 %v8729
          %vm8736 = vweird.f32 %v8730
          %vm8737 = vmor %vm8735, %vm8736
          %v8738 = vsel %vm8737, %v8730, %v8734
          %v8739 = vand.u32 2147483647, %v8729
          %vm8740 = vcmp.eq.f32.partialorder %v8739, 8.507059e+37
          %v8741 = vand.u32 %v8729, 2147483648
          %v8742 = vor.u32 1.1754944e-38, %v8741
          %v8743 = vsel %vm8740, %v8742, %v8738
          %v8744 = vmul.f32 1.0, %v8743
          %v8745 = vtanh.pop %v8725
          %v8747 = vrot.slane %v8690, 6
          %v8749 = vmul.f32 %v8744, %v8747
          %8751 = vrot.lane.b32.xlu0 %v8745, 64
          %v8752 = vpop.permute.xlu0 %8751
          %v8754 = vmul.f32 %v8744, %v8752
          %8756 = vrot.lane.b32.xlu0 %v8754, 32
          %v8757 = vpop.permute.xlu0 %8756
          %v8759 = vadd.f32 %v8749, %v8757
          %v8760 = vtanh.pop %v8759
          %8762 = vrot.lane.b32.xlu0 %v8760, 64
          %v8763 = vpop.permute.xlu0 %8762
          %v8765 = vmul.f32 %v8744, %v8763
          %v8767 = vrot.slane %v8765, 2
          %8768 = vrot.lane.b32.xlu0 %v8767, 32
          %v8769 = vpop.permute.xlu0 %8768
          %v8770 = vsel %vm1361, %v8769, 0
          %8772 = vmatpush.msra.mxu0 0.0
          %8773 = vmatpush.msra.mxu0 0.0
          %8774 = vmatpush.msra.mxu0 0.0
          %8775 = vmatpush.msra.mxu0 0.0
          %8776 = vmatpush.msra.mxu0 0.0
          %8777 = vmatpush.msra.mxu0 0.0
          %8778 = vmatpush.msra.mxu0 0.0
          %8779 = vmatpush.msra.mxu0 0.0
          %8780 = vmatpush.msra.mxu0 0.0
          %8781 = vmatpush.msra.mxu0 0.0
          %8782 = vmatpush.msra.mxu0 0.0
          %8783 = vmatpush.msra.mxu0 0.0
          %8784 = vmatpush.msra.mxu0 %v8638
          %8785 = vmatpush.msra.mxu0 %v8637
          %8786 = vmatpush.msra.mxu0 %v8636
          %8787 = vmatpush.msra.mxu0 %v8635
          %8788 = vmatmul.f32.gmra.mxu0 %v8770
          %v8789 = vpop.f32.mrf.mxu0
          %v8790 = vadd.f32 0.0, %v8789
          %8791 = vdwg.mxu0
          %v8793 = vrot.slane %v8790, 4
          %v8795 = vadd.f32 %v8633, %v8793
          %v8796 = vxor.u32 %v8795, 2147483648
          %v8797 = vmul.f32 %v8796, 1.442695
          %v8798 = vpow.pop %v8797
          %v8799 = vadd.f32 %v8798, 1.0
          %v8800 = vrcp.pop %v8799
          %v8801 = vmul.f32 %v8799, %v8800
          %v8802 = vsub.f32 1.0, %v8801
          %v8803 = vmul.f32 %v8800, %v8802
          %v8804 = vadd.f32 %v8800, %v8803
          %vm8805 = vweird.f32 %v8799
          %vm8806 = vweird.f32 %v8800
          %vm8807 = vmor %vm8805, %vm8806
          %v8808 = vsel %vm8807, %v8800, %v8804
          %v8809 = vand.u32 2147483647, %v8799
          %vm8810 = vcmp.eq.f32.partialorder %v8809, 8.507059e+37
          %v8811 = vand.u32 %v8799, 2147483648
          %v8812 = vor.u32 1.1754944e-38, %v8811
          %v8813 = vsel %vm8810, %v8812, %v8808
          %v8814 = vmul.f32 1.0, %v8813
          %v8815 = vtanh.pop %v8795
          %v8817 = vrot.slane %v8759, 6
          %v8819 = vmul.f32 %v8814, %v8817
          %8821 = vrot.lane.b32.xlu0 %v8815, 64
          %v8822 = vpop.permute.xlu0 %8821
          %v8824 = vmul.f32 %v8814, %v8822
          %8826 = vrot.lane.b32.xlu0 %v8824, 32
          %v8827 = vpop.permute.xlu0 %8826
          %v8829 = vadd.f32 %v8819, %v8827
          %v8830 = vtanh.pop %v8829
          %8832 = vrot.lane.b32.xlu0 %v8830, 64
          %v8833 = vpop.permute.xlu0 %8832
          %v8835 = vmul.f32 %v8814, %v8833
          %v8837 = vrot.slane %v8835, 4
          %8838 = vrot.lane.b32.xlu0 %v8837, 32
          %v8839 = vpop.permute.xlu0 %8838
          %v8840 = vsel %vm1361, %v8839, 0
          %8842 = vmatpush.msra.mxu0 0.0
          %8843 = vmatpush.msra.mxu0 0.0
          %8844 = vmatpush.msra.mxu0 0.0
          %8845 = vmatpush.msra.mxu0 0.0
          %8846 = vmatpush.msra.mxu0 0.0
          %8847 = vmatpush.msra.mxu0 0.0
          %8848 = vmatpush.msra.mxu0 0.0
          %8849 = vmatpush.msra.mxu0 0.0
          %8850 = vmatpush.msra.mxu0 0.0
          %8851 = vmatpush.msra.mxu0 0.0
          %8852 = vmatpush.msra.mxu0 0.0
          %8853 = vmatpush.msra.mxu0 0.0
          %8854 = vmatpush.msra.mxu0 %v8638
          %8855 = vmatpush.msra.mxu0 %v8637
          %8856 = vmatpush.msra.mxu0 %v8636
          %8857 = vmatpush.msra.mxu0 %v8635
          %8858 = vmatmul.f32.gmra.mxu0 %v8840
          %v8859 = vpop.f32.mrf.mxu0
          %v8860 = vadd.f32 0.0, %v8859
          %8861 = vdwg.mxu0
          %v8863 = vrot.slane %v8860, 2
          %v8865 = vadd.f32 %v8633, %v8863
          %v8866 = vxor.u32 %v8865, 2147483648
          %v8867 = vmul.f32 %v8866, 1.442695
          %v8868 = vpow.pop %v8867
          %v8869 = vadd.f32 %v8868, 1.0
          %v8870 = vrcp.pop %v8869
          %v8871 = vmul.f32 %v8869, %v8870
          %v8872 = vsub.f32 1.0, %v8871
          %v8873 = vmul.f32 %v8870, %v8872
          %v8874 = vadd.f32 %v8870, %v8873
          %vm8875 = vweird.f32 %v8869
          %vm8876 = vweird.f32 %v8870
          %vm8877 = vmor %vm8875, %vm8876
          %v8878 = vsel %vm8877, %v8870, %v8874
          %v8879 = vand.u32 2147483647, %v8869
          %vm8880 = vcmp.eq.f32.partialorder %v8879, 8.507059e+37
          %v8881 = vand.u32 %v8869, 2147483648
          %v8882 = vor.u32 1.1754944e-38, %v8881
          %v8883 = vsel %vm8880, %v8882, %v8878
          %v8884 = vmul.f32 1.0, %v8883
          %v8885 = vtanh.pop %v8865
          %v8887 = vrot.slane %v8829, 6
          %v8889 = vmul.f32 %v8884, %v8887
          %8891 = vrot.lane.b32.xlu0 %v8885, 64
          %v8892 = vpop.permute.xlu0 %8891
          %v8894 = vmul.f32 %v8884, %v8892
          %8896 = vrot.lane.b32.xlu0 %v8894, 32
          %v8897 = vpop.permute.xlu0 %8896
          %v8899 = vadd.f32 %v8889, %v8897
          %v8900 = vtanh.pop %v8899
          %8902 = vrot.lane.b32.xlu0 %v8900, 64
          %v8903 = vpop.permute.xlu0 %8902
          %v8905 = vmul.f32 %v8884, %v8903
          %s8906 = scalar_lea.vmem %s10, 64
          %v8907 = vld [vmem:[%s8906] sm:$0xff]
          %v8908 = vld [vmem:[%s8906 + $0x8] sm:$0xff]
          %v8909 = vld [vmem:[%s8906 + $0x10] sm:$0xff]
          %v8910 = vld [vmem:[%s8906 + $0x18] sm:$0xff]
          %v8911 = vld [vmem:[%s8906 + $0x20] sm:$0xff]
          %v8912 = vld [vmem:[%s8906 + $0x28] sm:$0xff]
          %v8913 = vld [vmem:[%s8906 + $0x30] sm:$0xff]
          %v8914 = vld [vmem:[%s8906 + $0x38] sm:$0xff]
          %s8915 = scalar_lea.vmem %s12, 1
          %v8916 = vld [vmem:[%s8915] sm:$0x1]
          %v8918 = vperm.slane %v8916, 0
          %v8920 = vrot.slane %v8598, 6
          %v8921 = vsel %vm8611, %v8920, 0
          %8923 = vmatpush.msra.mxu0 0.0
          %8924 = vmatpush.msra.mxu0 0.0
          %8925 = vmatpush.msra.mxu0 0.0
          %8926 = vmatpush.msra.mxu0 0.0
          %8927 = vmatpush.msra.mxu0 0.0
          %8928 = vmatpush.msra.mxu0 0.0
          %8929 = vmatpush.msra.mxu0 0.0
          %8930 = vmatpush.msra.mxu0 0.0
          %8931 = vmatpush.msra.mxu0 %v8914
          %8932 = vmatpush.msra.mxu0 %v8913
          %8933 = vmatpush.msra.mxu0 %v8912
          %8934 = vmatpush.msra.mxu0 %v8911
          %8935 = vmatpush.msra.mxu0 %v8910
          %8936 = vmatpush.msra.mxu0 %v8909
          %8937 = vmatpush.msra.mxu0 %v8908
          %8938 = vmatpush.msra.mxu0 %v8907
          %8939 = vmatmul.f32.gmra.mxu0 %v8921
          %v8940 = vpop.f32.mrf.mxu0
          %v8941 = vadd.f32 %v8918, %v8940
          %8942 = vdwg.mxu0
          %v8943 = vxor.u32 %v8941, 2147483648
          %v8944 = vmul.f32 %v8943, 1.442695
          %v8945 = vpow.pop %v8944
          %v8946 = vadd.f32 %v8945, 1.0
          %v8947 = vrcp.pop %v8946
          %v8948 = vmul.f32 %v8946, %v8947
          %v8949 = vsub.f32 1.0, %v8948
          %v8950 = vmul.f32 %v8947, %v8949
          %v8951 = vadd.f32 %v8947, %v8950
          %vm8952 = vweird.f32 %v8946
          %vm8953 = vweird.f32 %v8947
          %vm8954 = vmor %vm8952, %vm8953
          %v8955 = vsel %vm8954, %v8947, %v8951
          %v8956 = vand.u32 2147483647, %v8946
          %vm8957 = vcmp.eq.f32.partialorder %v8956, 8.507059e+37
          %v8958 = vand.u32 %v8946, 2147483648
          %v8959 = vor.u32 1.1754944e-38, %v8958
          %v8960 = vsel %vm8957, %v8959, %v8955
          %v8961 = vmul.f32 1.0, %v8960
          %v8962 = vtanh.pop %v8941
          %v8963 = vmul.f32 %v8961, 0.0
          %8965 = vrot.lane.b32.xlu0 %v8962, 64
          %v8966 = vpop.permute.xlu0 %8965
          %v8968 = vmul.f32 %v8961, %v8966
          %8970 = vrot.lane.b32.xlu0 %v8968, 32
          %v8971 = vpop.permute.xlu0 %8970
          %v8973 = vadd.f32 %v8963, %v8971
          %v8974 = vtanh.pop %v8973
          %8976 = vrot.lane.b32.xlu0 %v8974, 64
          %v8977 = vpop.permute.xlu0 %8976
          %v8979 = vmul.f32 %v8961, %v8977
          %8981 = vrot.lane.b32.xlu0 %v8905, 32
          %v8982 = vpop.permute.xlu0 %8981
          %v8985 = vrot.slane %v8979, 2
          %8986 = vrot.lane.b32.xlu0 %v8985, 64
          %v8987 = vpop.permute.xlu0 %8986
          %v8989 = vsel %vm1361, %v8982, %v8987
          %v8990 = vld [vmem:[%s13] sm:$0xff]
          %v8991 = vld [vmem:[%s13 + $0x8] sm:$0xff]
          %v8992 = vld [vmem:[%s13 + $0x10] sm:$0xff]
          %v8993 = vld [vmem:[%s13 + $0x18] sm:$0xff]
          %v8994 = vld [vmem:[%s13 + $0x20] sm:$0xff]
          %v8995 = vld [vmem:[%s13 + $0x28] sm:$0xff]
          %v8996 = vld [vmem:[%s13 + $0x30] sm:$0xff]
          %v8997 = vld [vmem:[%s13 + $0x38] sm:$0xff]
          %v8998 = vld [vmem:[%s14] sm:$0x1]
          %v9000 = vperm.slane %v8998, 0
          %v9003 = vrot.slane %v8989, 6
          %v9004 = vsel %vm8611, %v9003, 0
          %9006 = vmatpush.msra.mxu0 0.0
          %9007 = vmatpush.msra.mxu0 0.0
          %9008 = vmatpush.msra.mxu0 0.0
          %9009 = vmatpush.msra.mxu0 0.0
          %9010 = vmatpush.msra.mxu0 0.0
          %9011 = vmatpush.msra.mxu0 0.0
          %9012 = vmatpush.msra.mxu0 0.0
          %9013 = vmatpush.msra.mxu0 0.0
          %9014 = vmatpush.msra.mxu0 %v8997
          %9015 = vmatpush.msra.mxu0 %v8996
          %9016 = vmatpush.msra.mxu0 %v8995
          %9017 = vmatpush.msra.mxu0 %v8994
          %9018 = vmatpush.msra.mxu0 %v8993
          %9019 = vmatpush.msra.mxu0 %v8992
          %9020 = vmatpush.msra.mxu0 %v8991
          %9021 = vmatpush.msra.mxu0 %v8990
          %9022 = vmatmul.f32.gmra.mxu0 %v9004
          %v9023 = vpop.f32.mrf.mxu0
          %v9024 = vadd.f32 %v9000, %v9023
          %9025 = vdwg.mxu0
          %v9026 = vld [vmem:[%s15] sm:$0xff]
          %v9027 = vld [vmem:[%s15 + $0x8] sm:$0xff]
          %v9028 = vld [vmem:[%s15 + $0x10] sm:$0xff]
          %v9029 = vld [vmem:[%s15 + $0x18] sm:$0xff]
          %v9030 = vld [vmem:[%s15 + $0x20] sm:$0xff]
          %v9031 = vld [vmem:[%s15 + $0x28] sm:$0xff]
          %v9032 = vld [vmem:[%s15 + $0x30] sm:$0xff]
          %v9033 = vld [vmem:[%s15 + $0x38] sm:$0xff]
          %v9034 = vld [vmem:[%s15 + $0x40] sm:$0xff]
          %v9035 = vld [vmem:[%s15 + $0x48] sm:$0xff]
          %v9036 = vld [vmem:[%s15 + $0x50] sm:$0xff]
          %v9037 = vld [vmem:[%s15 + $0x58] sm:$0xff]
          %v9038 = vld [vmem:[%s15 + $0x60] sm:$0xff]
          %v9039 = vld [vmem:[%s15 + $0x68] sm:$0xff]
          %v9040 = vld [vmem:[%s15 + $0x70] sm:$0xff]
          %v9041 = vld [vmem:[%s15 + $0x78] sm:$0xff]
          %v9042 = vld [vmem:[%s16] sm:$0x1]
          %v9044 = vperm.slane %v9042, 0
          %9046 = vmatpush.msra.mxu0 %v9041
          %9047 = vmatpush.msra.mxu0 %v9040
          %9048 = vmatpush.msra.mxu0 %v9039
          %9049 = vmatpush.msra.mxu0 %v9038
          %9050 = vmatpush.msra.mxu0 %v9037
          %9051 = vmatpush.msra.mxu0 %v9036
          %9052 = vmatpush.msra.mxu0 %v9035
          %9053 = vmatpush.msra.mxu0 %v9034
          %9054 = vmatpush.msra.mxu0 %v9033
          %9055 = vmatpush.msra.mxu0 %v9032
          %9056 = vmatpush.msra.mxu0 %v9031
          %9057 = vmatpush.msra.mxu0 %v9030
          %9058 = vmatpush.msra.mxu0 %v9029
          %9059 = vmatpush.msra.mxu0 %v9028
          %9060 = vmatpush.msra.mxu0 %v9027
          %9061 = vmatpush.msra.mxu0 %v9026
          %9062 = vmatmul.f32.gmra.mxu0 %v9024
          %v9063 = vpop.f32.mrf.mxu0
          %v9064 = vadd.f32 %v9044, %v9063
          %9065 = vdwg.mxu0
          %v9066 = vld [vmem:[%s17] sm:$0xff]
          %v9067 = vld [vmem:[%s17 + $0x8] sm:$0xff]
          %v9068 = vld [vmem:[%s17 + $0x10] sm:$0xff]
          %v9069 = vld [vmem:[%s17 + $0x18] sm:$0xff]
          %v9070 = vld [vmem:[%s17 + $0x20] sm:$0xff]
          %v9071 = vld [vmem:[%s17 + $0x28] sm:$0xff]
          %v9072 = vld [vmem:[%s17 + $0x30] sm:$0xff]
          %v9073 = vld [vmem:[%s17 + $0x38] sm:$0xff]
          %v9074 = vld [vmem:[%s18] sm:$0x1]
          %v9076 = vperm.slane %v9074, 0
          %v9079 = vsel %vm8611, %v9064, 0
          %9081 = vmatpush.msra.mxu0 0.0
          %9082 = vmatpush.msra.mxu0 0.0
          %9083 = vmatpush.msra.mxu0 0.0
          %9084 = vmatpush.msra.mxu0 0.0
          %9085 = vmatpush.msra.mxu0 0.0
          %9086 = vmatpush.msra.mxu0 0.0
          %9087 = vmatpush.msra.mxu0 0.0
          %9088 = vmatpush.msra.mxu0 0.0
          %9089 = vmatpush.msra.mxu0 %v9073
          %9090 = vmatpush.msra.mxu0 %v9072
          %9091 = vmatpush.msra.mxu0 %v9071
          %9092 = vmatpush.msra.mxu0 %v9070
          %9093 = vmatpush.msra.mxu0 %v9069
          %9094 = vmatpush.msra.mxu0 %v9068
          %9095 = vmatpush.msra.mxu0 %v9067
          %9096 = vmatpush.msra.mxu0 %v9066
          %9097 = vmatmul.f32.gmra.mxu0 %v9079
          %v9098 = vpop.f32.mrf.mxu0
          %v9099 = vadd.f32 %v9076, %v9098
          %9100 = vdwg.mxu0
          %vm9101 = vcmask 9216
          %9102 = vst.msk [vmem:[#allocation4] sm:$0x3] %vm9101, %v9099
        $region108: #{acnn_bilstm_forward.1} parent=95 // pred_fallthru
          _
        // Predicated region
        $region109: #{acnn_bilstm_forward.1} parent=95 // pred_check
          %p9103 = pneg %p463
        $region110: #{acnn_bilstm_forward.1} parent=95 // pred_check_branch
          %9105 = sbr.rel (%p9103) target = $region112
        $region111: #{acnn_bilstm_forward.1} parent=95 // pred_region
          %9107 = vsyncadd [#allocation5], 0
          %s9109 = sshll.u32 [#allocation4], 4
          %s9110 = int_to_ptr.vmem [resolvable:$true] %s9109
          %s9111 = sshll.u32 %s19, 4
          %s9112 = int_to_ptr.hbm [resolvable:$true] %s9111
          %9114 = dma.vmem_to_hbm [thread:$0]  %s9110, 32, %s9112, [#allocation5]
        $region112: #{acnn_bilstm_forward.1} parent=95 // pred_fallthru
          _
        // Predicated region
        $region113: #{acnn_bilstm_forward.1} parent=95 // pred_check
          %p9115 = pneg %p463
        $region114: #{acnn_bilstm_forward.1} parent=95 // pred_check_branch
          %9117 = sbr.rel (%p9115) target = $region116
        $region115: #{acnn_bilstm_forward.1} parent=95 // pred_region
          %9119 = dma.done [#allocation5], 32
        $region116: #{acnn_bilstm_forward.1} parent=95 // pred_fallthru
          _
      $region96: #{acnn_bilstm_forward.1} parent=5 // pred_fallthru
        _
      %p9120 = scmp.le.s32.totalorder 2, %s26
      // Predicated region
      $region117: #{acnn_bilstm_forward.1} parent=5 // pred_check
        %p9121 = pneg %p9120
      $region118: #{acnn_bilstm_forward.1} parent=5 // pred_check_branch
        %9123 = sbr.rel (%p9121) target = $region120
      $region119: #{acnn_bilstm_forward.1} parent=5 // pred_region
        %s9124 = ssub.s32 %s26, 2
      $region120: #{acnn_bilstm_forward.1} parent=5 // pred_fallthru
        _
    $region6: #{acnn_bilstm_forward.1} parent=1 // loop_footer
      %s30 = sadd.s32 1, %s26
    $region7: #{acnn_bilstm_forward.1} parent=1 // loop_footer_branch
      %25 = sbr.rel target = $region3
    $region8: #{acnn_bilstm_forward.1} parent=1 // loop_exit
      _
    %9125 = vsyncpa [#allocation5], 1
    %s9126 = scalar_lea.sflag [#allocation5], 1
    %9127 = vsyncpa %s9126, 1

</llo_original>
